<compile_context>
chip_gen: v6e
topology: v6e:2x2x1
jax: 0.10.0
libtpu: 0.0.40
codegen_flags: <defaults>
</compile_context>

<pallas_src>
import math

import jax
import jax.numpy as jnp
from jax.experimental import pallas as pl
from jax.experimental.pallas import tpu as pltpu

_VMEM_LIMIT = 32 * 1024 * 1024   # ~8.5 MB actually live; leave headroom on v7x (64 MiB)

# ---------------------------------------------------------------------------
# in-kernel math helpers
# ---------------------------------------------------------------------------

# XLA's f32 rational approximation of erf (same one TPU/XLA uses for lax.erf).
_ERF_ALPHA = (2.2905065861350646e-04, 3.4082910107109506e-03,
              5.0955695062380861e-02, 1.8520832239976145e-01,
              1.1283791435190840e+00)
_ERF_BETA = (-1.1791602954361697e-07, 2.3547966471313185e-05,
             1.0179625278914885e-03, 1.4070470171167667e-02,
             1.1098505178285362e-01, 4.9746925110067538e-01, 1.0)
_ERF_CLAMP = 3.832506856900711  # erfinv(1 - 2^-23)


def _erf(x):
    x = jnp.clip(x, -_ERF_CLAMP, _ERF_CLAMP)
    x2 = x * x
    p = jnp.full_like(x2, _ERF_ALPHA[0])
    for c in _ERF_ALPHA[1:]:
        p = p * x2 + c
    q = jnp.full_like(x2, _ERF_BETA[0])
    for c in _ERF_BETA[1:]:
        q = q * x2 + c
    # Exact divide here (per review); approx reciprocal is used only for the
    # softmax denominator where its error is a uniform per-row scale.
    return x * p / q


def _gelu(x):
    # x * 0.5 * (1 + erf(x / sqrt(2)))   (exact-erf GELU, as in the PyTorch module)
    return x * 0.5 * (1.0 + _erf(x * (1.0 / math.sqrt(2.0))))


def _layer_norm(x, g, b, eps=1e-12):
    u = jnp.mean(x, axis=-1, keepdims=True)
    d = x - u
    s = jnp.mean(d * d, axis=-1, keepdims=True)
    return g * (d * jax.lax.rsqrt(s + eps)) + b


# ---------------------------------------------------------------------------
# fused kernel: grid=(I // inter_tile,), "arbitrary" (o accumulation over I)
# ---------------------------------------------------------------------------

def contbert_kernel(text_ref, know_ref, wg_t_ref, wg_k_ref, bg_ref,
                    wso_ref, bso_ref, ln1_g_ref, ln1_b_ref,
                    wi_ref, bi_ref,
                    wo_ref, bo_ref, ln2_g_ref, ln2_b_ref,
                    wc_ref, bc_ref,
                    out_ref,
                    h_ref, o_acc_ref):
    bf16 = jnp.bfloat16
    k = pl.program_id(0)

    # ---- step 0 only: cross-attention + gated pooling + BertSelfOutput -----
    @pl.when(k == 0)
    def _phase1():
        text = text_ref[...]   # (B, St, H) f32
        know = know_ref[...]   # (B, Sk, H) f32

        # softmax(text @ know^T) @ know
        # NOTE: kept in f32; at production BERT lengths cast text/know/attn to
        # bf16 for a 2-3x MXU speedup (review item) — irrelevant at St=Sk=8.
        scores = jnp.einsum("bqd,bkd->bqk", text, know,
                            preferred_element_type=jnp.float32)        # (B,St,Sk)
        scores = scores - jnp.max(scores, axis=-1, keepdims=True)
        p = jnp.exp(scores)
        attn = p * pl.reciprocal(jnp.sum(p, axis=-1, keepdims=True), approx=True)
        know_text = jnp.einsum("bqk,bkd->bqd", attn, know,
                               preferred_element_type=jnp.float32)     # (B,St,H)

        # gate: alpha = sigmoid([text, mean(know)] @ Wg + bg)   (N=1 matmul done
        # as a VPU multiply + lane reduce; keeps the MXU free)
        know_mean = jnp.mean(know, axis=1, keepdims=True)               # (B,1,H)
        g_text = jnp.sum(text * wg_t_ref[...], axis=-1, keepdims=True)      # (B,St,1)
        g_know = jnp.sum(know_mean * wg_k_ref[...], axis=-1, keepdims=True) # (B,1,1)
        alpha = jax.nn.sigmoid(g_text + g_know + bg_ref[0, 0])          # (B,St,1)

        pooled_text = jnp.sum(alpha * text, axis=1)                     # (B,H)
        pooled_know = jnp.sum((1.0 - alpha) * know_text, axis=1)        # (B,H)

        # BertSelfOutput: dense(768->768) + dropout(id) + add & LayerNorm
        h = jnp.dot(pooled_know.astype(bf16), wso_ref[...],
                    preferred_element_type=jnp.float32) + bso_ref[...]
        h_ref[...] = _layer_norm(h + pooled_text, ln1_g_ref[...], ln1_b_ref[...])
        o_acc_ref[...] = jnp.zeros_like(o_acc_ref)
        out_ref[...] = jnp.zeros_like(out_ref)

    # ---- every step: one streamed I-tile of Intermediate + Output dense ----
    inter = jnp.dot(h_ref[...].astype(bf16), wi_ref[...],
                    preferred_element_type=jnp.float32) + bi_ref[...]   # (B, TI)
    inter = _gelu(inter)
    o_acc_ref[...] += jnp.dot(inter.astype(bf16), wo_ref[...],
                              preferred_element_type=jnp.float32)       # (B, H)

    # ---- last step: BertOutput add & LN + classifier ------------------------
    @pl.when(k == pl.num_programs(0) - 1)
    def _finalize():
        o = _layer_norm(o_acc_ref[...] + bo_ref[...] + h_ref[...],
                        ln2_g_ref[...], ln2_b_ref[...])
        out_ref[...] = jnp.dot(o, wc_ref[...],
                               preferred_element_type=jnp.float32) + bc_ref[...]


# ---------------------------------------------------------------------------
# wrapper
# ---------------------------------------------------------------------------

def contbert_head(text_info, know_info, params, *, inter_tile=768, lane_pad=128):
    B, St, H = text_info.shape
    _, Sk, _ = know_info.shape
    I = params["wi"].shape[1]
    num_labels = params["wc"].shape[1]
    assert I % inter_tile == 0
    kt = I // inter_tile

    bf16 = jnp.bfloat16
    f32 = jnp.float32
    # lane-pad the tiny classifier so the final store is a full-lane store
    wc_pad = jnp.zeros((H, lane_pad), f32).at[:, :num_labels].set(params["wc"])
    bc_pad = jnp.zeros((1, lane_pad), f32).at[:, :num_labels].set(params["bc"])

    const2 = lambda k: (0, 0)
    fused = pl.pallas_call(
        contbert_kernel,
        out_shape=jax.ShapeDtypeStruct((B, lane_pad), f32),
        grid_spec=pltpu.PrefetchScalarGridSpec(
            num_scalar_prefetch=0,
            grid=(kt,),
            in_specs=[
                pl.BlockSpec((B, St, H), lambda k: (0, 0, 0)),   # text_info
                pl.BlockSpec((B, Sk, H), lambda k: (0, 0, 0)),   # know_info
                pl.BlockSpec((1, H), const2),                    # wg_t
                pl.BlockSpec((1, H), const2),                    # wg_k
                pl.BlockSpec((1, 1), const2),                    # bg
                pl.BlockSpec((H, H), const2),                    # wso (bf16)
                pl.BlockSpec((1, H), const2),                    # bso
                pl.BlockSpec((1, H), const2),                    # ln1_g
                pl.BlockSpec((1, H), const2),                    # ln1_b
                pl.BlockSpec((H, inter_tile), lambda k: (0, k)), # wi tile (bf16, streamed)
                pl.BlockSpec((1, inter_tile), lambda k: (0, k)), # bi tile
                pl.BlockSpec((inter_tile, H), lambda k: (k, 0)), # wo tile (bf16, streamed)
                pl.BlockSpec((1, H), const2),                    # bo
                pl.BlockSpec((1, H), const2),                    # ln2_g
                pl.BlockSpec((1, H), const2),                    # ln2_b
                pl.BlockSpec((H, lane_pad), const2),             # wc (padded)
                pl.BlockSpec((1, lane_pad), const2),             # bc (padded)
            ],
            out_specs=pl.BlockSpec((B, lane_pad), const2),
            scratch_shapes=[pltpu.VMEM((B, H), f32),             # h (post LN1)
                            pltpu.VMEM((B, H), f32)]),           # o accumulator
        compiler_params=pltpu.CompilerParams(
            dimension_semantics=("arbitrary",),                  # I-axis is a reduction
            vmem_limit_bytes=_VMEM_LIMIT),
    )
    logits_pad = fused(
        text_info, know_info, params["wg_t"], params["wg_k"], params["bg"],
        params["wso"].astype(bf16), params["bso"], params["ln1_g"], params["ln1_b"],
        params["wi"].astype(bf16), params["bi"],
        params["wo"].astype(bf16), params["bo"], params["ln2_g"], params["ln2_b"],
        wc_pad, bc_pad)

    # match the PyTorch module's logits shape (B, 1, num_labels)
    return logits_pad[:, :num_labels][:, None, :]


# ---------------------------------------------------------------------------
# pure-JAX reference (for a sanity check)
# ---------------------------------------------------------------------------

def contbert_head_ref(text, know, p):
    attn = jax.nn.softmax(jnp.einsum("bqd,bkd->bqk", text, know), axis=-1)
    know_text = jnp.einsum("bqk,bkd->bqd", attn, know)
    know_mean = jnp.mean(know, axis=1, keepdims=True)              # (B, 1, H)
    alpha = jax.nn.sigmoid(text @ p["wg_t"].T + know_mean @ p["wg_k"].T
                           + p["bg"][0, 0])                        # (B, St, 1)
    pooled_text = jnp.matmul(jnp.swapaxes(alpha, 1, 2), text)      # (B, 1, H)
    pooled_know = jnp.matmul(jnp.swapaxes(1.0 - alpha, 1, 2), know_text)

    def ln(x, g, b, eps=1e-12):
        u = jnp.mean(x, axis=-1, keepdims=True)
        s = jnp.mean((x - u) ** 2, axis=-1, keepdims=True)
        return g * ((x - u) / jnp.sqrt(s + eps)) + b

    h = pooled_know @ p["wso"] + p["bso"]
    h = ln(h + pooled_text, p["ln1_g"], p["ln1_b"])
    inter = jax.nn.gelu(h @ p["wi"] + p["bi"], approximate=False)
    o = inter @ p["wo"] + p["bo"]
    o = ln(o + h, p["ln2_g"], p["ln2_b"])
    return o @ p["wc"] + p["bc"]


# ---------------------------------------------------------------------------
# deterministic parameter / input construction and smoke test
# ---------------------------------------------------------------------------

def make_params(key, H=768, I=3072, num_labels=2):
    ks = jax.random.split(key, 6)
    std = 0.02
    f32 = jnp.float32
    return {
        # W_gate: Linear(2H -> 1), split into text / know-mean halves, lane-dense (1, H)
        "wg_t": jax.random.normal(ks[0], (1, H), f32) * std,
        "wg_k": jax.random.normal(ks[1], (1, H), f32) * std,
        "bg":   jnp.zeros((1, 1), f32),
        # BertSelfOutput: Linear(H -> H) + LayerNorm(H)   (weights stored (in, out))
        "wso":  jax.random.normal(ks[2], (H, H), f32) * std,
        "bso":  jnp.zeros((1, H), f32),
        "ln1_g": jnp.ones((1, H), f32),
        "ln1_b": jnp.zeros((1, H), f32),
        # BertIntermediate: Linear(H -> I)
        "wi":   jax.random.normal(ks[3], (H, I), f32) * std,
        "bi":   jnp.zeros((1, I), f32),
        # BertOutput: Linear(I -> H) + LayerNorm(H)
        "wo":   jax.random.normal(ks[4], (I, H), f32) * std,
        "bo":   jnp.zeros((1, H), f32),
        "ln2_g": jnp.ones((1, H), f32),
        "ln2_b": jnp.zeros((1, H), f32),
        # classifier: Linear(H -> 2)
        "wc":   jax.random.normal(ks[5], (H, num_labels), f32) * std,
        "bc":   jnp.zeros((1, num_labels), f32),
    }


if __name__ == "__main__":
    B, St, Sk, H, I = 2, 8, 8, 768, 3072   # hidden sizes are fixed by the module

    key = jax.random.PRNGKey(0)
    k_text, k_know, k_params = jax.random.split(key, 3)

    # Stand-ins for the BERT encoder outputs (hidden states are ~unit-scale
    # after the encoders' final LayerNorm).
    text_info = jax.random.normal(k_text, (B, St, H), jnp.float32)
    know_info = jax.random.normal(k_know, (B, Sk, H), jnp.float32)
    params = make_params(k_params, H=H, I=I, num_labels=2)

    logits = contbert_head(text_info, know_info, params)
    logits = jax.block_until_ready(logits)

    assert logits.shape == (B, 1, 2), logits.shape

    ref = contbert_head_ref(text_info, know_info, params)
    # bf16 weight streaming in the FFN stage -> slightly looser tolerance than pure f32.
    assert jnp.allclose(logits, ref, atol=2e-2, rtol=2e-2), (
        "mismatch vs reference", float(jnp.max(jnp.abs(logits - ref))))

    print("KERNEL_OK")
</pallas_src>

<mosaic_0001>
module attributes {stable_mosaic.version = 11 : i64} {
  func.func @contbert_kernel(%arg0: i32, %arg1: memref<2x8x768xf32, #tpu.memory_space<vmem>>, %arg2: memref<2x8x768xf32, #tpu.memory_space<vmem>>, %arg3: memref<1x768xf32, #tpu.memory_space<vmem>>, %arg4: memref<1x768xf32, #tpu.memory_space<vmem>>, %arg5: memref<1x1xf32, #tpu.memory_space<vmem>>, %arg6: memref<768x768xbf16, #tpu.memory_space<vmem>>, %arg7: memref<1x768xf32, #tpu.memory_space<vmem>>, %arg8: memref<1x768xf32, #tpu.memory_space<vmem>>, %arg9: memref<1x768xf32, #tpu.memory_space<vmem>>, %arg10: memref<768x768xbf16, #tpu.memory_space<vmem>>, %arg11: memref<1x768xf32, #tpu.memory_space<vmem>>, %arg12: memref<768x768xbf16, #tpu.memory_space<vmem>>, %arg13: memref<1x768xf32, #tpu.memory_space<vmem>>, %arg14: memref<1x768xf32, #tpu.memory_space<vmem>>, %arg15: memref<1x768xf32, #tpu.memory_space<vmem>>, %arg16: memref<768x128xf32, #tpu.memory_space<vmem>>, %arg17: memref<1x128xf32, #tpu.memory_space<vmem>>, %arg18: memref<2x128xf32, #tpu.memory_space<vmem>>, %arg19: memref<2x768xf32, #tpu.memory_space<vmem>>, %arg20: memref<2x768xf32, #tpu.memory_space<vmem>>) attributes {dimension_semantics = [#tpu.dimension_semantics<arbitrary>], iteration_bounds = array<i64: 4>, scalar_prefetch = 0 : i64, scratch_operands = 2 : i64, tpu.core_type = #tpu.core_type<tc>, window_params = [{pipeline_mode = #tpu.pipeline_mode<synchronous>, transform_indices = @transform_0, window_bounds = array<i64: 2, 8, 768>}, {pipeline_mode = #tpu.pipeline_mode<synchronous>, transform_indices = @transform_1, window_bounds = array<i64: 2, 8, 768>}, {pipeline_mode = #tpu.pipeline_mode<synchronous>, transform_indices = @transform_2, window_bounds = array<i64: 1, 768>}, {pipeline_mode = #tpu.pipeline_mode<synchronous>, transform_indices = @transform_3, window_bounds = array<i64: 1, 768>}, {pipeline_mode = #tpu.pipeline_mode<synchronous>, transform_indices = @transform_4, window_bounds = array<i64: 1, 1>}, {pipeline_mode = #tpu.pipeline_mode<synchronous>, transform_indices = @transform_5, window_bounds = array<i64: 768, 768>}, {pipeline_mode = #tpu.pipeline_mode<synchronous>, transform_indices = @transform_6, window_bounds = array<i64: 1, 768>}, {pipeline_mode = #tpu.pipeline_mode<synchronous>, transform_indices = @transform_7, window_bounds = array<i64: 1, 768>}, {pipeline_mode = #tpu.pipeline_mode<synchronous>, transform_indices = @transform_8, window_bounds = array<i64: 1, 768>}, {transform_indices = @transform_9, window_bounds = array<i64: 768, 768>}, {transform_indices = @transform_10, window_bounds = array<i64: 1, 768>}, {transform_indices = @transform_11, window_bounds = array<i64: 768, 768>}, {pipeline_mode = #tpu.pipeline_mode<synchronous>, transform_indices = @transform_12, window_bounds = array<i64: 1, 768>}, {pipeline_mode = #tpu.pipeline_mode<synchronous>, transform_indices = @transform_13, window_bounds = array<i64: 1, 768>}, {pipeline_mode = #tpu.pipeline_mode<synchronous>, transform_indices = @transform_14, window_bounds = array<i64: 1, 768>}, {pipeline_mode = #tpu.pipeline_mode<synchronous>, transform_indices = @transform_15, window_bounds = array<i64: 768, 128>}, {pipeline_mode = #tpu.pipeline_mode<synchronous>, transform_indices = @transform_16, window_bounds = array<i64: 1, 128>}, {pipeline_mode = #tpu.pipeline_mode<synchronous>, transform_indices = @transform_17, window_bounds = array<i64: 2, 128>}]} {
    %c0_i32 = arith.constant 0 : i32
    %0 = arith.cmpi eq, %arg0, %c0_i32 : i32
    %1 = arith.extui %0 : i1 to i32
    %c0_i32_0 = arith.constant 0 : i32
    %2 = arith.cmpi ne, %1, %c0_i32_0 : i32
    scf.if %2 {
      %c0_31 = arith.constant 0 : index
      %c0_32 = arith.constant 0 : index
      %c0_33 = arith.constant 0 : index
      %65 = vector.load %arg1[%c0_31, %c0_32, %c0_33] : memref<2x8x768xf32, #tpu.memory_space<vmem>>, vector<2x8x768xf32>
      %c0_34 = arith.constant 0 : index
      %c0_35 = arith.constant 0 : index
      %c0_36 = arith.constant 0 : index
      %66 = vector.load %arg2[%c0_34, %c0_35, %c0_36] : memref<2x8x768xf32, #tpu.memory_space<vmem>>, vector<2x8x768xf32>
      "tpu.trace_start"() <{level = 10 : i32, message = "bqd,bkd->bqk"}> : () -> ()
      %cst_37 = arith.constant dense<0.000000e+00> : vector<2x8x8xf32>
      %67 = tpu.matmul %65, %66, %cst_37 {dimension_numbers = #tpu.dot_dimension_numbers<[2], [2], [1], [1], [0, 0, 0, 1, 1, 1], [0], [0]>} : vector<2x8x768xf32>, vector<2x8x768xf32>, vector<2x8x8xf32> -> vector<2x8x8xf32>
      "tpu.trace_stop"() : () -> ()
      %cst_38 = arith.constant dense<0xFF800000> : vector<2x8xf32>
      %68 = vector.multi_reduction <maximumf>, %67, %cst_38 [2] : vector<2x8x8xf32> to vector<2x8xf32>
      %69 = vector.shape_cast %68 : vector<2x8xf32> to vector<2x8x1xf32>
      %70 = vector.broadcast %69 : vector<2x8x1xf32> to vector<2x8x8xf32>
      %71 = arith.subf %67, %70 : vector<2x8x8xf32>
      %72 = math.exp %71 : vector<2x8x8xf32>
      %cst_39 = arith.constant dense<0.000000e+00> : vector<2x8xf32>
      %73 = vector.multi_reduction <add>, %72, %cst_39 [2] : vector<2x8x8xf32> to vector<2x8xf32>
      %74 = vector.shape_cast %73 : vector<2x8xf32> to vector<2x8x1xf32>
      %75 = tpu.reciprocal %74 {approx = true} : vector<2x8x1xf32> -> vector<2x8x1xf32>
      %76 = vector.broadcast %75 : vector<2x8x1xf32> to vector<2x8x8xf32>
      %77 = arith.mulf %72, %76 : vector<2x8x8xf32>
      "tpu.trace_start"() <{level = 10 : i32, message = "bqk,bkd->bqd"}> : () -> ()
      %cst_40 = arith.constant dense<0.000000e+00> : vector<2x8x768xf32>
      %78 = tpu.matmul %77, %66, %cst_40 {dimension_numbers = #tpu.dot_dimension_numbers<[2], [1], [1], [2], [0, 0, 0, 1, 1, 2], [0], [0]>} : vector<2x8x8xf32>, vector<2x8x768xf32>, vector<2x8x768xf32> -> vector<2x8x768xf32>
      "tpu.trace_stop"() : () -> ()
      %cst_41 = arith.constant dense<0.000000e+00> : vector<2x768xf32>
      %79 = vector.multi_reduction <add>, %66, %cst_41 [1] : vector<2x8x768xf32> to vector<2x768xf32>
      %80 = vector.shape_cast %79 : vector<2x768xf32> to vector<2x1x768xf32>
      %cst_42 = arith.constant 8.000000e+00 : f32
      %81 = vector.broadcast %cst_42 : f32 to vector<2x1x768xf32>
      %82 = arith.divf %80, %81 : vector<2x1x768xf32>
      %c0_43 = arith.constant 0 : index
      %c0_44 = arith.constant 0 : index
      %83 = vector.load %arg3[%c0_43, %c0_44] : memref<1x768xf32, #tpu.memory_space<vmem>>, vector<1x768xf32>
      %84 = vector.shape_cast %83 : vector<1x768xf32> to vector<1x1x768xf32>
      %85 = vector.broadcast %84 : vector<1x1x768xf32> to vector<2x8x768xf32>
      %86 = arith.mulf %65, %85 : vector<2x8x768xf32>
      %cst_45 = arith.constant dense<0.000000e+00> : vector<2x8xf32>
      %87 = vector.multi_reduction <add>, %86, %cst_45 [2] : vector<2x8x768xf32> to vector<2x8xf32>
      %88 = vector.shape_cast %87 : vector<2x8xf32> to vector<2x8x1xf32>
      %c0_46 = arith.constant 0 : index
      %c0_47 = arith.constant 0 : index
      %89 = vector.load %arg4[%c0_46, %c0_47] : memref<1x768xf32, #tpu.memory_space<vmem>>, vector<1x768xf32>
      %90 = vector.shape_cast %89 : vector<1x768xf32> to vector<1x1x768xf32>
      %91 = vector.broadcast %90 : vector<1x1x768xf32> to vector<2x1x768xf32>
      %92 = arith.mulf %82, %91 : vector<2x1x768xf32>
      %cst_48 = arith.constant dense<0.000000e+00> : vector<2x1xf32>
      %93 = vector.multi_reduction <add>, %92, %cst_48 [2] : vector<2x1x768xf32> to vector<2x1xf32>
      %94 = vector.shape_cast %93 : vector<2x1xf32> to vector<2x1x1xf32>
      %95 = vector.broadcast %94 : vector<2x1x1xf32> to vector<2x8x1xf32>
      %96 = arith.addf %88, %95 : vector<2x8x1xf32>
      %c0_49 = arith.constant 0 : index
      %c0_50 = arith.constant 0 : index
      %97 = vector.load %arg5[%c0_49, %c0_50] : memref<1x1xf32, #tpu.memory_space<vmem>>, vector<1x1xf32>
      %98 = vector.extract %97[0, 0] : f32 from vector<1x1xf32>
      %99 = vector.broadcast %98 : f32 to vector<2x8x1xf32>
      %100 = arith.addf %96, %99 : vector<2x8x1xf32>
      %101 = arith.negf %100 : vector<2x8x1xf32>
      %102 = math.exp %101 : vector<2x8x1xf32>
      %cst_51 = arith.constant 1.000000e+00 : f32
      %103 = vector.broadcast %cst_51 : f32 to vector<2x8x1xf32>
      %104 = arith.addf %103, %102 : vector<2x8x1xf32>
      %105 = arith.divf %103, %104 : vector<2x8x1xf32>
      %106 = vector.broadcast %105 : vector<2x8x1xf32> to vector<2x8x768xf32>
      %107 = arith.mulf %106, %65 : vector<2x8x768xf32>
      %cst_52 = arith.constant dense<0.000000e+00> : vector<2x768xf32>
      %108 = vector.multi_reduction <add>, %107, %cst_52 [1] : vector<2x8x768xf32> to vector<2x768xf32>
      %cst_53 = arith.constant 1.000000e+00 : f32
      %109 = vector.broadcast %cst_53 : f32 to vector<2x8x1xf32>
      %110 = arith.subf %109, %105 : vector<2x8x1xf32>
      %111 = vector.broadcast %110 : vector<2x8x1xf32> to vector<2x8x768xf32>
      %112 = arith.mulf %111, %78 : vector<2x8x768xf32>
      %cst_54 = arith.constant dense<0.000000e+00> : vector<2x768xf32>
      %113 = vector.multi_reduction <add>, %112, %cst_54 [1] : vector<2x8x768xf32> to vector<2x768xf32>
      %114 = arith.truncf %113 : vector<2x768xf32> to vector<2x768xbf16>
      %c0_55 = arith.constant 0 : index
      %c0_56 = arith.constant 0 : index
      %115 = vector.load %arg6[%c0_55, %c0_56] : memref<768x768xbf16, #tpu.memory_space<vmem>>, vector<768x768xbf16>
      %cst_57 = arith.constant dense<0.000000e+00> : vector<2x768xf32>
      %116 = tpu.matmul %114, %115, %cst_57 {dimension_numbers = #tpu.dot_dimension_numbers<[1], [0], [0], [1], [0, 0, 1, 1], [], []>} : vector<2x768xbf16>, vector<768x768xbf16>, vector<2x768xf32> -> vector<2x768xf32>
      %c0_58 = arith.constant 0 : index
      %c0_59 = arith.constant 0 : index
      %117 = vector.load %arg7[%c0_58, %c0_59] : memref<1x768xf32, #tpu.memory_space<vmem>>, vector<1x768xf32>
      %118 = vector.broadcast %117 : vector<1x768xf32> to vector<2x768xf32>
      %119 = arith.addf %116, %118 : vector<2x768xf32>
      %120 = arith.addf %119, %108 : vector<2x768xf32>
      %c0_60 = arith.constant 0 : index
      %c0_61 = arith.constant 0 : index
      %121 = vector.load %arg8[%c0_60, %c0_61] : memref<1x768xf32, #tpu.memory_space<vmem>>, vector<1x768xf32>
      %c0_62 = arith.constant 0 : index
      %c0_63 = arith.constant 0 : index
      %122 = vector.load %arg9[%c0_62, %c0_63] : memref<1x768xf32, #tpu.memory_space<vmem>>, vector<1x768xf32>
      %cst_64 = arith.constant dense<0.000000e+00> : vector<2xf32>
      %123 = vector.multi_reduction <add>, %120, %cst_64 [1] : vector<2x768xf32> to vector<2xf32>
      %124 = vector.shape_cast %123 : vector<2xf32> to vector<2x1xf32>
      %cst_65 = arith.constant 7.680000e+02 : f32
      %125 = vector.broadcast %cst_65 : f32 to vector<2x1xf32>
      %126 = arith.divf %124, %125 : vector<2x1xf32>
      %127 = vector.broadcast %126 : vector<2x1xf32> to vector<2x768xf32>
      %128 = arith.subf %120, %127 : vector<2x768xf32>
      %129 = arith.mulf %128, %128 : vector<2x768xf32>
      %cst_66 = arith.constant dense<0.000000e+00> : vector<2xf32>
      %130 = vector.multi_reduction <add>, %129, %cst_66 [1] : vector<2x768xf32> to vector<2xf32>
      %131 = vector.shape_cast %130 : vector<2xf32> to vector<2x1xf32>
      %cst_67 = arith.constant 7.680000e+02 : f32
      %132 = vector.broadcast %cst_67 : f32 to vector<2x1xf32>
      %133 = arith.divf %131, %132 : vector<2x1xf32>
      %cst_68 = arith.constant 9.99999996E-13 : f32
      %134 = vector.broadcast %cst_68 : f32 to vector<2x1xf32>
      %135 = arith.addf %133, %134 : vector<2x1xf32>
      %136 = math.rsqrt %135 : vector<2x1xf32>
      %137 = vector.broadcast %136 : vector<2x1xf32> to vector<2x768xf32>
      %138 = arith.mulf %128, %137 : vector<2x768xf32>
      %139 = vector.broadcast %121 : vector<1x768xf32> to vector<2x768xf32>
      %140 = arith.mulf %139, %138 : vector<2x768xf32>
      %141 = vector.broadcast %122 : vector<1x768xf32> to vector<2x768xf32>
      %142 = arith.addf %140, %141 : vector<2x768xf32>
      %c0_69 = arith.constant 0 : index
      %c0_70 = arith.constant 0 : index
      %143 = vector.load %arg19[%c0_69, %c0_70] : memref<2x768xf32, #tpu.memory_space<vmem>>, vector<2x768xf32>
      tpu.vector_store %arg19[%c0_69, %c0_70], %142 {strides = array<i32>} : memref<2x768xf32, #tpu.memory_space<vmem>>, vector<2x768xf32>,
      %cst_71 = arith.constant 0.000000e+00 : f32
      %144 = vector.broadcast %cst_71 : f32 to vector<2x768xf32>
      %c0_72 = arith.constant 0 : index
      %c0_73 = arith.constant 0 : index
      %145 = vector.load %arg20[%c0_72, %c0_73] : memref<2x768xf32, #tpu.memory_space<vmem>>, vector<2x768xf32>
      tpu.vector_store %arg20[%c0_72, %c0_73], %144 {strides = array<i32>} : memref<2x768xf32, #tpu.memory_space<vmem>>, vector<2x768xf32>,
      %cst_74 = arith.constant 0.000000e+00 : f32
      %146 = vector.broadcast %cst_74 : f32 to vector<2x128xf32>
      %c0_75 = arith.constant 0 : index
      %c0_76 = arith.constant 0 : index
      %147 = vector.load %arg18[%c0_75, %c0_76] : memref<2x128xf32, #tpu.memory_space<vmem>>, vector<2x128xf32>
      tpu.vector_store %arg18[%c0_75, %c0_76], %146 {strides = array<i32>} : memref<2x128xf32, #tpu.memory_space<vmem>>, vector<2x128xf32>,
    } else {
    }
    %c0 = arith.constant 0 : index
    %c0_1 = arith.constant 0 : index
    %3 = vector.load %arg19[%c0, %c0_1] : memref<2x768xf32, #tpu.memory_space<vmem>>, vector<2x768xf32>
    %4 = arith.truncf %3 : vector<2x768xf32> to vector<2x768xbf16>
    %c0_2 = arith.constant 0 : index
    %c0_3 = arith.constant 0 : index
    %5 = vector.load %arg10[%c0_2, %c0_3] : memref<768x768xbf16, #tpu.memory_space<vmem>>, vector<768x768xbf16>
    %cst = arith.constant dense<0.000000e+00> : vector<2x768xf32>
    %6 = tpu.matmul %4, %5, %cst {dimension_numbers = #tpu.dot_dimension_numbers<[1], [0], [0], [1], [0, 0, 1, 1], [], []>} : vector<2x768xbf16>, vector<768x768xbf16>, vector<2x768xf32> -> vector<2x768xf32>
    %c0_4 = arith.constant 0 : index
    %c0_5 = arith.constant 0 : index
    %7 = vector.load %arg11[%c0_4, %c0_5] : memref<1x768xf32, #tpu.memory_space<vmem>>, vector<1x768xf32>
    %8 = vector.broadcast %7 : vector<1x768xf32> to vector<2x768xf32>
    %9 = arith.addf %6, %8 : vector<2x768xf32>
    %cst_6 = arith.constant 5.000000e-01 : f32
    %10 = vector.broadcast %cst_6 : f32 to vector<2x768xf32>
    %11 = arith.mulf %9, %10 : vector<2x768xf32>
    %cst_7 = arith.constant 0.707106769 : f32
    %12 = vector.broadcast %cst_7 : f32 to vector<2x768xf32>
    %13 = arith.mulf %9, %12 : vector<2x768xf32>
    %cst_8 = arith.constant -3.8325069 : f32
    %cst_9 = arith.constant 3.8325069 : f32
    %14 = vector.broadcast %cst_8 : f32 to vector<2x768xf32>
    %15 = arith.maximumf %14, %13 : vector<2x768xf32>
    %16 = vector.broadcast %cst_9 : f32 to vector<2x768xf32>
    %17 = arith.minimumf %16, %15 : vector<2x768xf32>
    %18 = arith.mulf %17, %17 : vector<2x768xf32>
    %cst_10 = arith.constant 2.29050653E-4 : f32
    %19 = vector.broadcast %cst_10 : f32 to vector<2x768xf32>
    %20 = arith.mulf %19, %18 : vector<2x768xf32>
    %cst_11 = arith.constant 0.00340829091 : f32
    %21 = vector.broadcast %cst_11 : f32 to vector<2x768xf32>
    %22 = arith.addf %20, %21 : vector<2x768xf32>
    %23 = arith.mulf %22, %18 : vector<2x768xf32>
    %cst_12 = arith.constant 0.0509556942 : f32
    %24 = vector.broadcast %cst_12 : f32 to vector<2x768xf32>
    %25 = arith.addf %23, %24 : vector<2x768xf32>
    %26 = arith.mulf %25, %18 : vector<2x768xf32>
    %cst_13 = arith.constant 0.185208321 : f32
    %27 = vector.broadcast %cst_13 : f32 to vector<2x768xf32>
    %28 = arith.addf %26, %27 : vector<2x768xf32>
    %29 = arith.mulf %28, %18 : vector<2x768xf32>
    %cst_14 = arith.constant 1.12837911 : f32
    %30 = vector.broadcast %cst_14 : f32 to vector<2x768xf32>
    %31 = arith.addf %29, %30 : vector<2x768xf32>
    %cst_15 = arith.constant -1.17916031E-7 : f32
    %32 = vector.broadcast %cst_15 : f32 to vector<2x768xf32>
    %33 = arith.mulf %32, %18 : vector<2x768xf32>
    %cst_16 = arith.constant 2.35479656E-5 : f32
    %34 = vector.broadcast %cst_16 : f32 to vector<2x768xf32>
    %35 = arith.addf %33, %34 : vector<2x768xf32>
    %36 = arith.mulf %35, %18 : vector<2x768xf32>
    %cst_17 = arith.constant 0.00101796258 : f32
    %37 = vector.broadcast %cst_17 : f32 to vector<2x768xf32>
    %38 = arith.addf %36, %37 : vector<2x768xf32>
    %39 = arith.mulf %38, %18 : vector<2x768xf32>
    %cst_18 = arith.constant 0.0140704699 : f32
    %40 = vector.broadcast %cst_18 : f32 to vector<2x768xf32>
    %41 = arith.addf %39, %40 : vector<2x768xf32>
    %42 = arith.mulf %41, %18 : vector<2x768xf32>
    %cst_19 = arith.constant 0.110985048 : f32
    %43 = vector.broadcast %cst_19 : f32 to vector<2x768xf32>
    %44 = arith.addf %42, %43 : vector<2x768xf32>
    %45 = arith.mulf %44, %18 : vector<2x768xf32>
    %cst_20 = arith.constant 0.497469246 : f32
    %46 = vector.broadcast %cst_20 : f32 to vector<2x768xf32>
    %47 = arith.addf %45, %46 : vector<2x768xf32>
    %48 = arith.mulf %47, %18 : vector<2x768xf32>
    %cst_21 = arith.constant 1.000000e+00 : f32
    %49 = vector.broadcast %cst_21 : f32 to vector<2x768xf32>
    %50 = arith.addf %48, %49 : vector<2x768xf32>
    %51 = arith.mulf %17, %31 : vector<2x768xf32>
    %52 = arith.divf %51, %50 : vector<2x768xf32>
    %cst_22 = arith.constant 1.000000e+00 : f32
    %53 = vector.broadcast %cst_22 : f32 to vector<2x768xf32>
    %54 = arith.addf %53, %52 : vector<2x768xf32>
    %55 = arith.mulf %11, %54 : vector<2x768xf32>
    %c0_23 = arith.constant 0 : index
    %c0_24 = arith.constant 0 : index
    %56 = vector.load %arg20[%c0_23, %c0_24] : memref<2x768xf32, #tpu.memory_space<vmem>>, vector<2x768xf32>
    %57 = arith.truncf %55 : vector<2x768xf32> to vector<2x768xbf16>
    %c0_25 = arith.constant 0 : index
    %c0_26 = arith.constant 0 : index
    %58 = vector.load %arg12[%c0_25, %c0_26] : memref<768x768xbf16, #tpu.memory_space<vmem>>, vector<768x768xbf16>
    %cst_27 = arith.constant dense<0.000000e+00> : vector<2x768xf32>
    %59 = tpu.matmul %57, %58, %cst_27 {dimension_numbers = #tpu.dot_dimension_numbers<[1], [0], [0], [1], [0, 0, 1, 1], [], []>} : vector<2x768xbf16>, vector<768x768xbf16>, vector<2x768xf32> -> vector<2x768xf32>
    %60 = arith.addf %56, %59 : vector<2x768xf32>
    %c0_28 = arith.constant 0 : index
    %c0_29 = arith.constant 0 : index
    %61 = vector.load %arg20[%c0_28, %c0_29] : memref<2x768xf32, #tpu.memory_space<vmem>>, vector<2x768xf32>
    tpu.vector_store %arg20[%c0_28, %c0_29], %60 {strides = array<i32>} : memref<2x768xf32, #tpu.memory_space<vmem>>, vector<2x768xf32>,
    %c3_i32 = arith.constant 3 : i32
    %62 = arith.cmpi eq, %arg0, %c3_i32 : i32
    %63 = arith.extui %62 : i1 to i32
    %c0_i32_30 = arith.constant 0 : i32
    %64 = arith.cmpi ne, %63, %c0_i32_30 : i32
    scf.if %64 {
      %c0_31 = arith.constant 0 : index
      %c0_32 = arith.constant 0 : index
      %65 = vector.load %arg20[%c0_31, %c0_32] : memref<2x768xf32, #tpu.memory_space<vmem>>, vector<2x768xf32>
      %c0_33 = arith.constant 0 : index
      %c0_34 = arith.constant 0 : index
      %66 = vector.load %arg13[%c0_33, %c0_34] : memref<1x768xf32, #tpu.memory_space<vmem>>, vector<1x768xf32>
      %67 = vector.broadcast %66 : vector<1x768xf32> to vector<2x768xf32>
      %68 = arith.addf %65, %67 : vector<2x768xf32>
      %c0_35 = arith.constant 0 : index
      %c0_36 = arith.constant 0 : index
      %69 = vector.load %arg19[%c0_35, %c0_36] : memref<2x768xf32, #tpu.memory_space<vmem>>, vector<2x768xf32>
      %70 = arith.addf %68, %69 : vector<2x768xf32>
      %c0_37 = arith.constant 0 : index
      %c0_38 = arith.constant 0 : index
      %71 = vector.load %arg14[%c0_37, %c0_38] : memref<1x768xf32, #tpu.memory_space<vmem>>, vector<1x768xf32>
      %c0_39 = arith.constant 0 : index
      %c0_40 = arith.constant 0 : index
      %72 = vector.load %arg15[%c0_39, %c0_40] : memref<1x768xf32, #tpu.memory_space<vmem>>, vector<1x768xf32>
      %cst_41 = arith.constant dense<0.000000e+00> : vector<2xf32>
      %73 = vector.multi_reduction <add>, %70, %cst_41 [1] : vector<2x768xf32> to vector<2xf32>
      %74 = vector.shape_cast %73 : vector<2xf32> to vector<2x1xf32>
      %cst_42 = arith.constant 7.680000e+02 : f32
      %75 = vector.broadcast %cst_42 : f32 to vector<2x1xf32>
      %76 = arith.divf %74, %75 : vector<2x1xf32>
      %77 = vector.broadcast %76 : vector<2x1xf32> to vector<2x768xf32>
      %78 = arith.subf %70, %77 : vector<2x768xf32>
      %79 = arith.mulf %78, %78 : vector<2x768xf32>
      %cst_43 = arith.constant dense<0.000000e+00> : vector<2xf32>
      %80 = vector.multi_reduction <add>, %79, %cst_43 [1] : vector<2x768xf32> to vector<2xf32>
      %81 = vector.shape_cast %80 : vector<2xf32> to vector<2x1xf32>
      %cst_44 = arith.constant 7.680000e+02 : f32
      %82 = vector.broadcast %cst_44 : f32 to vector<2x1xf32>
      %83 = arith.divf %81, %82 : vector<2x1xf32>
      %cst_45 = arith.constant 9.99999996E-13 : f32
      %84 = vector.broadcast %cst_45 : f32 to vector<2x1xf32>
      %85 = arith.addf %83, %84 : vector<2x1xf32>
      %86 = math.rsqrt %85 : vector<2x1xf32>
      %87 = vector.broadcast %86 : vector<2x1xf32> to vector<2x768xf32>
      %88 = arith.mulf %78, %87 : vector<2x768xf32>
      %89 = vector.broadcast %71 : vector<1x768xf32> to vector<2x768xf32>
      %90 = arith.mulf %89, %88 : vector<2x768xf32>
      %91 = vector.broadcast %72 : vector<1x768xf32> to vector<2x768xf32>
      %92 = arith.addf %90, %91 : vector<2x768xf32>
      %c0_46 = arith.constant 0 : index
      %c0_47 = arith.constant 0 : index
      %93 = vector.load %arg16[%c0_46, %c0_47] : memref<768x128xf32, #tpu.memory_space<vmem>>, vector<768x128xf32>
      %cst_48 = arith.constant dense<0.000000e+00> : vector<2x128xf32>
      %94 = tpu.matmul %92, %93, %cst_48 {dimension_numbers = #tpu.dot_dimension_numbers<[1], [0], [0], [1], [0, 0, 1, 1], [], []>} : vector<2x768xf32>, vector<768x128xf32>, vector<2x128xf32> -> vector<2x128xf32>
      %c0_49 = arith.constant 0 : index
      %c0_50 = arith.constant 0 : index
      %95 = vector.load %arg17[%c0_49, %c0_50] : memref<1x128xf32, #tpu.memory_space<vmem>>, vector<1x128xf32>
      %96 = vector.broadcast %95 : vector<1x128xf32> to vector<2x128xf32>
      %97 = arith.addf %94, %96 : vector<2x128xf32>
      %c0_51 = arith.constant 0 : index
      %c0_52 = arith.constant 0 : index
      %98 = vector.load %arg18[%c0_51, %c0_52] : memref<2x128xf32, #tpu.memory_space<vmem>>, vector<2x128xf32>
      tpu.vector_store %arg18[%c0_51, %c0_52], %97 {strides = array<i32>} : memref<2x128xf32, #tpu.memory_space<vmem>>, vector<2x128xf32>,
    } else {
    }
    return
  }
  func.func @transform_0(%arg0: i32) -> (i32, i32, i32) {
    %c0_i32 = arith.constant 0 : i32
    %c0_i32_0 = arith.constant 0 : i32
    %c0_i32_1 = arith.constant 0 : i32
    %c0_i32_2 = arith.constant 0 : i32
    return %c0_i32, %c0_i32_0, %c0_i32_1 : i32, i32, i32
  }
  func.func @transform_1(%arg0: i32) -> (i32, i32, i32) {
    %c0_i32 = arith.constant 0 : i32
    %c0_i32_0 = arith.constant 0 : i32
    %c0_i32_1 = arith.constant 0 : i32
    %c0_i32_2 = arith.constant 0 : i32
    return %c0_i32, %c0_i32_0, %c0_i32_1 : i32, i32, i32
  }
  func.func @transform_2(%arg0: i32) -> (i32, i32) {
    %c0_i32 = arith.constant 0 : i32
    %c0_i32_0 = arith.constant 0 : i32
    %c0_i32_1 = arith.constant 0 : i32
    return %c0_i32, %c0_i32_0 : i32, i32
  }
  func.func @transform_3(%arg0: i32) -> (i32, i32) {
    %c0_i32 = arith.constant 0 : i32
    %c0_i32_0 = arith.constant 0 : i32
    %c0_i32_1 = arith.constant 0 : i32
    return %c0_i32, %c0_i32_0 : i32, i32
  }
  func.func @transform_4(%arg0: i32) -> (i32, i32) {
    %c0_i32 = arith.constant 0 : i32
    %c0_i32_0 = arith.constant 0 : i32
    %c0_i32_1 = arith.constant 0 : i32
    return %c0_i32, %c0_i32_0 : i32, i32
  }
  func.func @transform_5(%arg0: i32) -> (i32, i32) {
    %c0_i32 = arith.constant 0 : i32
    %c0_i32_0 = arith.constant 0 : i32
    %c0_i32_1 = arith.constant 0 : i32
    return %c0_i32, %c0_i32_0 : i32, i32
  }
  func.func @transform_6(%arg0: i32) -> (i32, i32) {
    %c0_i32 = arith.constant 0 : i32
    %c0_i32_0 = arith.constant 0 : i32
    %c0_i32_1 = arith.constant 0 : i32
    return %c0_i32, %c0_i32_0 : i32, i32
  }
  func.func @transform_7(%arg0: i32) -> (i32, i32) {
    %c0_i32 = arith.constant 0 : i32
    %c0_i32_0 = arith.constant 0 : i32
    %c0_i32_1 = arith.constant 0 : i32
    return %c0_i32, %c0_i32_0 : i32, i32
  }
  func.func @transform_8(%arg0: i32) -> (i32, i32) {
    %c0_i32 = arith.constant 0 : i32
    %c0_i32_0 = arith.constant 0 : i32
    %c0_i32_1 = arith.constant 0 : i32
    return %c0_i32, %c0_i32_0 : i32, i32
  }
  func.func @transform_9(%arg0: i32) -> (i32, i32) {
    %c0_i32 = arith.constant 0 : i32
    %c0_i32_0 = arith.constant 0 : i32
    return %c0_i32, %arg0 : i32, i32
  }
  func.func @transform_10(%arg0: i32) -> (i32, i32) {
    %c0_i32 = arith.constant 0 : i32
    %c0_i32_0 = arith.constant 0 : i32
    return %c0_i32, %arg0 : i32, i32
  }
  func.func @transform_11(%arg0: i32) -> (i32, i32) {
    %c0_i32 = arith.constant 0 : i32
    %c0_i32_0 = arith.constant 0 : i32
    return %arg0, %c0_i32 : i32, i32
  }
  func.func @transform_12(%arg0: i32) -> (i32, i32) {
    %c0_i32 = arith.constant 0 : i32
    %c0_i32_0 = arith.constant 0 : i32
    %c0_i32_1 = arith.constant 0 : i32
    return %c0_i32, %c0_i32_0 : i32, i32
  }
  func.func @transform_13(%arg0: i32) -> (i32, i32) {
    %c0_i32 = arith.constant 0 : i32
    %c0_i32_0 = arith.constant 0 : i32
    %c0_i32_1 = arith.constant 0 : i32
    return %c0_i32, %c0_i32_0 : i32, i32
  }
  func.func @transform_14(%arg0: i32) -> (i32, i32) {
    %c0_i32 = arith.constant 0 : i32
    %c0_i32_0 = arith.constant 0 : i32
    %c0_i32_1 = arith.constant 0 : i32
    return %c0_i32, %c0_i32_0 : i32, i32
  }
  func.func @transform_15(%arg0: i32) -> (i32, i32) {
    %c0_i32 = arith.constant 0 : i32
    %c0_i32_0 = arith.constant 0 : i32
    %c0_i32_1 = arith.constant 0 : i32
    return %c0_i32, %c0_i32_0 : i32, i32
  }
  func.func @transform_16(%arg0: i32) -> (i32, i32) {
    %c0_i32 = arith.constant 0 : i32
    %c0_i32_0 = arith.constant 0 : i32
    %c0_i32_1 = arith.constant 0 : i32
    return %c0_i32, %c0_i32_0 : i32, i32
  }
  func.func @transform_17(%arg0: i32) -> (i32, i32) {
    %c0_i32 = arith.constant 0 : i32
    %c0_i32_0 = arith.constant 0 : i32
    %c0_i32_1 = arith.constant 0 : i32
    return %c0_i32, %c0_i32_0 : i32, i32
  }
}

</mosaic_0001>

<llo_original>
// kernel: tpu_custom_call.1
$region0: #{tpu_custom_call.1}
  #allocation0 [shape = 'u32[]', space=smem, size = 0x4, offset = 0x4, fixed_abs, tag = 'smem constant byte address 0x4 - core index']
  #allocation1 [shape = 'u32[144,128]{1,0:T(1,128)}', space=vmem, size = 0x12000, scoped, tag = 'internal scratch']
  #allocation2 [shape = 'f32[2,768]{1,0:T(2,128)}', space=vmem, size = 0x1800, scoped, tag = 'scratch operand']
  #allocation3 [shape = 'f32[2,768]{1,0:T(2,128)}', space=vmem, size = 0x1800, scoped, tag = 'scratch operand']
  #allocation4 [shape = 'f32[1,1]{1,0:T(1,128)S(1)}', space=vmem, size = 0x200, scoped, tag = 'scoped memory for tpu_custom_call.1']
  %s0 = inlined_call_operand.hbm [shape: f32[2,8,768], index: 0, kind: input, shape index: {}]
  %s1 = inlined_call_operand.hbm [shape: f32[2,8,768], index: 1, kind: input, shape index: {}]
  %s2 = inlined_call_operand.hbm [shape: f32[1,768], index: 2, kind: input, shape index: {}]
  %s3 = inlined_call_operand.hbm [shape: f32[1,768], index: 3, kind: input, shape index: {}]
  %s4 = inlined_call_operand.<no memory space> [shape: f32[1,1], index: 4, kind: input, shape index: {}]
  %s5 = inlined_call_operand.hbm [shape: bf16[768,768], index: 5, kind: input, shape index: {}]
  %s6 = inlined_call_operand.hbm [shape: f32[1,768], index: 6, kind: input, shape index: {}]
  %s7 = inlined_call_operand.hbm [shape: f32[1,768], index: 7, kind: input, shape index: {}]
  %s8 = inlined_call_operand.hbm [shape: f32[1,768], index: 8, kind: input, shape index: {}]
  %s9 = inlined_call_operand.hbm [shape: bf16[768,3072], index: 9, kind: input, shape index: {}]
  %s10 = inlined_call_operand.hbm [shape: f32[1,3072], index: 10, kind: input, shape index: {}]
  %s11 = inlined_call_operand.hbm [shape: bf16[3072,768], index: 11, kind: input, shape index: {}]
  %s12 = inlined_call_operand.hbm [shape: f32[1,768], index: 12, kind: input, shape index: {}]
  %s13 = inlined_call_operand.hbm [shape: f32[1,768], index: 13, kind: input, shape index: {}]
  %s14 = inlined_call_operand.hbm [shape: f32[1,768], index: 14, kind: input, shape index: {}]
  %s15 = inlined_call_operand.hbm [shape: f32[768,128], index: 15, kind: input, shape index: {}]
  %s16 = inlined_call_operand.hbm [shape: f32[1,128], index: 16, kind: input, shape index: {}]
  %s17 = inlined_call_operand.hbm [shape: f32[2,128], index: 17, kind: output, shape index: {}]
  %s18 = sld [smem:[#allocation0]]
  $region173: #{tpu_custom_call.1} parent=0
    _
  %s20 = ssub.s32 1, %s18
  %s21 = scalar_select 0, %s20, %s18
  %v22 = vstv %s4
  %23 = vst [vmem:[#allocation4] sm:$0x1] %v22
  $region1: #{tpu_custom_call.1} parent=0
    #allocation5 [shape = 'u8[49152]{0}', space=vmem, size = 0xc000, scoped, tag = 'input window, operand 0, single buffered']
    #allocation6 [shape = 's32[2]{0}', space=sflag, size = 0x8, scoped, tag = 'scoped memory for tpu_custom_call.1']
    #allocation7 [shape = 's32[2]{0}', space=sflag, size = 0x8, scoped, tag = 'scoped memory for tpu_custom_call.1']
    #allocation8 [shape = 'u8[49152]{0}', space=vmem, size = 0xc000, scoped, tag = 'input window, operand 1, single buffered']
    #allocation9 [shape = 's32[1]{0}', space=sflag, size = 0x4, scoped, tag = 'scoped memory for tpu_custom_call.1']
    #allocation10 [shape = 'u8[3072]{0}', space=vmem, size = 0xc00, scoped, tag = 'input window, operand 2, single buffered']
    #allocation11 [shape = 'u8[3072]{0}', space=vmem, size = 0xc00, scoped, tag = 'input window, operand 3, single buffered']
    #allocation12 [shape = 's32[1]{0}', space=sflag, size = 0x4, scoped, tag = 'scoped memory for tpu_custom_call.1']
    #allocation13 [shape = 'u8[1179648]{0}', space=vmem, size = 0x120000, scoped, tag = 'input window, operand 5, single buffered']
    #allocation14 [shape = 'u8[3072]{0}', space=vmem, size = 0xc00, scoped, tag = 'input window, operand 6, single buffered']
    #allocation15 [shape = 's32[1]{0}', space=sflag, size = 0x4, scoped, tag = 'scoped memory for tpu_custom_call.1']
    #allocation16 [shape = 'u8[3072]{0}', space=vmem, size = 0xc00, scoped, tag = 'input window, operand 7, single buffered']
    #allocation17 [shape = 'u8[3072]{0}', space=vmem, size = 0xc00, scoped, tag = 'input window, operand 8, single buffered']
    #allocation18 [shape = 's32[1]{0}', space=sflag, size = 0x4, scoped, tag = 'scoped memory for tpu_custom_call.1']
    #allocation19 [shape = 'u8[2359296]{0}', space=vmem, size = 0x240000, scoped, tag = 'input window, operand 9']
    #allocation20 [shape = 'u8[6144]{0}', space=vmem, size = 0x1800, scoped, tag = 'input window, operand 10']
    #allocation21 [shape = 'u8[2359296]{0}', space=vmem, size = 0x240000, scoped, tag = 'input window, operand 11']
    #allocation22 [shape = 'u8[3072]{0}', space=vmem, size = 0xc00, scoped, tag = 'input window, operand 12, single buffered']
    #allocation23 [shape = 'u8[3072]{0}', space=vmem, size = 0xc00, scoped, tag = 'input window, operand 13, single buffered']
    #allocation24 [shape = 'u8[3072]{0}', space=vmem, size = 0xc00, scoped, tag = 'input window, operand 14, single buffered']
    #allocation25 [shape = 'u8[393216]{0}', space=vmem, size = 0x60000, scoped, tag = 'input window, operand 15, single buffered']
    #allocation26 [shape = 'u8[512]{0}', space=vmem, size = 0x400, scoped, tag = 'input window, operand 16, single buffered']
    #allocation27 [shape = 's32[1]{0}', space=sflag, size = 0x4, scoped, tag = 'scoped memory for tpu_custom_call.1']
    #allocation28 [shape = 'u8[1024]{0}', space=vmem, size = 0x400, scoped, tag = 'output window, operand 0, single buffered']
    %24 = vsyncpa [#allocation6], 0
    %25 = vsyncpa [#allocation9], 0
    %26 = vsyncpa [#allocation12], 0
    %27 = vsyncpa [#allocation15], 0
    %28 = vsyncpa [#allocation18], 0
    %29 = vsyncpa [#allocation27], 0
    %30 = vsyncpa [#allocation7], 0
    loop: start=0, step=1, limit=6
    $region2: #{tpu_custom_call.1} parent=1 // loop_pre_header
      _
    $region3: #{tpu_custom_call.1} parent=1 // loop_header
      %s32 = sphi 0, %s36
      %p33 = scmp.ge.s32.totalorder %s32, 6
      %s40 = sphi 0, %s40
      %s42 = sphi 0, %s40
      %s43 = sphi 0, %s42
      %s57 = sphi 0, %s43
      %s61 = sphi 0, %s61
      %s63 = sphi 0, %s61
      %s64 = sphi 0, %s63
      %s78 = sphi 0, %s64
      %s82 = sphi 0, %s82
      %s84 = sphi 0, %s82
      %s85 = sphi 0, %s84
      %s99 = sphi 0, %s85
      %s103 = sphi 0, %s103
      %s105 = sphi 0, %s103
      %s106 = sphi 0, %s105
      %s120 = sphi 0, %s106
      %s124 = sphi 0, %s124
      %s126 = sphi 0, %s124
      %s127 = sphi 0, %s126
      %s141 = sphi 0, %s127
      %s145 = sphi 0, %s145
      %s147 = sphi 0, %s145
      %s148 = sphi 0, %s147
      %s162 = sphi 0, %s148
      %s166 = sphi 0, %s166
      %s168 = sphi 0, %s166
      %s169 = sphi 0, %s168
      %s183 = sphi 0, %s169
      %s187 = sphi 0, %s187
      %s189 = sphi 0, %s187
      %s190 = sphi 0, %s189
      %s204 = sphi 0, %s190
      %s208 = sphi 0, %s208
      %s210 = sphi 0, %s208
      %s211 = sphi 0, %s210
      %s225 = sphi 0, %s211
      %s231 = sphi 0, %s233
      %s234 = sphi 0, %s231
      %s235 = sphi 0, %s234
      %s251 = sphi 0, %s235
      %s257 = sphi 0, %s259
      %s260 = sphi 0, %s257
      %s261 = sphi 0, %s260
      %s277 = sphi 0, %s261
      %s283 = sphi 0, %s285
      %s286 = sphi 0, %s283
      %s287 = sphi 0, %s286
      %s303 = sphi 0, %s287
      %s307 = sphi 0, %s307
      %s309 = sphi 0, %s307
      %s310 = sphi 0, %s309
      %s324 = sphi 0, %s310
      %s328 = sphi 0, %s328
      %s330 = sphi 0, %s328
      %s331 = sphi 0, %s330
      %s345 = sphi 0, %s331
      %s349 = sphi 0, %s349
      %s351 = sphi 0, %s349
      %s352 = sphi 0, %s351
      %s366 = sphi 0, %s352
      %s370 = sphi 0, %s370
      %s372 = sphi 0, %s370
      %s373 = sphi 0, %s372
      %s387 = sphi 0, %s373
      %s391 = sphi 0, %s391
      %s393 = sphi 0, %s391
      %s394 = sphi 0, %s393
      %s408 = sphi 0, %s394
      %s412 = sphi 0, %s412
      %s414 = sphi 0, %s412
      %s415 = sphi 0, %s414
      %s429 = sphi 0, %s415
    $region4: #{tpu_custom_call.1} parent=1 // loop_header_branch
      %35 = sbr.rel (%p33) target = $region8
    $region5: #{tpu_custom_call.1} parent=1 // loop_body
      %s37 = ssub.s32 %s32, 1
      %s38 = ssub.s32 %s32, 2
      %s39 = sadd.s32 %s32, 1
      %s41 = sadd.s32 %s40, 1
      %p44 = scmp.eq.s32.totalorder %s32, 3
      %p45 = scmp.ne.s32.totalorder %s40, %s42
      %p46 = scmp.eq.s32.totalorder %s32, 0
      %p47 = por %p45, %p46
      %p48 = scmp.ne.s32.totalorder %s40, %s42
      %p49 = scmp.eq.s32.totalorder %s37, 3
      %p50 = por %p48, %p49
      %p51 = scmp.ne.s32.totalorder %s42, %s43
      %p52 = scmp.eq.s32.totalorder %s37, 0
      %p53 = por %p51, %p52
      %p54 = scmp.ne.s32.totalorder %s42, %s43
      %p55 = scmp.eq.s32.totalorder %s38, 3
      %p56 = por %p54, %p55
      %p58 = scmp.ne.s32.totalorder %s43, %s57
      %p59 = scmp.eq.s32.totalorder %s38, 0
      %p60 = por %p58, %p59
      %s62 = sadd.s32 %s61, 1
      %p65 = scmp.eq.s32.totalorder %s32, 3
      %p66 = scmp.ne.s32.totalorder %s61, %s63
      %p67 = scmp.eq.s32.totalorder %s32, 0
      %p68 = por %p66, %p67
      %p69 = scmp.ne.s32.totalorder %s61, %s63
      %p70 = scmp.eq.s32.totalorder %s37, 3
      %p71 = por %p69, %p70
      %p72 = scmp.ne.s32.totalorder %s63, %s64
      %p73 = scmp.eq.s32.totalorder %s37, 0
      %p74 = por %p72, %p73
      %p75 = scmp.ne.s32.totalorder %s63, %s64
      %p76 = scmp.eq.s32.totalorder %s38, 3
      %p77 = por %p75, %p76
      %p79 = scmp.ne.s32.totalorder %s64, %s78
      %p80 = scmp.eq.s32.totalorder %s38, 0
      %p81 = por %p79, %p80
      %s83 = sadd.s32 %s82, 1
      %p86 = scmp.eq.s32.totalorder %s32, 3
      %p87 = scmp.ne.s32.totalorder %s82, %s84
      %p88 = scmp.eq.s32.totalorder %s32, 0
      %p89 = por %p87, %p88
      %p90 = scmp.ne.s32.totalorder %s82, %s84
      %p91 = scmp.eq.s32.totalorder %s37, 3
      %p92 = por %p90, %p91
      %p93 = scmp.ne.s32.totalorder %s84, %s85
      %p94 = scmp.eq.s32.totalorder %s37, 0
      %p95 = por %p93, %p94
      %p96 = scmp.ne.s32.totalorder %s84, %s85
      %p97 = scmp.eq.s32.totalorder %s38, 3
      %p98 = por %p96, %p97
      %p100 = scmp.ne.s32.totalorder %s85, %s99
      %p101 = scmp.eq.s32.totalorder %s38, 0
      %p102 = por %p100, %p101
      %s104 = sadd.s32 %s103, 1
      %p107 = scmp.eq.s32.totalorder %s32, 3
      %p108 = scmp.ne.s32.totalorder %s103, %s105
      %p109 = scmp.eq.s32.totalorder %s32, 0
      %p110 = por %p108, %p109
      %p111 = scmp.ne.s32.totalorder %s103, %s105
      %p112 = scmp.eq.s32.totalorder %s37, 3
      %p113 = por %p111, %p112
      %p114 = scmp.ne.s32.totalorder %s105, %s106
      %p115 = scmp.eq.s32.totalorder %s37, 0
      %p116 = por %p114, %p115
      %p117 = scmp.ne.s32.totalorder %s105, %s106
      %p118 = scmp.eq.s32.totalorder %s38, 3
      %p119 = por %p117, %p118
      %p121 = scmp.ne.s32.totalorder %s106, %s120
      %p122 = scmp.eq.s32.totalorder %s38, 0
      %p123 = por %p121, %p122
      %s125 = sadd.s32 %s124, 1
      %p128 = scmp.eq.s32.totalorder %s32, 3
      %p129 = scmp.ne.s32.totalorder %s124, %s126
      %p130 = scmp.eq.s32.totalorder %s32, 0
      %p131 = por %p129, %p130
      %p132 = scmp.ne.s32.totalorder %s124, %s126
      %p133 = scmp.eq.s32.totalorder %s37, 3
      %p134 = por %p132, %p133
      %p135 = scmp.ne.s32.totalorder %s126, %s127
      %p136 = scmp.eq.s32.totalorder %s37, 0
      %p137 = por %p135, %p136
      %p138 = scmp.ne.s32.totalorder %s126, %s127
      %p139 = scmp.eq.s32.totalorder %s38, 3
      %p140 = por %p138, %p139
      %p142 = scmp.ne.s32.totalorder %s127, %s141
      %p143 = scmp.eq.s32.totalorder %s38, 0
      %p144 = por %p142, %p143
      %s146 = sadd.s32 %s145, 1
      %p149 = scmp.eq.s32.totalorder %s32, 3
      %p150 = scmp.ne.s32.totalorder %s145, %s147
      %p151 = scmp.eq.s32.totalorder %s32, 0
      %p152 = por %p150, %p151
      %p153 = scmp.ne.s32.totalorder %s145, %s147
      %p154 = scmp.eq.s32.totalorder %s37, 3
      %p155 = por %p153, %p154
      %p156 = scmp.ne.s32.totalorder %s147, %s148
      %p157 = scmp.eq.s32.totalorder %s37, 0
      %p158 = por %p156, %p157
      %p159 = scmp.ne.s32.totalorder %s147, %s148
      %p160 = scmp.eq.s32.totalorder %s38, 3
      %p161 = por %p159, %p160
      %p163 = scmp.ne.s32.totalorder %s148, %s162
      %p164 = scmp.eq.s32.totalorder %s38, 0
      %p165 = por %p163, %p164
      %s167 = sadd.s32 %s166, 1
      %p170 = scmp.eq.s32.totalorder %s32, 3
      %p171 = scmp.ne.s32.totalorder %s166, %s168
      %p172 = scmp.eq.s32.totalorder %s32, 0
      %p173 = por %p171, %p172
      %p174 = scmp.ne.s32.totalorder %s166, %s168
      %p175 = scmp.eq.s32.totalorder %s37, 3
      %p176 = por %p174, %p175
      %p177 = scmp.ne.s32.totalorder %s168, %s169
      %p178 = scmp.eq.s32.totalorder %s37, 0
      %p179 = por %p177, %p178
      %p180 = scmp.ne.s32.totalorder %s168, %s169
      %p181 = scmp.eq.s32.totalorder %s38, 3
      %p182 = por %p180, %p181
      %p184 = scmp.ne.s32.totalorder %s169, %s183
      %p185 = scmp.eq.s32.totalorder %s38, 0
      %p186 = por %p184, %p185
      %s188 = sadd.s32 %s187, 1
      %p191 = scmp.eq.s32.totalorder %s32, 3
      %p192 = scmp.ne.s32.totalorder %s187, %s189
      %p193 = scmp.eq.s32.totalorder %s32, 0
      %p194 = por %p192, %p193
      %p195 = scmp.ne.s32.totalorder %s187, %s189
      %p196 = scmp.eq.s32.totalorder %s37, 3
      %p197 = por %p195, %p196
      %p198 = scmp.ne.s32.totalorder %s189, %s190
      %p199 = scmp.eq.s32.totalorder %s37, 0
      %p200 = por %p198, %p199
      %p201 = scmp.ne.s32.totalorder %s189, %s190
      %p202 = scmp.eq.s32.totalorder %s38, 3
      %p203 = por %p201, %p202
      %p205 = scmp.ne.s32.totalorder %s190, %s204
      %p206 = scmp.eq.s32.totalorder %s38, 0
      %p207 = por %p205, %p206
      %s209 = sadd.s32 %s208, 1
      %p212 = scmp.eq.s32.totalorder %s32, 3
      %p213 = scmp.ne.s32.totalorder %s208, %s210
      %p214 = scmp.eq.s32.totalorder %s32, 0
      %p215 = por %p213, %p214
      %p216 = scmp.ne.s32.totalorder %s208, %s210
      %p217 = scmp.eq.s32.totalorder %s37, 3
      %p218 = por %p216, %p217
      %p219 = scmp.ne.s32.totalorder %s210, %s211
      %p220 = scmp.eq.s32.totalorder %s37, 0
      %p221 = por %p219, %p220
      %p222 = scmp.ne.s32.totalorder %s210, %s211
      %p223 = scmp.eq.s32.totalorder %s38, 3
      %p224 = por %p222, %p223
      %p226 = scmp.ne.s32.totalorder %s211, %s225
      %p227 = scmp.eq.s32.totalorder %s38, 0
      %p228 = por %p226, %p227
      %s229 = ssub.s32 %s32, %s39
      %p230 = scmp.eq.s32.totalorder %s229, 0
      %s232 = sadd.s32 %s231, 1
      %s233 = scalar_select %p230, %s231, %s232
      %p236 = pneg %p230
      %p237 = scmp.eq.s32.totalorder %s32, 3
      %p238 = por %p236, %p237
      %p239 = scmp.ne.s32.totalorder %s231, %s234
      %p240 = scmp.eq.s32.totalorder %s32, 0
      %p241 = por %p239, %p240
      %p242 = scmp.ne.s32.totalorder %s231, %s234
      %p243 = scmp.eq.s32.totalorder %s37, 3
      %p244 = por %p242, %p243
      %p245 = scmp.ne.s32.totalorder %s234, %s235
      %p246 = scmp.eq.s32.totalorder %s37, 0
      %p247 = por %p245, %p246
      %p248 = scmp.ne.s32.totalorder %s234, %s235
      %p249 = scmp.eq.s32.totalorder %s38, 3
      %p250 = por %p248, %p249
      %p252 = scmp.ne.s32.totalorder %s235, %s251
      %p253 = scmp.eq.s32.totalorder %s38, 0
      %p254 = por %p252, %p253
      %s255 = ssub.s32 %s32, %s39
      %p256 = scmp.eq.s32.totalorder %s255, 0
      %s258 = sadd.s32 %s257, 1
      %s259 = scalar_select %p256, %s257, %s258
      %p262 = pneg %p256
      %p263 = scmp.eq.s32.totalorder %s32, 3
      %p264 = por %p262, %p263
      %p265 = scmp.ne.s32.totalorder %s257, %s260
      %p266 = scmp.eq.s32.totalorder %s32, 0
      %p267 = por %p265, %p266
      %p268 = scmp.ne.s32.totalorder %s257, %s260
      %p269 = scmp.eq.s32.totalorder %s37, 3
      %p270 = por %p268, %p269
      %p271 = scmp.ne.s32.totalorder %s260, %s261
      %p272 = scmp.eq.s32.totalorder %s37, 0
      %p273 = por %p271, %p272
      %p274 = scmp.ne.s32.totalorder %s260, %s261
      %p275 = scmp.eq.s32.totalorder %s38, 3
      %p276 = por %p274, %p275
      %p278 = scmp.ne.s32.totalorder %s261, %s277
      %p279 = scmp.eq.s32.totalorder %s38, 0
      %p280 = por %p278, %p279
      %s281 = ssub.s32 %s32, %s39
      %p282 = scmp.eq.s32.totalorder %s281, 0
      %s284 = sadd.s32 %s283, 1
      %s285 = scalar_select %p282, %s283, %s284
      %p288 = pneg %p282
      %p289 = scmp.eq.s32.totalorder %s32, 3
      %p290 = por %p288, %p289
      %p291 = scmp.ne.s32.totalorder %s283, %s286
      %p292 = scmp.eq.s32.totalorder %s32, 0
      %p293 = por %p291, %p292
      %p294 = scmp.ne.s32.totalorder %s283, %s286
      %p295 = scmp.eq.s32.totalorder %s37, 3
      %p296 = por %p294, %p295
      %p297 = scmp.ne.s32.totalorder %s286, %s287
      %p298 = scmp.eq.s32.totalorder %s37, 0
      %p299 = por %p297, %p298
      %p300 = scmp.ne.s32.totalorder %s286, %s287
      %p301 = scmp.eq.s32.totalorder %s38, 3
      %p302 = por %p300, %p301
      %p304 = scmp.ne.s32.totalorder %s287, %s303
      %p305 = scmp.eq.s32.totalorder %s38, 0
      %p306 = por %p304, %p305
      %s308 = sadd.s32 %s307, 1
      %p311 = scmp.eq.s32.totalorder %s32, 3
      %p312 = scmp.ne.s32.totalorder %s307, %s309
      %p313 = scmp.eq.s32.totalorder %s32, 0
      %p314 = por %p312, %p313
      %p315 = scmp.ne.s32.totalorder %s307, %s309
      %p316 = scmp.eq.s32.totalorder %s37, 3
      %p317 = por %p315, %p316
      %p318 = scmp.ne.s32.totalorder %s309, %s310
      %p319 = scmp.eq.s32.totalorder %s37, 0
      %p320 = por %p318, %p319
      %p321 = scmp.ne.s32.totalorder %s309, %s310
      %p322 = scmp.eq.s32.totalorder %s38, 3
      %p323 = por %p321, %p322
      %p325 = scmp.ne.s32.totalorder %s310, %s324
      %p326 = scmp.eq.s32.totalorder %s38, 0
      %p327 = por %p325, %p326
      %s329 = sadd.s32 %s328, 1
      %p332 = scmp.eq.s32.totalorder %s32, 3
      %p333 = scmp.ne.s32.totalorder %s328, %s330
      %p334 = scmp.eq.s32.totalorder %s32, 0
      %p335 = por %p333, %p334
      %p336 = scmp.ne.s32.totalorder %s328, %s330
      %p337 = scmp.eq.s32.totalorder %s37, 3
      %p338 = por %p336, %p337
      %p339 = scmp.ne.s32.totalorder %s330, %s331
      %p340 = scmp.eq.s32.totalorder %s37, 0
      %p341 = por %p339, %p340
      %p342 = scmp.ne.s32.totalorder %s330, %s331
      %p343 = scmp.eq.s32.totalorder %s38, 3
      %p344 = por %p342, %p343
      %p346 = scmp.ne.s32.totalorder %s331, %s345
      %p347 = scmp.eq.s32.totalorder %s38, 0
      %p348 = por %p346, %p347
      %s350 = sadd.s32 %s349, 1
      %p353 = scmp.eq.s32.totalorder %s32, 3
      %p354 = scmp.ne.s32.totalorder %s349, %s351
      %p355 = scmp.eq.s32.totalorder %s32, 0
      %p356 = por %p354, %p355
      %p357 = scmp.ne.s32.totalorder %s349, %s351
      %p358 = scmp.eq.s32.totalorder %s37, 3
      %p359 = por %p357, %p358
      %p360 = scmp.ne.s32.totalorder %s351, %s352
      %p361 = scmp.eq.s32.totalorder %s37, 0
      %p362 = por %p360, %p361
      %p363 = scmp.ne.s32.totalorder %s351, %s352
      %p364 = scmp.eq.s32.totalorder %s38, 3
      %p365 = por %p363, %p364
      %p367 = scmp.ne.s32.totalorder %s352, %s366
      %p368 = scmp.eq.s32.totalorder %s38, 0
      %p369 = por %p367, %p368
      %s371 = sadd.s32 %s370, 1
      %p374 = scmp.eq.s32.totalorder %s32, 3
      %p375 = scmp.ne.s32.totalorder %s370, %s372
      %p376 = scmp.eq.s32.totalorder %s32, 0
      %p377 = por %p375, %p376
      %p378 = scmp.ne.s32.totalorder %s370, %s372
      %p379 = scmp.eq.s32.totalorder %s37, 3
      %p380 = por %p378, %p379
      %p381 = scmp.ne.s32.totalorder %s372, %s373
      %p382 = scmp.eq.s32.totalorder %s37, 0
      %p383 = por %p381, %p382
      %p384 = scmp.ne.s32.totalorder %s372, %s373
      %p385 = scmp.eq.s32.totalorder %s38, 3
      %p386 = por %p384, %p385
      %p388 = scmp.ne.s32.totalorder %s373, %s387
      %p389 = scmp.eq.s32.totalorder %s38, 0
      %p390 = por %p388, %p389
      %s392 = sadd.s32 %s391, 1
      %p395 = scmp.eq.s32.totalorder %s32, 3
      %p396 = scmp.ne.s32.totalorder %s391, %s393
      %p397 = scmp.eq.s32.totalorder %s32, 0
      %p398 = por %p396, %p397
      %p399 = scmp.ne.s32.totalorder %s391, %s393
      %p400 = scmp.eq.s32.totalorder %s37, 3
      %p401 = por %p399, %p400
      %p402 = scmp.ne.s32.totalorder %s393, %s394
      %p403 = scmp.eq.s32.totalorder %s37, 0
      %p404 = por %p402, %p403
      %p405 = scmp.ne.s32.totalorder %s393, %s394
      %p406 = scmp.eq.s32.totalorder %s38, 3
      %p407 = por %p405, %p406
      %p409 = scmp.ne.s32.totalorder %s394, %s408
      %p410 = scmp.eq.s32.totalorder %s38, 0
      %p411 = por %p409, %p410
      %s413 = sadd.s32 %s412, 1
      %p416 = scmp.eq.s32.totalorder %s32, 3
      %p417 = scmp.ne.s32.totalorder %s412, %s414
      %p418 = scmp.eq.s32.totalorder %s32, 0
      %p419 = por %p417, %p418
      %p420 = scmp.ne.s32.totalorder %s412, %s414
      %p421 = scmp.eq.s32.totalorder %s37, 3
      %p422 = por %p420, %p421
      %p423 = scmp.ne.s32.totalorder %s414, %s415
      %p424 = scmp.eq.s32.totalorder %s37, 0
      %p425 = por %p423, %p424
      %p426 = scmp.ne.s32.totalorder %s414, %s415
      %p427 = scmp.eq.s32.totalorder %s38, 3
      %p428 = por %p426, %p427
      %p430 = scmp.ne.s32.totalorder %s415, %s429
      %p431 = scmp.eq.s32.totalorder %s38, 0
      %p432 = por %p430, %p431
      %p433 = scmp.le.s32.totalorder 1, %s32
      %p434 = scmp.lt.s32.totalorder %s32, 5
      %p435 = pnand %p433, %p434
      %p436 = pneg %p435
      // Predicated region
      $region9: #{tpu_custom_call.1} parent=5 // pred_check
        _
      $region10: #{tpu_custom_call.1} parent=5 // pred_check_branch
        %438 = sbr.rel (%p435) target = $region12
      $region11: #{tpu_custom_call.1} parent=5 // pred_region
        %s439 = ssub.s32 %s32, 1
        // Predicated region
        $region13: #{tpu_custom_call.1} parent=11 // pred_check
          %p440 = pneg %p53
        $region14: #{tpu_custom_call.1} parent=11 // pred_check_branch
          %442 = sbr.rel (%p440) target = $region16
        $region15: #{tpu_custom_call.1} parent=11 // pred_region
          %s444 = ssub.s32 1536, 1536
          %445 = vsyncadd [#allocation6], %s444
          %s446 = sshll.u32 [#allocation5], 4
          %s447 = int_to_ptr.vmem [resolvable:$true] %s446
          %452 = dma.hbm_to_vmem [thread:$0]  %s0, 1536, %s447, [#allocation6], 768, 768, 48
        $region16: #{tpu_custom_call.1} parent=11 // pred_fallthru
          _
        // Predicated region
        $region17: #{tpu_custom_call.1} parent=11 // pred_check
          %p453 = pneg %p74
        $region18: #{tpu_custom_call.1} parent=11 // pred_check_branch
          %455 = sbr.rel (%p453) target = $region20
        $region19: #{tpu_custom_call.1} parent=11 // pred_region
          %s457 = ssub.s32 1536, 1536
          %458 = vsyncadd [#allocation9], %s457
          %s459 = sshll.u32 [#allocation8], 4
          %s460 = int_to_ptr.vmem [resolvable:$true] %s459
          %465 = dma.hbm_to_vmem [thread:$0]  %s1, 1536, %s460, [#allocation9], 768, 768, 48
        $region20: #{tpu_custom_call.1} parent=11 // pred_fallthru
          _
        // Predicated region
        $region21: #{tpu_custom_call.1} parent=11 // pred_check
          %p466 = pneg %p95
        $region22: #{tpu_custom_call.1} parent=11 // pred_check_branch
          %468 = sbr.rel (%p466) target = $region24
        $region23: #{tpu_custom_call.1} parent=11 // pred_region
          %s470 = ssub.s32 96, 96
          %471 = vsyncadd [#allocation9], %s470
          %s473 = sshll.u32 [#allocation10], 4
          %s474 = int_to_ptr.vmem [resolvable:$true] %s473
          %476 = dma.hbm_to_vmem [thread:$0]  %s2, 96, %s474, [#allocation9]
        $region24: #{tpu_custom_call.1} parent=11 // pred_fallthru
          _
        // Predicated region
        $region25: #{tpu_custom_call.1} parent=11 // pred_check
          %p477 = pneg %p116
        $region26: #{tpu_custom_call.1} parent=11 // pred_check_branch
          %479 = sbr.rel (%p477) target = $region28
        $region27: #{tpu_custom_call.1} parent=11 // pred_region
          %s481 = ssub.s32 96, 96
          %482 = vsyncadd [#allocation12], %s481
          %s484 = sshll.u32 [#allocation11], 4
          %s485 = int_to_ptr.vmem [resolvable:$true] %s484
          %487 = dma.hbm_to_vmem [thread:$0]  %s3, 96, %s485, [#allocation12]
        $region28: #{tpu_custom_call.1} parent=11 // pred_fallthru
          _
        // Predicated region
        $region29: #{tpu_custom_call.1} parent=11 // pred_check
          %p488 = pneg %p137
        $region30: #{tpu_custom_call.1} parent=11 // pred_check_branch
          %490 = sbr.rel (%p488) target = $region32
        $region31: #{tpu_custom_call.1} parent=11 // pred_region
          _
        $region32: #{tpu_custom_call.1} parent=11 // pred_fallthru
          _
        // Predicated region
        $region33: #{tpu_custom_call.1} parent=11 // pred_check
          %p491 = pneg %p158
        $region34: #{tpu_custom_call.1} parent=11 // pred_check_branch
          %493 = sbr.rel (%p491) target = $region36
        $region35: #{tpu_custom_call.1} parent=11 // pred_region
          %s495 = ssub.s32 36864, 36864
          %496 = vsyncadd [#allocation12], %s495
          %s497 = sshll.u32 [#allocation13], 4
          %s498 = int_to_ptr.vmem [resolvable:$true] %s497
          %503 = dma.hbm_to_vmem [thread:$0]  %s5, 36864, %s498, [#allocation12], 384, 384, 24
        $region36: #{tpu_custom_call.1} parent=11 // pred_fallthru
          _
        // Predicated region
        $region37: #{tpu_custom_call.1} parent=11 // pred_check
          %p504 = pneg %p179
        $region38: #{tpu_custom_call.1} parent=11 // pred_check_branch
          %506 = sbr.rel (%p504) target = $region40
        $region39: #{tpu_custom_call.1} parent=11 // pred_region
          %s508 = ssub.s32 96, 96
          %509 = vsyncadd [#allocation15], %s508
          %s511 = sshll.u32 [#allocation14], 4
          %s512 = int_to_ptr.vmem [resolvable:$true] %s511
          %514 = dma.hbm_to_vmem [thread:$0]  %s6, 96, %s512, [#allocation15]
        $region40: #{tpu_custom_call.1} parent=11 // pred_fallthru
          _
        // Predicated region
        $region41: #{tpu_custom_call.1} parent=11 // pred_check
          %p515 = pneg %p200
        $region42: #{tpu_custom_call.1} parent=11 // pred_check_branch
          %517 = sbr.rel (%p515) target = $region44
        $region43: #{tpu_custom_call.1} parent=11 // pred_region
          %s519 = ssub.s32 96, 96
          %520 = vsyncadd [#allocation15], %s519
          %s522 = sshll.u32 [#allocation16], 4
          %s523 = int_to_ptr.vmem [resolvable:$true] %s522
          %525 = dma.hbm_to_vmem [thread:$0]  %s7, 96, %s523, [#allocation15]
        $region44: #{tpu_custom_call.1} parent=11 // pred_fallthru
          _
        // Predicated region
        $region45: #{tpu_custom_call.1} parent=11 // pred_check
          %p526 = pneg %p221
        $region46: #{tpu_custom_call.1} parent=11 // pred_check_branch
          %528 = sbr.rel (%p526) target = $region48
        $region47: #{tpu_custom_call.1} parent=11 // pred_region
          %s530 = ssub.s32 96, 96
          %531 = vsyncadd [#allocation18], %s530
          %s533 = sshll.u32 [#allocation17], 4
          %s534 = int_to_ptr.vmem [resolvable:$true] %s533
          %536 = dma.hbm_to_vmem [thread:$0]  %s8, 96, %s534, [#allocation18]
        $region48: #{tpu_custom_call.1} parent=11 // pred_fallthru
          _
        // Predicated region
        $region49: #{tpu_custom_call.1} parent=11 // pred_check
          %p537 = pneg %p320
        $region50: #{tpu_custom_call.1} parent=11 // pred_check_branch
          %539 = sbr.rel (%p537) target = $region52
        $region51: #{tpu_custom_call.1} parent=11 // pred_region
          %s541 = ssub.s32 96, 96
          %542 = vsyncadd [#allocation9], %s541
          %s544 = sshll.u32 [#allocation22], 4
          %s545 = int_to_ptr.vmem [resolvable:$true] %s544
          %547 = dma.hbm_to_vmem [thread:$0]  %s12, 96, %s545, [#allocation9]
        $region52: #{tpu_custom_call.1} parent=11 // pred_fallthru
          _
        // Predicated region
        $region53: #{tpu_custom_call.1} parent=11 // pred_check
          %p548 = pneg %p341
        $region54: #{tpu_custom_call.1} parent=11 // pred_check_branch
          %550 = sbr.rel (%p548) target = $region56
        $region55: #{tpu_custom_call.1} parent=11 // pred_region
          %s552 = ssub.s32 96, 96
          %553 = vsyncadd [#allocation12], %s552
          %s555 = sshll.u32 [#allocation23], 4
          %s556 = int_to_ptr.vmem [resolvable:$true] %s555
          %558 = dma.hbm_to_vmem [thread:$0]  %s13, 96, %s556, [#allocation12]
        $region56: #{tpu_custom_call.1} parent=11 // pred_fallthru
          _
        // Predicated region
        $region57: #{tpu_custom_call.1} parent=11 // pred_check
          %p559 = pneg %p362
        $region58: #{tpu_custom_call.1} parent=11 // pred_check_branch
          %561 = sbr.rel (%p559) target = $region60
        $region59: #{tpu_custom_call.1} parent=11 // pred_region
          %s563 = ssub.s32 96, 96
          %564 = vsyncadd [#allocation15], %s563
          %s566 = sshll.u32 [#allocation24], 4
          %s567 = int_to_ptr.vmem [resolvable:$true] %s566
          %569 = dma.hbm_to_vmem [thread:$0]  %s14, 96, %s567, [#allocation15]
        $region60: #{tpu_custom_call.1} parent=11 // pred_fallthru
          _
        // Predicated region
        $region61: #{tpu_custom_call.1} parent=11 // pred_check
          %p570 = pneg %p383
        $region62: #{tpu_custom_call.1} parent=11 // pred_check_branch
          %572 = sbr.rel (%p570) target = $region64
        $region63: #{tpu_custom_call.1} parent=11 // pred_region
          %s574 = ssub.s32 12288, 12288
          %575 = vsyncadd [#allocation18], %s574
          %s576 = sshll.u32 [#allocation25], 4
          %s577 = int_to_ptr.vmem [resolvable:$true] %s576
          %582 = dma.hbm_to_vmem [thread:$0]  %s15, 12288, %s577, [#allocation18], 128, 128, 8
        $region64: #{tpu_custom_call.1} parent=11 // pred_fallthru
          _
        // Predicated region
        $region65: #{tpu_custom_call.1} parent=11 // pred_check
          %p583 = pneg %p404
        $region66: #{tpu_custom_call.1} parent=11 // pred_check_branch
          %585 = sbr.rel (%p583) target = $region68
        $region67: #{tpu_custom_call.1} parent=11 // pred_region
          %s587 = ssub.s32 16, 16
          %588 = vsyncadd [#allocation27], %s587
          %s590 = sshll.u32 [#allocation26], 4
          %s591 = int_to_ptr.vmem [resolvable:$true] %s590
          %593 = dma.hbm_to_vmem [thread:$0]  %s16, 16, %s591, [#allocation27]
        $region68: #{tpu_custom_call.1} parent=11 // pred_fallthru
          _
      $region12: #{tpu_custom_call.1} parent=5 // pred_fallthru
        _
      %p594 = scmp.lt.s32.totalorder %s32, 4
      // Predicated region
      $region69: #{tpu_custom_call.1} parent=5 // pred_check
        %p595 = pneg %p594
      $region70: #{tpu_custom_call.1} parent=5 // pred_check_branch
        %597 = sbr.rel (%p595) target = $region72
      $region71: #{tpu_custom_call.1} parent=5 // pred_region
        // Predicated region
        $region73: #{tpu_custom_call.1} parent=71 // pred_check
          %p598 = pneg %p241
        $region74: #{tpu_custom_call.1} parent=71 // pred_check_branch
          %600 = sbr.rel (%p598) target = $region76
        $region75: #{tpu_custom_call.1} parent=71 // pred_region
          %s601 = sand.u32 %s32, 1
          %s602 = scalar_lea.sflag [#allocation6], %s601
          %s603 = sand.u32 %s231, 1
          %s604 = smul.addr %s603, 2304
          %s605 = scalar_lea.vmem [#allocation19], %s604
          %s606 = smul.u32 6, %s32
          %s608 = ssub.s32 36864, 36864
          %609 = vsyncadd %s602, %s608
          %s610 = smul.addr %s606, 64
          %s611 = scalar_lea.hbm %s9, %s610
          %s612 = sshll.u32 %s605, 4
          %s613 = int_to_ptr.vmem [resolvable:$true] %s612
          %618 = dma.hbm_to_vmem [thread:$0]  %s611, 36864, %s613, %s602, 1536, 384, 24
        $region76: #{tpu_custom_call.1} parent=71 // pred_fallthru
          _
        // Predicated region
        $region77: #{tpu_custom_call.1} parent=71 // pred_check
          %p619 = pneg %p267
        $region78: #{tpu_custom_call.1} parent=71 // pred_check_branch
          %621 = sbr.rel (%p619) target = $region80
        $region79: #{tpu_custom_call.1} parent=71 // pred_region
          %s622 = sand.u32 %s32, 1
          %s623 = scalar_lea.sflag [#allocation6], %s622
          %s624 = sand.u32 %s257, 1
          %s625 = smul.addr %s624, 6
          %s626 = scalar_lea.vmem [#allocation20], %s625
          %s627 = smul.u32 6, %s32
          %s629 = ssub.s32 96, 96
          %630 = vsyncadd %s623, %s629
          %s631 = smul.addr %s627, 16
          %s632 = scalar_lea.hbm %s10, %s631
          %s634 = sshll.u32 %s626, 4
          %s635 = int_to_ptr.vmem [resolvable:$true] %s634
          %637 = dma.hbm_to_vmem [thread:$0]  %s632, 96, %s635, %s623
        $region80: #{tpu_custom_call.1} parent=71 // pred_fallthru
          _
        // Predicated region
        $region81: #{tpu_custom_call.1} parent=71 // pred_check
          %p638 = pneg %p293
        $region82: #{tpu_custom_call.1} parent=71 // pred_check_branch
          %640 = sbr.rel (%p638) target = $region84
        $region83: #{tpu_custom_call.1} parent=71 // pred_region
          %s641 = sand.u32 %s32, 1
          %s642 = scalar_lea.sflag [#allocation6], %s641
          %s643 = sand.u32 %s283, 1
          %s644 = smul.addr %s643, 2304
          %s645 = scalar_lea.vmem [#allocation21], %s644
          %s646 = smul.u32 96, %s32
          %s648 = ssub.s32 36864, 36864
          %649 = vsyncadd %s642, %s648
          %s650 = smul.addr %s646, 6
          %s651 = smul.addr %s650, 64
          %s652 = scalar_lea.hbm %s11, %s651
          %s653 = sshll.u32 %s645, 4
          %s654 = int_to_ptr.vmem [resolvable:$true] %s653
          %659 = dma.hbm_to_vmem [thread:$0]  %s652, 36864, %s654, %s642, 384, 384, 24
        $region84: #{tpu_custom_call.1} parent=71 // pred_fallthru
          _
      $region72: #{tpu_custom_call.1} parent=5 // pred_fallthru
        _
      %p660 = scmp.le.s32.totalorder 1, %s32
      %p661 = scmp.lt.s32.totalorder %s32, 5
      %p662 = pnand %p660, %p661
      %p663 = pneg %p662
      // Predicated region
      $region85: #{tpu_custom_call.1} parent=5 // pred_check
        _
      $region86: #{tpu_custom_call.1} parent=5 // pred_check_branch
        %665 = sbr.rel (%p662) target = $region88
      $region87: #{tpu_custom_call.1} parent=5 // pred_region
        %s666 = ssub.s32 %s32, 1
        // Predicated region
        $region89: #{tpu_custom_call.1} parent=87 // pred_check
          %p667 = pneg %p53
        $region90: #{tpu_custom_call.1} parent=87 // pred_check_branch
          %669 = sbr.rel (%p667) target = $region92
        $region91: #{tpu_custom_call.1} parent=87 // pred_region
          %670 = dma.done [#allocation6], 1536
        $region92: #{tpu_custom_call.1} parent=87 // pred_fallthru
          _
        // Predicated region
        $region93: #{tpu_custom_call.1} parent=87 // pred_check
          %p671 = pneg %p74
        $region94: #{tpu_custom_call.1} parent=87 // pred_check_branch
          %673 = sbr.rel (%p671) target = $region96
        $region95: #{tpu_custom_call.1} parent=87 // pred_region
          %674 = dma.done [#allocation9], 1536
        $region96: #{tpu_custom_call.1} parent=87 // pred_fallthru
          _
        // Predicated region
        $region97: #{tpu_custom_call.1} parent=87 // pred_check
          %p675 = pneg %p95
        $region98: #{tpu_custom_call.1} parent=87 // pred_check_branch
          %677 = sbr.rel (%p675) target = $region100
        $region99: #{tpu_custom_call.1} parent=87 // pred_region
          %678 = dma.done [#allocation9], 96
        $region100: #{tpu_custom_call.1} parent=87 // pred_fallthru
          _
        // Predicated region
        $region101: #{tpu_custom_call.1} parent=87 // pred_check
          %p679 = pneg %p116
        $region102: #{tpu_custom_call.1} parent=87 // pred_check_branch
          %681 = sbr.rel (%p679) target = $region104
        $region103: #{tpu_custom_call.1} parent=87 // pred_region
          %682 = dma.done [#allocation12], 96
        $region104: #{tpu_custom_call.1} parent=87 // pred_fallthru
          _
        // Predicated region
        $region105: #{tpu_custom_call.1} parent=87 // pred_check
          %p683 = pneg %p158
        $region106: #{tpu_custom_call.1} parent=87 // pred_check_branch
          %685 = sbr.rel (%p683) target = $region108
        $region107: #{tpu_custom_call.1} parent=87 // pred_region
          %686 = dma.done [#allocation12], 36864
        $region108: #{tpu_custom_call.1} parent=87 // pred_fallthru
          _
        // Predicated region
        $region109: #{tpu_custom_call.1} parent=87 // pred_check
          %p687 = pneg %p179
        $region110: #{tpu_custom_call.1} parent=87 // pred_check_branch
          %689 = sbr.rel (%p687) target = $region112
        $region111: #{tpu_custom_call.1} parent=87 // pred_region
          %690 = dma.done [#allocation15], 96
        $region112: #{tpu_custom_call.1} parent=87 // pred_fallthru
          _
        // Predicated region
        $region113: #{tpu_custom_call.1} parent=87 // pred_check
          %p691 = pneg %p200
        $region114: #{tpu_custom_call.1} parent=87 // pred_check_branch
          %693 = sbr.rel (%p691) target = $region116
        $region115: #{tpu_custom_call.1} parent=87 // pred_region
          %694 = dma.done [#allocation15], 96
        $region116: #{tpu_custom_call.1} parent=87 // pred_fallthru
          _
        // Predicated region
        $region117: #{tpu_custom_call.1} parent=87 // pred_check
          %p695 = pneg %p221
        $region118: #{tpu_custom_call.1} parent=87 // pred_check_branch
          %697 = sbr.rel (%p695) target = $region120
        $region119: #{tpu_custom_call.1} parent=87 // pred_region
          %698 = dma.done [#allocation18], 96
        $region120: #{tpu_custom_call.1} parent=87 // pred_fallthru
          _
        %s699 = sand.u32 %s37, 1
        %s700 = scalar_lea.sflag [#allocation6], %s699
        %s701 = sand.u32 %s234, 1
        %s702 = smul.addr %s701, 2304
        %s703 = scalar_lea.vmem [#allocation19], %s702
        // Predicated region
        $region121: #{tpu_custom_call.1} parent=87 // pred_check
          %p704 = pneg %p247
        $region122: #{tpu_custom_call.1} parent=87 // pred_check_branch
          %706 = sbr.rel (%p704) target = $region124
        $region123: #{tpu_custom_call.1} parent=87 // pred_region
          %707 = dma.done %s700, 36864
        $region124: #{tpu_custom_call.1} parent=87 // pred_fallthru
          _
        %s708 = sand.u32 %s37, 1
        %s709 = scalar_lea.sflag [#allocation6], %s708
        %s710 = sand.u32 %s260, 1
        %s711 = smul.addr %s710, 6
        %s712 = scalar_lea.vmem [#allocation20], %s711
        // Predicated region
        $region125: #{tpu_custom_call.1} parent=87 // pred_check
          %p713 = pneg %p273
        $region126: #{tpu_custom_call.1} parent=87 // pred_check_branch
          %715 = sbr.rel (%p713) target = $region128
        $region127: #{tpu_custom_call.1} parent=87 // pred_region
          %716 = dma.done %s709, 96
        $region128: #{tpu_custom_call.1} parent=87 // pred_fallthru
          _
        %s717 = sand.u32 %s37, 1
        %s718 = scalar_lea.sflag [#allocation6], %s717
        %s719 = sand.u32 %s286, 1
        %s720 = smul.addr %s719, 2304
        %s721 = scalar_lea.vmem [#allocation21], %s720
        // Predicated region
        $region129: #{tpu_custom_call.1} parent=87 // pred_check
          %p722 = pneg %p299
        $region130: #{tpu_custom_call.1} parent=87 // pred_check_branch
          %724 = sbr.rel (%p722) target = $region132
        $region131: #{tpu_custom_call.1} parent=87 // pred_region
          %725 = dma.done %s718, 36864
        $region132: #{tpu_custom_call.1} parent=87 // pred_fallthru
          _
        // Predicated region
        $region133: #{tpu_custom_call.1} parent=87 // pred_check
          %p726 = pneg %p320
        $region134: #{tpu_custom_call.1} parent=87 // pred_check_branch
          %728 = sbr.rel (%p726) target = $region136
        $region135: #{tpu_custom_call.1} parent=87 // pred_region
          %729 = dma.done [#allocation9], 96
        $region136: #{tpu_custom_call.1} parent=87 // pred_fallthru
          _
        // Predicated region
        $region137: #{tpu_custom_call.1} parent=87 // pred_check
          %p730 = pneg %p341
        $region138: #{tpu_custom_call.1} parent=87 // pred_check_branch
          %732 = sbr.rel (%p730) target = $region140
        $region139: #{tpu_custom_call.1} parent=87 // pred_region
          %733 = dma.done [#allocation12], 96
        $region140: #{tpu_custom_call.1} parent=87 // pred_fallthru
          _
        // Predicated region
        $region141: #{tpu_custom_call.1} parent=87 // pred_check
          %p734 = pneg %p362
        $region142: #{tpu_custom_call.1} parent=87 // pred_check_branch
          %736 = sbr.rel (%p734) target = $region144
        $region143: #{tpu_custom_call.1} parent=87 // pred_region
          %737 = dma.done [#allocation15], 96
        $region144: #{tpu_custom_call.1} parent=87 // pred_fallthru
          _
        // Predicated region
        $region145: #{tpu_custom_call.1} parent=87 // pred_check
          %p738 = pneg %p383
        $region146: #{tpu_custom_call.1} parent=87 // pred_check_branch
          %740 = sbr.rel (%p738) target = $region148
        $region147: #{tpu_custom_call.1} parent=87 // pred_region
          %741 = dma.done [#allocation18], 12288
        $region148: #{tpu_custom_call.1} parent=87 // pred_fallthru
          _
        // Predicated region
        $region149: #{tpu_custom_call.1} parent=87 // pred_check
          %p742 = pneg %p404
        $region150: #{tpu_custom_call.1} parent=87 // pred_check_branch
          %744 = sbr.rel (%p742) target = $region152
        $region151: #{tpu_custom_call.1} parent=87 // pred_region
          %745 = dma.done [#allocation27], 16
        $region152: #{tpu_custom_call.1} parent=87 // pred_fallthru
          _
        %p746 = pneg %p53
        %p747 = pneg %p50
        %p748 = pneg %p74
        %p749 = pneg %p71
        %p750 = pneg %p95
        %p751 = pneg %p92
        %p752 = pneg %p116
        %p753 = pneg %p113
        %p754 = pneg %p137
        %p755 = pneg %p134
        %p756 = pneg %p158
        %p757 = pneg %p155
        %p758 = pneg %p179
        %p759 = pneg %p176
        %p760 = pneg %p200
        %p761 = pneg %p197
        %p762 = pneg %p221
        %p763 = pneg %p218
        %s764 = sand.u32 %s37, 1
        %s765 = scalar_lea.sflag [#allocation6], %s764
        %s766 = sand.u32 %s234, 1
        %s767 = smul.addr %s766, 2304
        %s768 = scalar_lea.vmem [#allocation19], %s767
        %p769 = pneg %p247
        %p770 = pneg %p244
        %s771 = sand.u32 %s37, 1
        %s772 = scalar_lea.sflag [#allocation6], %s771
        %s773 = sand.u32 %s260, 1
        %s774 = smul.addr %s773, 6
        %s775 = scalar_lea.vmem [#allocation20], %s774
        %p776 = pneg %p273
        %p777 = pneg %p270
        %s778 = sand.u32 %s37, 1
        %s779 = scalar_lea.sflag [#allocation6], %s778
        %s780 = sand.u32 %s286, 1
        %s781 = smul.addr %s780, 2304
        %s782 = scalar_lea.vmem [#allocation21], %s781
        %p783 = pneg %p299
        %p784 = pneg %p296
        %p785 = pneg %p320
        %p786 = pneg %p317
        %p787 = pneg %p341
        %p788 = pneg %p338
        %p789 = pneg %p362
        %p790 = pneg %p359
        %p791 = pneg %p383
        %p792 = pneg %p380
        %p793 = pneg %p404
        %p794 = pneg %p401
        %p795 = pneg %p425
        %p796 = pneg %p422
        %s797 = smul.u32 6, %s37
        %s798 = smul.u32 6, %s37
        %s799 = smul.u32 96, %s37
        %p800 = scmp.eq.s32.totalorder %s37, 0
        // Predicated region
        $region153: #{tpu_custom_call.1} parent=87 // pred_check
          %p801 = pneg %p800
        $region154: #{tpu_custom_call.1} parent=87 // pred_check_branch
          %803 = sbr.rel (%p801) target = $region156
        $region155: #{tpu_custom_call.1} parent=87 // pred_region
          %v804 = vld [vmem:[#allocation5] sm:$0xff]
          %v805 = vld [vmem:[#allocation5 + $0x8] sm:$0xff]
          %v806 = vld [vmem:[#allocation5 + $0x10] sm:$0xff]
          %v807 = vld [vmem:[#allocation5 + $0x18] sm:$0xff]
          %v808 = vld [vmem:[#allocation5 + $0x20] sm:$0xff]
          %v809 = vld [vmem:[#allocation5 + $0x28] sm:$0xff]
          %v810 = vld [vmem:[#allocation5 + $0x30] sm:$0xff]
          %v811 = vld [vmem:[#allocation5 + $0x38] sm:$0xff]
          %v812 = vld [vmem:[#allocation5 + $0x40] sm:$0xff]
          %v813 = vld [vmem:[#allocation5 + $0x48] sm:$0xff]
          %v814 = vld [vmem:[#allocation5 + $0x50] sm:$0xff]
          %v815 = vld [vmem:[#allocation5 + $0x58] sm:$0xff]
          %v816 = vld [vmem:[#allocation8] sm:$0xff]
          %v817 = vld [vmem:[#allocation8 + $0x8] sm:$0xff]
          %v818 = vld [vmem:[#allocation8 + $0x10] sm:$0xff]
          %v819 = vld [vmem:[#allocation8 + $0x18] sm:$0xff]
          %v820 = vld [vmem:[#allocation8 + $0x20] sm:$0xff]
          %v821 = vld [vmem:[#allocation8 + $0x28] sm:$0xff]
          %v822 = vld [vmem:[#allocation8 + $0x30] sm:$0xff]
          %v823 = vld [vmem:[#allocation8 + $0x38] sm:$0xff]
          %v824 = vld [vmem:[#allocation8 + $0x40] sm:$0xff]
          %v825 = vld [vmem:[#allocation8 + $0x48] sm:$0xff]
          %v826 = vld [vmem:[#allocation8 + $0x50] sm:$0xff]
          %v827 = vld [vmem:[#allocation8 + $0x58] sm:$0xff]
          %828 = vmatprep.subr.mxu0 0.0
          %829 = vmatpush1.xpose.msra.mxu0 0.0
          %830 = vmatprep.subr.mxu0 0.0
          %831 = vmatpush1.xpose.msra.mxu0 0.0
          %832 = vmatprep.subr.mxu0 0.0
          %833 = vmatpush1.xpose.msra.mxu0 0.0
          %834 = vmatprep.subr.mxu0 0.0
          %835 = vmatpush1.xpose.msra.mxu0 0.0
          %836 = vmatprep.subr.mxu0 0.0
          %837 = vmatpush1.xpose.msra.mxu0 0.0
          %838 = vmatprep.subr.mxu0 0.0
          %839 = vmatpush1.xpose.msra.mxu0 0.0
          %840 = vmatprep.subr.mxu0 0.0
          %841 = vmatpush1.xpose.msra.mxu0 0.0
          %842 = vmatprep.subr.mxu0 0.0
          %843 = vmatpush1.xpose.msra.mxu0 0.0
          %844 = vmatprep.subr.mxu0 0.0
          %845 = vmatpush1.xpose.msra.mxu0 0.0
          %846 = vmatprep.subr.mxu0 0.0
          %847 = vmatpush1.xpose.msra.mxu0 0.0
          %848 = vmatprep.subr.mxu0 0.0
          %849 = vmatpush1.xpose.msra.mxu0 0.0
          %850 = vmatprep.subr.mxu0 0.0
          %851 = vmatpush1.xpose.msra.mxu0 0.0
          %852 = vmatprep.subr.mxu0 0.0
          %853 = vmatpush1.xpose.msra.mxu0 0.0
          %854 = vmatprep.subr.mxu0 0.0
          %855 = vmatpush1.xpose.msra.mxu0 0.0
          %856 = vmatprep.subr.mxu0 0.0
          %857 = vmatpush1.xpose.msra.mxu0 0.0
          %858 = vmatprep.subr.mxu0 %v817
          %859 = vmatpush1.xpose.msra.mxu0 %v816
          %860 = vmatprep.subr.mxu0 0.0
          %861 = vmatpush2.xpose.msra.mxu0 0.0
          %862 = vmatprep.subr.mxu0 0.0
          %863 = vmatpush2.xpose.msra.mxu0 0.0
          %864 = vmatprep.subr.mxu0 0.0
          %865 = vmatpush2.xpose.msra.mxu0 0.0
          %866 = vmatprep.subr.mxu0 0.0
          %867 = vmatpush2.xpose.msra.mxu0 0.0
          %868 = vmatprep.subr.mxu0 0.0
          %869 = vmatpush2.xpose.msra.mxu0 0.0
          %870 = vmatprep.subr.mxu0 0.0
          %871 = vmatpush2.xpose.msra.mxu0 0.0
          %872 = vmatprep.subr.mxu0 0.0
          %873 = vmatpush2.xpose.msra.mxu0 0.0
          %874 = vmatprep.subr.mxu0 0.0
          %875 = vmatpush2.xpose.msra.mxu0 0.0
          %876 = vmatprep.subr.mxu0 0.0
          %877 = vmatpush2.xpose.msra.mxu0 0.0
          %878 = vmatprep.subr.mxu0 0.0
          %879 = vmatpush2.xpose.msra.mxu0 0.0
          %880 = vmatprep.subr.mxu0 0.0
          %881 = vmatpush2.xpose.msra.mxu0 0.0
          %882 = vmatprep.subr.mxu0 0.0
          %883 = vmatpush2.xpose.msra.mxu0 0.0
          %884 = vmatprep.subr.mxu0 0.0
          %885 = vmatpush2.xpose.msra.mxu0 0.0
          %886 = vmatprep.subr.mxu0 0.0
          %887 = vmatpush2.xpose.msra.mxu0 0.0
          %888 = vmatprep.subr.mxu0 0.0
          %889 = vmatpush2.xpose.msra.mxu0 0.0
          %890 = vmatprep.subr.mxu0 0.0
          %891 = vmatpush2.xpose.msra.mxu0 0.0
          %892 = vmatprep.mubr.f32.mxu0 %v805
          %893 = vmatmul.mubr.f32.gmra.mxu0 %v804
          %v894 = vpop.f32.mrf.mxu0
          %v895 = vadd.f32 0.0, %v894
          %v896 = vpop.f32.mrf.mxu0
          %897 = vdwg.mxu0
          %898 = vmatprep.subr.mxu0 0.0
          %899 = vmatpush1.xpose.msra.mxu0 0.0
          %900 = vmatprep.subr.mxu0 0.0
          %901 = vmatpush1.xpose.msra.mxu0 0.0
          %902 = vmatprep.subr.mxu0 0.0
          %903 = vmatpush1.xpose.msra.mxu0 0.0
          %904 = vmatprep.subr.mxu0 0.0
          %905 = vmatpush1.xpose.msra.mxu0 0.0
          %906 = vmatprep.subr.mxu0 0.0
          %907 = vmatpush1.xpose.msra.mxu0 0.0
          %908 = vmatprep.subr.mxu0 0.0
          %909 = vmatpush1.xpose.msra.mxu0 0.0
          %910 = vmatprep.subr.mxu0 0.0
          %911 = vmatpush1.xpose.msra.mxu0 0.0
          %912 = vmatprep.subr.mxu0 0.0
          %913 = vmatpush1.xpose.msra.mxu0 0.0
          %914 = vmatprep.subr.mxu0 0.0
          %915 = vmatpush1.xpose.msra.mxu0 0.0
          %916 = vmatprep.subr.mxu0 0.0
          %917 = vmatpush1.xpose.msra.mxu0 0.0
          %918 = vmatprep.subr.mxu0 0.0
          %919 = vmatpush1.xpose.msra.mxu0 0.0
          %920 = vmatprep.subr.mxu0 0.0
          %921 = vmatpush1.xpose.msra.mxu0 0.0
          %922 = vmatprep.subr.mxu0 0.0
          %923 = vmatpush1.xpose.msra.mxu0 0.0
          %924 = vmatprep.subr.mxu0 0.0
          %925 = vmatpush1.xpose.msra.mxu0 0.0
          %926 = vmatprep.subr.mxu0 0.0
          %927 = vmatpush1.xpose.msra.mxu0 0.0
          %928 = vmatprep.subr.mxu0 %v819
          %929 = vmatpush1.xpose.msra.mxu0 %v818
          %930 = vmatprep.subr.mxu0 0.0
          %931 = vmatpush2.xpose.msra.mxu0 0.0
          %932 = vmatprep.subr.mxu0 0.0
          %933 = vmatpush2.xpose.msra.mxu0 0.0
          %934 = vmatprep.subr.mxu0 0.0
          %935 = vmatpush2.xpose.msra.mxu0 0.0
          %936 = vmatprep.subr.mxu0 0.0
          %937 = vmatpush2.xpose.msra.mxu0 0.0
          %938 = vmatprep.subr.mxu0 0.0
          %939 = vmatpush2.xpose.msra.mxu0 0.0
          %940 = vmatprep.subr.mxu0 0.0
          %941 = vmatpush2.xpose.msra.mxu0 0.0
          %942 = vmatprep.subr.mxu0 0.0
          %943 = vmatpush2.xpose.msra.mxu0 0.0
          %944 = vmatprep.subr.mxu0 0.0
          %945 = vmatpush2.xpose.msra.mxu0 0.0
          %946 = vmatprep.subr.mxu0 0.0
          %947 = vmatpush2.xpose.msra.mxu0 0.0
          %948 = vmatprep.subr.mxu0 0.0
          %949 = vmatpush2.xpose.msra.mxu0 0.0
          %950 = vmatprep.subr.mxu0 0.0
          %951 = vmatpush2.xpose.msra.mxu0 0.0
          %952 = vmatprep.subr.mxu0 0.0
          %953 = vmatpush2.xpose.msra.mxu0 0.0
          %954 = vmatprep.subr.mxu0 0.0
          %955 = vmatpush2.xpose.msra.mxu0 0.0
          %956 = vmatprep.subr.mxu0 0.0
          %957 = vmatpush2.xpose.msra.mxu0 0.0
          %958 = vmatprep.subr.mxu0 0.0
          %959 = vmatpush2.xpose.msra.mxu0 0.0
          %960 = vmatprep.subr.mxu0 0.0
          %961 = vmatpush2.xpose.msra.mxu0 0.0
          %962 = vmatprep.mubr.f32.mxu0 %v807
          %963 = vmatmul.mubr.f32.gmra.mxu0 %v806
          %v964 = vpop.f32.mrf.mxu0
          %v965 = vadd.f32 %v895, %v964
          %v966 = vpop.f32.mrf.mxu0
          %967 = vdwg.mxu0
          %968 = vmatprep.subr.mxu0 0.0
          %969 = vmatpush1.xpose.msra.mxu0 0.0
          %970 = vmatprep.subr.mxu0 0.0
          %971 = vmatpush1.xpose.msra.mxu0 0.0
          %972 = vmatprep.subr.mxu0 0.0
          %973 = vmatpush1.xpose.msra.mxu0 0.0
          %974 = vmatprep.subr.mxu0 0.0
          %975 = vmatpush1.xpose.msra.mxu0 0.0
          %976 = vmatprep.subr.mxu0 0.0
          %977 = vmatpush1.xpose.msra.mxu0 0.0
          %978 = vmatprep.subr.mxu0 0.0
          %979 = vmatpush1.xpose.msra.mxu0 0.0
          %980 = vmatprep.subr.mxu0 0.0
          %981 = vmatpush1.xpose.msra.mxu0 0.0
          %982 = vmatprep.subr.mxu0 0.0
          %983 = vmatpush1.xpose.msra.mxu0 0.0
          %984 = vmatprep.subr.mxu0 0.0
          %985 = vmatpush1.xpose.msra.mxu0 0.0
          %986 = vmatprep.subr.mxu0 0.0
          %987 = vmatpush1.xpose.msra.mxu0 0.0
          %988 = vmatprep.subr.mxu0 0.0
          %989 = vmatpush1.xpose.msra.mxu0 0.0
          %990 = vmatprep.subr.mxu0 0.0
          %991 = vmatpush1.xpose.msra.mxu0 0.0
          %992 = vmatprep.subr.mxu0 0.0
          %993 = vmatpush1.xpose.msra.mxu0 0.0
          %994 = vmatprep.subr.mxu0 0.0
          %995 = vmatpush1.xpose.msra.mxu0 0.0
          %996 = vmatprep.subr.mxu0 0.0
          %997 = vmatpush1.xpose.msra.mxu0 0.0
          %998 = vmatprep.subr.mxu0 %v821
          %999 = vmatpush1.xpose.msra.mxu0 %v820
          %1000 = vmatprep.subr.mxu0 0.0
          %1001 = vmatpush2.xpose.msra.mxu0 0.0
          %1002 = vmatprep.subr.mxu0 0.0
          %1003 = vmatpush2.xpose.msra.mxu0 0.0
          %1004 = vmatprep.subr.mxu0 0.0
          %1005 = vmatpush2.xpose.msra.mxu0 0.0
          %1006 = vmatprep.subr.mxu0 0.0
          %1007 = vmatpush2.xpose.msra.mxu0 0.0
          %1008 = vmatprep.subr.mxu0 0.0
          %1009 = vmatpush2.xpose.msra.mxu0 0.0
          %1010 = vmatprep.subr.mxu0 0.0
          %1011 = vmatpush2.xpose.msra.mxu0 0.0
          %1012 = vmatprep.subr.mxu0 0.0
          %1013 = vmatpush2.xpose.msra.mxu0 0.0
          %1014 = vmatprep.subr.mxu0 0.0
          %1015 = vmatpush2.xpose.msra.mxu0 0.0
          %1016 = vmatprep.subr.mxu0 0.0
          %1017 = vmatpush2.xpose.msra.mxu0 0.0
          %1018 = vmatprep.subr.mxu0 0.0
          %1019 = vmatpush2.xpose.msra.mxu0 0.0
          %1020 = vmatprep.subr.mxu0 0.0
          %1021 = vmatpush2.xpose.msra.mxu0 0.0
          %1022 = vmatprep.subr.mxu0 0.0
          %1023 = vmatpush2.xpose.msra.mxu0 0.0
          %1024 = vmatprep.subr.mxu0 0.0
          %1025 = vmatpush2.xpose.msra.mxu0 0.0
          %1026 = vmatprep.subr.mxu0 0.0
          %1027 = vmatpush2.xpose.msra.mxu0 0.0
          %1028 = vmatprep.subr.mxu0 0.0
          %1029 = vmatpush2.xpose.msra.mxu0 0.0
          %1030 = vmatprep.subr.mxu0 0.0
          %1031 = vmatpush2.xpose.msra.mxu0 0.0
          %1032 = vmatprep.mubr.f32.mxu0 %v809
          %1033 = vmatmul.mubr.f32.gmra.mxu0 %v808
          %v1034 = vpop.f32.mrf.mxu0
          %v1035 = vadd.f32 %v965, %v1034
          %v1036 = vpop.f32.mrf.mxu0
          %1037 = vdwg.mxu0
          %1038 = vmatprep.subr.mxu0 0.0
          %1039 = vmatpush1.xpose.msra.mxu0 0.0
          %1040 = vmatprep.subr.mxu0 0.0
          %1041 = vmatpush1.xpose.msra.mxu0 0.0
          %1042 = vmatprep.subr.mxu0 0.0
          %1043 = vmatpush1.xpose.msra.mxu0 0.0
          %1044 = vmatprep.subr.mxu0 0.0
          %1045 = vmatpush1.xpose.msra.mxu0 0.0
          %1046 = vmatprep.subr.mxu0 0.0
          %1047 = vmatpush1.xpose.msra.mxu0 0.0
          %1048 = vmatprep.subr.mxu0 0.0
          %1049 = vmatpush1.xpose.msra.mxu0 0.0
          %1050 = vmatprep.subr.mxu0 0.0
          %1051 = vmatpush1.xpose.msra.mxu0 0.0
          %1052 = vmatprep.subr.mxu0 0.0
          %1053 = vmatpush1.xpose.msra.mxu0 0.0
          %1054 = vmatprep.subr.mxu0 0.0
          %1055 = vmatpush1.xpose.msra.mxu0 0.0
          %1056 = vmatprep.subr.mxu0 0.0
          %1057 = vmatpush1.xpose.msra.mxu0 0.0
          %1058 = vmatprep.subr.mxu0 0.0
          %1059 = vmatpush1.xpose.msra.mxu0 0.0
          %1060 = vmatprep.subr.mxu0 0.0
          %1061 = vmatpush1.xpose.msra.mxu0 0.0
          %1062 = vmatprep.subr.mxu0 0.0
          %1063 = vmatpush1.xpose.msra.mxu0 0.0
          %1064 = vmatprep.subr.mxu0 0.0
          %1065 = vmatpush1.xpose.msra.mxu0 0.0
          %1066 = vmatprep.subr.mxu0 0.0
          %1067 = vmatpush1.xpose.msra.mxu0 0.0
          %1068 = vmatprep.subr.mxu0 %v823
          %1069 = vmatpush1.xpose.msra.mxu0 %v822
          %1070 = vmatprep.subr.mxu0 0.0
          %1071 = vmatpush2.xpose.msra.mxu0 0.0
          %1072 = vmatprep.subr.mxu0 0.0
          %1073 = vmatpush2.xpose.msra.mxu0 0.0
          %1074 = vmatprep.subr.mxu0 0.0
          %1075 = vmatpush2.xpose.msra.mxu0 0.0
          %1076 = vmatprep.subr.mxu0 0.0
          %1077 = vmatpush2.xpose.msra.mxu0 0.0
          %1078 = vmatprep.subr.mxu0 0.0
          %1079 = vmatpush2.xpose.msra.mxu0 0.0
          %1080 = vmatprep.subr.mxu0 0.0
          %1081 = vmatpush2.xpose.msra.mxu0 0.0
          %1082 = vmatprep.subr.mxu0 0.0
          %1083 = vmatpush2.xpose.msra.mxu0 0.0
          %1084 = vmatprep.subr.mxu0 0.0
          %1085 = vmatpush2.xpose.msra.mxu0 0.0
          %1086 = vmatprep.subr.mxu0 0.0
          %1087 = vmatpush2.xpose.msra.mxu0 0.0
          %1088 = vmatprep.subr.mxu0 0.0
          %1089 = vmatpush2.xpose.msra.mxu0 0.0
          %1090 = vmatprep.subr.mxu0 0.0
          %1091 = vmatpush2.xpose.msra.mxu0 0.0
          %1092 = vmatprep.subr.mxu0 0.0
          %1093 = vmatpush2.xpose.msra.mxu0 0.0
          %1094 = vmatprep.subr.mxu0 0.0
          %1095 = vmatpush2.xpose.msra.mxu0 0.0
          %1096 = vmatprep.subr.mxu0 0.0
          %1097 = vmatpush2.xpose.msra.mxu0 0.0
          %1098 = vmatprep.subr.mxu0 0.0
          %1099 = vmatpush2.xpose.msra.mxu0 0.0
          %1100 = vmatprep.subr.mxu0 0.0
          %1101 = vmatpush2.xpose.msra.mxu0 0.0
          %1102 = vmatprep.mubr.f32.mxu0 %v811
          %1103 = vmatmul.mubr.f32.gmra.mxu0 %v810
          %v1104 = vpop.f32.mrf.mxu0
          %v1105 = vadd.f32 0.0, %v1104
          %v1106 = vpop.f32.mrf.mxu0
          %1107 = vdwg.mxu0
          %1108 = vmatprep.subr.mxu0 0.0
          %1109 = vmatpush1.xpose.msra.mxu0 0.0
          %1110 = vmatprep.subr.mxu0 0.0
          %1111 = vmatpush1.xpose.msra.mxu0 0.0
          %1112 = vmatprep.subr.mxu0 0.0
          %1113 = vmatpush1.xpose.msra.mxu0 0.0
          %1114 = vmatprep.subr.mxu0 0.0
          %1115 = vmatpush1.xpose.msra.mxu0 0.0
          %1116 = vmatprep.subr.mxu0 0.0
          %1117 = vmatpush1.xpose.msra.mxu0 0.0
          %1118 = vmatprep.subr.mxu0 0.0
          %1119 = vmatpush1.xpose.msra.mxu0 0.0
          %1120 = vmatprep.subr.mxu0 0.0
          %1121 = vmatpush1.xpose.msra.mxu0 0.0
          %1122 = vmatprep.subr.mxu0 0.0
          %1123 = vmatpush1.xpose.msra.mxu0 0.0
          %1124 = vmatprep.subr.mxu0 0.0
          %1125 = vmatpush1.xpose.msra.mxu0 0.0
          %1126 = vmatprep.subr.mxu0 0.0
          %1127 = vmatpush1.xpose.msra.mxu0 0.0
          %1128 = vmatprep.subr.mxu0 0.0
          %1129 = vmatpush1.xpose.msra.mxu0 0.0
          %1130 = vmatprep.subr.mxu0 0.0
          %1131 = vmatpush1.xpose.msra.mxu0 0.0
          %1132 = vmatprep.subr.mxu0 0.0
          %1133 = vmatpush1.xpose.msra.mxu0 0.0
          %1134 = vmatprep.subr.mxu0 0.0
          %1135 = vmatpush1.xpose.msra.mxu0 0.0
          %1136 = vmatprep.subr.mxu0 0.0
          %1137 = vmatpush1.xpose.msra.mxu0 0.0
          %1138 = vmatprep.subr.mxu0 %v825
          %1139 = vmatpush1.xpose.msra.mxu0 %v824
          %1140 = vmatprep.subr.mxu0 0.0
          %1141 = vmatpush2.xpose.msra.mxu0 0.0
          %1142 = vmatprep.subr.mxu0 0.0
          %1143 = vmatpush2.xpose.msra.mxu0 0.0
          %1144 = vmatprep.subr.mxu0 0.0
          %1145 = vmatpush2.xpose.msra.mxu0 0.0
          %1146 = vmatprep.subr.mxu0 0.0
          %1147 = vmatpush2.xpose.msra.mxu0 0.0
          %1148 = vmatprep.subr.mxu0 0.0
          %1149 = vmatpush2.xpose.msra.mxu0 0.0
          %1150 = vmatprep.subr.mxu0 0.0
          %1151 = vmatpush2.xpose.msra.mxu0 0.0
          %1152 = vmatprep.subr.mxu0 0.0
          %1153 = vmatpush2.xpose.msra.mxu0 0.0
          %1154 = vmatprep.subr.mxu0 0.0
          %1155 = vmatpush2.xpose.msra.mxu0 0.0
          %1156 = vmatprep.subr.mxu0 0.0
          %1157 = vmatpush2.xpose.msra.mxu0 0.0
          %1158 = vmatprep.subr.mxu0 0.0
          %1159 = vmatpush2.xpose.msra.mxu0 0.0
          %1160 = vmatprep.subr.mxu0 0.0
          %1161 = vmatpush2.xpose.msra.mxu0 0.0
          %1162 = vmatprep.subr.mxu0 0.0
          %1163 = vmatpush2.xpose.msra.mxu0 0.0
          %1164 = vmatprep.subr.mxu0 0.0
          %1165 = vmatpush2.xpose.msra.mxu0 0.0
          %1166 = vmatprep.subr.mxu0 0.0
          %1167 = vmatpush2.xpose.msra.mxu0 0.0
          %1168 = vmatprep.subr.mxu0 0.0
          %1169 = vmatpush2.xpose.msra.mxu0 0.0
          %1170 = vmatprep.subr.mxu0 0.0
          %1171 = vmatpush2.xpose.msra.mxu0 0.0
          %1172 = vmatprep.mubr.f32.mxu0 %v813
          %1173 = vmatmul.mubr.f32.gmra.mxu0 %v812
          %v1174 = vpop.f32.mrf.mxu0
          %v1175 = vadd.f32 %v1105, %v1174
          %v1176 = vpop.f32.mrf.mxu0
          %1177 = vdwg.mxu0
          %1178 = vmatprep.subr.mxu0 0.0
          %1179 = vmatpush1.xpose.msra.mxu0 0.0
          %1180 = vmatprep.subr.mxu0 0.0
          %1181 = vmatpush1.xpose.msra.mxu0 0.0
          %1182 = vmatprep.subr.mxu0 0.0
          %1183 = vmatpush1.xpose.msra.mxu0 0.0
          %1184 = vmatprep.subr.mxu0 0.0
          %1185 = vmatpush1.xpose.msra.mxu0 0.0
          %1186 = vmatprep.subr.mxu0 0.0
          %1187 = vmatpush1.xpose.msra.mxu0 0.0
          %1188 = vmatprep.subr.mxu0 0.0
          %1189 = vmatpush1.xpose.msra.mxu0 0.0
          %1190 = vmatprep.subr.mxu0 0.0
          %1191 = vmatpush1.xpose.msra.mxu0 0.0
          %1192 = vmatprep.subr.mxu0 0.0
          %1193 = vmatpush1.xpose.msra.mxu0 0.0
          %1194 = vmatprep.subr.mxu0 0.0
          %1195 = vmatpush1.xpose.msra.mxu0 0.0
          %1196 = vmatprep.subr.mxu0 0.0
          %1197 = vmatpush1.xpose.msra.mxu0 0.0
          %1198 = vmatprep.subr.mxu0 0.0
          %1199 = vmatpush1.xpose.msra.mxu0 0.0
          %1200 = vmatprep.subr.mxu0 0.0
          %1201 = vmatpush1.xpose.msra.mxu0 0.0
          %1202 = vmatprep.subr.mxu0 0.0
          %1203 = vmatpush1.xpose.msra.mxu0 0.0
          %1204 = vmatprep.subr.mxu0 0.0
          %1205 = vmatpush1.xpose.msra.mxu0 0.0
          %1206 = vmatprep.subr.mxu0 0.0
          %1207 = vmatpush1.xpose.msra.mxu0 0.0
          %1208 = vmatprep.subr.mxu0 %v827
          %1209 = vmatpush1.xpose.msra.mxu0 %v826
          %1210 = vmatprep.subr.mxu0 0.0
          %1211 = vmatpush2.xpose.msra.mxu0 0.0
          %1212 = vmatprep.subr.mxu0 0.0
          %1213 = vmatpush2.xpose.msra.mxu0 0.0
          %1214 = vmatprep.subr.mxu0 0.0
          %1215 = vmatpush2.xpose.msra.mxu0 0.0
          %1216 = vmatprep.subr.mxu0 0.0
          %1217 = vmatpush2.xpose.msra.mxu0 0.0
          %1218 = vmatprep.subr.mxu0 0.0
          %1219 = vmatpush2.xpose.msra.mxu0 0.0
          %1220 = vmatprep.subr.mxu0 0.0
          %1221 = vmatpush2.xpose.msra.mxu0 0.0
          %1222 = vmatprep.subr.mxu0 0.0
          %1223 = vmatpush2.xpose.msra.mxu0 0.0
          %1224 = vmatprep.subr.mxu0 0.0
          %1225 = vmatpush2.xpose.msra.mxu0 0.0
          %1226 = vmatprep.subr.mxu0 0.0
          %1227 = vmatpush2.xpose.msra.mxu0 0.0
          %1228 = vmatprep.subr.mxu0 0.0
          %1229 = vmatpush2.xpose.msra.mxu0 0.0
          %1230 = vmatprep.subr.mxu0 0.0
          %1231 = vmatpush2.xpose.msra.mxu0 0.0
          %1232 = vmatprep.subr.mxu0 0.0
          %1233 = vmatpush2.xpose.msra.mxu0 0.0
          %1234 = vmatprep.subr.mxu0 0.0
          %1235 = vmatpush2.xpose.msra.mxu0 0.0
          %1236 = vmatprep.subr.mxu0 0.0
          %1237 = vmatpush2.xpose.msra.mxu0 0.0
          %1238 = vmatprep.subr.mxu0 0.0
          %1239 = vmatpush2.xpose.msra.mxu0 0.0
          %1240 = vmatprep.subr.mxu0 0.0
          %1241 = vmatpush2.xpose.msra.mxu0 0.0
          %1242 = vmatprep.mubr.f32.mxu0 %v815
          %1243 = vmatmul.mubr.f32.gmra.mxu0 %v814
          %v1244 = vpop.f32.mrf.mxu0
          %v1245 = vadd.f32 %v1175, %v1244
          %v1246 = vpop.f32.mrf.mxu0
          %1247 = vdwg.mxu0
          %vm1248 = vcmask 64512
          %v1249 = vsel %vm1248, %v1035, -inf
          %1250 = vmax.xlane.f32.xlu0 %v1249
          %v1251 = vpop.xlane.xlu0 %1250
          %v1252 = vsel %vm1248, %v1245, -inf
          %1253 = vmax.xlane.f32.xlu0 %v1252
          %v1254 = vpop.xlane.xlu0 %1253
          %v1255 = vsub.f32 %v1035, %v1251
          %v1256 = vsub.f32 %v1245, %v1254
          %v1257 = vmul.f32 %v1255, 1.442695
          %v1258 = vpow.pop %v1257
          %v1259 = vmul.f32 %v1256, 1.442695
          %v1260 = vpow.pop %v1259
          %v1261 = vsel %vm1248, %v1258, 0.0
          %1262 = vadd.xlane.f32.xlu0 %v1261
          %v1263 = vpop.xlane.xlu0 %1262
          %v1264 = vsel %vm1248, %v1260, 0.0
          %1265 = vadd.xlane.f32.xlu0 %v1264
          %v1266 = vpop.xlane.xlu0 %1265
          %v1267 = vrcp.pop %v1263
          %v1268 = vrcp.pop %v1266
          %v1269 = vmul.f32 %v1258, %v1267
          %v1270 = vmul.f32 %v1260, %v1268
          %v1272 = vsel %vm1248, %v1269, 0
          %1274 = vmatprep.subr.mxu0 0.0
          %1275 = vmatpush1.msra.mxu0 0.0
          %1276 = vmatprep.subr.mxu0 0.0
          %1277 = vmatpush1.msra.mxu0 0.0
          %1278 = vmatprep.subr.mxu0 0.0
          %1279 = vmatpush1.msra.mxu0 0.0
          %1280 = vmatprep.subr.mxu0 0.0
          %1281 = vmatpush1.msra.mxu0 0.0
          %1282 = vmatprep.subr.mxu0 0.0
          %1283 = vmatpush1.msra.mxu0 0.0
          %1284 = vmatprep.subr.mxu0 0.0
          %1285 = vmatpush1.msra.mxu0 0.0
          %1286 = vmatprep.subr.mxu0 0.0
          %1287 = vmatpush1.msra.mxu0 0.0
          %1288 = vmatprep.subr.mxu0 0.0
          %1289 = vmatpush1.msra.mxu0 0.0
          %1290 = vmatprep.subr.mxu0 0.0
          %1291 = vmatpush1.msra.mxu0 0.0
          %1292 = vmatprep.subr.mxu0 0.0
          %1293 = vmatpush1.msra.mxu0 0.0
          %1294 = vmatprep.subr.mxu0 0.0
          %1295 = vmatpush1.msra.mxu0 0.0
          %1296 = vmatprep.subr.mxu0 0.0
          %1297 = vmatpush1.msra.mxu0 0.0
          %1298 = vmatprep.subr.mxu0 0.0
          %1299 = vmatpush1.msra.mxu0 0.0
          %1300 = vmatprep.subr.mxu0 0.0
          %1301 = vmatpush1.msra.mxu0 0.0
          %1302 = vmatprep.subr.mxu0 0.0
          %1303 = vmatpush1.msra.mxu0 0.0
          %1304 = vmatprep.subr.mxu0 %v817
          %1305 = vmatpush1.msra.mxu0 %v816
          %1306 = vmatprep.subr.mxu0 0.0
          %1307 = vmatpush2.msra.mxu0 0.0
          %1308 = vmatprep.subr.mxu0 0.0
          %1309 = vmatpush2.msra.mxu0 0.0
          %1310 = vmatprep.subr.mxu0 0.0
          %1311 = vmatpush2.msra.mxu0 0.0
          %1312 = vmatprep.subr.mxu0 0.0
          %1313 = vmatpush2.msra.mxu0 0.0
          %1314 = vmatprep.subr.mxu0 0.0
          %1315 = vmatpush2.msra.mxu0 0.0
          %1316 = vmatprep.subr.mxu0 0.0
          %1317 = vmatpush2.msra.mxu0 0.0
          %1318 = vmatprep.subr.mxu0 0.0
          %1319 = vmatpush2.msra.mxu0 0.0
          %1320 = vmatprep.subr.mxu0 0.0
          %1321 = vmatpush2.msra.mxu0 0.0
          %1322 = vmatprep.subr.mxu0 0.0
          %1323 = vmatpush2.msra.mxu0 0.0
          %1324 = vmatprep.subr.mxu0 0.0
          %1325 = vmatpush2.msra.mxu0 0.0
          %1326 = vmatprep.subr.mxu0 0.0
          %1327 = vmatpush2.msra.mxu0 0.0
          %1328 = vmatprep.subr.mxu0 0.0
          %1329 = vmatpush2.msra.mxu0 0.0
          %1330 = vmatprep.subr.mxu0 0.0
          %1331 = vmatpush2.msra.mxu0 0.0
          %1332 = vmatprep.subr.mxu0 0.0
          %1333 = vmatpush2.msra.mxu0 0.0
          %1334 = vmatprep.subr.mxu0 0.0
          %1335 = vmatpush2.msra.mxu0 0.0
          %1336 = vmatprep.subr.mxu0 0.0
          %1337 = vmatpush2.msra.mxu0 0.0
          %1338 = vmatprep.mubr.f32.mxu0 0.0
          %1339 = vmatmul.mubr.f32.gmra.mxu0 %v1272
          %v1340 = vpop.f32.mrf.mxu0
          %v1341 = vadd.f32 0.0, %v1340
          %v1342 = vpop.f32.mrf.mxu0
          %v1343 = vadd.f32 0.0, %v1342
          %1344 = vdwg.mxu0
          %1345 = vmatprep.subr.mxu0 0.0
          %1346 = vmatpush1.msra.mxu0 0.0
          %1347 = vmatprep.subr.mxu0 0.0
          %1348 = vmatpush1.msra.mxu0 0.0
          %1349 = vmatprep.subr.mxu0 0.0
          %1350 = vmatpush1.msra.mxu0 0.0
          %1351 = vmatprep.subr.mxu0 0.0
          %1352 = vmatpush1.msra.mxu0 0.0
          %1353 = vmatprep.subr.mxu0 0.0
          %1354 = vmatpush1.msra.mxu0 0.0
          %1355 = vmatprep.subr.mxu0 0.0
          %1356 = vmatpush1.msra.mxu0 0.0
          %1357 = vmatprep.subr.mxu0 0.0
          %1358 = vmatpush1.msra.mxu0 0.0
          %1359 = vmatprep.subr.mxu0 0.0
          %1360 = vmatpush1.msra.mxu0 0.0
          %1361 = vmatprep.subr.mxu0 0.0
          %1362 = vmatpush1.msra.mxu0 0.0
          %1363 = vmatprep.subr.mxu0 0.0
          %1364 = vmatpush1.msra.mxu0 0.0
          %1365 = vmatprep.subr.mxu0 0.0
          %1366 = vmatpush1.msra.mxu0 0.0
          %1367 = vmatprep.subr.mxu0 0.0
          %1368 = vmatpush1.msra.mxu0 0.0
          %1369 = vmatprep.subr.mxu0 0.0
          %1370 = vmatpush1.msra.mxu0 0.0
          %1371 = vmatprep.subr.mxu0 0.0
          %1372 = vmatpush1.msra.mxu0 0.0
          %1373 = vmatprep.subr.mxu0 0.0
          %1374 = vmatpush1.msra.mxu0 0.0
          %1375 = vmatprep.subr.mxu0 %v819
          %1376 = vmatpush1.msra.mxu0 %v818
          %1377 = vmatprep.subr.mxu0 0.0
          %1378 = vmatpush2.msra.mxu0 0.0
          %1379 = vmatprep.subr.mxu0 0.0
          %1380 = vmatpush2.msra.mxu0 0.0
          %1381 = vmatprep.subr.mxu0 0.0
          %1382 = vmatpush2.msra.mxu0 0.0
          %1383 = vmatprep.subr.mxu0 0.0
          %1384 = vmatpush2.msra.mxu0 0.0
          %1385 = vmatprep.subr.mxu0 0.0
          %1386 = vmatpush2.msra.mxu0 0.0
          %1387 = vmatprep.subr.mxu0 0.0
          %1388 = vmatpush2.msra.mxu0 0.0
          %1389 = vmatprep.subr.mxu0 0.0
          %1390 = vmatpush2.msra.mxu0 0.0
          %1391 = vmatprep.subr.mxu0 0.0
          %1392 = vmatpush2.msra.mxu0 0.0
          %1393 = vmatprep.subr.mxu0 0.0
          %1394 = vmatpush2.msra.mxu0 0.0
          %1395 = vmatprep.subr.mxu0 0.0
          %1396 = vmatpush2.msra.mxu0 0.0
          %1397 = vmatprep.subr.mxu0 0.0
          %1398 = vmatpush2.msra.mxu0 0.0
          %1399 = vmatprep.subr.mxu0 0.0
          %1400 = vmatpush2.msra.mxu0 0.0
          %1401 = vmatprep.subr.mxu0 0.0
          %1402 = vmatpush2.msra.mxu0 0.0
          %1403 = vmatprep.subr.mxu0 0.0
          %1404 = vmatpush2.msra.mxu0 0.0
          %1405 = vmatprep.subr.mxu0 0.0
          %1406 = vmatpush2.msra.mxu0 0.0
          %1407 = vmatprep.subr.mxu0 0.0
          %1408 = vmatpush2.msra.mxu0 0.0
          %1409 = vmatprep.mubr.f32.mxu0 0.0
          %1410 = vmatmul.mubr.f32.gmra.mxu0 %v1272
          %v1411 = vpop.f32.mrf.mxu0
          %v1412 = vadd.f32 0.0, %v1411
          %v1413 = vpop.f32.mrf.mxu0
          %v1414 = vadd.f32 0.0, %v1413
          %1415 = vdwg.mxu0
          %1416 = vmatprep.subr.mxu0 0.0
          %1417 = vmatpush1.msra.mxu0 0.0
          %1418 = vmatprep.subr.mxu0 0.0
          %1419 = vmatpush1.msra.mxu0 0.0
          %1420 = vmatprep.subr.mxu0 0.0
          %1421 = vmatpush1.msra.mxu0 0.0
          %1422 = vmatprep.subr.mxu0 0.0
          %1423 = vmatpush1.msra.mxu0 0.0
          %1424 = vmatprep.subr.mxu0 0.0
          %1425 = vmatpush1.msra.mxu0 0.0
          %1426 = vmatprep.subr.mxu0 0.0
          %1427 = vmatpush1.msra.mxu0 0.0
          %1428 = vmatprep.subr.mxu0 0.0
          %1429 = vmatpush1.msra.mxu0 0.0
          %1430 = vmatprep.subr.mxu0 0.0
          %1431 = vmatpush1.msra.mxu0 0.0
          %1432 = vmatprep.subr.mxu0 0.0
          %1433 = vmatpush1.msra.mxu0 0.0
          %1434 = vmatprep.subr.mxu0 0.0
          %1435 = vmatpush1.msra.mxu0 0.0
          %1436 = vmatprep.subr.mxu0 0.0
          %1437 = vmatpush1.msra.mxu0 0.0
          %1438 = vmatprep.subr.mxu0 0.0
          %1439 = vmatpush1.msra.mxu0 0.0
          %1440 = vmatprep.subr.mxu0 0.0
          %1441 = vmatpush1.msra.mxu0 0.0
          %1442 = vmatprep.subr.mxu0 0.0
          %1443 = vmatpush1.msra.mxu0 0.0
          %1444 = vmatprep.subr.mxu0 0.0
          %1445 = vmatpush1.msra.mxu0 0.0
          %1446 = vmatprep.subr.mxu0 %v821
          %1447 = vmatpush1.msra.mxu0 %v820
          %1448 = vmatprep.subr.mxu0 0.0
          %1449 = vmatpush2.msra.mxu0 0.0
          %1450 = vmatprep.subr.mxu0 0.0
          %1451 = vmatpush2.msra.mxu0 0.0
          %1452 = vmatprep.subr.mxu0 0.0
          %1453 = vmatpush2.msra.mxu0 0.0
          %1454 = vmatprep.subr.mxu0 0.0
          %1455 = vmatpush2.msra.mxu0 0.0
          %1456 = vmatprep.subr.mxu0 0.0
          %1457 = vmatpush2.msra.mxu0 0.0
          %1458 = vmatprep.subr.mxu0 0.0
          %1459 = vmatpush2.msra.mxu0 0.0
          %1460 = vmatprep.subr.mxu0 0.0
          %1461 = vmatpush2.msra.mxu0 0.0
          %1462 = vmatprep.subr.mxu0 0.0
          %1463 = vmatpush2.msra.mxu0 0.0
          %1464 = vmatprep.subr.mxu0 0.0
          %1465 = vmatpush2.msra.mxu0 0.0
          %1466 = vmatprep.subr.mxu0 0.0
          %1467 = vmatpush2.msra.mxu0 0.0
          %1468 = vmatprep.subr.mxu0 0.0
          %1469 = vmatpush2.msra.mxu0 0.0
          %1470 = vmatprep.subr.mxu0 0.0
          %1471 = vmatpush2.msra.mxu0 0.0
          %1472 = vmatprep.subr.mxu0 0.0
          %1473 = vmatpush2.msra.mxu0 0.0
          %1474 = vmatprep.subr.mxu0 0.0
          %1475 = vmatpush2.msra.mxu0 0.0
          %1476 = vmatprep.subr.mxu0 0.0
          %1477 = vmatpush2.msra.mxu0 0.0
          %1478 = vmatprep.subr.mxu0 0.0
          %1479 = vmatpush2.msra.mxu0 0.0
          %1480 = vmatprep.mubr.f32.mxu0 0.0
          %1481 = vmatmul.mubr.f32.gmra.mxu0 %v1272
          %v1482 = vpop.f32.mrf.mxu0
          %v1483 = vadd.f32 0.0, %v1482
          %v1484 = vpop.f32.mrf.mxu0
          %v1485 = vadd.f32 0.0, %v1484
          %1486 = vdwg.mxu0
          %v1488 = vsel %vm1248, %v1270, 0
          %1490 = vmatprep.subr.mxu0 0.0
          %1491 = vmatpush1.msra.mxu0 0.0
          %1492 = vmatprep.subr.mxu0 0.0
          %1493 = vmatpush1.msra.mxu0 0.0
          %1494 = vmatprep.subr.mxu0 0.0
          %1495 = vmatpush1.msra.mxu0 0.0
          %1496 = vmatprep.subr.mxu0 0.0
          %1497 = vmatpush1.msra.mxu0 0.0
          %1498 = vmatprep.subr.mxu0 0.0
          %1499 = vmatpush1.msra.mxu0 0.0
          %1500 = vmatprep.subr.mxu0 0.0
          %1501 = vmatpush1.msra.mxu0 0.0
          %1502 = vmatprep.subr.mxu0 0.0
          %1503 = vmatpush1.msra.mxu0 0.0
          %1504 = vmatprep.subr.mxu0 0.0
          %1505 = vmatpush1.msra.mxu0 0.0
          %1506 = vmatprep.subr.mxu0 0.0
          %1507 = vmatpush1.msra.mxu0 0.0
          %1508 = vmatprep.subr.mxu0 0.0
          %1509 = vmatpush1.msra.mxu0 0.0
          %1510 = vmatprep.subr.mxu0 0.0
          %1511 = vmatpush1.msra.mxu0 0.0
          %1512 = vmatprep.subr.mxu0 0.0
          %1513 = vmatpush1.msra.mxu0 0.0
          %1514 = vmatprep.subr.mxu0 0.0
          %1515 = vmatpush1.msra.mxu0 0.0
          %1516 = vmatprep.subr.mxu0 0.0
          %1517 = vmatpush1.msra.mxu0 0.0
          %1518 = vmatprep.subr.mxu0 0.0
          %1519 = vmatpush1.msra.mxu0 0.0
          %1520 = vmatprep.subr.mxu0 %v823
          %1521 = vmatpush1.msra.mxu0 %v822
          %1522 = vmatprep.subr.mxu0 0.0
          %1523 = vmatpush2.msra.mxu0 0.0
          %1524 = vmatprep.subr.mxu0 0.0
          %1525 = vmatpush2.msra.mxu0 0.0
          %1526 = vmatprep.subr.mxu0 0.0
          %1527 = vmatpush2.msra.mxu0 0.0
          %1528 = vmatprep.subr.mxu0 0.0
          %1529 = vmatpush2.msra.mxu0 0.0
          %1530 = vmatprep.subr.mxu0 0.0
          %1531 = vmatpush2.msra.mxu0 0.0
          %1532 = vmatprep.subr.mxu0 0.0
          %1533 = vmatpush2.msra.mxu0 0.0
          %1534 = vmatprep.subr.mxu0 0.0
          %1535 = vmatpush2.msra.mxu0 0.0
          %1536 = vmatprep.subr.mxu0 0.0
          %1537 = vmatpush2.msra.mxu0 0.0
          %1538 = vmatprep.subr.mxu0 0.0
          %1539 = vmatpush2.msra.mxu0 0.0
          %1540 = vmatprep.subr.mxu0 0.0
          %1541 = vmatpush2.msra.mxu0 0.0
          %1542 = vmatprep.subr.mxu0 0.0
          %1543 = vmatpush2.msra.mxu0 0.0
          %1544 = vmatprep.subr.mxu0 0.0
          %1545 = vmatpush2.msra.mxu0 0.0
          %1546 = vmatprep.subr.mxu0 0.0
          %1547 = vmatpush2.msra.mxu0 0.0
          %1548 = vmatprep.subr.mxu0 0.0
          %1549 = vmatpush2.msra.mxu0 0.0
          %1550 = vmatprep.subr.mxu0 0.0
          %1551 = vmatpush2.msra.mxu0 0.0
          %1552 = vmatprep.subr.mxu0 0.0
          %1553 = vmatpush2.msra.mxu0 0.0
          %1554 = vmatprep.mubr.f32.mxu0 0.0
          %1555 = vmatmul.mubr.f32.gmra.mxu0 %v1488
          %v1556 = vpop.f32.mrf.mxu0
          %v1557 = vadd.f32 0.0, %v1556
          %v1558 = vpop.f32.mrf.mxu0
          %v1559 = vadd.f32 0.0, %v1558
          %1560 = vdwg.mxu0
          %1561 = vmatprep.subr.mxu0 0.0
          %1562 = vmatpush1.msra.mxu0 0.0
          %1563 = vmatprep.subr.mxu0 0.0
          %1564 = vmatpush1.msra.mxu0 0.0
          %1565 = vmatprep.subr.mxu0 0.0
          %1566 = vmatpush1.msra.mxu0 0.0
          %1567 = vmatprep.subr.mxu0 0.0
          %1568 = vmatpush1.msra.mxu0 0.0
          %1569 = vmatprep.subr.mxu0 0.0
          %1570 = vmatpush1.msra.mxu0 0.0
          %1571 = vmatprep.subr.mxu0 0.0
          %1572 = vmatpush1.msra.mxu0 0.0
          %1573 = vmatprep.subr.mxu0 0.0
          %1574 = vmatpush1.msra.mxu0 0.0
          %1575 = vmatprep.subr.mxu0 0.0
          %1576 = vmatpush1.msra.mxu0 0.0
          %1577 = vmatprep.subr.mxu0 0.0
          %1578 = vmatpush1.msra.mxu0 0.0
          %1579 = vmatprep.subr.mxu0 0.0
          %1580 = vmatpush1.msra.mxu0 0.0
          %1581 = vmatprep.subr.mxu0 0.0
          %1582 = vmatpush1.msra.mxu0 0.0
          %1583 = vmatprep.subr.mxu0 0.0
          %1584 = vmatpush1.msra.mxu0 0.0
          %1585 = vmatprep.subr.mxu0 0.0
          %1586 = vmatpush1.msra.mxu0 0.0
          %1587 = vmatprep.subr.mxu0 0.0
          %1588 = vmatpush1.msra.mxu0 0.0
          %1589 = vmatprep.subr.mxu0 0.0
          %1590 = vmatpush1.msra.mxu0 0.0
          %1591 = vmatprep.subr.mxu0 %v825
          %1592 = vmatpush1.msra.mxu0 %v824
          %1593 = vmatprep.subr.mxu0 0.0
          %1594 = vmatpush2.msra.mxu0 0.0
          %1595 = vmatprep.subr.mxu0 0.0
          %1596 = vmatpush2.msra.mxu0 0.0
          %1597 = vmatprep.subr.mxu0 0.0
          %1598 = vmatpush2.msra.mxu0 0.0
          %1599 = vmatprep.subr.mxu0 0.0
          %1600 = vmatpush2.msra.mxu0 0.0
          %1601 = vmatprep.subr.mxu0 0.0
          %1602 = vmatpush2.msra.mxu0 0.0
          %1603 = vmatprep.subr.mxu0 0.0
          %1604 = vmatpush2.msra.mxu0 0.0
          %1605 = vmatprep.subr.mxu0 0.0
          %1606 = vmatpush2.msra.mxu0 0.0
          %1607 = vmatprep.subr.mxu0 0.0
          %1608 = vmatpush2.msra.mxu0 0.0
          %1609 = vmatprep.subr.mxu0 0.0
          %1610 = vmatpush2.msra.mxu0 0.0
          %1611 = vmatprep.subr.mxu0 0.0
          %1612 = vmatpush2.msra.mxu0 0.0
          %1613 = vmatprep.subr.mxu0 0.0
          %1614 = vmatpush2.msra.mxu0 0.0
          %1615 = vmatprep.subr.mxu0 0.0
          %1616 = vmatpush2.msra.mxu0 0.0
          %1617 = vmatprep.subr.mxu0 0.0
          %1618 = vmatpush2.msra.mxu0 0.0
          %1619 = vmatprep.subr.mxu0 0.0
          %1620 = vmatpush2.msra.mxu0 0.0
          %1621 = vmatprep.subr.mxu0 0.0
          %1622 = vmatpush2.msra.mxu0 0.0
          %1623 = vmatprep.subr.mxu0 0.0
          %1624 = vmatpush2.msra.mxu0 0.0
          %1625 = vmatprep.mubr.f32.mxu0 0.0
          %1626 = vmatmul.mubr.f32.gmra.mxu0 %v1488
          %v1627 = vpop.f32.mrf.mxu0
          %v1628 = vadd.f32 0.0, %v1627
          %v1629 = vpop.f32.mrf.mxu0
          %v1630 = vadd.f32 0.0, %v1629
          %1631 = vdwg.mxu0
          %1632 = vmatprep.subr.mxu0 0.0
          %1633 = vmatpush1.msra.mxu0 0.0
          %1634 = vmatprep.subr.mxu0 0.0
          %1635 = vmatpush1.msra.mxu0 0.0
          %1636 = vmatprep.subr.mxu0 0.0
          %1637 = vmatpush1.msra.mxu0 0.0
          %1638 = vmatprep.subr.mxu0 0.0
          %1639 = vmatpush1.msra.mxu0 0.0
          %1640 = vmatprep.subr.mxu0 0.0
          %1641 = vmatpush1.msra.mxu0 0.0
          %1642 = vmatprep.subr.mxu0 0.0
          %1643 = vmatpush1.msra.mxu0 0.0
          %1644 = vmatprep.subr.mxu0 0.0
          %1645 = vmatpush1.msra.mxu0 0.0
          %1646 = vmatprep.subr.mxu0 0.0
          %1647 = vmatpush1.msra.mxu0 0.0
          %1648 = vmatprep.subr.mxu0 0.0
          %1649 = vmatpush1.msra.mxu0 0.0
          %1650 = vmatprep.subr.mxu0 0.0
          %1651 = vmatpush1.msra.mxu0 0.0
          %1652 = vmatprep.subr.mxu0 0.0
          %1653 = vmatpush1.msra.mxu0 0.0
          %1654 = vmatprep.subr.mxu0 0.0
          %1655 = vmatpush1.msra.mxu0 0.0
          %1656 = vmatprep.subr.mxu0 0.0
          %1657 = vmatpush1.msra.mxu0 0.0
          %1658 = vmatprep.subr.mxu0 0.0
          %1659 = vmatpush1.msra.mxu0 0.0
          %1660 = vmatprep.subr.mxu0 0.0
          %1661 = vmatpush1.msra.mxu0 0.0
          %1662 = vmatprep.subr.mxu0 %v827
          %1663 = vmatpush1.msra.mxu0 %v826
          %1664 = vmatprep.subr.mxu0 0.0
          %1665 = vmatpush2.msra.mxu0 0.0
          %1666 = vmatprep.subr.mxu0 0.0
          %1667 = vmatpush2.msra.mxu0 0.0
          %1668 = vmatprep.subr.mxu0 0.0
          %1669 = vmatpush2.msra.mxu0 0.0
          %1670 = vmatprep.subr.mxu0 0.0
          %1671 = vmatpush2.msra.mxu0 0.0
          %1672 = vmatprep.subr.mxu0 0.0
          %1673 = vmatpush2.msra.mxu0 0.0
          %1674 = vmatprep.subr.mxu0 0.0
          %1675 = vmatpush2.msra.mxu0 0.0
          %1676 = vmatprep.subr.mxu0 0.0
          %1677 = vmatpush2.msra.mxu0 0.0
          %1678 = vmatprep.subr.mxu0 0.0
          %1679 = vmatpush2.msra.mxu0 0.0
          %1680 = vmatprep.subr.mxu0 0.0
          %1681 = vmatpush2.msra.mxu0 0.0
          %1682 = vmatprep.subr.mxu0 0.0
          %1683 = vmatpush2.msra.mxu0 0.0
          %1684 = vmatprep.subr.mxu0 0.0
          %1685 = vmatpush2.msra.mxu0 0.0
          %1686 = vmatprep.subr.mxu0 0.0
          %1687 = vmatpush2.msra.mxu0 0.0
          %1688 = vmatprep.subr.mxu0 0.0
          %1689 = vmatpush2.msra.mxu0 0.0
          %1690 = vmatprep.subr.mxu0 0.0
          %1691 = vmatpush2.msra.mxu0 0.0
          %1692 = vmatprep.subr.mxu0 0.0
          %1693 = vmatpush2.msra.mxu0 0.0
          %1694 = vmatprep.subr.mxu0 0.0
          %1695 = vmatpush2.msra.mxu0 0.0
          %1696 = vmatprep.mubr.f32.mxu0 0.0
          %1697 = vmatmul.mubr.f32.gmra.mxu0 %v1488
          %v1698 = vpop.f32.mrf.mxu0
          %v1699 = vadd.f32 0.0, %v1698
          %v1700 = vpop.f32.mrf.mxu0
          %v1701 = vadd.f32 0.0, %v1700
          %1702 = vdwg.mxu0
          %v1703 = vrot.slane %v816, 4
          %v1704 = vadd.f32 %v816, %v1703
          %v1705 = vrot.slane %v1704, 2
          %v1706 = vadd.f32 %v1704, %v1705
          %v1707 = vrot.slane %v1706, 1
          %v1708 = vadd.f32 %v1706, %v1707
          %v1709 = vrot.slane %v817, 4
          %v1710 = vadd.f32 %v817, %v1709
          %v1711 = vrot.slane %v1710, 2
          %v1712 = vadd.f32 %v1710, %v1711
          %v1713 = vrot.slane %v1712, 1
          %v1714 = vadd.f32 %v1712, %v1713
          %v1715 = vrot.slane %v818, 4
          %v1716 = vadd.f32 %v818, %v1715
          %v1717 = vrot.slane %v1716, 2
          %v1718 = vadd.f32 %v1716, %v1717
          %v1719 = vrot.slane %v1718, 1
          %v1720 = vadd.f32 %v1718, %v1719
          %v1721 = vrot.slane %v819, 4
          %v1722 = vadd.f32 %v819, %v1721
          %v1723 = vrot.slane %v1722, 2
          %v1724 = vadd.f32 %v1722, %v1723
          %v1725 = vrot.slane %v1724, 1
          %v1726 = vadd.f32 %v1724, %v1725
          %v1727 = vrot.slane %v820, 4
          %v1728 = vadd.f32 %v820, %v1727
          %v1729 = vrot.slane %v1728, 2
          %v1730 = vadd.f32 %v1728, %v1729
          %v1731 = vrot.slane %v1730, 1
          %v1732 = vadd.f32 %v1730, %v1731
          %v1733 = vrot.slane %v821, 4
          %v1734 = vadd.f32 %v821, %v1733
          %v1735 = vrot.slane %v1734, 2
          %v1736 = vadd.f32 %v1734, %v1735
          %v1737 = vrot.slane %v1736, 1
          %v1738 = vadd.f32 %v1736, %v1737
          %v1739 = vrot.slane %v822, 4
          %v1740 = vadd.f32 %v822, %v1739
          %v1741 = vrot.slane %v1740, 2
          %v1742 = vadd.f32 %v1740, %v1741
          %v1743 = vrot.slane %v1742, 1
          %v1744 = vadd.f32 %v1742, %v1743
          %v1745 = vrot.slane %v823, 4
          %v1746 = vadd.f32 %v823, %v1745
          %v1747 = vrot.slane %v1746, 2
          %v1748 = vadd.f32 %v1746, %v1747
          %v1749 = vrot.slane %v1748, 1
          %v1750 = vadd.f32 %v1748, %v1749
          %v1751 = vrot.slane %v824, 4
          %v1752 = vadd.f32 %v824, %v1751
          %v1753 = vrot.slane %v1752, 2
          %v1754 = vadd.f32 %v1752, %v1753
          %v1755 = vrot.slane %v1754, 1
          %v1756 = vadd.f32 %v1754, %v1755
          %v1757 = vrot.slane %v825, 4
          %v1758 = vadd.f32 %v825, %v1757
          %v1759 = vrot.slane %v1758, 2
          %v1760 = vadd.f32 %v1758, %v1759
          %v1761 = vrot.slane %v1760, 1
          %v1762 = vadd.f32 %v1760, %v1761
          %v1763 = vrot.slane %v826, 4
          %v1764 = vadd.f32 %v826, %v1763
          %v1765 = vrot.slane %v1764, 2
          %v1766 = vadd.f32 %v1764, %v1765
          %v1767 = vrot.slane %v1766, 1
          %v1768 = vadd.f32 %v1766, %v1767
          %v1769 = vrot.slane %v827, 4
          %v1770 = vadd.f32 %v827, %v1769
          %v1771 = vrot.slane %v1770, 2
          %v1772 = vadd.f32 %v1770, %v1771
          %v1773 = vrot.slane %v1772, 1
          %v1774 = vadd.f32 %v1772, %v1773
          %v1775 = vrcp.pop 8.0
          %v1776 = vmul.f32 %v1708, %v1775
          %v1777 = vmul.f32 %v1714, %v1775
          %v1778 = vmul.f32 %v1720, %v1775
          %v1779 = vmul.f32 %v1726, %v1775
          %v1780 = vmul.f32 %v1732, %v1775
          %v1781 = vmul.f32 %v1738, %v1775
          %v1782 = vmul.f32 %v1744, %v1775
          %v1783 = vmul.f32 %v1750, %v1775
          %v1784 = vmul.f32 %v1756, %v1775
          %v1785 = vmul.f32 %v1762, %v1775
          %v1786 = vmul.f32 %v1768, %v1775
          %v1787 = vmul.f32 %v1774, %v1775
          %v1788 = vld [vmem:[#allocation10] sm:$0x3f]
          %v1790 = vlaneseq
          %v1791 = vshrl.u32 %v1790, 7
          %v1792 = vsub.s32 0, %v1791
          %v1793 = vrot.slane %v1788, %v1792
          %v1794 = vlaneseq
          %v1795 = vshrl.u32 %v1794, 7
          %v1796 = vsub.s32 1, %v1795
          %v1797 = vrot.slane %v1788, %v1796
          %v1798 = vlaneseq
          %v1799 = vshrl.u32 %v1798, 7
          %v1800 = vsub.s32 2, %v1799
          %v1801 = vrot.slane %v1788, %v1800
          %v1802 = vlaneseq
          %v1803 = vshrl.u32 %v1802, 7
          %v1804 = vsub.s32 3, %v1803
          %v1805 = vrot.slane %v1788, %v1804
          %v1806 = vlaneseq
          %v1807 = vshrl.u32 %v1806, 7
          %v1808 = vsub.s32 4, %v1807
          %v1809 = vrot.slane %v1788, %v1808
          %v1810 = vlaneseq
          %v1811 = vshrl.u32 %v1810, 7
          %v1812 = vsub.s32 5, %v1811
          %v1813 = vrot.slane %v1788, %v1812
          %v1820 = vmul.f32 %v804, %v1793
          %v1821 = vmul.f32 %v805, %v1797
          %v1822 = vmul.f32 %v806, %v1801
          %v1823 = vmul.f32 %v807, %v1805
          %v1824 = vmul.f32 %v808, %v1809
          %v1825 = vmul.f32 %v809, %v1813
          %v1826 = vmul.f32 %v810, %v1793
          %v1827 = vmul.f32 %v811, %v1797
          %v1828 = vmul.f32 %v812, %v1801
          %v1829 = vmul.f32 %v813, %v1805
          %v1830 = vmul.f32 %v814, %v1809
          %v1831 = vmul.f32 %v815, %v1813
          %v1832 = vadd.f32 %v1820, %v1821
          %v1833 = vadd.f32 %v1832, %v1822
          %v1834 = vadd.f32 %v1833, %v1823
          %v1835 = vadd.f32 %v1834, %v1824
          %v1836 = vadd.f32 %v1835, %v1825
          %1837 = vadd.xlane.f32.xlu0 %v1836
          %v1838 = vpop.xlane.xlu0 %1837
          %v1839 = vadd.f32 %v1826, %v1827
          %v1840 = vadd.f32 %v1839, %v1828
          %v1841 = vadd.f32 %v1840, %v1829
          %v1842 = vadd.f32 %v1841, %v1830
          %v1843 = vadd.f32 %v1842, %v1831
          %1844 = vadd.xlane.f32.xlu0 %v1843
          %v1845 = vpop.xlane.xlu0 %1844
          %v1846 = vld [vmem:[#allocation11] sm:$0x3f]
          %v1848 = vlaneseq
          %v1849 = vshrl.u32 %v1848, 7
          %v1850 = vsub.s32 0, %v1849
          %v1851 = vrot.slane %v1846, %v1850
          %v1852 = vlaneseq
          %v1853 = vshrl.u32 %v1852, 7
          %v1854 = vsub.s32 1, %v1853
          %v1855 = vrot.slane %v1846, %v1854
          %v1856 = vlaneseq
          %v1857 = vshrl.u32 %v1856, 7
          %v1858 = vsub.s32 2, %v1857
          %v1859 = vrot.slane %v1846, %v1858
          %v1860 = vlaneseq
          %v1861 = vshrl.u32 %v1860, 7
          %v1862 = vsub.s32 3, %v1861
          %v1863 = vrot.slane %v1846, %v1862
          %v1864 = vlaneseq
          %v1865 = vshrl.u32 %v1864, 7
          %v1866 = vsub.s32 4, %v1865
          %v1867 = vrot.slane %v1846, %v1866
          %v1868 = vlaneseq
          %v1869 = vshrl.u32 %v1868, 7
          %v1870 = vsub.s32 5, %v1869
          %v1871 = vrot.slane %v1846, %v1870
          %v1878 = vmul.f32 %v1776, %v1851
          %v1879 = vmul.f32 %v1777, %v1855
          %v1880 = vmul.f32 %v1778, %v1859
          %v1881 = vmul.f32 %v1779, %v1863
          %v1882 = vmul.f32 %v1780, %v1867
          %v1883 = vmul.f32 %v1781, %v1871
          %v1884 = vmul.f32 %v1782, %v1851
          %v1885 = vmul.f32 %v1783, %v1855
          %v1886 = vmul.f32 %v1784, %v1859
          %v1887 = vmul.f32 %v1785, %v1863
          %v1888 = vmul.f32 %v1786, %v1867
          %v1889 = vmul.f32 %v1787, %v1871
          %vm1890 = vcmask 1040384
          %v1891 = vsel %vm1890, %v1878, 0.0
          %v1892 = vsel %vm1890, %v1879, 0.0
          %v1893 = vadd.f32 %v1891, %v1892
          %v1894 = vsel %vm1890, %v1880, 0.0
          %v1895 = vadd.f32 %v1893, %v1894
          %v1896 = vsel %vm1890, %v1881, 0.0
          %v1897 = vadd.f32 %v1895, %v1896
          %v1898 = vsel %vm1890, %v1882, 0.0
          %v1899 = vadd.f32 %v1897, %v1898
          %v1900 = vsel %vm1890, %v1883, 0.0
          %v1901 = vadd.f32 %v1899, %v1900
          %1902 = vadd.xlane.f32.xlu0 %v1901
          %v1903 = vpop.xlane.xlu0 %1902
          %v1904 = vsel %vm1890, %v1884, 0.0
          %v1905 = vsel %vm1890, %v1885, 0.0
          %v1906 = vadd.f32 %v1904, %v1905
          %v1907 = vsel %vm1890, %v1886, 0.0
          %v1908 = vadd.f32 %v1906, %v1907
          %v1909 = vsel %vm1890, %v1887, 0.0
          %v1910 = vadd.f32 %v1908, %v1909
          %v1911 = vsel %vm1890, %v1888, 0.0
          %v1912 = vadd.f32 %v1910, %v1911
          %v1913 = vsel %vm1890, %v1889, 0.0
          %v1914 = vadd.f32 %v1912, %v1913
          %1915 = vadd.xlane.f32.xlu0 %v1914
          %v1916 = vpop.xlane.xlu0 %1915
          %v1917 = vlaneseq
          %v1918 = vshrl.u32 %v1917, 7
          %v1919 = vsub.s32 0, %v1918
          %v1920 = vrot.slane %v1903, %v1919
          %v1921 = vlaneseq
          %v1922 = vshrl.u32 %v1921, 7
          %v1923 = vsub.s32 0, %v1922
          %v1924 = vrot.slane %v1916, %v1923
          %v1925 = vadd.f32 %v1838, %v1920
          %v1926 = vadd.f32 %v1845, %v1924
          %v1927 = vld [vmem:[#allocation4] sm:$0x1]
          %s1928 = vtos %v1927
          %v1929 = vstv %s1928
          %v1930 = vadd.f32 %v1925, %v1929
          %v1931 = vadd.f32 %v1926, %v1929
          %v1932 = vxor.u32 %v1930, 2147483648
          %v1933 = vxor.u32 %v1931, 2147483648
          %v1934 = vmul.f32 %v1932, 1.442695
          %v1935 = vpow.pop %v1934
          %v1936 = vmul.f32 %v1933, 1.442695
          %v1937 = vpow.pop %v1936
          %v1938 = vadd.f32 %v1935, 1.0
          %v1939 = vadd.f32 %v1937, 1.0
          %v1940 = vrcp.pop %v1938
          %v1941 = vmul.f32 1.0, %v1940
          %v1942 = vrcp.pop %v1939
          %v1943 = vmul.f32 1.0, %v1942
          %v1944 = vmul.f32 %v1941, %v804
          %v1945 = vmul.f32 %v1941, %v805
          %v1946 = vmul.f32 %v1941, %v806
          %v1947 = vmul.f32 %v1941, %v807
          %v1948 = vmul.f32 %v1941, %v808
          %v1949 = vmul.f32 %v1941, %v809
          %v1950 = vmul.f32 %v1943, %v810
          %v1951 = vmul.f32 %v1943, %v811
          %v1952 = vmul.f32 %v1943, %v812
          %v1953 = vmul.f32 %v1943, %v813
          %v1954 = vmul.f32 %v1943, %v814
          %v1955 = vmul.f32 %v1943, %v815
          %v1956 = vrot.slane %v1944, 4
          %v1957 = vadd.f32 %v1944, %v1956
          %v1958 = vrot.slane %v1957, 2
          %v1959 = vadd.f32 %v1957, %v1958
          %v1960 = vrot.slane %v1959, 1
          %v1961 = vadd.f32 %v1959, %v1960
          %v1962 = vrot.slane %v1945, 4
          %v1963 = vadd.f32 %v1945, %v1962
          %v1964 = vrot.slane %v1963, 2
          %v1965 = vadd.f32 %v1963, %v1964
          %v1966 = vrot.slane %v1965, 1
          %v1967 = vadd.f32 %v1965, %v1966
          %v1968 = vrot.slane %v1946, 4
          %v1969 = vadd.f32 %v1946, %v1968
          %v1970 = vrot.slane %v1969, 2
          %v1971 = vadd.f32 %v1969, %v1970
          %v1972 = vrot.slane %v1971, 1
          %v1973 = vadd.f32 %v1971, %v1972
          %v1974 = vrot.slane %v1947, 4
          %v1975 = vadd.f32 %v1947, %v1974
          %v1976 = vrot.slane %v1975, 2
          %v1977 = vadd.f32 %v1975, %v1976
          %v1978 = vrot.slane %v1977, 1
          %v1979 = vadd.f32 %v1977, %v1978
          %v1980 = vrot.slane %v1948, 4
          %v1981 = vadd.f32 %v1948, %v1980
          %v1982 = vrot.slane %v1981, 2
          %v1983 = vadd.f32 %v1981, %v1982
          %v1984 = vrot.slane %v1983, 1
          %v1985 = vadd.f32 %v1983, %v1984
          %v1986 = vrot.slane %v1949, 4
          %v1987 = vadd.f32 %v1949, %v1986
          %v1988 = vrot.slane %v1987, 2
          %v1989 = vadd.f32 %v1987, %v1988
          %v1990 = vrot.slane %v1989, 1
          %v1991 = vadd.f32 %v1989, %v1990
          %v1992 = vrot.slane %v1950, 4
          %v1993 = vadd.f32 %v1950, %v1992
          %v1994 = vrot.slane %v1993, 2
          %v1995 = vadd.f32 %v1993, %v1994
          %v1996 = vrot.slane %v1995, 1
          %v1997 = vadd.f32 %v1995, %v1996
          %v1998 = vrot.slane %v1951, 4
          %v1999 = vadd.f32 %v1951, %v1998
          %v2000 = vrot.slane %v1999, 2
          %v2001 = vadd.f32 %v1999, %v2000
          %v2002 = vrot.slane %v2001, 1
          %v2003 = vadd.f32 %v2001, %v2002
          %v2004 = vrot.slane %v1952, 4
          %v2005 = vadd.f32 %v1952, %v2004
          %v2006 = vrot.slane %v2005, 2
          %v2007 = vadd.f32 %v2005, %v2006
          %v2008 = vrot.slane %v2007, 1
          %v2009 = vadd.f32 %v2007, %v2008
          %v2010 = vrot.slane %v1953, 4
          %v2011 = vadd.f32 %v1953, %v2010
          %v2012 = vrot.slane %v2011, 2
          %v2013 = vadd.f32 %v2011, %v2012
          %v2014 = vrot.slane %v2013, 1
          %v2015 = vadd.f32 %v2013, %v2014
          %v2016 = vrot.slane %v1954, 4
          %v2017 = vadd.f32 %v1954, %v2016
          %v2018 = vrot.slane %v2017, 2
          %v2019 = vadd.f32 %v2017, %v2018
          %v2020 = vrot.slane %v2019, 1
          %v2021 = vadd.f32 %v2019, %v2020
          %v2022 = vrot.slane %v1955, 4
          %v2023 = vadd.f32 %v1955, %v2022
          %v2024 = vrot.slane %v2023, 2
          %v2025 = vadd.f32 %v2023, %v2024
          %v2026 = vrot.slane %v2025, 1
          %v2027 = vadd.f32 %v2025, %v2026
          %v2028 = vsub.f32 1.0, %v1941
          %v2029 = vsub.f32 1.0, %v1943
          %v2030 = vmul.f32 %v2028, %v1341
          %v2031 = vmul.f32 %v2028, %v1343
          %v2032 = vmul.f32 %v2028, %v1412
          %v2033 = vmul.f32 %v2028, %v1414
          %v2034 = vmul.f32 %v2028, %v1483
          %v2035 = vmul.f32 %v2028, %v1485
          %v2036 = vmul.f32 %v2029, %v1557
          %v2037 = vmul.f32 %v2029, %v1559
          %v2038 = vmul.f32 %v2029, %v1628
          %v2039 = vmul.f32 %v2029, %v1630
          %v2040 = vmul.f32 %v2029, %v1699
          %v2041 = vmul.f32 %v2029, %v1701
          %v2042 = vrot.slane %v2030, 4
          %v2043 = vadd.f32 %v2030, %v2042
          %v2044 = vrot.slane %v2043, 2
          %v2045 = vadd.f32 %v2043, %v2044
          %v2046 = vrot.slane %v2045, 1
          %v2047 = vadd.f32 %v2045, %v2046
          %v2048 = vrot.slane %v2031, 4
          %v2049 = vadd.f32 %v2031, %v2048
          %v2050 = vrot.slane %v2049, 2
          %v2051 = vadd.f32 %v2049, %v2050
          %v2052 = vrot.slane %v2051, 1
          %v2053 = vadd.f32 %v2051, %v2052
          %v2054 = vrot.slane %v2032, 4
          %v2055 = vadd.f32 %v2032, %v2054
          %v2056 = vrot.slane %v2055, 2
          %v2057 = vadd.f32 %v2055, %v2056
          %v2058 = vrot.slane %v2057, 1
          %v2059 = vadd.f32 %v2057, %v2058
          %v2060 = vrot.slane %v2033, 4
          %v2061 = vadd.f32 %v2033, %v2060
          %v2062 = vrot.slane %v2061, 2
          %v2063 = vadd.f32 %v2061, %v2062
          %v2064 = vrot.slane %v2063, 1
          %v2065 = vadd.f32 %v2063, %v2064
          %v2066 = vrot.slane %v2034, 4
          %v2067 = vadd.f32 %v2034, %v2066
          %v2068 = vrot.slane %v2067, 2
          %v2069 = vadd.f32 %v2067, %v2068
          %v2070 = vrot.slane %v2069, 1
          %v2071 = vadd.f32 %v2069, %v2070
          %v2072 = vrot.slane %v2035, 4
          %v2073 = vadd.f32 %v2035, %v2072
          %v2074 = vrot.slane %v2073, 2
          %v2075 = vadd.f32 %v2073, %v2074
          %v2076 = vrot.slane %v2075, 1
          %v2077 = vadd.f32 %v2075, %v2076
          %v2078 = vrot.slane %v2036, 4
          %v2079 = vadd.f32 %v2036, %v2078
          %v2080 = vrot.slane %v2079, 2
          %v2081 = vadd.f32 %v2079, %v2080
          %v2082 = vrot.slane %v2081, 1
          %v2083 = vadd.f32 %v2081, %v2082
          %v2084 = vrot.slane %v2037, 4
          %v2085 = vadd.f32 %v2037, %v2084
          %v2086 = vrot.slane %v2085, 2
          %v2087 = vadd.f32 %v2085, %v2086
          %v2088 = vrot.slane %v2087, 1
          %v2089 = vadd.f32 %v2087, %v2088
          %v2090 = vrot.slane %v2038, 4
          %v2091 = vadd.f32 %v2038, %v2090
          %v2092 = vrot.slane %v2091, 2
          %v2093 = vadd.f32 %v2091, %v2092
          %v2094 = vrot.slane %v2093, 1
          %v2095 = vadd.f32 %v2093, %v2094
          %v2096 = vrot.slane %v2039, 4
          %v2097 = vadd.f32 %v2039, %v2096
          %v2098 = vrot.slane %v2097, 2
          %v2099 = vadd.f32 %v2097, %v2098
          %v2100 = vrot.slane %v2099, 1
          %v2101 = vadd.f32 %v2099, %v2100
          %v2102 = vrot.slane %v2040, 4
          %v2103 = vadd.f32 %v2040, %v2102
          %v2104 = vrot.slane %v2103, 2
          %v2105 = vadd.f32 %v2103, %v2104
          %v2106 = vrot.slane %v2105, 1
          %v2107 = vadd.f32 %v2105, %v2106
          %v2108 = vrot.slane %v2041, 4
          %v2109 = vadd.f32 %v2041, %v2108
          %v2110 = vrot.slane %v2109, 2
          %v2111 = vadd.f32 %v2109, %v2110
          %v2112 = vrot.slane %v2111, 1
          %v2113 = vadd.f32 %v2111, %v2112
          %v2114 = vpack.c.bf16 %v2047, %v2047
          %v2115 = vpack.c.bf16 %v2053, %v2053
          %v2116 = vpack.c.bf16 %v2059, %v2059
          %v2117 = vpack.c.bf16 %v2065, %v2065
          %v2118 = vpack.c.bf16 %v2071, %v2071
          %v2119 = vpack.c.bf16 %v2077, %v2077
          %v2120 = vpack.c.bf16 %v2083, %v2083
          %v2121 = vpack.c.bf16 %v2089, %v2089
          %v2122 = vpack.c.bf16 %v2095, %v2095
          %v2123 = vpack.c.bf16 %v2101, %v2101
          %v2124 = vpack.c.bf16 %v2107, %v2107
          %v2125 = vpack.c.bf16 %v2113, %v2113
          %v2126 = vld [vmem:[#allocation13] sm:$0xff]
          %v2127 = vld [vmem:[#allocation13 + $0x8] sm:$0xff]
          %v2128 = vld [vmem:[#allocation13 + $0x10] sm:$0xff]
          %v2129 = vld [vmem:[#allocation13 + $0x18] sm:$0xff]
          %v2130 = vld [vmem:[#allocation13 + $0x20] sm:$0xff]
          %v2131 = vld [vmem:[#allocation13 + $0x28] sm:$0xff]
          %v2132 = vld [vmem:[#allocation13 + $0x30] sm:$0xff]
          %v2133 = vld [vmem:[#allocation13 + $0x38] sm:$0xff]
          %v2134 = vld [vmem:[#allocation13 + $0x40] sm:$0xff]
          %v2135 = vld [vmem:[#allocation13 + $0x48] sm:$0xff]
          %v2136 = vld [vmem:[#allocation13 + $0x50] sm:$0xff]
          %v2137 = vld [vmem:[#allocation13 + $0x58] sm:$0xff]
          %v2138 = vld [vmem:[#allocation13 + $0x60] sm:$0xff]
          %v2139 = vld [vmem:[#allocation13 + $0x68] sm:$0xff]
          %v2140 = vld [vmem:[#allocation13 + $0x70] sm:$0xff]
          %v2141 = vld [vmem:[#allocation13 + $0x78] sm:$0xff]
          %v2142 = vld [vmem:[#allocation13 + $0x80] sm:$0xff]
          %v2143 = vld [vmem:[#allocation13 + $0x88] sm:$0xff]
          %v2144 = vld [vmem:[#allocation13 + $0x90] sm:$0xff]
          %v2145 = vld [vmem:[#allocation13 + $0x98] sm:$0xff]
          %v2146 = vld [vmem:[#allocation13 + $0xa0] sm:$0xff]
          %v2147 = vld [vmem:[#allocation13 + $0xa8] sm:$0xff]
          %v2148 = vld [vmem:[#allocation13 + $0xb0] sm:$0xff]
          %v2149 = vld [vmem:[#allocation13 + $0xb8] sm:$0xff]
          %v2150 = vld [vmem:[#allocation13 + $0xc0] sm:$0xff]
          %v2151 = vld [vmem:[#allocation13 + $0xc8] sm:$0xff]
          %v2152 = vld [vmem:[#allocation13 + $0xd0] sm:$0xff]
          %v2153 = vld [vmem:[#allocation13 + $0xd8] sm:$0xff]
          %v2154 = vld [vmem:[#allocation13 + $0xe0] sm:$0xff]
          %v2155 = vld [vmem:[#allocation13 + $0xe8] sm:$0xff]
          %v2156 = vld [vmem:[#allocation13 + $0xf0] sm:$0xff]
          %v2157 = vld [vmem:[#allocation13 + $0xf8] sm:$0xff]
          %v2158 = vld [vmem:[#allocation13 + $0x100] sm:$0xff]
          %v2159 = vld [vmem:[#allocation13 + $0x108] sm:$0xff]
          %v2160 = vld [vmem:[#allocation13 + $0x110] sm:$0xff]
          %v2161 = vld [vmem:[#allocation13 + $0x118] sm:$0xff]
          %v2162 = vld [vmem:[#allocation13 + $0x120] sm:$0xff]
          %v2163 = vld [vmem:[#allocation13 + $0x128] sm:$0xff]
          %v2164 = vld [vmem:[#allocation13 + $0x130] sm:$0xff]
          %v2165 = vld [vmem:[#allocation13 + $0x138] sm:$0xff]
          %v2166 = vld [vmem:[#allocation13 + $0x140] sm:$0xff]
          %v2167 = vld [vmem:[#allocation13 + $0x148] sm:$0xff]
          %v2168 = vld [vmem:[#allocation13 + $0x150] sm:$0xff]
          %v2169 = vld [vmem:[#allocation13 + $0x158] sm:$0xff]
          %v2170 = vld [vmem:[#allocation13 + $0x160] sm:$0xff]
          %v2171 = vld [vmem:[#allocation13 + $0x168] sm:$0xff]
          %v2172 = vld [vmem:[#allocation13 + $0x170] sm:$0xff]
          %v2173 = vld [vmem:[#allocation13 + $0x178] sm:$0xff]
          %v2174 = vld [vmem:[#allocation13 + $0x180] sm:$0xff]
          %v2175 = vld [vmem:[#allocation13 + $0x188] sm:$0xff]
          %v2176 = vld [vmem:[#allocation13 + $0x190] sm:$0xff]
          %v2177 = vld [vmem:[#allocation13 + $0x198] sm:$0xff]
          %v2178 = vld [vmem:[#allocation13 + $0x1a0] sm:$0xff]
          %v2179 = vld [vmem:[#allocation13 + $0x1a8] sm:$0xff]
          %v2180 = vld [vmem:[#allocation13 + $0x1b0] sm:$0xff]
          %v2181 = vld [vmem:[#allocation13 + $0x1b8] sm:$0xff]
          %v2182 = vld [vmem:[#allocation13 + $0x1c0] sm:$0xff]
          %v2183 = vld [vmem:[#allocation13 + $0x1c8] sm:$0xff]
          %v2184 = vld [vmem:[#allocation13 + $0x1d0] sm:$0xff]
          %v2185 = vld [vmem:[#allocation13 + $0x1d8] sm:$0xff]
          %v2186 = vld [vmem:[#allocation13 + $0x1e0] sm:$0xff]
          %v2187 = vld [vmem:[#allocation13 + $0x1e8] sm:$0xff]
          %v2188 = vld [vmem:[#allocation13 + $0x1f0] sm:$0xff]
          %v2189 = vld [vmem:[#allocation13 + $0x1f8] sm:$0xff]
          %v2190 = vld [vmem:[#allocation13 + $0x200] sm:$0xff]
          %v2191 = vld [vmem:[#allocation13 + $0x208] sm:$0xff]
          %v2192 = vld [vmem:[#allocation13 + $0x210] sm:$0xff]
          %v2193 = vld [vmem:[#allocation13 + $0x218] sm:$0xff]
          %v2194 = vld [vmem:[#allocation13 + $0x220] sm:$0xff]
          %v2195 = vld [vmem:[#allocation13 + $0x228] sm:$0xff]
          %v2196 = vld [vmem:[#allocation13 + $0x230] sm:$0xff]
          %v2197 = vld [vmem:[#allocation13 + $0x238] sm:$0xff]
          %v2198 = vld [vmem:[#allocation13 + $0x240] sm:$0xff]
          %v2199 = vld [vmem:[#allocation13 + $0x248] sm:$0xff]
          %v2200 = vld [vmem:[#allocation13 + $0x250] sm:$0xff]
          %v2201 = vld [vmem:[#allocation13 + $0x258] sm:$0xff]
          %v2202 = vld [vmem:[#allocation13 + $0x260] sm:$0xff]
          %v2203 = vld [vmem:[#allocation13 + $0x268] sm:$0xff]
          %v2204 = vld [vmem:[#allocation13 + $0x270] sm:$0xff]
          %v2205 = vld [vmem:[#allocation13 + $0x278] sm:$0xff]
          %v2206 = vld [vmem:[#allocation13 + $0x280] sm:$0xff]
          %v2207 = vld [vmem:[#allocation13 + $0x288] sm:$0xff]
          %v2208 = vld [vmem:[#allocation13 + $0x290] sm:$0xff]
          %v2209 = vld [vmem:[#allocation13 + $0x298] sm:$0xff]
          %v2210 = vld [vmem:[#allocation13 + $0x2a0] sm:$0xff]
          %v2211 = vld [vmem:[#allocation13 + $0x2a8] sm:$0xff]
          %v2212 = vld [vmem:[#allocation13 + $0x2b0] sm:$0xff]
          %v2213 = vld [vmem:[#allocation13 + $0x2b8] sm:$0xff]
          %v2214 = vld [vmem:[#allocation13 + $0x2c0] sm:$0xff]
          %v2215 = vld [vmem:[#allocation13 + $0x2c8] sm:$0xff]
          %v2216 = vld [vmem:[#allocation13 + $0x2d0] sm:$0xff]
          %v2217 = vld [vmem:[#allocation13 + $0x2d8] sm:$0xff]
          %v2218 = vld [vmem:[#allocation13 + $0x2e0] sm:$0xff]
          %v2219 = vld [vmem:[#allocation13 + $0x2e8] sm:$0xff]
          %v2220 = vld [vmem:[#allocation13 + $0x2f0] sm:$0xff]
          %v2221 = vld [vmem:[#allocation13 + $0x2f8] sm:$0xff]
          %v2222 = vld [vmem:[#allocation13 + $0x300] sm:$0xff]
          %v2223 = vld [vmem:[#allocation13 + $0x308] sm:$0xff]
          %v2224 = vld [vmem:[#allocation13 + $0x310] sm:$0xff]
          %v2225 = vld [vmem:[#allocation13 + $0x318] sm:$0xff]
          %v2226 = vld [vmem:[#allocation13 + $0x320] sm:$0xff]
          %v2227 = vld [vmem:[#allocation13 + $0x328] sm:$0xff]
          %v2228 = vld [vmem:[#allocation13 + $0x330] sm:$0xff]
          %v2229 = vld [vmem:[#allocation13 + $0x338] sm:$0xff]
          %v2230 = vld [vmem:[#allocation13 + $0x340] sm:$0xff]
          %v2231 = vld [vmem:[#allocation13 + $0x348] sm:$0xff]
          %v2232 = vld [vmem:[#allocation13 + $0x350] sm:$0xff]
          %v2233 = vld [vmem:[#allocation13 + $0x358] sm:$0xff]
          %v2234 = vld [vmem:[#allocation13 + $0x360] sm:$0xff]
          %v2235 = vld [vmem:[#allocation13 + $0x368] sm:$0xff]
          %v2236 = vld [vmem:[#allocation13 + $0x370] sm:$0xff]
          %v2237 = vld [vmem:[#allocation13 + $0x378] sm:$0xff]
          %v2238 = vld [vmem:[#allocation13 + $0x380] sm:$0xff]
          %v2239 = vld [vmem:[#allocation13 + $0x388] sm:$0xff]
          %v2240 = vld [vmem:[#allocation13 + $0x390] sm:$0xff]
          %v2241 = vld [vmem:[#allocation13 + $0x398] sm:$0xff]
          %v2242 = vld [vmem:[#allocation13 + $0x3a0] sm:$0xff]
          %v2243 = vld [vmem:[#allocation13 + $0x3a8] sm:$0xff]
          %v2244 = vld [vmem:[#allocation13 + $0x3b0] sm:$0xff]
          %v2245 = vld [vmem:[#allocation13 + $0x3b8] sm:$0xff]
          %v2246 = vld [vmem:[#allocation13 + $0x3c0] sm:$0xff]
          %v2247 = vld [vmem:[#allocation13 + $0x3c8] sm:$0xff]
          %v2248 = vld [vmem:[#allocation13 + $0x3d0] sm:$0xff]
          %v2249 = vld [vmem:[#allocation13 + $0x3d8] sm:$0xff]
          %v2250 = vld [vmem:[#allocation13 + $0x3e0] sm:$0xff]
          %v2251 = vld [vmem:[#allocation13 + $0x3e8] sm:$0xff]
          %v2252 = vld [vmem:[#allocation13 + $0x3f0] sm:$0xff]
          %v2253 = vld [vmem:[#allocation13 + $0x3f8] sm:$0xff]
          %v2254 = vld [vmem:[#allocation13 + $0x400] sm:$0xff]
          %v2255 = vld [vmem:[#allocation13 + $0x408] sm:$0xff]
          %v2256 = vld [vmem:[#allocation13 + $0x410] sm:$0xff]
          %v2257 = vld [vmem:[#allocation13 + $0x418] sm:$0xff]
          %v2258 = vld [vmem:[#allocation13 + $0x420] sm:$0xff]
          %v2259 = vld [vmem:[#allocation13 + $0x428] sm:$0xff]
          %v2260 = vld [vmem:[#allocation13 + $0x430] sm:$0xff]
          %v2261 = vld [vmem:[#allocation13 + $0x438] sm:$0xff]
          %v2262 = vld [vmem:[#allocation13 + $0x440] sm:$0xff]
          %v2263 = vld [vmem:[#allocation13 + $0x448] sm:$0xff]
          %v2264 = vld [vmem:[#allocation13 + $0x450] sm:$0xff]
          %v2265 = vld [vmem:[#allocation13 + $0x458] sm:$0xff]
          %v2266 = vld [vmem:[#allocation13 + $0x460] sm:$0xff]
          %v2267 = vld [vmem:[#allocation13 + $0x468] sm:$0xff]
          %v2268 = vld [vmem:[#allocation13 + $0x470] sm:$0xff]
          %v2269 = vld [vmem:[#allocation13 + $0x478] sm:$0xff]
          %v2270 = vld [vmem:[#allocation13 + $0x480] sm:$0xff]
          %v2271 = vld [vmem:[#allocation13 + $0x488] sm:$0xff]
          %v2272 = vld [vmem:[#allocation13 + $0x490] sm:$0xff]
          %v2273 = vld [vmem:[#allocation13 + $0x498] sm:$0xff]
          %v2274 = vld [vmem:[#allocation13 + $0x4a0] sm:$0xff]
          %v2275 = vld [vmem:[#allocation13 + $0x4a8] sm:$0xff]
          %v2276 = vld [vmem:[#allocation13 + $0x4b0] sm:$0xff]
          %v2277 = vld [vmem:[#allocation13 + $0x4b8] sm:$0xff]
          %v2278 = vld [vmem:[#allocation13 + $0x4c0] sm:$0xff]
          %v2279 = vld [vmem:[#allocation13 + $0x4c8] sm:$0xff]
          %v2280 = vld [vmem:[#allocation13 + $0x4d0] sm:$0xff]
          %v2281 = vld [vmem:[#allocation13 + $0x4d8] sm:$0xff]
          %v2282 = vld [vmem:[#allocation13 + $0x4e0] sm:$0xff]
          %v2283 = vld [vmem:[#allocation13 + $0x4e8] sm:$0xff]
          %v2284 = vld [vmem:[#allocation13 + $0x4f0] sm:$0xff]
          %v2285 = vld [vmem:[#allocation13 + $0x4f8] sm:$0xff]
          %v2286 = vld [vmem:[#allocation13 + $0x500] sm:$0xff]
          %v2287 = vld [vmem:[#allocation13 + $0x508] sm:$0xff]
          %v2288 = vld [vmem:[#allocation13 + $0x510] sm:$0xff]
          %v2289 = vld [vmem:[#allocation13 + $0x518] sm:$0xff]
          %v2290 = vld [vmem:[#allocation13 + $0x520] sm:$0xff]
          %v2291 = vld [vmem:[#allocation13 + $0x528] sm:$0xff]
          %v2292 = vld [vmem:[#allocation13 + $0x530] sm:$0xff]
          %v2293 = vld [vmem:[#allocation13 + $0x538] sm:$0xff]
          %v2294 = vld [vmem:[#allocation13 + $0x540] sm:$0xff]
          %v2295 = vld [vmem:[#allocation13 + $0x548] sm:$0xff]
          %v2296 = vld [vmem:[#allocation13 + $0x550] sm:$0xff]
          %v2297 = vld [vmem:[#allocation13 + $0x558] sm:$0xff]
          %v2298 = vld [vmem:[#allocation13 + $0x560] sm:$0xff]
          %v2299 = vld [vmem:[#allocation13 + $0x568] sm:$0xff]
          %v2300 = vld [vmem:[#allocation13 + $0x570] sm:$0xff]
          %v2301 = vld [vmem:[#allocation13 + $0x578] sm:$0xff]
          %v2302 = vld [vmem:[#allocation13 + $0x580] sm:$0xff]
          %v2303 = vld [vmem:[#allocation13 + $0x588] sm:$0xff]
          %v2304 = vld [vmem:[#allocation13 + $0x590] sm:$0xff]
          %v2305 = vld [vmem:[#allocation13 + $0x598] sm:$0xff]
          %v2306 = vld [vmem:[#allocation13 + $0x5a0] sm:$0xff]
          %v2307 = vld [vmem:[#allocation13 + $0x5a8] sm:$0xff]
          %v2308 = vld [vmem:[#allocation13 + $0x5b0] sm:$0xff]
          %v2309 = vld [vmem:[#allocation13 + $0x5b8] sm:$0xff]
          %v2310 = vld [vmem:[#allocation13 + $0x5c0] sm:$0xff]
          %v2311 = vld [vmem:[#allocation13 + $0x5c8] sm:$0xff]
          %v2312 = vld [vmem:[#allocation13 + $0x5d0] sm:$0xff]
          %v2313 = vld [vmem:[#allocation13 + $0x5d8] sm:$0xff]
          %v2314 = vld [vmem:[#allocation13 + $0x5e0] sm:$0xff]
          %v2315 = vld [vmem:[#allocation13 + $0x5e8] sm:$0xff]
          %v2316 = vld [vmem:[#allocation13 + $0x5f0] sm:$0xff]
          %v2317 = vld [vmem:[#allocation13 + $0x5f8] sm:$0xff]
          %v2318 = vld [vmem:[#allocation13 + $0x600] sm:$0xff]
          %v2319 = vld [vmem:[#allocation13 + $0x608] sm:$0xff]
          %v2320 = vld [vmem:[#allocation13 + $0x610] sm:$0xff]
          %v2321 = vld [vmem:[#allocation13 + $0x618] sm:$0xff]
          %v2322 = vld [vmem:[#allocation13 + $0x620] sm:$0xff]
          %v2323 = vld [vmem:[#allocation13 + $0x628] sm:$0xff]
          %v2324 = vld [vmem:[#allocation13 + $0x630] sm:$0xff]
          %v2325 = vld [vmem:[#allocation13 + $0x638] sm:$0xff]
          %v2326 = vld [vmem:[#allocation13 + $0x640] sm:$0xff]
          %v2327 = vld [vmem:[#allocation13 + $0x648] sm:$0xff]
          %v2328 = vld [vmem:[#allocation13 + $0x650] sm:$0xff]
          %v2329 = vld [vmem:[#allocation13 + $0x658] sm:$0xff]
          %v2330 = vld [vmem:[#allocation13 + $0x660] sm:$0xff]
          %v2331 = vld [vmem:[#allocation13 + $0x668] sm:$0xff]
          %v2332 = vld [vmem:[#allocation13 + $0x670] sm:$0xff]
          %v2333 = vld [vmem:[#allocation13 + $0x678] sm:$0xff]
          %v2334 = vld [vmem:[#allocation13 + $0x680] sm:$0xff]
          %v2335 = vld [vmem:[#allocation13 + $0x688] sm:$0xff]
          %v2336 = vld [vmem:[#allocation13 + $0x690] sm:$0xff]
          %v2337 = vld [vmem:[#allocation13 + $0x698] sm:$0xff]
          %v2338 = vld [vmem:[#allocation13 + $0x6a0] sm:$0xff]
          %v2339 = vld [vmem:[#allocation13 + $0x6a8] sm:$0xff]
          %v2340 = vld [vmem:[#allocation13 + $0x6b0] sm:$0xff]
          %v2341 = vld [vmem:[#allocation13 + $0x6b8] sm:$0xff]
          %v2342 = vld [vmem:[#allocation13 + $0x6c0] sm:$0xff]
          %v2343 = vld [vmem:[#allocation13 + $0x6c8] sm:$0xff]
          %v2344 = vld [vmem:[#allocation13 + $0x6d0] sm:$0xff]
          %v2345 = vld [vmem:[#allocation13 + $0x6d8] sm:$0xff]
          %v2346 = vld [vmem:[#allocation13 + $0x6e0] sm:$0xff]
          %v2347 = vld [vmem:[#allocation13 + $0x6e8] sm:$0xff]
          %v2348 = vld [vmem:[#allocation13 + $0x6f0] sm:$0xff]
          %v2349 = vld [vmem:[#allocation13 + $0x6f8] sm:$0xff]
          %v2350 = vld [vmem:[#allocation13 + $0x700] sm:$0xff]
          %v2351 = vld [vmem:[#allocation13 + $0x708] sm:$0xff]
          %v2352 = vld [vmem:[#allocation13 + $0x710] sm:$0xff]
          %v2353 = vld [vmem:[#allocation13 + $0x718] sm:$0xff]
          %v2354 = vld [vmem:[#allocation13 + $0x720] sm:$0xff]
          %v2355 = vld [vmem:[#allocation13 + $0x728] sm:$0xff]
          %v2356 = vld [vmem:[#allocation13 + $0x730] sm:$0xff]
          %v2357 = vld [vmem:[#allocation13 + $0x738] sm:$0xff]
          %v2358 = vld [vmem:[#allocation13 + $0x740] sm:$0xff]
          %v2359 = vld [vmem:[#allocation13 + $0x748] sm:$0xff]
          %v2360 = vld [vmem:[#allocation13 + $0x750] sm:$0xff]
          %v2361 = vld [vmem:[#allocation13 + $0x758] sm:$0xff]
          %v2362 = vld [vmem:[#allocation13 + $0x760] sm:$0xff]
          %v2363 = vld [vmem:[#allocation13 + $0x768] sm:$0xff]
          %v2364 = vld [vmem:[#allocation13 + $0x770] sm:$0xff]
          %v2365 = vld [vmem:[#allocation13 + $0x778] sm:$0xff]
          %v2366 = vld [vmem:[#allocation13 + $0x780] sm:$0xff]
          %v2367 = vld [vmem:[#allocation13 + $0x788] sm:$0xff]
          %v2368 = vld [vmem:[#allocation13 + $0x790] sm:$0xff]
          %v2369 = vld [vmem:[#allocation13 + $0x798] sm:$0xff]
          %v2370 = vld [vmem:[#allocation13 + $0x7a0] sm:$0xff]
          %v2371 = vld [vmem:[#allocation13 + $0x7a8] sm:$0xff]
          %v2372 = vld [vmem:[#allocation13 + $0x7b0] sm:$0xff]
          %v2373 = vld [vmem:[#allocation13 + $0x7b8] sm:$0xff]
          %v2374 = vld [vmem:[#allocation13 + $0x7c0] sm:$0xff]
          %v2375 = vld [vmem:[#allocation13 + $0x7c8] sm:$0xff]
          %v2376 = vld [vmem:[#allocation13 + $0x7d0] sm:$0xff]
          %v2377 = vld [vmem:[#allocation13 + $0x7d8] sm:$0xff]
          %v2378 = vld [vmem:[#allocation13 + $0x7e0] sm:$0xff]
          %v2379 = vld [vmem:[#allocation13 + $0x7e8] sm:$0xff]
          %v2380 = vld [vmem:[#allocation13 + $0x7f0] sm:$0xff]
          %v2381 = vld [vmem:[#allocation13 + $0x7f8] sm:$0xff]
          %v2382 = vld [vmem:[#allocation13 + $0x800] sm:$0xff]
          %v2383 = vld [vmem:[#allocation13 + $0x808] sm:$0xff]
          %v2384 = vld [vmem:[#allocation13 + $0x810] sm:$0xff]
          %v2385 = vld [vmem:[#allocation13 + $0x818] sm:$0xff]
          %v2386 = vld [vmem:[#allocation13 + $0x820] sm:$0xff]
          %v2387 = vld [vmem:[#allocation13 + $0x828] sm:$0xff]
          %v2388 = vld [vmem:[#allocation13 + $0x830] sm:$0xff]
          %v2389 = vld [vmem:[#allocation13 + $0x838] sm:$0xff]
          %v2390 = vld [vmem:[#allocation13 + $0x840] sm:$0xff]
          %v2391 = vld [vmem:[#allocation13 + $0x848] sm:$0xff]
          %v2392 = vld [vmem:[#allocation13 + $0x850] sm:$0xff]
          %v2393 = vld [vmem:[#allocation13 + $0x858] sm:$0xff]
          %v2394 = vld [vmem:[#allocation13 + $0x860] sm:$0xff]
          %v2395 = vld [vmem:[#allocation13 + $0x868] sm:$0xff]
          %v2396 = vld [vmem:[#allocation13 + $0x870] sm:$0xff]
          %v2397 = vld [vmem:[#allocation13 + $0x878] sm:$0xff]
          %v2398 = vld [vmem:[#allocation13 + $0x880] sm:$0xff]
          %v2399 = vld [vmem:[#allocation13 + $0x888] sm:$0xff]
          %v2400 = vld [vmem:[#allocation13 + $0x890] sm:$0xff]
          %v2401 = vld [vmem:[#allocation13 + $0x898] sm:$0xff]
          %v2402 = vld [vmem:[#allocation13 + $0x8a0] sm:$0xff]
          %v2403 = vld [vmem:[#allocation13 + $0x8a8] sm:$0xff]
          %v2404 = vld [vmem:[#allocation13 + $0x8b0] sm:$0xff]
          %v2405 = vld [vmem:[#allocation13 + $0x8b8] sm:$0xff]
          %v2406 = vld [vmem:[#allocation13 + $0x8c0] sm:$0xff]
          %v2407 = vld [vmem:[#allocation13 + $0x8c8] sm:$0xff]
          %v2408 = vld [vmem:[#allocation13 + $0x8d0] sm:$0xff]
          %v2409 = vld [vmem:[#allocation13 + $0x8d8] sm:$0xff]
          %v2410 = vld [vmem:[#allocation13 + $0x8e0] sm:$0xff]
          %v2411 = vld [vmem:[#allocation13 + $0x8e8] sm:$0xff]
          %v2412 = vld [vmem:[#allocation13 + $0x8f0] sm:$0xff]
          %v2413 = vld [vmem:[#allocation13 + $0x8f8] sm:$0xff]
          %v2414 = vld [vmem:[#allocation14] sm:$0x3f]
          %v2416 = vlaneseq
          %v2417 = vshrl.u32 %v2416, 7
          %v2418 = vsub.s32 0, %v2417
          %v2419 = vrot.slane %v2414, %v2418
          %v2420 = vlaneseq
          %v2421 = vshrl.u32 %v2420, 7
          %v2422 = vsub.s32 1, %v2421
          %v2423 = vrot.slane %v2414, %v2422
          %v2424 = vlaneseq
          %v2425 = vshrl.u32 %v2424, 7
          %v2426 = vsub.s32 2, %v2425
          %v2427 = vrot.slane %v2414, %v2426
          %v2428 = vlaneseq
          %v2429 = vshrl.u32 %v2428, 7
          %v2430 = vsub.s32 3, %v2429
          %v2431 = vrot.slane %v2414, %v2430
          %v2432 = vlaneseq
          %v2433 = vshrl.u32 %v2432, 7
          %v2434 = vsub.s32 4, %v2433
          %v2435 = vrot.slane %v2414, %v2434
          %v2436 = vlaneseq
          %v2437 = vshrl.u32 %v2436, 7
          %v2438 = vsub.s32 5, %v2437
          %v2439 = vrot.slane %v2414, %v2438
          %v2458 = vunpack.c.l.b16 %v2114
          %v2459 = vunpack.c.l.b16 %v2115
          %v2460 = vunpack.c.l.b16 %v2116
          %v2461 = vunpack.c.l.b16 %v2117
          %v2462 = vunpack.c.l.b16 %v2118
          %v2463 = vunpack.c.l.b16 %v2119
          %v2464 = vunpack.c.l.b16 %v2120
          %v2465 = vunpack.c.l.b16 %v2121
          %v2466 = vunpack.c.l.b16 %v2122
          %v2467 = vunpack.c.l.b16 %v2123
          %v2468 = vunpack.c.l.b16 %v2124
          %v2469 = vunpack.c.l.b16 %v2125
          %vm2470 = vcmask 1041409
          %v2471 = vsel %vm2470, %v2464, %v2458
          %v2472 = vsel %vm2470, %v2465, %v2459
          %v2473 = vsel %vm2470, %v2466, %v2460
          %v2474 = vsel %vm2470, %v2467, %v2461
          %v2475 = vsel %vm2470, %v2468, %v2462
          %v2476 = vsel %vm2470, %v2469, %v2463
          %v2477 = vpack.c.b16 %v2471, %v2471
          %v2478 = vpack.c.b16 %v2472, %v2472
          %v2479 = vpack.c.b16 %v2473, %v2473
          %v2480 = vpack.c.b16 %v2474, %v2474
          %v2481 = vpack.c.b16 %v2475, %v2475
          %v2482 = vpack.c.b16 %v2476, %v2476
          %v2777 = vunpack.c.l.b16 %v2126
          %v2778 = vunpack.c.h.b16 %v2126
          %v2779 = vunpack.c.l.b16 %v2127
          %v2780 = vunpack.c.h.b16 %v2127
          %v2781 = vunpack.c.l.b16 %v2128
          %v2782 = vunpack.c.h.b16 %v2128
          %v2783 = vunpack.c.l.b16 %v2129
          %v2784 = vunpack.c.h.b16 %v2129
          %v2785 = vunpack.c.l.b16 %v2130
          %v2786 = vunpack.c.h.b16 %v2130
          %v2787 = vunpack.c.l.b16 %v2131
          %v2788 = vunpack.c.h.b16 %v2131
          %v2789 = vunpack.c.l.b16 %v2132
          %v2790 = vunpack.c.h.b16 %v2132
          %v2791 = vunpack.c.l.b16 %v2133
          %v2792 = vunpack.c.h.b16 %v2133
          %v2793 = vunpack.c.l.b16 %v2134
          %v2794 = vunpack.c.h.b16 %v2134
          %v2795 = vunpack.c.l.b16 %v2135
          %v2796 = vunpack.c.h.b16 %v2135
          %v2797 = vunpack.c.l.b16 %v2136
          %v2798 = vunpack.c.h.b16 %v2136
          %v2799 = vunpack.c.l.b16 %v2137
          %v2800 = vunpack.c.h.b16 %v2137
          %v2801 = vunpack.c.l.b16 %v2138
          %v2802 = vunpack.c.h.b16 %v2138
          %v2803 = vunpack.c.l.b16 %v2139
          %v2804 = vunpack.c.h.b16 %v2139
          %v2805 = vunpack.c.l.b16 %v2140
          %v2806 = vunpack.c.h.b16 %v2140
          %v2807 = vunpack.c.l.b16 %v2141
          %v2808 = vunpack.c.h.b16 %v2141
          %v2809 = vunpack.c.l.b16 %v2142
          %v2810 = vunpack.c.h.b16 %v2142
          %v2811 = vunpack.c.l.b16 %v2143
          %v2812 = vunpack.c.h.b16 %v2143
          %v2813 = vunpack.c.l.b16 %v2144
          %v2814 = vunpack.c.h.b16 %v2144
          %v2815 = vunpack.c.l.b16 %v2145
          %v2816 = vunpack.c.h.b16 %v2145
          %v2817 = vunpack.c.l.b16 %v2146
          %v2818 = vunpack.c.h.b16 %v2146
          %v2819 = vunpack.c.l.b16 %v2147
          %v2820 = vunpack.c.h.b16 %v2147
          %v2821 = vunpack.c.l.b16 %v2148
          %v2822 = vunpack.c.h.b16 %v2148
          %v2823 = vunpack.c.l.b16 %v2149
          %v2824 = vunpack.c.h.b16 %v2149
          %v2825 = vunpack.c.l.b16 %v2150
          %v2826 = vunpack.c.h.b16 %v2150
          %v2827 = vunpack.c.l.b16 %v2151
          %v2828 = vunpack.c.h.b16 %v2151
          %v2829 = vunpack.c.l.b16 %v2152
          %v2830 = vunpack.c.h.b16 %v2152
          %v2831 = vunpack.c.l.b16 %v2153
          %v2832 = vunpack.c.h.b16 %v2153
          %v2833 = vunpack.c.l.b16 %v2154
          %v2834 = vunpack.c.h.b16 %v2154
          %v2835 = vunpack.c.l.b16 %v2155
          %v2836 = vunpack.c.h.b16 %v2155
          %v2837 = vunpack.c.l.b16 %v2156
          %v2838 = vunpack.c.h.b16 %v2156
          %v2839 = vunpack.c.l.b16 %v2157
          %v2840 = vunpack.c.h.b16 %v2157
          %v2841 = vunpack.c.l.b16 %v2158
          %v2842 = vunpack.c.h.b16 %v2158
          %v2843 = vunpack.c.l.b16 %v2159
          %v2844 = vunpack.c.h.b16 %v2159
          %v2845 = vunpack.c.l.b16 %v2160
          %v2846 = vunpack.c.h.b16 %v2160
          %v2847 = vunpack.c.l.b16 %v2161
          %v2848 = vunpack.c.h.b16 %v2161
          %v2849 = vunpack.c.l.b16 %v2162
          %v2850 = vunpack.c.h.b16 %v2162
          %v2851 = vunpack.c.l.b16 %v2163
          %v2852 = vunpack.c.h.b16 %v2163
          %v2853 = vunpack.c.l.b16 %v2164
          %v2854 = vunpack.c.h.b16 %v2164
          %v2855 = vunpack.c.l.b16 %v2165
          %v2856 = vunpack.c.h.b16 %v2165
          %v2857 = vunpack.c.l.b16 %v2166
          %v2858 = vunpack.c.h.b16 %v2166
          %v2859 = vunpack.c.l.b16 %v2167
          %v2860 = vunpack.c.h.b16 %v2167
          %v2861 = vunpack.c.l.b16 %v2168
          %v2862 = vunpack.c.h.b16 %v2168
          %v2863 = vunpack.c.l.b16 %v2169
          %v2864 = vunpack.c.h.b16 %v2169
          %v2865 = vunpack.c.l.b16 %v2170
          %v2866 = vunpack.c.h.b16 %v2170
          %v2867 = vunpack.c.l.b16 %v2171
          %v2868 = vunpack.c.h.b16 %v2171
          %v2869 = vunpack.c.l.b16 %v2172
          %v2870 = vunpack.c.h.b16 %v2172
          %v2871 = vunpack.c.l.b16 %v2173
          %v2872 = vunpack.c.h.b16 %v2173
          %v2873 = vunpack.c.l.b16 %v2174
          %v2874 = vunpack.c.h.b16 %v2174
          %v2875 = vunpack.c.l.b16 %v2175
          %v2876 = vunpack.c.h.b16 %v2175
          %v2877 = vunpack.c.l.b16 %v2176
          %v2878 = vunpack.c.h.b16 %v2176
          %v2879 = vunpack.c.l.b16 %v2177
          %v2880 = vunpack.c.h.b16 %v2177
          %v2881 = vunpack.c.l.b16 %v2178
          %v2882 = vunpack.c.h.b16 %v2178
          %v2883 = vunpack.c.l.b16 %v2179
          %v2884 = vunpack.c.h.b16 %v2179
          %v2885 = vunpack.c.l.b16 %v2180
          %v2886 = vunpack.c.h.b16 %v2180
          %v2887 = vunpack.c.l.b16 %v2181
          %v2888 = vunpack.c.h.b16 %v2181
          %v2889 = vunpack.c.l.b16 %v2182
          %v2890 = vunpack.c.h.b16 %v2182
          %v2891 = vunpack.c.l.b16 %v2183
          %v2892 = vunpack.c.h.b16 %v2183
          %v2893 = vunpack.c.l.b16 %v2184
          %v2894 = vunpack.c.h.b16 %v2184
          %v2895 = vunpack.c.l.b16 %v2185
          %v2896 = vunpack.c.h.b16 %v2185
          %v2897 = vunpack.c.l.b16 %v2186
          %v2898 = vunpack.c.h.b16 %v2186
          %v2899 = vunpack.c.l.b16 %v2187
          %v2900 = vunpack.c.h.b16 %v2187
          %v2901 = vunpack.c.l.b16 %v2188
          %v2902 = vunpack.c.h.b16 %v2188
          %v2903 = vunpack.c.l.b16 %v2189
          %v2904 = vunpack.c.h.b16 %v2189
          %v2905 = vunpack.c.l.b16 %v2190
          %v2906 = vunpack.c.h.b16 %v2190
          %v2907 = vunpack.c.l.b16 %v2191
          %v2908 = vunpack.c.h.b16 %v2191
          %v2909 = vunpack.c.l.b16 %v2192
          %v2910 = vunpack.c.h.b16 %v2192
          %v2911 = vunpack.c.l.b16 %v2193
          %v2912 = vunpack.c.h.b16 %v2193
          %v2913 = vunpack.c.l.b16 %v2194
          %v2914 = vunpack.c.h.b16 %v2194
          %v2915 = vunpack.c.l.b16 %v2195
          %v2916 = vunpack.c.h.b16 %v2195
          %v2917 = vunpack.c.l.b16 %v2196
          %v2918 = vunpack.c.h.b16 %v2196
          %v2919 = vunpack.c.l.b16 %v2197
          %v2920 = vunpack.c.h.b16 %v2197
          %v2921 = vunpack.c.l.b16 %v2198
          %v2922 = vunpack.c.h.b16 %v2198
          %v2923 = vunpack.c.l.b16 %v2199
          %v2924 = vunpack.c.h.b16 %v2199
          %v2925 = vunpack.c.l.b16 %v2200
          %v2926 = vunpack.c.h.b16 %v2200
          %v2927 = vunpack.c.l.b16 %v2201
          %v2928 = vunpack.c.h.b16 %v2201
          %v2929 = vunpack.c.l.b16 %v2202
          %v2930 = vunpack.c.h.b16 %v2202
          %v2931 = vunpack.c.l.b16 %v2203
          %v2932 = vunpack.c.h.b16 %v2203
          %v2933 = vunpack.c.l.b16 %v2204
          %v2934 = vunpack.c.h.b16 %v2204
          %v2935 = vunpack.c.l.b16 %v2205
          %v2936 = vunpack.c.h.b16 %v2205
          %v2937 = vunpack.c.l.b16 %v2206
          %v2938 = vunpack.c.h.b16 %v2206
          %v2939 = vunpack.c.l.b16 %v2207
          %v2940 = vunpack.c.h.b16 %v2207
          %v2941 = vunpack.c.l.b16 %v2208
          %v2942 = vunpack.c.h.b16 %v2208
          %v2943 = vunpack.c.l.b16 %v2209
          %v2944 = vunpack.c.h.b16 %v2209
          %v2945 = vunpack.c.l.b16 %v2210
          %v2946 = vunpack.c.h.b16 %v2210
          %v2947 = vunpack.c.l.b16 %v2211
          %v2948 = vunpack.c.h.b16 %v2211
          %v2949 = vunpack.c.l.b16 %v2212
          %v2950 = vunpack.c.h.b16 %v2212
          %v2951 = vunpack.c.l.b16 %v2213
          %v2952 = vunpack.c.h.b16 %v2213
          %v2953 = vunpack.c.l.b16 %v2214
          %v2954 = vunpack.c.h.b16 %v2214
          %v2955 = vunpack.c.l.b16 %v2215
          %v2956 = vunpack.c.h.b16 %v2215
          %v2957 = vunpack.c.l.b16 %v2216
          %v2958 = vunpack.c.h.b16 %v2216
          %v2959 = vunpack.c.l.b16 %v2217
          %v2960 = vunpack.c.h.b16 %v2217
          %v2961 = vunpack.c.l.b16 %v2218
          %v2962 = vunpack.c.h.b16 %v2218
          %v2963 = vunpack.c.l.b16 %v2219
          %v2964 = vunpack.c.h.b16 %v2219
          %v2965 = vunpack.c.l.b16 %v2220
          %v2966 = vunpack.c.h.b16 %v2220
          %v2967 = vunpack.c.l.b16 %v2221
          %v2968 = vunpack.c.h.b16 %v2221
          %v2969 = vunpack.c.l.b16 %v2222
          %v2970 = vunpack.c.h.b16 %v2222
          %v2971 = vunpack.c.l.b16 %v2223
          %v2972 = vunpack.c.h.b16 %v2223
          %v2973 = vunpack.c.l.b16 %v2224
          %v2974 = vunpack.c.h.b16 %v2224
          %v2975 = vunpack.c.l.b16 %v2225
          %v2976 = vunpack.c.h.b16 %v2225
          %v2977 = vunpack.c.l.b16 %v2226
          %v2978 = vunpack.c.h.b16 %v2226
          %v2979 = vunpack.c.l.b16 %v2227
          %v2980 = vunpack.c.h.b16 %v2227
          %v2981 = vunpack.c.l.b16 %v2228
          %v2982 = vunpack.c.h.b16 %v2228
          %v2983 = vunpack.c.l.b16 %v2229
          %v2984 = vunpack.c.h.b16 %v2229
          %v2985 = vunpack.c.l.b16 %v2230
          %v2986 = vunpack.c.h.b16 %v2230
          %v2987 = vunpack.c.l.b16 %v2231
          %v2988 = vunpack.c.h.b16 %v2231
          %v2989 = vunpack.c.l.b16 %v2232
          %v2990 = vunpack.c.h.b16 %v2232
          %v2991 = vunpack.c.l.b16 %v2233
          %v2992 = vunpack.c.h.b16 %v2233
          %v2993 = vunpack.c.l.b16 %v2234
          %v2994 = vunpack.c.h.b16 %v2234
          %v2995 = vunpack.c.l.b16 %v2235
          %v2996 = vunpack.c.h.b16 %v2235
          %v2997 = vunpack.c.l.b16 %v2236
          %v2998 = vunpack.c.h.b16 %v2236
          %v2999 = vunpack.c.l.b16 %v2237
          %v3000 = vunpack.c.h.b16 %v2237
          %v3001 = vunpack.c.l.b16 %v2238
          %v3002 = vunpack.c.h.b16 %v2238
          %v3003 = vunpack.c.l.b16 %v2239
          %v3004 = vunpack.c.h.b16 %v2239
          %v3005 = vunpack.c.l.b16 %v2240
          %v3006 = vunpack.c.h.b16 %v2240
          %v3007 = vunpack.c.l.b16 %v2241
          %v3008 = vunpack.c.h.b16 %v2241
          %v3009 = vunpack.c.l.b16 %v2242
          %v3010 = vunpack.c.h.b16 %v2242
          %v3011 = vunpack.c.l.b16 %v2243
          %v3012 = vunpack.c.h.b16 %v2243
          %v3013 = vunpack.c.l.b16 %v2244
          %v3014 = vunpack.c.h.b16 %v2244
          %v3015 = vunpack.c.l.b16 %v2245
          %v3016 = vunpack.c.h.b16 %v2245
          %v3017 = vunpack.c.l.b16 %v2246
          %v3018 = vunpack.c.h.b16 %v2246
          %v3019 = vunpack.c.l.b16 %v2247
          %v3020 = vunpack.c.h.b16 %v2247
          %v3021 = vunpack.c.l.b16 %v2248
          %v3022 = vunpack.c.h.b16 %v2248
          %v3023 = vunpack.c.l.b16 %v2249
          %v3024 = vunpack.c.h.b16 %v2249
          %v3025 = vunpack.c.l.b16 %v2250
          %v3026 = vunpack.c.h.b16 %v2250
          %v3027 = vunpack.c.l.b16 %v2251
          %v3028 = vunpack.c.h.b16 %v2251
          %v3029 = vunpack.c.l.b16 %v2252
          %v3030 = vunpack.c.h.b16 %v2252
          %v3031 = vunpack.c.l.b16 %v2253
          %v3032 = vunpack.c.h.b16 %v2253
          %v3033 = vunpack.c.l.b16 %v2254
          %v3034 = vunpack.c.h.b16 %v2254
          %v3035 = vunpack.c.l.b16 %v2255
          %v3036 = vunpack.c.h.b16 %v2255
          %v3037 = vunpack.c.l.b16 %v2256
          %v3038 = vunpack.c.h.b16 %v2256
          %v3039 = vunpack.c.l.b16 %v2257
          %v3040 = vunpack.c.h.b16 %v2257
          %v3041 = vunpack.c.l.b16 %v2258
          %v3042 = vunpack.c.h.b16 %v2258
          %v3043 = vunpack.c.l.b16 %v2259
          %v3044 = vunpack.c.h.b16 %v2259
          %v3045 = vunpack.c.l.b16 %v2260
          %v3046 = vunpack.c.h.b16 %v2260
          %v3047 = vunpack.c.l.b16 %v2261
          %v3048 = vunpack.c.h.b16 %v2261
          %v3049 = vunpack.c.l.b16 %v2262
          %v3050 = vunpack.c.h.b16 %v2262
          %v3051 = vunpack.c.l.b16 %v2263
          %v3052 = vunpack.c.h.b16 %v2263
          %v3053 = vunpack.c.l.b16 %v2264
          %v3054 = vunpack.c.h.b16 %v2264
          %v3055 = vunpack.c.l.b16 %v2265
          %v3056 = vunpack.c.h.b16 %v2265
          %v3057 = vunpack.c.l.b16 %v2266
          %v3058 = vunpack.c.h.b16 %v2266
          %v3059 = vunpack.c.l.b16 %v2267
          %v3060 = vunpack.c.h.b16 %v2267
          %v3061 = vunpack.c.l.b16 %v2268
          %v3062 = vunpack.c.h.b16 %v2268
          %v3063 = vunpack.c.l.b16 %v2269
          %v3064 = vunpack.c.h.b16 %v2269
          %v3065 = vunpack.c.l.b16 %v2270
          %v3066 = vunpack.c.h.b16 %v2270
          %v3067 = vunpack.c.l.b16 %v2271
          %v3068 = vunpack.c.h.b16 %v2271
          %v3069 = vunpack.c.l.b16 %v2272
          %v3070 = vunpack.c.h.b16 %v2272
          %v3071 = vunpack.c.l.b16 %v2273
          %v3072 = vunpack.c.h.b16 %v2273
          %v3073 = vunpack.c.l.b16 %v2274
          %v3074 = vunpack.c.h.b16 %v2274
          %v3075 = vunpack.c.l.b16 %v2275
          %v3076 = vunpack.c.h.b16 %v2275
          %v3077 = vunpack.c.l.b16 %v2276
          %v3078 = vunpack.c.h.b16 %v2276
          %v3079 = vunpack.c.l.b16 %v2277
          %v3080 = vunpack.c.h.b16 %v2277
          %v3081 = vunpack.c.l.b16 %v2278
          %v3082 = vunpack.c.h.b16 %v2278
          %v3083 = vunpack.c.l.b16 %v2279
          %v3084 = vunpack.c.h.b16 %v2279
          %v3085 = vunpack.c.l.b16 %v2280
          %v3086 = vunpack.c.h.b16 %v2280
          %v3087 = vunpack.c.l.b16 %v2281
          %v3088 = vunpack.c.h.b16 %v2281
          %v3089 = vunpack.c.l.b16 %v2282
          %v3090 = vunpack.c.h.b16 %v2282
          %v3091 = vunpack.c.l.b16 %v2283
          %v3092 = vunpack.c.h.b16 %v2283
          %v3093 = vunpack.c.l.b16 %v2284
          %v3094 = vunpack.c.h.b16 %v2284
          %v3095 = vunpack.c.l.b16 %v2285
          %v3096 = vunpack.c.h.b16 %v2285
          %v3097 = vunpack.c.l.b16 %v2286
          %v3098 = vunpack.c.h.b16 %v2286
          %v3099 = vunpack.c.l.b16 %v2287
          %v3100 = vunpack.c.h.b16 %v2287
          %v3101 = vunpack.c.l.b16 %v2288
          %v3102 = vunpack.c.h.b16 %v2288
          %v3103 = vunpack.c.l.b16 %v2289
          %v3104 = vunpack.c.h.b16 %v2289
          %v3105 = vunpack.c.l.b16 %v2290
          %v3106 = vunpack.c.h.b16 %v2290
          %v3107 = vunpack.c.l.b16 %v2291
          %v3108 = vunpack.c.h.b16 %v2291
          %v3109 = vunpack.c.l.b16 %v2292
          %v3110 = vunpack.c.h.b16 %v2292
          %v3111 = vunpack.c.l.b16 %v2293
          %v3112 = vunpack.c.h.b16 %v2293
          %v3113 = vunpack.c.l.b16 %v2294
          %v3114 = vunpack.c.h.b16 %v2294
          %v3115 = vunpack.c.l.b16 %v2295
          %v3116 = vunpack.c.h.b16 %v2295
          %v3117 = vunpack.c.l.b16 %v2296
          %v3118 = vunpack.c.h.b16 %v2296
          %v3119 = vunpack.c.l.b16 %v2297
          %v3120 = vunpack.c.h.b16 %v2297
          %v3121 = vunpack.c.l.b16 %v2298
          %v3122 = vunpack.c.h.b16 %v2298
          %v3123 = vunpack.c.l.b16 %v2299
          %v3124 = vunpack.c.h.b16 %v2299
          %v3125 = vunpack.c.l.b16 %v2300
          %v3126 = vunpack.c.h.b16 %v2300
          %v3127 = vunpack.c.l.b16 %v2301
          %v3128 = vunpack.c.h.b16 %v2301
          %v3129 = vunpack.c.l.b16 %v2302
          %v3130 = vunpack.c.h.b16 %v2302
          %v3131 = vunpack.c.l.b16 %v2303
          %v3132 = vunpack.c.h.b16 %v2303
          %v3133 = vunpack.c.l.b16 %v2304
          %v3134 = vunpack.c.h.b16 %v2304
          %v3135 = vunpack.c.l.b16 %v2305
          %v3136 = vunpack.c.h.b16 %v2305
          %v3137 = vunpack.c.l.b16 %v2306
          %v3138 = vunpack.c.h.b16 %v2306
          %v3139 = vunpack.c.l.b16 %v2307
          %v3140 = vunpack.c.h.b16 %v2307
          %v3141 = vunpack.c.l.b16 %v2308
          %v3142 = vunpack.c.h.b16 %v2308
          %v3143 = vunpack.c.l.b16 %v2309
          %v3144 = vunpack.c.h.b16 %v2309
          %v3145 = vunpack.c.l.b16 %v2310
          %v3146 = vunpack.c.h.b16 %v2310
          %v3147 = vunpack.c.l.b16 %v2311
          %v3148 = vunpack.c.h.b16 %v2311
          %v3149 = vunpack.c.l.b16 %v2312
          %v3150 = vunpack.c.h.b16 %v2312
          %v3151 = vunpack.c.l.b16 %v2313
          %v3152 = vunpack.c.h.b16 %v2313
          %v3153 = vunpack.c.l.b16 %v2314
          %v3154 = vunpack.c.h.b16 %v2314
          %v3155 = vunpack.c.l.b16 %v2315
          %v3156 = vunpack.c.h.b16 %v2315
          %v3157 = vunpack.c.l.b16 %v2316
          %v3158 = vunpack.c.h.b16 %v2316
          %v3159 = vunpack.c.l.b16 %v2317
          %v3160 = vunpack.c.h.b16 %v2317
          %v3161 = vunpack.c.l.b16 %v2318
          %v3162 = vunpack.c.h.b16 %v2318
          %v3163 = vunpack.c.l.b16 %v2319
          %v3164 = vunpack.c.h.b16 %v2319
          %v3165 = vunpack.c.l.b16 %v2320
          %v3166 = vunpack.c.h.b16 %v2320
          %v3167 = vunpack.c.l.b16 %v2321
          %v3168 = vunpack.c.h.b16 %v2321
          %v3169 = vunpack.c.l.b16 %v2322
          %v3170 = vunpack.c.h.b16 %v2322
          %v3171 = vunpack.c.l.b16 %v2323
          %v3172 = vunpack.c.h.b16 %v2323
          %v3173 = vunpack.c.l.b16 %v2324
          %v3174 = vunpack.c.h.b16 %v2324
          %v3175 = vunpack.c.l.b16 %v2325
          %v3176 = vunpack.c.h.b16 %v2325
          %v3177 = vunpack.c.l.b16 %v2326
          %v3178 = vunpack.c.h.b16 %v2326
          %v3179 = vunpack.c.l.b16 %v2327
          %v3180 = vunpack.c.h.b16 %v2327
          %v3181 = vunpack.c.l.b16 %v2328
          %v3182 = vunpack.c.h.b16 %v2328
          %v3183 = vunpack.c.l.b16 %v2329
          %v3184 = vunpack.c.h.b16 %v2329
          %v3185 = vunpack.c.l.b16 %v2330
          %v3186 = vunpack.c.h.b16 %v2330
          %v3187 = vunpack.c.l.b16 %v2331
          %v3188 = vunpack.c.h.b16 %v2331
          %v3189 = vunpack.c.l.b16 %v2332
          %v3190 = vunpack.c.h.b16 %v2332
          %v3191 = vunpack.c.l.b16 %v2333
          %v3192 = vunpack.c.h.b16 %v2333
          %v3193 = vunpack.c.l.b16 %v2334
          %v3194 = vunpack.c.h.b16 %v2334
          %v3195 = vunpack.c.l.b16 %v2335
          %v3196 = vunpack.c.h.b16 %v2335
          %v3197 = vunpack.c.l.b16 %v2336
          %v3198 = vunpack.c.h.b16 %v2336
          %v3199 = vunpack.c.l.b16 %v2337
          %v3200 = vunpack.c.h.b16 %v2337
          %v3201 = vunpack.c.l.b16 %v2338
          %v3202 = vunpack.c.h.b16 %v2338
          %v3203 = vunpack.c.l.b16 %v2339
          %v3204 = vunpack.c.h.b16 %v2339
          %v3205 = vunpack.c.l.b16 %v2340
          %v3206 = vunpack.c.h.b16 %v2340
          %v3207 = vunpack.c.l.b16 %v2341
          %v3208 = vunpack.c.h.b16 %v2341
          %v3209 = vunpack.c.l.b16 %v2342
          %v3210 = vunpack.c.h.b16 %v2342
          %v3211 = vunpack.c.l.b16 %v2343
          %v3212 = vunpack.c.h.b16 %v2343
          %v3213 = vunpack.c.l.b16 %v2344
          %v3214 = vunpack.c.h.b16 %v2344
          %v3215 = vunpack.c.l.b16 %v2345
          %v3216 = vunpack.c.h.b16 %v2345
          %v3217 = vunpack.c.l.b16 %v2346
          %v3218 = vunpack.c.h.b16 %v2346
          %v3219 = vunpack.c.l.b16 %v2347
          %v3220 = vunpack.c.h.b16 %v2347
          %v3221 = vunpack.c.l.b16 %v2348
          %v3222 = vunpack.c.h.b16 %v2348
          %v3223 = vunpack.c.l.b16 %v2349
          %v3224 = vunpack.c.h.b16 %v2349
          %v3225 = vunpack.c.l.b16 %v2350
          %v3226 = vunpack.c.h.b16 %v2350
          %v3227 = vunpack.c.l.b16 %v2351
          %v3228 = vunpack.c.h.b16 %v2351
          %v3229 = vunpack.c.l.b16 %v2352
          %v3230 = vunpack.c.h.b16 %v2352
          %v3231 = vunpack.c.l.b16 %v2353
          %v3232 = vunpack.c.h.b16 %v2353
          %v3233 = vunpack.c.l.b16 %v2354
          %v3234 = vunpack.c.h.b16 %v2354
          %v3235 = vunpack.c.l.b16 %v2355
          %v3236 = vunpack.c.h.b16 %v2355
          %v3237 = vunpack.c.l.b16 %v2356
          %v3238 = vunpack.c.h.b16 %v2356
          %v3239 = vunpack.c.l.b16 %v2357
          %v3240 = vunpack.c.h.b16 %v2357
          %v3241 = vunpack.c.l.b16 %v2358
          %v3242 = vunpack.c.h.b16 %v2358
          %v3243 = vunpack.c.l.b16 %v2359
          %v3244 = vunpack.c.h.b16 %v2359
          %v3245 = vunpack.c.l.b16 %v2360
          %v3246 = vunpack.c.h.b16 %v2360
          %v3247 = vunpack.c.l.b16 %v2361
          %v3248 = vunpack.c.h.b16 %v2361
          %v3249 = vunpack.c.l.b16 %v2362
          %v3250 = vunpack.c.h.b16 %v2362
          %v3251 = vunpack.c.l.b16 %v2363
          %v3252 = vunpack.c.h.b16 %v2363
          %v3253 = vunpack.c.l.b16 %v2364
          %v3254 = vunpack.c.h.b16 %v2364
          %v3255 = vunpack.c.l.b16 %v2365
          %v3256 = vunpack.c.h.b16 %v2365
          %v3257 = vunpack.c.l.b16 %v2366
          %v3258 = vunpack.c.h.b16 %v2366
          %v3259 = vunpack.c.l.b16 %v2367
          %v3260 = vunpack.c.h.b16 %v2367
          %v3261 = vunpack.c.l.b16 %v2368
          %v3262 = vunpack.c.h.b16 %v2368
          %v3263 = vunpack.c.l.b16 %v2369
          %v3264 = vunpack.c.h.b16 %v2369
          %v3265 = vunpack.c.l.b16 %v2370
          %v3266 = vunpack.c.h.b16 %v2370
          %v3267 = vunpack.c.l.b16 %v2371
          %v3268 = vunpack.c.h.b16 %v2371
          %v3269 = vunpack.c.l.b16 %v2372
          %v3270 = vunpack.c.h.b16 %v2372
          %v3271 = vunpack.c.l.b16 %v2373
          %v3272 = vunpack.c.h.b16 %v2373
          %v3273 = vunpack.c.l.b16 %v2374
          %v3274 = vunpack.c.h.b16 %v2374
          %v3275 = vunpack.c.l.b16 %v2375
          %v3276 = vunpack.c.h.b16 %v2375
          %v3277 = vunpack.c.l.b16 %v2376
          %v3278 = vunpack.c.h.b16 %v2376
          %v3279 = vunpack.c.l.b16 %v2377
          %v3280 = vunpack.c.h.b16 %v2377
          %v3281 = vunpack.c.l.b16 %v2378
          %v3282 = vunpack.c.h.b16 %v2378
          %v3283 = vunpack.c.l.b16 %v2379
          %v3284 = vunpack.c.h.b16 %v2379
          %v3285 = vunpack.c.l.b16 %v2380
          %v3286 = vunpack.c.h.b16 %v2380
          %v3287 = vunpack.c.l.b16 %v2381
          %v3288 = vunpack.c.h.b16 %v2381
          %v3289 = vunpack.c.l.b16 %v2382
          %v3290 = vunpack.c.h.b16 %v2382
          %v3291 = vunpack.c.l.b16 %v2383
          %v3292 = vunpack.c.h.b16 %v2383
          %v3293 = vunpack.c.l.b16 %v2384
          %v3294 = vunpack.c.h.b16 %v2384
          %v3295 = vunpack.c.l.b16 %v2385
          %v3296 = vunpack.c.h.b16 %v2385
          %v3297 = vunpack.c.l.b16 %v2386
          %v3298 = vunpack.c.h.b16 %v2386
          %v3299 = vunpack.c.l.b16 %v2387
          %v3300 = vunpack.c.h.b16 %v2387
          %v3301 = vunpack.c.l.b16 %v2388
          %v3302 = vunpack.c.h.b16 %v2388
          %v3303 = vunpack.c.l.b16 %v2389
          %v3304 = vunpack.c.h.b16 %v2389
          %v3305 = vunpack.c.l.b16 %v2390
          %v3306 = vunpack.c.h.b16 %v2390
          %v3307 = vunpack.c.l.b16 %v2391
          %v3308 = vunpack.c.h.b16 %v2391
          %v3309 = vunpack.c.l.b16 %v2392
          %v3310 = vunpack.c.h.b16 %v2392
          %v3311 = vunpack.c.l.b16 %v2393
          %v3312 = vunpack.c.h.b16 %v2393
          %v3313 = vunpack.c.l.b16 %v2394
          %v3314 = vunpack.c.h.b16 %v2394
          %v3315 = vunpack.c.l.b16 %v2395
          %v3316 = vunpack.c.h.b16 %v2395
          %v3317 = vunpack.c.l.b16 %v2396
          %v3318 = vunpack.c.h.b16 %v2396
          %v3319 = vunpack.c.l.b16 %v2397
          %v3320 = vunpack.c.h.b16 %v2397
          %v3321 = vunpack.c.l.b16 %v2398
          %v3322 = vunpack.c.h.b16 %v2398
          %v3323 = vunpack.c.l.b16 %v2399
          %v3324 = vunpack.c.h.b16 %v2399
          %v3325 = vunpack.c.l.b16 %v2400
          %v3326 = vunpack.c.h.b16 %v2400
          %v3327 = vunpack.c.l.b16 %v2401
          %v3328 = vunpack.c.h.b16 %v2401
          %v3329 = vunpack.c.l.b16 %v2402
          %v3330 = vunpack.c.h.b16 %v2402
          %v3331 = vunpack.c.l.b16 %v2403
          %v3332 = vunpack.c.h.b16 %v2403
          %v3333 = vunpack.c.l.b16 %v2404
          %v3334 = vunpack.c.h.b16 %v2404
          %v3335 = vunpack.c.l.b16 %v2405
          %v3336 = vunpack.c.h.b16 %v2405
          %v3337 = vunpack.c.l.b16 %v2406
          %v3338 = vunpack.c.h.b16 %v2406
          %v3339 = vunpack.c.l.b16 %v2407
          %v3340 = vunpack.c.h.b16 %v2407
          %v3341 = vunpack.c.l.b16 %v2408
          %v3342 = vunpack.c.h.b16 %v2408
          %v3343 = vunpack.c.l.b16 %v2409
          %v3344 = vunpack.c.h.b16 %v2409
          %v3345 = vunpack.c.l.b16 %v2410
          %v3346 = vunpack.c.h.b16 %v2410
          %v3347 = vunpack.c.l.b16 %v2411
          %v3348 = vunpack.c.h.b16 %v2411
          %v3349 = vunpack.c.l.b16 %v2412
          %v3350 = vunpack.c.h.b16 %v2412
          %v3351 = vunpack.c.l.b16 %v2413
          %v3352 = vunpack.c.h.b16 %v2413
          %v3353 = vpack.c.b16 %v2783, %v2777
          %v3354 = vpack.c.b16 %v2784, %v2778
          %v3355 = vpack.c.b16 %v2785, %v2779
          %v3356 = vpack.c.b16 %v2786, %v2780
          %v3357 = vpack.c.b16 %v2787, %v2781
          %v3358 = vpack.c.b16 %v2788, %v2782
          %v3359 = vpack.c.b16 %v2795, %v2789
          %v3360 = vpack.c.b16 %v2796, %v2790
          %v3361 = vpack.c.b16 %v2797, %v2791
          %v3362 = vpack.c.b16 %v2798, %v2792
          %v3363 = vpack.c.b16 %v2799, %v2793
          %v3364 = vpack.c.b16 %v2800, %v2794
          %v3365 = vpack.c.b16 %v2807, %v2801
          %v3366 = vpack.c.b16 %v2808, %v2802
          %v3367 = vpack.c.b16 %v2809, %v2803
          %v3368 = vpack.c.b16 %v2810, %v2804
          %v3369 = vpack.c.b16 %v2811, %v2805
          %v3370 = vpack.c.b16 %v2812, %v2806
          %v3371 = vpack.c.b16 %v2819, %v2813
          %v3372 = vpack.c.b16 %v2820, %v2814
          %v3373 = vpack.c.b16 %v2821, %v2815
          %v3374 = vpack.c.b16 %v2822, %v2816
          %v3375 = vpack.c.b16 %v2823, %v2817
          %v3376 = vpack.c.b16 %v2824, %v2818
          %v3377 = vpack.c.b16 %v2831, %v2825
          %v3378 = vpack.c.b16 %v2832, %v2826
          %v3379 = vpack.c.b16 %v2833, %v2827
          %v3380 = vpack.c.b16 %v2834, %v2828
          %v3381 = vpack.c.b16 %v2835, %v2829
          %v3382 = vpack.c.b16 %v2836, %v2830
          %v3383 = vpack.c.b16 %v2843, %v2837
          %v3384 = vpack.c.b16 %v2844, %v2838
          %v3385 = vpack.c.b16 %v2845, %v2839
          %v3386 = vpack.c.b16 %v2846, %v2840
          %v3387 = vpack.c.b16 %v2847, %v2841
          %v3388 = vpack.c.b16 %v2848, %v2842
          %v3389 = vpack.c.b16 %v2855, %v2849
          %v3390 = vpack.c.b16 %v2856, %v2850
          %v3391 = vpack.c.b16 %v2857, %v2851
          %v3392 = vpack.c.b16 %v2858, %v2852
          %v3393 = vpack.c.b16 %v2859, %v2853
          %v3394 = vpack.c.b16 %v2860, %v2854
          %v3395 = vpack.c.b16 %v2867, %v2861
          %v3396 = vpack.c.b16 %v2868, %v2862
          %v3397 = vpack.c.b16 %v2869, %v2863
          %v3398 = vpack.c.b16 %v2870, %v2864
          %v3399 = vpack.c.b16 %v2871, %v2865
          %v3400 = vpack.c.b16 %v2872, %v2866
          %v3401 = vpack.c.b16 %v2879, %v2873
          %v3402 = vpack.c.b16 %v2880, %v2874
          %v3403 = vpack.c.b16 %v2881, %v2875
          %v3404 = vpack.c.b16 %v2882, %v2876
          %v3405 = vpack.c.b16 %v2883, %v2877
          %v3406 = vpack.c.b16 %v2884, %v2878
          %v3407 = vpack.c.b16 %v2891, %v2885
          %v3408 = vpack.c.b16 %v2892, %v2886
          %v3409 = vpack.c.b16 %v2893, %v2887
          %v3410 = vpack.c.b16 %v2894, %v2888
          %v3411 = vpack.c.b16 %v2895, %v2889
          %v3412 = vpack.c.b16 %v2896, %v2890
          %v3413 = vpack.c.b16 %v2903, %v2897
          %v3414 = vpack.c.b16 %v2904, %v2898
          %v3415 = vpack.c.b16 %v2905, %v2899
          %v3416 = vpack.c.b16 %v2906, %v2900
          %v3417 = vpack.c.b16 %v2907, %v2901
          %v3418 = vpack.c.b16 %v2908, %v2902
          %v3419 = vpack.c.b16 %v2915, %v2909
          %v3420 = vpack.c.b16 %v2916, %v2910
          %v3421 = vpack.c.b16 %v2917, %v2911
          %v3422 = vpack.c.b16 %v2918, %v2912
          %v3423 = vpack.c.b16 %v2919, %v2913
          %v3424 = vpack.c.b16 %v2920, %v2914
          %v3425 = vpack.c.b16 %v2927, %v2921
          %v3426 = vpack.c.b16 %v2928, %v2922
          %v3427 = vpack.c.b16 %v2929, %v2923
          %v3428 = vpack.c.b16 %v2930, %v2924
          %v3429 = vpack.c.b16 %v2931, %v2925
          %v3430 = vpack.c.b16 %v2932, %v2926
          %v3431 = vpack.c.b16 %v2939, %v2933
          %v3432 = vpack.c.b16 %v2940, %v2934
          %v3433 = vpack.c.b16 %v2941, %v2935
          %v3434 = vpack.c.b16 %v2942, %v2936
          %v3435 = vpack.c.b16 %v2943, %v2937
          %v3436 = vpack.c.b16 %v2944, %v2938
          %v3437 = vpack.c.b16 %v2951, %v2945
          %v3438 = vpack.c.b16 %v2952, %v2946
          %v3439 = vpack.c.b16 %v2953, %v2947
          %v3440 = vpack.c.b16 %v2954, %v2948
          %v3441 = vpack.c.b16 %v2955, %v2949
          %v3442 = vpack.c.b16 %v2956, %v2950
          %v3443 = vpack.c.b16 %v2963, %v2957
          %v3444 = vpack.c.b16 %v2964, %v2958
          %v3445 = vpack.c.b16 %v2965, %v2959
          %v3446 = vpack.c.b16 %v2966, %v2960
          %v3447 = vpack.c.b16 %v2967, %v2961
          %v3448 = vpack.c.b16 %v2968, %v2962
          %v3449 = vpack.c.b16 %v2975, %v2969
          %v3450 = vpack.c.b16 %v2976, %v2970
          %v3451 = vpack.c.b16 %v2977, %v2971
          %v3452 = vpack.c.b16 %v2978, %v2972
          %v3453 = vpack.c.b16 %v2979, %v2973
          %v3454 = vpack.c.b16 %v2980, %v2974
          %v3455 = vpack.c.b16 %v2987, %v2981
          %v3456 = vpack.c.b16 %v2988, %v2982
          %v3457 = vpack.c.b16 %v2989, %v2983
          %v3458 = vpack.c.b16 %v2990, %v2984
          %v3459 = vpack.c.b16 %v2991, %v2985
          %v3460 = vpack.c.b16 %v2992, %v2986
          %v3461 = vpack.c.b16 %v2999, %v2993
          %v3462 = vpack.c.b16 %v3000, %v2994
          %v3463 = vpack.c.b16 %v3001, %v2995
          %v3464 = vpack.c.b16 %v3002, %v2996
          %v3465 = vpack.c.b16 %v3003, %v2997
          %v3466 = vpack.c.b16 %v3004, %v2998
          %v3467 = vpack.c.b16 %v3011, %v3005
          %v3468 = vpack.c.b16 %v3012, %v3006
          %v3469 = vpack.c.b16 %v3013, %v3007
          %v3470 = vpack.c.b16 %v3014, %v3008
          %v3471 = vpack.c.b16 %v3015, %v3009
          %v3472 = vpack.c.b16 %v3016, %v3010
          %v3473 = vpack.c.b16 %v3023, %v3017
          %v3474 = vpack.c.b16 %v3024, %v3018
          %v3475 = vpack.c.b16 %v3025, %v3019
          %v3476 = vpack.c.b16 %v3026, %v3020
          %v3477 = vpack.c.b16 %v3027, %v3021
          %v3478 = vpack.c.b16 %v3028, %v3022
          %v3479 = vpack.c.b16 %v3035, %v3029
          %v3480 = vpack.c.b16 %v3036, %v3030
          %v3481 = vpack.c.b16 %v3037, %v3031
          %v3482 = vpack.c.b16 %v3038, %v3032
          %v3483 = vpack.c.b16 %v3039, %v3033
          %v3484 = vpack.c.b16 %v3040, %v3034
          %v3485 = vpack.c.b16 %v3047, %v3041
          %v3486 = vpack.c.b16 %v3048, %v3042
          %v3487 = vpack.c.b16 %v3049, %v3043
          %v3488 = vpack.c.b16 %v3050, %v3044
          %v3489 = vpack.c.b16 %v3051, %v3045
          %v3490 = vpack.c.b16 %v3052, %v3046
          %v3491 = vpack.c.b16 %v3059, %v3053
          %v3492 = vpack.c.b16 %v3060, %v3054
          %v3493 = vpack.c.b16 %v3061, %v3055
          %v3494 = vpack.c.b16 %v3062, %v3056
          %v3495 = vpack.c.b16 %v3063, %v3057
          %v3496 = vpack.c.b16 %v3064, %v3058
          %v3497 = vpack.c.b16 %v3071, %v3065
          %v3498 = vpack.c.b16 %v3072, %v3066
          %v3499 = vpack.c.b16 %v3073, %v3067
          %v3500 = vpack.c.b16 %v3074, %v3068
          %v3501 = vpack.c.b16 %v3075, %v3069
          %v3502 = vpack.c.b16 %v3076, %v3070
          %v3503 = vpack.c.b16 %v3083, %v3077
          %v3504 = vpack.c.b16 %v3084, %v3078
          %v3505 = vpack.c.b16 %v3085, %v3079
          %v3506 = vpack.c.b16 %v3086, %v3080
          %v3507 = vpack.c.b16 %v3087, %v3081
          %v3508 = vpack.c.b16 %v3088, %v3082
          %v3509 = vpack.c.b16 %v3095, %v3089
          %v3510 = vpack.c.b16 %v3096, %v3090
          %v3511 = vpack.c.b16 %v3097, %v3091
          %v3512 = vpack.c.b16 %v3098, %v3092
          %v3513 = vpack.c.b16 %v3099, %v3093
          %v3514 = vpack.c.b16 %v3100, %v3094
          %v3515 = vpack.c.b16 %v3107, %v3101
          %v3516 = vpack.c.b16 %v3108, %v3102
          %v3517 = vpack.c.b16 %v3109, %v3103
          %v3518 = vpack.c.b16 %v3110, %v3104
          %v3519 = vpack.c.b16 %v3111, %v3105
          %v3520 = vpack.c.b16 %v3112, %v3106
          %v3521 = vpack.c.b16 %v3119, %v3113
          %v3522 = vpack.c.b16 %v3120, %v3114
          %v3523 = vpack.c.b16 %v3121, %v3115
          %v3524 = vpack.c.b16 %v3122, %v3116
          %v3525 = vpack.c.b16 %v3123, %v3117
          %v3526 = vpack.c.b16 %v3124, %v3118
          %v3527 = vpack.c.b16 %v3131, %v3125
          %v3528 = vpack.c.b16 %v3132, %v3126
          %v3529 = vpack.c.b16 %v3133, %v3127
          %v3530 = vpack.c.b16 %v3134, %v3128
          %v3531 = vpack.c.b16 %v3135, %v3129
          %v3532 = vpack.c.b16 %v3136, %v3130
          %v3533 = vpack.c.b16 %v3143, %v3137
          %v3534 = vpack.c.b16 %v3144, %v3138
          %v3535 = vpack.c.b16 %v3145, %v3139
          %v3536 = vpack.c.b16 %v3146, %v3140
          %v3537 = vpack.c.b16 %v3147, %v3141
          %v3538 = vpack.c.b16 %v3148, %v3142
          %v3539 = vpack.c.b16 %v3155, %v3149
          %v3540 = vpack.c.b16 %v3156, %v3150
          %v3541 = vpack.c.b16 %v3157, %v3151
          %v3542 = vpack.c.b16 %v3158, %v3152
          %v3543 = vpack.c.b16 %v3159, %v3153
          %v3544 = vpack.c.b16 %v3160, %v3154
          %v3545 = vpack.c.b16 %v3167, %v3161
          %v3546 = vpack.c.b16 %v3168, %v3162
          %v3547 = vpack.c.b16 %v3169, %v3163
          %v3548 = vpack.c.b16 %v3170, %v3164
          %v3549 = vpack.c.b16 %v3171, %v3165
          %v3550 = vpack.c.b16 %v3172, %v3166
          %v3551 = vpack.c.b16 %v3179, %v3173
          %v3552 = vpack.c.b16 %v3180, %v3174
          %v3553 = vpack.c.b16 %v3181, %v3175
          %v3554 = vpack.c.b16 %v3182, %v3176
          %v3555 = vpack.c.b16 %v3183, %v3177
          %v3556 = vpack.c.b16 %v3184, %v3178
          %v3557 = vpack.c.b16 %v3191, %v3185
          %v3558 = vpack.c.b16 %v3192, %v3186
          %v3559 = vpack.c.b16 %v3193, %v3187
          %v3560 = vpack.c.b16 %v3194, %v3188
          %v3561 = vpack.c.b16 %v3195, %v3189
          %v3562 = vpack.c.b16 %v3196, %v3190
          %v3563 = vpack.c.b16 %v3203, %v3197
          %v3564 = vpack.c.b16 %v3204, %v3198
          %v3565 = vpack.c.b16 %v3205, %v3199
          %v3566 = vpack.c.b16 %v3206, %v3200
          %v3567 = vpack.c.b16 %v3207, %v3201
          %v3568 = vpack.c.b16 %v3208, %v3202
          %v3569 = vpack.c.b16 %v3215, %v3209
          %v3570 = vpack.c.b16 %v3216, %v3210
          %v3571 = vpack.c.b16 %v3217, %v3211
          %v3572 = vpack.c.b16 %v3218, %v3212
          %v3573 = vpack.c.b16 %v3219, %v3213
          %v3574 = vpack.c.b16 %v3220, %v3214
          %v3575 = vpack.c.b16 %v3227, %v3221
          %v3576 = vpack.c.b16 %v3228, %v3222
          %v3577 = vpack.c.b16 %v3229, %v3223
          %v3578 = vpack.c.b16 %v3230, %v3224
          %v3579 = vpack.c.b16 %v3231, %v3225
          %v3580 = vpack.c.b16 %v3232, %v3226
          %v3581 = vpack.c.b16 %v3239, %v3233
          %v3582 = vpack.c.b16 %v3240, %v3234
          %v3583 = vpack.c.b16 %v3241, %v3235
          %v3584 = vpack.c.b16 %v3242, %v3236
          %v3585 = vpack.c.b16 %v3243, %v3237
          %v3586 = vpack.c.b16 %v3244, %v3238
          %v3587 = vpack.c.b16 %v3251, %v3245
          %v3588 = vpack.c.b16 %v3252, %v3246
          %v3589 = vpack.c.b16 %v3253, %v3247
          %v3590 = vpack.c.b16 %v3254, %v3248
          %v3591 = vpack.c.b16 %v3255, %v3249
          %v3592 = vpack.c.b16 %v3256, %v3250
          %v3593 = vpack.c.b16 %v3263, %v3257
          %v3594 = vpack.c.b16 %v3264, %v3258
          %v3595 = vpack.c.b16 %v3265, %v3259
          %v3596 = vpack.c.b16 %v3266, %v3260
          %v3597 = vpack.c.b16 %v3267, %v3261
          %v3598 = vpack.c.b16 %v3268, %v3262
          %v3599 = vpack.c.b16 %v3275, %v3269
          %v3600 = vpack.c.b16 %v3276, %v3270
          %v3601 = vpack.c.b16 %v3277, %v3271
          %v3602 = vpack.c.b16 %v3278, %v3272
          %v3603 = vpack.c.b16 %v3279, %v3273
          %v3604 = vpack.c.b16 %v3280, %v3274
          %v3605 = vpack.c.b16 %v3287, %v3281
          %v3606 = vpack.c.b16 %v3288, %v3282
          %v3607 = vpack.c.b16 %v3289, %v3283
          %v3608 = vpack.c.b16 %v3290, %v3284
          %v3609 = vpack.c.b16 %v3291, %v3285
          %v3610 = vpack.c.b16 %v3292, %v3286
          %v3611 = vpack.c.b16 %v3299, %v3293
          %v3612 = vpack.c.b16 %v3300, %v3294
          %v3613 = vpack.c.b16 %v3301, %v3295
          %v3614 = vpack.c.b16 %v3302, %v3296
          %v3615 = vpack.c.b16 %v3303, %v3297
          %v3616 = vpack.c.b16 %v3304, %v3298
          %v3617 = vpack.c.b16 %v3311, %v3305
          %v3618 = vpack.c.b16 %v3312, %v3306
          %v3619 = vpack.c.b16 %v3313, %v3307
          %v3620 = vpack.c.b16 %v3314, %v3308
          %v3621 = vpack.c.b16 %v3315, %v3309
          %v3622 = vpack.c.b16 %v3316, %v3310
          %v3623 = vpack.c.b16 %v3323, %v3317
          %v3624 = vpack.c.b16 %v3324, %v3318
          %v3625 = vpack.c.b16 %v3325, %v3319
          %v3626 = vpack.c.b16 %v3326, %v3320
          %v3627 = vpack.c.b16 %v3327, %v3321
          %v3628 = vpack.c.b16 %v3328, %v3322
          %v3629 = vpack.c.b16 %v3335, %v3329
          %v3630 = vpack.c.b16 %v3336, %v3330
          %v3631 = vpack.c.b16 %v3337, %v3331
          %v3632 = vpack.c.b16 %v3338, %v3332
          %v3633 = vpack.c.b16 %v3339, %v3333
          %v3634 = vpack.c.b16 %v3340, %v3334
          %v3635 = vpack.c.b16 %v3347, %v3341
          %v3636 = vpack.c.b16 %v3348, %v3342
          %v3637 = vpack.c.b16 %v3349, %v3343
          %v3638 = vpack.c.b16 %v3350, %v3344
          %v3639 = vpack.c.b16 %v3351, %v3345
          %v3640 = vpack.c.b16 %v3352, %v3346
          %3929 = vmatprep.subr.bf16.mxu0 %v3396
          %3930 = vmatpush1.bf16.msra.mxu0 %v3395
          %3931 = vmatprep.subr.bf16.mxu0 %v3390
          %3932 = vmatpush1.bf16.msra.mxu0 %v3389
          %3933 = vmatprep.subr.bf16.mxu0 %v3384
          %3934 = vmatpush1.bf16.msra.mxu0 %v3383
          %3935 = vmatprep.subr.bf16.mxu0 %v3378
          %3936 = vmatpush1.bf16.msra.mxu0 %v3377
          %3937 = vmatprep.subr.bf16.mxu0 %v3372
          %3938 = vmatpush1.bf16.msra.mxu0 %v3371
          %3939 = vmatprep.subr.bf16.mxu0 %v3366
          %3940 = vmatpush1.bf16.msra.mxu0 %v3365
          %3941 = vmatprep.subr.bf16.mxu0 %v3360
          %3942 = vmatpush1.bf16.msra.mxu0 %v3359
          %3943 = vmatprep.subr.bf16.mxu0 %v3354
          %3944 = vmatpush1.bf16.msra.mxu0 %v3353
          %3945 = vmatprep.subr.bf16.mxu0 %v3444
          %3946 = vmatpush2.bf16.msra.mxu0 %v3443
          %3947 = vmatprep.subr.bf16.mxu0 %v3438
          %3948 = vmatpush2.bf16.msra.mxu0 %v3437
          %3949 = vmatprep.subr.bf16.mxu0 %v3432
          %3950 = vmatpush2.bf16.msra.mxu0 %v3431
          %3951 = vmatprep.subr.bf16.mxu0 %v3426
          %3952 = vmatpush2.bf16.msra.mxu0 %v3425
          %3953 = vmatprep.subr.bf16.mxu0 %v3420
          %3954 = vmatpush2.bf16.msra.mxu0 %v3419
          %3955 = vmatprep.subr.bf16.mxu0 %v3414
          %3956 = vmatpush2.bf16.msra.mxu0 %v3413
          %3957 = vmatprep.subr.bf16.mxu0 %v3408
          %3958 = vmatpush2.bf16.msra.mxu0 %v3407
          %3959 = vmatprep.subr.bf16.mxu0 %v3402
          %3960 = vmatpush2.bf16.msra.mxu0 %v3401
          %3961 = vmatprep.mubr.bf16.mxu0 %v2478
          %3962 = vmatmul.mubr.bf16.gmra.mxu0 %v2477
          %v3963 = vpop.f32.mrf.mxu0
          %v3964 = vadd.f32 %v2419, %v3963
          %v3965 = vpop.f32.mrf.mxu0
          %v3966 = vadd.f32 %v2423, %v3965
          %v3967 = vpop.f32.mrf.mxu0
          %v3968 = vpop.f32.mrf.mxu0
          %3969 = vdwg.mxu0
          %3970 = vmatprep.subr.bf16.mxu0 %v3492
          %3971 = vmatpush1.bf16.msra.mxu0 %v3491
          %3972 = vmatprep.subr.bf16.mxu0 %v3486
          %3973 = vmatpush1.bf16.msra.mxu0 %v3485
          %3974 = vmatprep.subr.bf16.mxu0 %v3480
          %3975 = vmatpush1.bf16.msra.mxu0 %v3479
          %3976 = vmatprep.subr.bf16.mxu0 %v3474
          %3977 = vmatpush1.bf16.msra.mxu0 %v3473
          %3978 = vmatprep.subr.bf16.mxu0 %v3468
          %3979 = vmatpush1.bf16.msra.mxu0 %v3467
          %3980 = vmatprep.subr.bf16.mxu0 %v3462
          %3981 = vmatpush1.bf16.msra.mxu0 %v3461
          %3982 = vmatprep.subr.bf16.mxu0 %v3456
          %3983 = vmatpush1.bf16.msra.mxu0 %v3455
          %3984 = vmatprep.subr.bf16.mxu0 %v3450
          %3985 = vmatpush1.bf16.msra.mxu0 %v3449
          %3986 = vmatprep.subr.bf16.mxu0 %v3540
          %3987 = vmatpush2.bf16.msra.mxu0 %v3539
          %3988 = vmatprep.subr.bf16.mxu0 %v3534
          %3989 = vmatpush2.bf16.msra.mxu0 %v3533
          %3990 = vmatprep.subr.bf16.mxu0 %v3528
          %3991 = vmatpush2.bf16.msra.mxu0 %v3527
          %3992 = vmatprep.subr.bf16.mxu0 %v3522
          %3993 = vmatpush2.bf16.msra.mxu0 %v3521
          %3994 = vmatprep.subr.bf16.mxu0 %v3516
          %3995 = vmatpush2.bf16.msra.mxu0 %v3515
          %3996 = vmatprep.subr.bf16.mxu0 %v3510
          %3997 = vmatpush2.bf16.msra.mxu0 %v3509
          %3998 = vmatprep.subr.bf16.mxu0 %v3504
          %3999 = vmatpush2.bf16.msra.mxu0 %v3503
          %4000 = vmatprep.subr.bf16.mxu0 %v3498
          %4001 = vmatpush2.bf16.msra.mxu0 %v3497
          %4002 = vmatprep.mubr.bf16.mxu0 %v2480
          %4003 = vmatmul.mubr.bf16.gmra.mxu0 %v2479
          %v4004 = vpop.f32.mrf.mxu0
          %v4005 = vadd.f32 %v3964, %v4004
          %v4006 = vpop.f32.mrf.mxu0
          %v4007 = vadd.f32 %v3966, %v4006
          %v4008 = vpop.f32.mrf.mxu0
          %v4009 = vpop.f32.mrf.mxu0
          %4010 = vdwg.mxu0
          %4011 = vmatprep.subr.bf16.mxu0 %v3588
          %4012 = vmatpush1.bf16.msra.mxu0 %v3587
          %4013 = vmatprep.subr.bf16.mxu0 %v3582
          %4014 = vmatpush1.bf16.msra.mxu0 %v3581
          %4015 = vmatprep.subr.bf16.mxu0 %v3576
          %4016 = vmatpush1.bf16.msra.mxu0 %v3575
          %4017 = vmatprep.subr.bf16.mxu0 %v3570
          %4018 = vmatpush1.bf16.msra.mxu0 %v3569
          %4019 = vmatprep.subr.bf16.mxu0 %v3564
          %4020 = vmatpush1.bf16.msra.mxu0 %v3563
          %4021 = vmatprep.subr.bf16.mxu0 %v3558
          %4022 = vmatpush1.bf16.msra.mxu0 %v3557
          %4023 = vmatprep.subr.bf16.mxu0 %v3552
          %4024 = vmatpush1.bf16.msra.mxu0 %v3551
          %4025 = vmatprep.subr.bf16.mxu0 %v3546
          %4026 = vmatpush1.bf16.msra.mxu0 %v3545
          %4027 = vmatprep.subr.bf16.mxu0 %v3636
          %4028 = vmatpush2.bf16.msra.mxu0 %v3635
          %4029 = vmatprep.subr.bf16.mxu0 %v3630
          %4030 = vmatpush2.bf16.msra.mxu0 %v3629
          %4031 = vmatprep.subr.bf16.mxu0 %v3624
          %4032 = vmatpush2.bf16.msra.mxu0 %v3623
          %4033 = vmatprep.subr.bf16.mxu0 %v3618
          %4034 = vmatpush2.bf16.msra.mxu0 %v3617
          %4035 = vmatprep.subr.bf16.mxu0 %v3612
          %4036 = vmatpush2.bf16.msra.mxu0 %v3611
          %4037 = vmatprep.subr.bf16.mxu0 %v3606
          %4038 = vmatpush2.bf16.msra.mxu0 %v3605
          %4039 = vmatprep.subr.bf16.mxu0 %v3600
          %4040 = vmatpush2.bf16.msra.mxu0 %v3599
          %4041 = vmatprep.subr.bf16.mxu0 %v3594
          %4042 = vmatpush2.bf16.msra.mxu0 %v3593
          %4043 = vmatprep.mubr.bf16.mxu0 %v2482
          %4044 = vmatmul.mubr.bf16.gmra.mxu0 %v2481
          %v4045 = vpop.f32.mrf.mxu0
          %v4046 = vadd.f32 %v4005, %v4045
          %v4047 = vpop.f32.mrf.mxu0
          %v4048 = vadd.f32 %v4007, %v4047
          %v4049 = vpop.f32.mrf.mxu0
          %v4050 = vpop.f32.mrf.mxu0
          %4051 = vdwg.mxu0
          %4052 = vmatprep.subr.bf16.mxu0 %v3398
          %4053 = vmatpush1.bf16.msra.mxu0 %v3397
          %4054 = vmatprep.subr.bf16.mxu0 %v3392
          %4055 = vmatpush1.bf16.msra.mxu0 %v3391
          %4056 = vmatprep.subr.bf16.mxu0 %v3386
          %4057 = vmatpush1.bf16.msra.mxu0 %v3385
          %4058 = vmatprep.subr.bf16.mxu0 %v3380
          %4059 = vmatpush1.bf16.msra.mxu0 %v3379
          %4060 = vmatprep.subr.bf16.mxu0 %v3374
          %4061 = vmatpush1.bf16.msra.mxu0 %v3373
          %4062 = vmatprep.subr.bf16.mxu0 %v3368
          %4063 = vmatpush1.bf16.msra.mxu0 %v3367
          %4064 = vmatprep.subr.bf16.mxu0 %v3362
          %4065 = vmatpush1.bf16.msra.mxu0 %v3361
          %4066 = vmatprep.subr.bf16.mxu0 %v3356
          %4067 = vmatpush1.bf16.msra.mxu0 %v3355
          %4068 = vmatprep.subr.bf16.mxu0 %v3446
          %4069 = vmatpush2.bf16.msra.mxu0 %v3445
          %4070 = vmatprep.subr.bf16.mxu0 %v3440
          %4071 = vmatpush2.bf16.msra.mxu0 %v3439
          %4072 = vmatprep.subr.bf16.mxu0 %v3434
          %4073 = vmatpush2.bf16.msra.mxu0 %v3433
          %4074 = vmatprep.subr.bf16.mxu0 %v3428
          %4075 = vmatpush2.bf16.msra.mxu0 %v3427
          %4076 = vmatprep.subr.bf16.mxu0 %v3422
          %4077 = vmatpush2.bf16.msra.mxu0 %v3421
          %4078 = vmatprep.subr.bf16.mxu0 %v3416
          %4079 = vmatpush2.bf16.msra.mxu0 %v3415
          %4080 = vmatprep.subr.bf16.mxu0 %v3410
          %4081 = vmatpush2.bf16.msra.mxu0 %v3409
          %4082 = vmatprep.subr.bf16.mxu0 %v3404
          %4083 = vmatpush2.bf16.msra.mxu0 %v3403
          %4084 = vmatprep.mubr.bf16.mxu0 %v2478
          %4085 = vmatmul.mubr.bf16.gmra.mxu0 %v2477
          %v4086 = vpop.f32.mrf.mxu0
          %v4087 = vadd.f32 %v2427, %v4086
          %v4088 = vpop.f32.mrf.mxu0
          %v4089 = vadd.f32 %v2431, %v4088
          %v4090 = vpop.f32.mrf.mxu0
          %v4091 = vpop.f32.mrf.mxu0
          %4092 = vdwg.mxu0
          %4093 = vmatprep.subr.bf16.mxu0 %v3494
          %4094 = vmatpush1.bf16.msra.mxu0 %v3493
          %4095 = vmatprep.subr.bf16.mxu0 %v3488
          %4096 = vmatpush1.bf16.msra.mxu0 %v3487
          %4097 = vmatprep.subr.bf16.mxu0 %v3482
          %4098 = vmatpush1.bf16.msra.mxu0 %v3481
          %4099 = vmatprep.subr.bf16.mxu0 %v3476
          %4100 = vmatpush1.bf16.msra.mxu0 %v3475
          %4101 = vmatprep.subr.bf16.mxu0 %v3470
          %4102 = vmatpush1.bf16.msra.mxu0 %v3469
          %4103 = vmatprep.subr.bf16.mxu0 %v3464
          %4104 = vmatpush1.bf16.msra.mxu0 %v3463
          %4105 = vmatprep.subr.bf16.mxu0 %v3458
          %4106 = vmatpush1.bf16.msra.mxu0 %v3457
          %4107 = vmatprep.subr.bf16.mxu0 %v3452
          %4108 = vmatpush1.bf16.msra.mxu0 %v3451
          %4109 = vmatprep.subr.bf16.mxu0 %v3542
          %4110 = vmatpush2.bf16.msra.mxu0 %v3541
          %4111 = vmatprep.subr.bf16.mxu0 %v3536
          %4112 = vmatpush2.bf16.msra.mxu0 %v3535
          %4113 = vmatprep.subr.bf16.mxu0 %v3530
          %4114 = vmatpush2.bf16.msra.mxu0 %v3529
          %4115 = vmatprep.subr.bf16.mxu0 %v3524
          %4116 = vmatpush2.bf16.msra.mxu0 %v3523
          %4117 = vmatprep.subr.bf16.mxu0 %v3518
          %4118 = vmatpush2.bf16.msra.mxu0 %v3517
          %4119 = vmatprep.subr.bf16.mxu0 %v3512
          %4120 = vmatpush2.bf16.msra.mxu0 %v3511
          %4121 = vmatprep.subr.bf16.mxu0 %v3506
          %4122 = vmatpush2.bf16.msra.mxu0 %v3505
          %4123 = vmatprep.subr.bf16.mxu0 %v3500
          %4124 = vmatpush2.bf16.msra.mxu0 %v3499
          %4125 = vmatprep.mubr.bf16.mxu0 %v2480
          %4126 = vmatmul.mubr.bf16.gmra.mxu0 %v2479
          %v4127 = vpop.f32.mrf.mxu0
          %v4128 = vadd.f32 %v4087, %v4127
          %v4129 = vpop.f32.mrf.mxu0
          %v4130 = vadd.f32 %v4089, %v4129
          %v4131 = vpop.f32.mrf.mxu0
          %v4132 = vpop.f32.mrf.mxu0
          %4133 = vdwg.mxu0
          %4134 = vmatprep.subr.bf16.mxu0 %v3590
          %4135 = vmatpush1.bf16.msra.mxu0 %v3589
          %4136 = vmatprep.subr.bf16.mxu0 %v3584
          %4137 = vmatpush1.bf16.msra.mxu0 %v3583
          %4138 = vmatprep.subr.bf16.mxu0 %v3578
          %4139 = vmatpush1.bf16.msra.mxu0 %v3577
          %4140 = vmatprep.subr.bf16.mxu0 %v3572
          %4141 = vmatpush1.bf16.msra.mxu0 %v3571
          %4142 = vmatprep.subr.bf16.mxu0 %v3566
          %4143 = vmatpush1.bf16.msra.mxu0 %v3565
          %4144 = vmatprep.subr.bf16.mxu0 %v3560
          %4145 = vmatpush1.bf16.msra.mxu0 %v3559
          %4146 = vmatprep.subr.bf16.mxu0 %v3554
          %4147 = vmatpush1.bf16.msra.mxu0 %v3553
          %4148 = vmatprep.subr.bf16.mxu0 %v3548
          %4149 = vmatpush1.bf16.msra.mxu0 %v3547
          %4150 = vmatprep.subr.bf16.mxu0 %v3638
          %4151 = vmatpush2.bf16.msra.mxu0 %v3637
          %4152 = vmatprep.subr.bf16.mxu0 %v3632
          %4153 = vmatpush2.bf16.msra.mxu0 %v3631
          %4154 = vmatprep.subr.bf16.mxu0 %v3626
          %4155 = vmatpush2.bf16.msra.mxu0 %v3625
          %4156 = vmatprep.subr.bf16.mxu0 %v3620
          %4157 = vmatpush2.bf16.msra.mxu0 %v3619
          %4158 = vmatprep.subr.bf16.mxu0 %v3614
          %4159 = vmatpush2.bf16.msra.mxu0 %v3613
          %4160 = vmatprep.subr.bf16.mxu0 %v3608
          %4161 = vmatpush2.bf16.msra.mxu0 %v3607
          %4162 = vmatprep.subr.bf16.mxu0 %v3602
          %4163 = vmatpush2.bf16.msra.mxu0 %v3601
          %4164 = vmatprep.subr.bf16.mxu0 %v3596
          %4165 = vmatpush2.bf16.msra.mxu0 %v3595
          %4166 = vmatprep.mubr.bf16.mxu0 %v2482
          %4167 = vmatmul.mubr.bf16.gmra.mxu0 %v2481
          %v4168 = vpop.f32.mrf.mxu0
          %v4169 = vadd.f32 %v4128, %v4168
          %v4170 = vpop.f32.mrf.mxu0
          %v4171 = vadd.f32 %v4130, %v4170
          %v4172 = vpop.f32.mrf.mxu0
          %v4173 = vpop.f32.mrf.mxu0
          %4174 = vdwg.mxu0
          %4175 = vmatprep.subr.bf16.mxu0 %v3400
          %4176 = vmatpush1.bf16.msra.mxu0 %v3399
          %4177 = vmatprep.subr.bf16.mxu0 %v3394
          %4178 = vmatpush1.bf16.msra.mxu0 %v3393
          %4179 = vmatprep.subr.bf16.mxu0 %v3388
          %4180 = vmatpush1.bf16.msra.mxu0 %v3387
          %4181 = vmatprep.subr.bf16.mxu0 %v3382
          %4182 = vmatpush1.bf16.msra.mxu0 %v3381
          %4183 = vmatprep.subr.bf16.mxu0 %v3376
          %4184 = vmatpush1.bf16.msra.mxu0 %v3375
          %4185 = vmatprep.subr.bf16.mxu0 %v3370
          %4186 = vmatpush1.bf16.msra.mxu0 %v3369
          %4187 = vmatprep.subr.bf16.mxu0 %v3364
          %4188 = vmatpush1.bf16.msra.mxu0 %v3363
          %4189 = vmatprep.subr.bf16.mxu0 %v3358
          %4190 = vmatpush1.bf16.msra.mxu0 %v3357
          %4191 = vmatprep.subr.bf16.mxu0 %v3448
          %4192 = vmatpush2.bf16.msra.mxu0 %v3447
          %4193 = vmatprep.subr.bf16.mxu0 %v3442
          %4194 = vmatpush2.bf16.msra.mxu0 %v3441
          %4195 = vmatprep.subr.bf16.mxu0 %v3436
          %4196 = vmatpush2.bf16.msra.mxu0 %v3435
          %4197 = vmatprep.subr.bf16.mxu0 %v3430
          %4198 = vmatpush2.bf16.msra.mxu0 %v3429
          %4199 = vmatprep.subr.bf16.mxu0 %v3424
          %4200 = vmatpush2.bf16.msra.mxu0 %v3423
          %4201 = vmatprep.subr.bf16.mxu0 %v3418
          %4202 = vmatpush2.bf16.msra.mxu0 %v3417
          %4203 = vmatprep.subr.bf16.mxu0 %v3412
          %4204 = vmatpush2.bf16.msra.mxu0 %v3411
          %4205 = vmatprep.subr.bf16.mxu0 %v3406
          %4206 = vmatpush2.bf16.msra.mxu0 %v3405
          %4207 = vmatprep.mubr.bf16.mxu0 %v2478
          %4208 = vmatmul.mubr.bf16.gmra.mxu0 %v2477
          %v4209 = vpop.f32.mrf.mxu0
          %v4210 = vadd.f32 %v2435, %v4209
          %v4211 = vpop.f32.mrf.mxu0
          %v4212 = vadd.f32 %v2439, %v4211
          %v4213 = vpop.f32.mrf.mxu0
          %v4214 = vpop.f32.mrf.mxu0
          %4215 = vdwg.mxu0
          %4216 = vmatprep.subr.bf16.mxu0 %v3496
          %4217 = vmatpush1.bf16.msra.mxu0 %v3495
          %4218 = vmatprep.subr.bf16.mxu0 %v3490
          %4219 = vmatpush1.bf16.msra.mxu0 %v3489
          %4220 = vmatprep.subr.bf16.mxu0 %v3484
          %4221 = vmatpush1.bf16.msra.mxu0 %v3483
          %4222 = vmatprep.subr.bf16.mxu0 %v3478
          %4223 = vmatpush1.bf16.msra.mxu0 %v3477
          %4224 = vmatprep.subr.bf16.mxu0 %v3472
          %4225 = vmatpush1.bf16.msra.mxu0 %v3471
          %4226 = vmatprep.subr.bf16.mxu0 %v3466
          %4227 = vmatpush1.bf16.msra.mxu0 %v3465
          %4228 = vmatprep.subr.bf16.mxu0 %v3460
          %4229 = vmatpush1.bf16.msra.mxu0 %v3459
          %4230 = vmatprep.subr.bf16.mxu0 %v3454
          %4231 = vmatpush1.bf16.msra.mxu0 %v3453
          %4232 = vmatprep.subr.bf16.mxu0 %v3544
          %4233 = vmatpush2.bf16.msra.mxu0 %v3543
          %4234 = vmatprep.subr.bf16.mxu0 %v3538
          %4235 = vmatpush2.bf16.msra.mxu0 %v3537
          %4236 = vmatprep.subr.bf16.mxu0 %v3532
          %4237 = vmatpush2.bf16.msra.mxu0 %v3531
          %4238 = vmatprep.subr.bf16.mxu0 %v3526
          %4239 = vmatpush2.bf16.msra.mxu0 %v3525
          %4240 = vmatprep.subr.bf16.mxu0 %v3520
          %4241 = vmatpush2.bf16.msra.mxu0 %v3519
          %4242 = vmatprep.subr.bf16.mxu0 %v3514
          %4243 = vmatpush2.bf16.msra.mxu0 %v3513
          %4244 = vmatprep.subr.bf16.mxu0 %v3508
          %4245 = vmatpush2.bf16.msra.mxu0 %v3507
          %4246 = vmatprep.subr.bf16.mxu0 %v3502
          %4247 = vmatpush2.bf16.msra.mxu0 %v3501
          %4248 = vmatprep.mubr.bf16.mxu0 %v2480
          %4249 = vmatmul.mubr.bf16.gmra.mxu0 %v2479
          %v4250 = vpop.f32.mrf.mxu0
          %v4251 = vadd.f32 %v4210, %v4250
          %v4252 = vpop.f32.mrf.mxu0
          %v4253 = vadd.f32 %v4212, %v4252
          %v4254 = vpop.f32.mrf.mxu0
          %v4255 = vpop.f32.mrf.mxu0
          %4256 = vdwg.mxu0
          %4257 = vmatprep.subr.bf16.mxu0 %v3592
          %4258 = vmatpush1.bf16.msra.mxu0 %v3591
          %4259 = vmatprep.subr.bf16.mxu0 %v3586
          %4260 = vmatpush1.bf16.msra.mxu0 %v3585
          %4261 = vmatprep.subr.bf16.mxu0 %v3580
          %4262 = vmatpush1.bf16.msra.mxu0 %v3579
          %4263 = vmatprep.subr.bf16.mxu0 %v3574
          %4264 = vmatpush1.bf16.msra.mxu0 %v3573
          %4265 = vmatprep.subr.bf16.mxu0 %v3568
          %4266 = vmatpush1.bf16.msra.mxu0 %v3567
          %4267 = vmatprep.subr.bf16.mxu0 %v3562
          %4268 = vmatpush1.bf16.msra.mxu0 %v3561
          %4269 = vmatprep.subr.bf16.mxu0 %v3556
          %4270 = vmatpush1.bf16.msra.mxu0 %v3555
          %4271 = vmatprep.subr.bf16.mxu0 %v3550
          %4272 = vmatpush1.bf16.msra.mxu0 %v3549
          %4273 = vmatprep.subr.bf16.mxu0 %v3640
          %4274 = vmatpush2.bf16.msra.mxu0 %v3639
          %4275 = vmatprep.subr.bf16.mxu0 %v3634
          %4276 = vmatpush2.bf16.msra.mxu0 %v3633
          %4277 = vmatprep.subr.bf16.mxu0 %v3628
          %4278 = vmatpush2.bf16.msra.mxu0 %v3627
          %4279 = vmatprep.subr.bf16.mxu0 %v3622
          %4280 = vmatpush2.bf16.msra.mxu0 %v3621
          %4281 = vmatprep.subr.bf16.mxu0 %v3616
          %4282 = vmatpush2.bf16.msra.mxu0 %v3615
          %4283 = vmatprep.subr.bf16.mxu0 %v3610
          %4284 = vmatpush2.bf16.msra.mxu0 %v3609
          %4285 = vmatprep.subr.bf16.mxu0 %v3604
          %4286 = vmatpush2.bf16.msra.mxu0 %v3603
          %4287 = vmatprep.subr.bf16.mxu0 %v3598
          %4288 = vmatpush2.bf16.msra.mxu0 %v3597
          %4289 = vmatprep.mubr.bf16.mxu0 %v2482
          %4290 = vmatmul.mubr.bf16.gmra.mxu0 %v2481
          %v4291 = vpop.f32.mrf.mxu0
          %v4292 = vadd.f32 %v4251, %v4291
          %v4293 = vpop.f32.mrf.mxu0
          %v4294 = vadd.f32 %v4253, %v4293
          %v4295 = vpop.f32.mrf.mxu0
          %v4296 = vpop.f32.mrf.mxu0
          %4297 = vdwg.mxu0
          %v4310 = vsel %vm2470, %v1997, %v1961
          %v4311 = vsel %vm2470, %v2003, %v1967
          %v4312 = vsel %vm2470, %v2009, %v1973
          %v4313 = vsel %vm2470, %v2015, %v1979
          %v4314 = vsel %vm2470, %v2021, %v1985
          %v4315 = vsel %vm2470, %v2027, %v1991
          %v4322 = vadd.f32 %v4046, %v4310
          %v4323 = vadd.f32 %v4048, %v4311
          %v4324 = vadd.f32 %v4169, %v4312
          %v4325 = vadd.f32 %v4171, %v4313
          %v4326 = vadd.f32 %v4292, %v4314
          %v4327 = vadd.f32 %v4294, %v4315
          %v4328 = vld [vmem:[#allocation16] sm:$0x3f]
          %v4329 = vld [vmem:[#allocation17] sm:$0x3f]
          %vm4330 = vcmask 1041408
          %v4331 = vsel %vm4330, %v4322, 0.0
          %v4332 = vsel %vm4330, %v4323, 0.0
          %v4333 = vadd.f32 %v4331, %v4332
          %v4334 = vsel %vm4330, %v4324, 0.0
          %v4335 = vadd.f32 %v4333, %v4334
          %v4336 = vsel %vm4330, %v4325, 0.0
          %v4337 = vadd.f32 %v4335, %v4336
          %v4338 = vsel %vm4330, %v4326, 0.0
          %v4339 = vadd.f32 %v4337, %v4338
          %v4340 = vsel %vm4330, %v4327, 0.0
          %v4341 = vadd.f32 %v4339, %v4340
          %4342 = vadd.xlane.f32.xlu0 %v4341
          %v4343 = vpop.xlane.xlu0 %4342
          %v4344 = vrcp.pop 768.0
          %v4345 = vmul.f32 %v4343, %v4344
          %v4346 = vsub.f32 %v4322, %v4345
          %v4347 = vsub.f32 %v4323, %v4345
          %v4348 = vsub.f32 %v4324, %v4345
          %v4349 = vsub.f32 %v4325, %v4345
          %v4350 = vsub.f32 %v4326, %v4345
          %v4351 = vsub.f32 %v4327, %v4345
          %v4352 = vmul.f32 %v4346, %v4346
          %v4353 = vmul.f32 %v4347, %v4347
          %v4354 = vmul.f32 %v4348, %v4348
          %v4355 = vmul.f32 %v4349, %v4349
          %v4356 = vmul.f32 %v4350, %v4350
          %v4357 = vmul.f32 %v4351, %v4351
          %v4358 = vsel %vm4330, %v4352, 0.0
          %v4359 = vsel %vm4330, %v4353, 0.0
          %v4360 = vadd.f32 %v4358, %v4359
          %v4361 = vsel %vm4330, %v4354, 0.0
          %v4362 = vadd.f32 %v4360, %v4361
          %v4363 = vsel %vm4330, %v4355, 0.0
          %v4364 = vadd.f32 %v4362, %v4363
          %v4365 = vsel %vm4330, %v4356, 0.0
          %v4366 = vadd.f32 %v4364, %v4365
          %v4367 = vsel %vm4330, %v4357, 0.0
          %v4368 = vadd.f32 %v4366, %v4367
          %4369 = vadd.xlane.f32.xlu0 %v4368
          %v4370 = vpop.xlane.xlu0 %4369
          %v4371 = vmul.f32 %v4370, %v4344
          %v4372 = vadd.f32 %v4371, 1e-12
          %v4373 = vrsqrt.pop %v4372
          %v4374 = vmul.f32 %v4346, %v4373
          %v4375 = vmul.f32 %v4347, %v4373
          %v4376 = vmul.f32 %v4348, %v4373
          %v4377 = vmul.f32 %v4349, %v4373
          %v4378 = vmul.f32 %v4350, %v4373
          %v4379 = vmul.f32 %v4351, %v4373
          %v4381 = vlaneseq
          %v4382 = vshrl.u32 %v4381, 7
          %v4383 = vsub.s32 0, %v4382
          %v4384 = vrot.slane %v4328, %v4383
          %v4385 = vlaneseq
          %v4386 = vshrl.u32 %v4385, 7
          %v4387 = vsub.s32 1, %v4386
          %v4388 = vrot.slane %v4328, %v4387
          %v4389 = vlaneseq
          %v4390 = vshrl.u32 %v4389, 7
          %v4391 = vsub.s32 2, %v4390
          %v4392 = vrot.slane %v4328, %v4391
          %v4393 = vlaneseq
          %v4394 = vshrl.u32 %v4393, 7
          %v4395 = vsub.s32 3, %v4394
          %v4396 = vrot.slane %v4328, %v4395
          %v4397 = vlaneseq
          %v4398 = vshrl.u32 %v4397, 7
          %v4399 = vsub.s32 4, %v4398
          %v4400 = vrot.slane %v4328, %v4399
          %v4401 = vlaneseq
          %v4402 = vshrl.u32 %v4401, 7
          %v4403 = vsub.s32 5, %v4402
          %v4404 = vrot.slane %v4328, %v4403
          %v4411 = vmul.f32 %v4384, %v4374
          %v4412 = vmul.f32 %v4388, %v4375
          %v4413 = vmul.f32 %v4392, %v4376
          %v4414 = vmul.f32 %v4396, %v4377
          %v4415 = vmul.f32 %v4400, %v4378
          %v4416 = vmul.f32 %v4404, %v4379
          %v4418 = vlaneseq
          %v4419 = vshrl.u32 %v4418, 7
          %v4420 = vsub.s32 0, %v4419
          %v4421 = vrot.slane %v4329, %v4420
          %v4422 = vlaneseq
          %v4423 = vshrl.u32 %v4422, 7
          %v4424 = vsub.s32 1, %v4423
          %v4425 = vrot.slane %v4329, %v4424
          %v4426 = vlaneseq
          %v4427 = vshrl.u32 %v4426, 7
          %v4428 = vsub.s32 2, %v4427
          %v4429 = vrot.slane %v4329, %v4428
          %v4430 = vlaneseq
          %v4431 = vshrl.u32 %v4430, 7
          %v4432 = vsub.s32 3, %v4431
          %v4433 = vrot.slane %v4329, %v4432
          %v4434 = vlaneseq
          %v4435 = vshrl.u32 %v4434, 7
          %v4436 = vsub.s32 4, %v4435
          %v4437 = vrot.slane %v4329, %v4436
          %v4438 = vlaneseq
          %v4439 = vshrl.u32 %v4438, 7
          %v4440 = vsub.s32 5, %v4439
          %v4441 = vrot.slane %v4329, %v4440
          %v4448 = vadd.f32 %v4411, %v4421
          %v4449 = vadd.f32 %v4412, %v4425
          %v4450 = vadd.f32 %v4413, %v4429
          %v4451 = vadd.f32 %v4414, %v4433
          %v4452 = vadd.f32 %v4415, %v4437
          %v4453 = vadd.f32 %v4416, %v4441
          %v4460 = vcombine.low %v4448, %v4449
          %v4461 = vcombine.low %v4450, %v4451
          %v4463 = vunpack.c.l.s4 1983009808
          %v4464 = vunpack.c.0.s8 %v4463
          %v4465 = vlaneseq
          %v4466 = vshrl.u32 %v4465, 7
          %v4467 = vsub.s32 %v4464, %v4466
          %v4468 = vrot.slane %v4460, %v4467
          %v4470 = vunpack.c.l.s4 1983009808
          %v4471 = vunpack.c.0.s8 %v4470
          %v4472 = vlaneseq
          %v4473 = vshrl.u32 %v4472, 7
          %v4474 = vsub.s32 %v4471, %v4473
          %v4475 = vrot.slane %v4461, %v4474
          %v4476 = vcombine.low %v4468, %v4475
          %v4477 = vcombine.low %v4452, %v4453
          %v4479 = vunpack.c.l.s4 1983009808
          %v4480 = vunpack.c.0.s8 %v4479
          %v4481 = vlaneseq
          %v4482 = vshrl.u32 %v4481, 7
          %v4483 = vsub.s32 %v4480, %v4482
          %v4484 = vrot.slane %v4477, %v4483
          %4487 = vst [vmem:[#allocation2] sm:$0xff] %v4476
          %4488 = vst [vmem:[#allocation2 + $0x8] sm:$0xf] %v4484
          %4489 = vst [vmem:[#allocation3] sm:$0xff] 0.0
          %4490 = vst [vmem:[#allocation3 + $0x8] sm:$0xf] 0.0
          %4491 = vst [vmem:[#allocation28] sm:$0x3] 0.0
        $region156: #{tpu_custom_call.1} parent=87 // pred_fallthru
          _
        %v4492 = vld [vmem:[#allocation2] sm:$0xff]
        %v4493 = vld [vmem:[#allocation2 + $0x8] sm:$0xf]
        %v4496 = vcombine.high %v4492, %v4492
        %v4498 = vunpack.c.l.s4 1983009808
        %v4499 = vunpack.c.0.s8 %v4498
        %v4500 = vlaneseq
        %v4501 = vshrl.u32 %v4500, 7
        %v4502 = vsub.s32 %v4499, %v4501
        %v4503 = vrot.slane %v4492, %v4502
        %v4505 = vunpack.c.l.s4 1983009808
        %v4506 = vunpack.c.0.s8 %v4505
        %v4507 = vlaneseq
        %v4508 = vshrl.u32 %v4507, 7
        %v4509 = vsub.s32 %v4506, %v4508
        %v4510 = vrot.slane %v4496, %v4509
        %v4511 = vcombine.high %v4503, %v4503
        %v4512 = vcombine.high %v4510, %v4510
        %v4514 = vunpack.c.l.s4 1983009808
        %v4515 = vunpack.c.0.s8 %v4514
        %v4516 = vlaneseq
        %v4517 = vshrl.u32 %v4516, 7
        %v4518 = vsub.s32 %v4515, %v4517
        %v4519 = vrot.slane %v4493, %v4518
        %v4520 = vcombine.high %v4519, %v4519
        %v4527 = vpack.c.bf16 %v4503, %v4503
        %v4528 = vpack.c.bf16 %v4511, %v4511
        %v4529 = vpack.c.bf16 %v4510, %v4510
        %v4530 = vpack.c.bf16 %v4512, %v4512
        %v4531 = vpack.c.bf16 %v4519, %v4519
        %v4532 = vpack.c.bf16 %v4520, %v4520
        %v4533 = vld [vmem:[%s703] sm:$0xff]
        %v4534 = vld [vmem:[%s703 + $0x8] sm:$0xff]
        %v4535 = vld [vmem:[%s703 + $0x10] sm:$0xff]
        %v4536 = vld [vmem:[%s703 + $0x18] sm:$0xff]
        %v4537 = vld [vmem:[%s703 + $0x20] sm:$0xff]
        %v4538 = vld [vmem:[%s703 + $0x28] sm:$0xff]
        %v4539 = vld [vmem:[%s703 + $0x30] sm:$0xff]
        %v4540 = vld [vmem:[%s703 + $0x38] sm:$0xff]
        %v4541 = vld [vmem:[%s703 + $0x40] sm:$0xff]
        %v4542 = vld [vmem:[%s703 + $0x48] sm:$0xff]
        %v4543 = vld [vmem:[%s703 + $0x50] sm:$0xff]
        %v4544 = vld [vmem:[%s703 + $0x58] sm:$0xff]
        %v4545 = vld [vmem:[%s703 + $0x60] sm:$0xff]
        %v4546 = vld [vmem:[%s703 + $0x68] sm:$0xff]
        %v4547 = vld [vmem:[%s703 + $0x70] sm:$0xff]
        %v4548 = vld [vmem:[%s703 + $0x78] sm:$0xff]
        %v4549 = vld [vmem:[%s703 + $0x80] sm:$0xff]
        %v4550 = vld [vmem:[%s703 + $0x88] sm:$0xff]
        %v4551 = vld [vmem:[%s703 + $0x90] sm:$0xff]
        %v4552 = vld [vmem:[%s703 + $0x98] sm:$0xff]
        %v4553 = vld [vmem:[%s703 + $0xa0] sm:$0xff]
        %v4554 = vld [vmem:[%s703 + $0xa8] sm:$0xff]
        %v4555 = vld [vmem:[%s703 + $0xb0] sm:$0xff]
        %v4556 = vld [vmem:[%s703 + $0xb8] sm:$0xff]
        %v4557 = vld [vmem:[%s703 + $0xc0] sm:$0xff]
        %v4558 = vld [vmem:[%s703 + $0xc8] sm:$0xff]
        %v4559 = vld [vmem:[%s703 + $0xd0] sm:$0xff]
        %v4560 = vld [vmem:[%s703 + $0xd8] sm:$0xff]
        %v4561 = vld [vmem:[%s703 + $0xe0] sm:$0xff]
        %v4562 = vld [vmem:[%s703 + $0xe8] sm:$0xff]
        %v4563 = vld [vmem:[%s703 + $0xf0] sm:$0xff]
        %v4564 = vld [vmem:[%s703 + $0xf8] sm:$0xff]
        %v4565 = vld [vmem:[%s703 + $0x100] sm:$0xff]
        %v4566 = vld [vmem:[%s703 + $0x108] sm:$0xff]
        %v4567 = vld [vmem:[%s703 + $0x110] sm:$0xff]
        %v4568 = vld [vmem:[%s703 + $0x118] sm:$0xff]
        %v4569 = vld [vmem:[%s703 + $0x120] sm:$0xff]
        %v4570 = vld [vmem:[%s703 + $0x128] sm:$0xff]
        %v4571 = vld [vmem:[%s703 + $0x130] sm:$0xff]
        %v4572 = vld [vmem:[%s703 + $0x138] sm:$0xff]
        %v4573 = vld [vmem:[%s703 + $0x140] sm:$0xff]
        %v4574 = vld [vmem:[%s703 + $0x148] sm:$0xff]
        %v4575 = vld [vmem:[%s703 + $0x150] sm:$0xff]
        %v4576 = vld [vmem:[%s703 + $0x158] sm:$0xff]
        %v4577 = vld [vmem:[%s703 + $0x160] sm:$0xff]
        %v4578 = vld [vmem:[%s703 + $0x168] sm:$0xff]
        %v4579 = vld [vmem:[%s703 + $0x170] sm:$0xff]
        %v4580 = vld [vmem:[%s703 + $0x178] sm:$0xff]
        %v4581 = vld [vmem:[%s703 + $0x180] sm:$0xff]
        %v4582 = vld [vmem:[%s703 + $0x188] sm:$0xff]
        %v4583 = vld [vmem:[%s703 + $0x190] sm:$0xff]
        %v4584 = vld [vmem:[%s703 + $0x198] sm:$0xff]
        %v4585 = vld [vmem:[%s703 + $0x1a0] sm:$0xff]
        %v4586 = vld [vmem:[%s703 + $0x1a8] sm:$0xff]
        %v4587 = vld [vmem:[%s703 + $0x1b0] sm:$0xff]
        %v4588 = vld [vmem:[%s703 + $0x1b8] sm:$0xff]
        %v4589 = vld [vmem:[%s703 + $0x1c0] sm:$0xff]
        %v4590 = vld [vmem:[%s703 + $0x1c8] sm:$0xff]
        %v4591 = vld [vmem:[%s703 + $0x1d0] sm:$0xff]
        %v4592 = vld [vmem:[%s703 + $0x1d8] sm:$0xff]
        %v4593 = vld [vmem:[%s703 + $0x1e0] sm:$0xff]
        %v4594 = vld [vmem:[%s703 + $0x1e8] sm:$0xff]
        %v4595 = vld [vmem:[%s703 + $0x1f0] sm:$0xff]
        %v4596 = vld [vmem:[%s703 + $0x1f8] sm:$0xff]
        %v4597 = vld [vmem:[%s703 + $0x200] sm:$0xff]
        %v4598 = vld [vmem:[%s703 + $0x208] sm:$0xff]
        %v4599 = vld [vmem:[%s703 + $0x210] sm:$0xff]
        %v4600 = vld [vmem:[%s703 + $0x218] sm:$0xff]
        %v4601 = vld [vmem:[%s703 + $0x220] sm:$0xff]
        %v4602 = vld [vmem:[%s703 + $0x228] sm:$0xff]
        %v4603 = vld [vmem:[%s703 + $0x230] sm:$0xff]
        %v4604 = vld [vmem:[%s703 + $0x238] sm:$0xff]
        %v4605 = vld [vmem:[%s703 + $0x240] sm:$0xff]
        %v4606 = vld [vmem:[%s703 + $0x248] sm:$0xff]
        %v4607 = vld [vmem:[%s703 + $0x250] sm:$0xff]
        %v4608 = vld [vmem:[%s703 + $0x258] sm:$0xff]
        %v4609 = vld [vmem:[%s703 + $0x260] sm:$0xff]
        %v4610 = vld [vmem:[%s703 + $0x268] sm:$0xff]
        %v4611 = vld [vmem:[%s703 + $0x270] sm:$0xff]
        %v4612 = vld [vmem:[%s703 + $0x278] sm:$0xff]
        %v4613 = vld [vmem:[%s703 + $0x280] sm:$0xff]
        %v4614 = vld [vmem:[%s703 + $0x288] sm:$0xff]
        %v4615 = vld [vmem:[%s703 + $0x290] sm:$0xff]
        %v4616 = vld [vmem:[%s703 + $0x298] sm:$0xff]
        %v4617 = vld [vmem:[%s703 + $0x2a0] sm:$0xff]
        %v4618 = vld [vmem:[%s703 + $0x2a8] sm:$0xff]
        %v4619 = vld [vmem:[%s703 + $0x2b0] sm:$0xff]
        %v4620 = vld [vmem:[%s703 + $0x2b8] sm:$0xff]
        %v4621 = vld [vmem:[%s703 + $0x2c0] sm:$0xff]
        %v4622 = vld [vmem:[%s703 + $0x2c8] sm:$0xff]
        %v4623 = vld [vmem:[%s703 + $0x2d0] sm:$0xff]
        %v4624 = vld [vmem:[%s703 + $0x2d8] sm:$0xff]
        %v4625 = vld [vmem:[%s703 + $0x2e0] sm:$0xff]
        %v4626 = vld [vmem:[%s703 + $0x2e8] sm:$0xff]
        %v4627 = vld [vmem:[%s703 + $0x2f0] sm:$0xff]
        %v4628 = vld [vmem:[%s703 + $0x2f8] sm:$0xff]
        %v4629 = vld [vmem:[%s703 + $0x300] sm:$0xff]
        %v4630 = vld [vmem:[%s703 + $0x308] sm:$0xff]
        %v4631 = vld [vmem:[%s703 + $0x310] sm:$0xff]
        %v4632 = vld [vmem:[%s703 + $0x318] sm:$0xff]
        %v4633 = vld [vmem:[%s703 + $0x320] sm:$0xff]
        %v4634 = vld [vmem:[%s703 + $0x328] sm:$0xff]
        %v4635 = vld [vmem:[%s703 + $0x330] sm:$0xff]
        %v4636 = vld [vmem:[%s703 + $0x338] sm:$0xff]
        %v4637 = vld [vmem:[%s703 + $0x340] sm:$0xff]
        %v4638 = vld [vmem:[%s703 + $0x348] sm:$0xff]
        %v4639 = vld [vmem:[%s703 + $0x350] sm:$0xff]
        %v4640 = vld [vmem:[%s703 + $0x358] sm:$0xff]
        %v4641 = vld [vmem:[%s703 + $0x360] sm:$0xff]
        %v4642 = vld [vmem:[%s703 + $0x368] sm:$0xff]
        %v4643 = vld [vmem:[%s703 + $0x370] sm:$0xff]
        %v4644 = vld [vmem:[%s703 + $0x378] sm:$0xff]
        %v4645 = vld [vmem:[%s703 + $0x380] sm:$0xff]
        %v4646 = vld [vmem:[%s703 + $0x388] sm:$0xff]
        %v4647 = vld [vmem:[%s703 + $0x390] sm:$0xff]
        %v4648 = vld [vmem:[%s703 + $0x398] sm:$0xff]
        %v4649 = vld [vmem:[%s703 + $0x3a0] sm:$0xff]
        %v4650 = vld [vmem:[%s703 + $0x3a8] sm:$0xff]
        %v4651 = vld [vmem:[%s703 + $0x3b0] sm:$0xff]
        %v4652 = vld [vmem:[%s703 + $0x3b8] sm:$0xff]
        %v4653 = vld [vmem:[%s703 + $0x3c0] sm:$0xff]
        %v4654 = vld [vmem:[%s703 + $0x3c8] sm:$0xff]
        %v4655 = vld [vmem:[%s703 + $0x3d0] sm:$0xff]
        %v4656 = vld [vmem:[%s703 + $0x3d8] sm:$0xff]
        %v4657 = vld [vmem:[%s703 + $0x3e0] sm:$0xff]
        %v4658 = vld [vmem:[%s703 + $0x3e8] sm:$0xff]
        %v4659 = vld [vmem:[%s703 + $0x3f0] sm:$0xff]
        %v4660 = vld [vmem:[%s703 + $0x3f8] sm:$0xff]
        %v4661 = vld [vmem:[%s703 + $0x400] sm:$0xff]
        %v4662 = vld [vmem:[%s703 + $0x408] sm:$0xff]
        %v4663 = vld [vmem:[%s703 + $0x410] sm:$0xff]
        %v4664 = vld [vmem:[%s703 + $0x418] sm:$0xff]
        %v4665 = vld [vmem:[%s703 + $0x420] sm:$0xff]
        %v4666 = vld [vmem:[%s703 + $0x428] sm:$0xff]
        %v4667 = vld [vmem:[%s703 + $0x430] sm:$0xff]
        %v4668 = vld [vmem:[%s703 + $0x438] sm:$0xff]
        %v4669 = vld [vmem:[%s703 + $0x440] sm:$0xff]
        %v4670 = vld [vmem:[%s703 + $0x448] sm:$0xff]
        %v4671 = vld [vmem:[%s703 + $0x450] sm:$0xff]
        %v4672 = vld [vmem:[%s703 + $0x458] sm:$0xff]
        %v4673 = vld [vmem:[%s703 + $0x460] sm:$0xff]
        %v4674 = vld [vmem:[%s703 + $0x468] sm:$0xff]
        %v4675 = vld [vmem:[%s703 + $0x470] sm:$0xff]
        %v4676 = vld [vmem:[%s703 + $0x478] sm:$0xff]
        %v4677 = vld [vmem:[%s703 + $0x480] sm:$0xff]
        %v4678 = vld [vmem:[%s703 + $0x488] sm:$0xff]
        %v4679 = vld [vmem:[%s703 + $0x490] sm:$0xff]
        %v4680 = vld [vmem:[%s703 + $0x498] sm:$0xff]
        %v4681 = vld [vmem:[%s703 + $0x4a0] sm:$0xff]
        %v4682 = vld [vmem:[%s703 + $0x4a8] sm:$0xff]
        %v4683 = vld [vmem:[%s703 + $0x4b0] sm:$0xff]
        %v4684 = vld [vmem:[%s703 + $0x4b8] sm:$0xff]
        %v4685 = vld [vmem:[%s703 + $0x4c0] sm:$0xff]
        %v4686 = vld [vmem:[%s703 + $0x4c8] sm:$0xff]
        %v4687 = vld [vmem:[%s703 + $0x4d0] sm:$0xff]
        %v4688 = vld [vmem:[%s703 + $0x4d8] sm:$0xff]
        %v4689 = vld [vmem:[%s703 + $0x4e0] sm:$0xff]
        %v4690 = vld [vmem:[%s703 + $0x4e8] sm:$0xff]
        %v4691 = vld [vmem:[%s703 + $0x4f0] sm:$0xff]
        %v4692 = vld [vmem:[%s703 + $0x4f8] sm:$0xff]
        %v4693 = vld [vmem:[%s703 + $0x500] sm:$0xff]
        %v4694 = vld [vmem:[%s703 + $0x508] sm:$0xff]
        %v4695 = vld [vmem:[%s703 + $0x510] sm:$0xff]
        %v4696 = vld [vmem:[%s703 + $0x518] sm:$0xff]
        %v4697 = vld [vmem:[%s703 + $0x520] sm:$0xff]
        %v4698 = vld [vmem:[%s703 + $0x528] sm:$0xff]
        %v4699 = vld [vmem:[%s703 + $0x530] sm:$0xff]
        %v4700 = vld [vmem:[%s703 + $0x538] sm:$0xff]
        %v4701 = vld [vmem:[%s703 + $0x540] sm:$0xff]
        %v4702 = vld [vmem:[%s703 + $0x548] sm:$0xff]
        %v4703 = vld [vmem:[%s703 + $0x550] sm:$0xff]
        %v4704 = vld [vmem:[%s703 + $0x558] sm:$0xff]
        %v4705 = vld [vmem:[%s703 + $0x560] sm:$0xff]
        %v4706 = vld [vmem:[%s703 + $0x568] sm:$0xff]
        %v4707 = vld [vmem:[%s703 + $0x570] sm:$0xff]
        %v4708 = vld [vmem:[%s703 + $0x578] sm:$0xff]
        %v4709 = vld [vmem:[%s703 + $0x580] sm:$0xff]
        %v4710 = vld [vmem:[%s703 + $0x588] sm:$0xff]
        %v4711 = vld [vmem:[%s703 + $0x590] sm:$0xff]
        %v4712 = vld [vmem:[%s703 + $0x598] sm:$0xff]
        %v4713 = vld [vmem:[%s703 + $0x5a0] sm:$0xff]
        %v4714 = vld [vmem:[%s703 + $0x5a8] sm:$0xff]
        %v4715 = vld [vmem:[%s703 + $0x5b0] sm:$0xff]
        %v4716 = vld [vmem:[%s703 + $0x5b8] sm:$0xff]
        %v4717 = vld [vmem:[%s703 + $0x5c0] sm:$0xff]
        %v4718 = vld [vmem:[%s703 + $0x5c8] sm:$0xff]
        %v4719 = vld [vmem:[%s703 + $0x5d0] sm:$0xff]
        %v4720 = vld [vmem:[%s703 + $0x5d8] sm:$0xff]
        %v4721 = vld [vmem:[%s703 + $0x5e0] sm:$0xff]
        %v4722 = vld [vmem:[%s703 + $0x5e8] sm:$0xff]
        %v4723 = vld [vmem:[%s703 + $0x5f0] sm:$0xff]
        %v4724 = vld [vmem:[%s703 + $0x5f8] sm:$0xff]
        %v4725 = vld [vmem:[%s703 + $0x600] sm:$0xff]
        %v4726 = vld [vmem:[%s703 + $0x608] sm:$0xff]
        %v4727 = vld [vmem:[%s703 + $0x610] sm:$0xff]
        %v4728 = vld [vmem:[%s703 + $0x618] sm:$0xff]
        %v4729 = vld [vmem:[%s703 + $0x620] sm:$0xff]
        %v4730 = vld [vmem:[%s703 + $0x628] sm:$0xff]
        %v4731 = vld [vmem:[%s703 + $0x630] sm:$0xff]
        %v4732 = vld [vmem:[%s703 + $0x638] sm:$0xff]
        %v4733 = vld [vmem:[%s703 + $0x640] sm:$0xff]
        %v4734 = vld [vmem:[%s703 + $0x648] sm:$0xff]
        %v4735 = vld [vmem:[%s703 + $0x650] sm:$0xff]
        %v4736 = vld [vmem:[%s703 + $0x658] sm:$0xff]
        %v4737 = vld [vmem:[%s703 + $0x660] sm:$0xff]
        %v4738 = vld [vmem:[%s703 + $0x668] sm:$0xff]
        %v4739 = vld [vmem:[%s703 + $0x670] sm:$0xff]
        %v4740 = vld [vmem:[%s703 + $0x678] sm:$0xff]
        %v4741 = vld [vmem:[%s703 + $0x680] sm:$0xff]
        %v4742 = vld [vmem:[%s703 + $0x688] sm:$0xff]
        %v4743 = vld [vmem:[%s703 + $0x690] sm:$0xff]
        %v4744 = vld [vmem:[%s703 + $0x698] sm:$0xff]
        %v4745 = vld [vmem:[%s703 + $0x6a0] sm:$0xff]
        %v4746 = vld [vmem:[%s703 + $0x6a8] sm:$0xff]
        %v4747 = vld [vmem:[%s703 + $0x6b0] sm:$0xff]
        %v4748 = vld [vmem:[%s703 + $0x6b8] sm:$0xff]
        %v4749 = vld [vmem:[%s703 + $0x6c0] sm:$0xff]
        %v4750 = vld [vmem:[%s703 + $0x6c8] sm:$0xff]
        %v4751 = vld [vmem:[%s703 + $0x6d0] sm:$0xff]
        %v4752 = vld [vmem:[%s703 + $0x6d8] sm:$0xff]
        %v4753 = vld [vmem:[%s703 + $0x6e0] sm:$0xff]
        %v4754 = vld [vmem:[%s703 + $0x6e8] sm:$0xff]
        %v4755 = vld [vmem:[%s703 + $0x6f0] sm:$0xff]
        %v4756 = vld [vmem:[%s703 + $0x6f8] sm:$0xff]
        %v4757 = vld [vmem:[%s703 + $0x700] sm:$0xff]
        %v4758 = vld [vmem:[%s703 + $0x708] sm:$0xff]
        %v4759 = vld [vmem:[%s703 + $0x710] sm:$0xff]
        %v4760 = vld [vmem:[%s703 + $0x718] sm:$0xff]
        %v4761 = vld [vmem:[%s703 + $0x720] sm:$0xff]
        %v4762 = vld [vmem:[%s703 + $0x728] sm:$0xff]
        %v4763 = vld [vmem:[%s703 + $0x730] sm:$0xff]
        %v4764 = vld [vmem:[%s703 + $0x738] sm:$0xff]
        %v4765 = vld [vmem:[%s703 + $0x740] sm:$0xff]
        %v4766 = vld [vmem:[%s703 + $0x748] sm:$0xff]
        %v4767 = vld [vmem:[%s703 + $0x750] sm:$0xff]
        %v4768 = vld [vmem:[%s703 + $0x758] sm:$0xff]
        %v4769 = vld [vmem:[%s703 + $0x760] sm:$0xff]
        %v4770 = vld [vmem:[%s703 + $0x768] sm:$0xff]
        %v4771 = vld [vmem:[%s703 + $0x770] sm:$0xff]
        %v4772 = vld [vmem:[%s703 + $0x778] sm:$0xff]
        %v4773 = vld [vmem:[%s703 + $0x780] sm:$0xff]
        %v4774 = vld [vmem:[%s703 + $0x788] sm:$0xff]
        %v4775 = vld [vmem:[%s703 + $0x790] sm:$0xff]
        %v4776 = vld [vmem:[%s703 + $0x798] sm:$0xff]
        %v4777 = vld [vmem:[%s703 + $0x7a0] sm:$0xff]
        %v4778 = vld [vmem:[%s703 + $0x7a8] sm:$0xff]
        %v4779 = vld [vmem:[%s703 + $0x7b0] sm:$0xff]
        %v4780 = vld [vmem:[%s703 + $0x7b8] sm:$0xff]
        %v4781 = vld [vmem:[%s703 + $0x7c0] sm:$0xff]
        %v4782 = vld [vmem:[%s703 + $0x7c8] sm:$0xff]
        %v4783 = vld [vmem:[%s703 + $0x7d0] sm:$0xff]
        %v4784 = vld [vmem:[%s703 + $0x7d8] sm:$0xff]
        %v4785 = vld [vmem:[%s703 + $0x7e0] sm:$0xff]
        %v4786 = vld [vmem:[%s703 + $0x7e8] sm:$0xff]
        %v4787 = vld [vmem:[%s703 + $0x7f0] sm:$0xff]
        %v4788 = vld [vmem:[%s703 + $0x7f8] sm:$0xff]
        %v4789 = vld [vmem:[%s703 + $0x800] sm:$0xff]
        %v4790 = vld [vmem:[%s703 + $0x808] sm:$0xff]
        %v4791 = vld [vmem:[%s703 + $0x810] sm:$0xff]
        %v4792 = vld [vmem:[%s703 + $0x818] sm:$0xff]
        %v4793 = vld [vmem:[%s703 + $0x820] sm:$0xff]
        %v4794 = vld [vmem:[%s703 + $0x828] sm:$0xff]
        %v4795 = vld [vmem:[%s703 + $0x830] sm:$0xff]
        %v4796 = vld [vmem:[%s703 + $0x838] sm:$0xff]
        %v4797 = vld [vmem:[%s703 + $0x840] sm:$0xff]
        %v4798 = vld [vmem:[%s703 + $0x848] sm:$0xff]
        %v4799 = vld [vmem:[%s703 + $0x850] sm:$0xff]
        %v4800 = vld [vmem:[%s703 + $0x858] sm:$0xff]
        %v4801 = vld [vmem:[%s703 + $0x860] sm:$0xff]
        %v4802 = vld [vmem:[%s703 + $0x868] sm:$0xff]
        %v4803 = vld [vmem:[%s703 + $0x870] sm:$0xff]
        %v4804 = vld [vmem:[%s703 + $0x878] sm:$0xff]
        %v4805 = vld [vmem:[%s703 + $0x880] sm:$0xff]
        %v4806 = vld [vmem:[%s703 + $0x888] sm:$0xff]
        %v4807 = vld [vmem:[%s703 + $0x890] sm:$0xff]
        %v4808 = vld [vmem:[%s703 + $0x898] sm:$0xff]
        %v4809 = vld [vmem:[%s703 + $0x8a0] sm:$0xff]
        %v4810 = vld [vmem:[%s703 + $0x8a8] sm:$0xff]
        %v4811 = vld [vmem:[%s703 + $0x8b0] sm:$0xff]
        %v4812 = vld [vmem:[%s703 + $0x8b8] sm:$0xff]
        %v4813 = vld [vmem:[%s703 + $0x8c0] sm:$0xff]
        %v4814 = vld [vmem:[%s703 + $0x8c8] sm:$0xff]
        %v4815 = vld [vmem:[%s703 + $0x8d0] sm:$0xff]
        %v4816 = vld [vmem:[%s703 + $0x8d8] sm:$0xff]
        %v4817 = vld [vmem:[%s703 + $0x8e0] sm:$0xff]
        %v4818 = vld [vmem:[%s703 + $0x8e8] sm:$0xff]
        %v4819 = vld [vmem:[%s703 + $0x8f0] sm:$0xff]
        %v4820 = vld [vmem:[%s703 + $0x8f8] sm:$0xff]
        %v4821 = vld [vmem:[%s712] sm:$0x3f]
        %v4823 = vlaneseq
        %v4824 = vshrl.u32 %v4823, 7
        %v4825 = vsub.s32 0, %v4824
        %v4826 = vrot.slane %v4821, %v4825
        %v4827 = vlaneseq
        %v4828 = vshrl.u32 %v4827, 7
        %v4829 = vsub.s32 1, %v4828
        %v4830 = vrot.slane %v4821, %v4829
        %v4831 = vlaneseq
        %v4832 = vshrl.u32 %v4831, 7
        %v4833 = vsub.s32 2, %v4832
        %v4834 = vrot.slane %v4821, %v4833
        %v4835 = vlaneseq
        %v4836 = vshrl.u32 %v4835, 7
        %v4837 = vsub.s32 3, %v4836
        %v4838 = vrot.slane %v4821, %v4837
        %v4839 = vlaneseq
        %v4840 = vshrl.u32 %v4839, 7
        %v4841 = vsub.s32 4, %v4840
        %v4842 = vrot.slane %v4821, %v4841
        %v4843 = vlaneseq
        %v4844 = vshrl.u32 %v4843, 7
        %v4845 = vsub.s32 5, %v4844
        %v4846 = vrot.slane %v4821, %v4845
        %v5141 = vunpack.c.l.b16 %v4533
        %v5142 = vunpack.c.h.b16 %v4533
        %v5143 = vunpack.c.l.b16 %v4534
        %v5144 = vunpack.c.h.b16 %v4534
        %v5145 = vunpack.c.l.b16 %v4535
        %v5146 = vunpack.c.h.b16 %v4535
        %v5147 = vunpack.c.l.b16 %v4536
        %v5148 = vunpack.c.h.b16 %v4536
        %v5149 = vunpack.c.l.b16 %v4537
        %v5150 = vunpack.c.h.b16 %v4537
        %v5151 = vunpack.c.l.b16 %v4538
        %v5152 = vunpack.c.h.b16 %v4538
        %v5153 = vunpack.c.l.b16 %v4539
        %v5154 = vunpack.c.h.b16 %v4539
        %v5155 = vunpack.c.l.b16 %v4540
        %v5156 = vunpack.c.h.b16 %v4540
        %v5157 = vunpack.c.l.b16 %v4541
        %v5158 = vunpack.c.h.b16 %v4541
        %v5159 = vunpack.c.l.b16 %v4542
        %v5160 = vunpack.c.h.b16 %v4542
        %v5161 = vunpack.c.l.b16 %v4543
        %v5162 = vunpack.c.h.b16 %v4543
        %v5163 = vunpack.c.l.b16 %v4544
        %v5164 = vunpack.c.h.b16 %v4544
        %v5165 = vunpack.c.l.b16 %v4545
        %v5166 = vunpack.c.h.b16 %v4545
        %v5167 = vunpack.c.l.b16 %v4546
        %v5168 = vunpack.c.h.b16 %v4546
        %v5169 = vunpack.c.l.b16 %v4547
        %v5170 = vunpack.c.h.b16 %v4547
        %v5171 = vunpack.c.l.b16 %v4548
        %v5172 = vunpack.c.h.b16 %v4548
        %v5173 = vunpack.c.l.b16 %v4549
        %v5174 = vunpack.c.h.b16 %v4549
        %v5175 = vunpack.c.l.b16 %v4550
        %v5176 = vunpack.c.h.b16 %v4550
        %v5177 = vunpack.c.l.b16 %v4551
        %v5178 = vunpack.c.h.b16 %v4551
        %v5179 = vunpack.c.l.b16 %v4552
        %v5180 = vunpack.c.h.b16 %v4552
        %v5181 = vunpack.c.l.b16 %v4553
        %v5182 = vunpack.c.h.b16 %v4553
        %v5183 = vunpack.c.l.b16 %v4554
        %v5184 = vunpack.c.h.b16 %v4554
        %v5185 = vunpack.c.l.b16 %v4555
        %v5186 = vunpack.c.h.b16 %v4555
        %v5187 = vunpack.c.l.b16 %v4556
        %v5188 = vunpack.c.h.b16 %v4556
        %v5189 = vunpack.c.l.b16 %v4557
        %v5190 = vunpack.c.h.b16 %v4557
        %v5191 = vunpack.c.l.b16 %v4558
        %v5192 = vunpack.c.h.b16 %v4558
        %v5193 = vunpack.c.l.b16 %v4559
        %v5194 = vunpack.c.h.b16 %v4559
        %v5195 = vunpack.c.l.b16 %v4560
        %v5196 = vunpack.c.h.b16 %v4560
        %v5197 = vunpack.c.l.b16 %v4561
        %v5198 = vunpack.c.h.b16 %v4561
        %v5199 = vunpack.c.l.b16 %v4562
        %v5200 = vunpack.c.h.b16 %v4562
        %v5201 = vunpack.c.l.b16 %v4563
        %v5202 = vunpack.c.h.b16 %v4563
        %v5203 = vunpack.c.l.b16 %v4564
        %v5204 = vunpack.c.h.b16 %v4564
        %v5205 = vunpack.c.l.b16 %v4565
        %v5206 = vunpack.c.h.b16 %v4565
        %v5207 = vunpack.c.l.b16 %v4566
        %v5208 = vunpack.c.h.b16 %v4566
        %v5209 = vunpack.c.l.b16 %v4567
        %v5210 = vunpack.c.h.b16 %v4567
        %v5211 = vunpack.c.l.b16 %v4568
        %v5212 = vunpack.c.h.b16 %v4568
        %v5213 = vunpack.c.l.b16 %v4569
        %v5214 = vunpack.c.h.b16 %v4569
        %v5215 = vunpack.c.l.b16 %v4570
        %v5216 = vunpack.c.h.b16 %v4570
        %v5217 = vunpack.c.l.b16 %v4571
        %v5218 = vunpack.c.h.b16 %v4571
        %v5219 = vunpack.c.l.b16 %v4572
        %v5220 = vunpack.c.h.b16 %v4572
        %v5221 = vunpack.c.l.b16 %v4573
        %v5222 = vunpack.c.h.b16 %v4573
        %v5223 = vunpack.c.l.b16 %v4574
        %v5224 = vunpack.c.h.b16 %v4574
        %v5225 = vunpack.c.l.b16 %v4575
        %v5226 = vunpack.c.h.b16 %v4575
        %v5227 = vunpack.c.l.b16 %v4576
        %v5228 = vunpack.c.h.b16 %v4576
        %v5229 = vunpack.c.l.b16 %v4577
        %v5230 = vunpack.c.h.b16 %v4577
        %v5231 = vunpack.c.l.b16 %v4578
        %v5232 = vunpack.c.h.b16 %v4578
        %v5233 = vunpack.c.l.b16 %v4579
        %v5234 = vunpack.c.h.b16 %v4579
        %v5235 = vunpack.c.l.b16 %v4580
        %v5236 = vunpack.c.h.b16 %v4580
        %v5237 = vunpack.c.l.b16 %v4581
        %v5238 = vunpack.c.h.b16 %v4581
        %v5239 = vunpack.c.l.b16 %v4582
        %v5240 = vunpack.c.h.b16 %v4582
        %v5241 = vunpack.c.l.b16 %v4583
        %v5242 = vunpack.c.h.b16 %v4583
        %v5243 = vunpack.c.l.b16 %v4584
        %v5244 = vunpack.c.h.b16 %v4584
        %v5245 = vunpack.c.l.b16 %v4585
        %v5246 = vunpack.c.h.b16 %v4585
        %v5247 = vunpack.c.l.b16 %v4586
        %v5248 = vunpack.c.h.b16 %v4586
        %v5249 = vunpack.c.l.b16 %v4587
        %v5250 = vunpack.c.h.b16 %v4587
        %v5251 = vunpack.c.l.b16 %v4588
        %v5252 = vunpack.c.h.b16 %v4588
        %v5253 = vunpack.c.l.b16 %v4589
        %v5254 = vunpack.c.h.b16 %v4589
        %v5255 = vunpack.c.l.b16 %v4590
        %v5256 = vunpack.c.h.b16 %v4590
        %v5257 = vunpack.c.l.b16 %v4591
        %v5258 = vunpack.c.h.b16 %v4591
        %v5259 = vunpack.c.l.b16 %v4592
        %v5260 = vunpack.c.h.b16 %v4592
        %v5261 = vunpack.c.l.b16 %v4593
        %v5262 = vunpack.c.h.b16 %v4593
        %v5263 = vunpack.c.l.b16 %v4594
        %v5264 = vunpack.c.h.b16 %v4594
        %v5265 = vunpack.c.l.b16 %v4595
        %v5266 = vunpack.c.h.b16 %v4595
        %v5267 = vunpack.c.l.b16 %v4596
        %v5268 = vunpack.c.h.b16 %v4596
        %v5269 = vunpack.c.l.b16 %v4597
        %v5270 = vunpack.c.h.b16 %v4597
        %v5271 = vunpack.c.l.b16 %v4598
        %v5272 = vunpack.c.h.b16 %v4598
        %v5273 = vunpack.c.l.b16 %v4599
        %v5274 = vunpack.c.h.b16 %v4599
        %v5275 = vunpack.c.l.b16 %v4600
        %v5276 = vunpack.c.h.b16 %v4600
        %v5277 = vunpack.c.l.b16 %v4601
        %v5278 = vunpack.c.h.b16 %v4601
        %v5279 = vunpack.c.l.b16 %v4602
        %v5280 = vunpack.c.h.b16 %v4602
        %v5281 = vunpack.c.l.b16 %v4603
        %v5282 = vunpack.c.h.b16 %v4603
        %v5283 = vunpack.c.l.b16 %v4604
        %v5284 = vunpack.c.h.b16 %v4604
        %v5285 = vunpack.c.l.b16 %v4605
        %v5286 = vunpack.c.h.b16 %v4605
        %v5287 = vunpack.c.l.b16 %v4606
        %v5288 = vunpack.c.h.b16 %v4606
        %v5289 = vunpack.c.l.b16 %v4607
        %v5290 = vunpack.c.h.b16 %v4607
        %v5291 = vunpack.c.l.b16 %v4608
        %v5292 = vunpack.c.h.b16 %v4608
        %v5293 = vunpack.c.l.b16 %v4609
        %v5294 = vunpack.c.h.b16 %v4609
        %v5295 = vunpack.c.l.b16 %v4610
        %v5296 = vunpack.c.h.b16 %v4610
        %v5297 = vunpack.c.l.b16 %v4611
        %v5298 = vunpack.c.h.b16 %v4611
        %v5299 = vunpack.c.l.b16 %v4612
        %v5300 = vunpack.c.h.b16 %v4612
        %v5301 = vunpack.c.l.b16 %v4613
        %v5302 = vunpack.c.h.b16 %v4613
        %v5303 = vunpack.c.l.b16 %v4614
        %v5304 = vunpack.c.h.b16 %v4614
        %v5305 = vunpack.c.l.b16 %v4615
        %v5306 = vunpack.c.h.b16 %v4615
        %v5307 = vunpack.c.l.b16 %v4616
        %v5308 = vunpack.c.h.b16 %v4616
        %v5309 = vunpack.c.l.b16 %v4617
        %v5310 = vunpack.c.h.b16 %v4617
        %v5311 = vunpack.c.l.b16 %v4618
        %v5312 = vunpack.c.h.b16 %v4618
        %v5313 = vunpack.c.l.b16 %v4619
        %v5314 = vunpack.c.h.b16 %v4619
        %v5315 = vunpack.c.l.b16 %v4620
        %v5316 = vunpack.c.h.b16 %v4620
        %v5317 = vunpack.c.l.b16 %v4621
        %v5318 = vunpack.c.h.b16 %v4621
        %v5319 = vunpack.c.l.b16 %v4622
        %v5320 = vunpack.c.h.b16 %v4622
        %v5321 = vunpack.c.l.b16 %v4623
        %v5322 = vunpack.c.h.b16 %v4623
        %v5323 = vunpack.c.l.b16 %v4624
        %v5324 = vunpack.c.h.b16 %v4624
        %v5325 = vunpack.c.l.b16 %v4625
        %v5326 = vunpack.c.h.b16 %v4625
        %v5327 = vunpack.c.l.b16 %v4626
        %v5328 = vunpack.c.h.b16 %v4626
        %v5329 = vunpack.c.l.b16 %v4627
        %v5330 = vunpack.c.h.b16 %v4627
        %v5331 = vunpack.c.l.b16 %v4628
        %v5332 = vunpack.c.h.b16 %v4628
        %v5333 = vunpack.c.l.b16 %v4629
        %v5334 = vunpack.c.h.b16 %v4629
        %v5335 = vunpack.c.l.b16 %v4630
        %v5336 = vunpack.c.h.b16 %v4630
        %v5337 = vunpack.c.l.b16 %v4631
        %v5338 = vunpack.c.h.b16 %v4631
        %v5339 = vunpack.c.l.b16 %v4632
        %v5340 = vunpack.c.h.b16 %v4632
        %v5341 = vunpack.c.l.b16 %v4633
        %v5342 = vunpack.c.h.b16 %v4633
        %v5343 = vunpack.c.l.b16 %v4634
        %v5344 = vunpack.c.h.b16 %v4634
        %v5345 = vunpack.c.l.b16 %v4635
        %v5346 = vunpack.c.h.b16 %v4635
        %v5347 = vunpack.c.l.b16 %v4636
        %v5348 = vunpack.c.h.b16 %v4636
        %v5349 = vunpack.c.l.b16 %v4637
        %v5350 = vunpack.c.h.b16 %v4637
        %v5351 = vunpack.c.l.b16 %v4638
        %v5352 = vunpack.c.h.b16 %v4638
        %v5353 = vunpack.c.l.b16 %v4639
        %v5354 = vunpack.c.h.b16 %v4639
        %v5355 = vunpack.c.l.b16 %v4640
        %v5356 = vunpack.c.h.b16 %v4640
        %v5357 = vunpack.c.l.b16 %v4641
        %v5358 = vunpack.c.h.b16 %v4641
        %v5359 = vunpack.c.l.b16 %v4642
        %v5360 = vunpack.c.h.b16 %v4642
        %v5361 = vunpack.c.l.b16 %v4643
        %v5362 = vunpack.c.h.b16 %v4643
        %v5363 = vunpack.c.l.b16 %v4644
        %v5364 = vunpack.c.h.b16 %v4644
        %v5365 = vunpack.c.l.b16 %v4645
        %v5366 = vunpack.c.h.b16 %v4645
        %v5367 = vunpack.c.l.b16 %v4646
        %v5368 = vunpack.c.h.b16 %v4646
        %v5369 = vunpack.c.l.b16 %v4647
        %v5370 = vunpack.c.h.b16 %v4647
        %v5371 = vunpack.c.l.b16 %v4648
        %v5372 = vunpack.c.h.b16 %v4648
        %v5373 = vunpack.c.l.b16 %v4649
        %v5374 = vunpack.c.h.b16 %v4649
        %v5375 = vunpack.c.l.b16 %v4650
        %v5376 = vunpack.c.h.b16 %v4650
        %v5377 = vunpack.c.l.b16 %v4651
        %v5378 = vunpack.c.h.b16 %v4651
        %v5379 = vunpack.c.l.b16 %v4652
        %v5380 = vunpack.c.h.b16 %v4652
        %v5381 = vunpack.c.l.b16 %v4653
        %v5382 = vunpack.c.h.b16 %v4653
        %v5383 = vunpack.c.l.b16 %v4654
        %v5384 = vunpack.c.h.b16 %v4654
        %v5385 = vunpack.c.l.b16 %v4655
        %v5386 = vunpack.c.h.b16 %v4655
        %v5387 = vunpack.c.l.b16 %v4656
        %v5388 = vunpack.c.h.b16 %v4656
        %v5389 = vunpack.c.l.b16 %v4657
        %v5390 = vunpack.c.h.b16 %v4657
        %v5391 = vunpack.c.l.b16 %v4658
        %v5392 = vunpack.c.h.b16 %v4658
        %v5393 = vunpack.c.l.b16 %v4659
        %v5394 = vunpack.c.h.b16 %v4659
        %v5395 = vunpack.c.l.b16 %v4660
        %v5396 = vunpack.c.h.b16 %v4660
        %v5397 = vunpack.c.l.b16 %v4661
        %v5398 = vunpack.c.h.b16 %v4661
        %v5399 = vunpack.c.l.b16 %v4662
        %v5400 = vunpack.c.h.b16 %v4662
        %v5401 = vunpack.c.l.b16 %v4663
        %v5402 = vunpack.c.h.b16 %v4663
        %v5403 = vunpack.c.l.b16 %v4664
        %v5404 = vunpack.c.h.b16 %v4664
        %v5405 = vunpack.c.l.b16 %v4665
        %v5406 = vunpack.c.h.b16 %v4665
        %v5407 = vunpack.c.l.b16 %v4666
        %v5408 = vunpack.c.h.b16 %v4666
        %v5409 = vunpack.c.l.b16 %v4667
        %v5410 = vunpack.c.h.b16 %v4667
        %v5411 = vunpack.c.l.b16 %v4668
        %v5412 = vunpack.c.h.b16 %v4668
        %v5413 = vunpack.c.l.b16 %v4669
        %v5414 = vunpack.c.h.b16 %v4669
        %v5415 = vunpack.c.l.b16 %v4670
        %v5416 = vunpack.c.h.b16 %v4670
        %v5417 = vunpack.c.l.b16 %v4671
        %v5418 = vunpack.c.h.b16 %v4671
        %v5419 = vunpack.c.l.b16 %v4672
        %v5420 = vunpack.c.h.b16 %v4672
        %v5421 = vunpack.c.l.b16 %v4673
        %v5422 = vunpack.c.h.b16 %v4673
        %v5423 = vunpack.c.l.b16 %v4674
        %v5424 = vunpack.c.h.b16 %v4674
        %v5425 = vunpack.c.l.b16 %v4675
        %v5426 = vunpack.c.h.b16 %v4675
        %v5427 = vunpack.c.l.b16 %v4676
        %v5428 = vunpack.c.h.b16 %v4676
        %v5429 = vunpack.c.l.b16 %v4677
        %v5430 = vunpack.c.h.b16 %v4677
        %v5431 = vunpack.c.l.b16 %v4678
        %v5432 = vunpack.c.h.b16 %v4678
        %v5433 = vunpack.c.l.b16 %v4679
        %v5434 = vunpack.c.h.b16 %v4679
        %v5435 = vunpack.c.l.b16 %v4680
        %v5436 = vunpack.c.h.b16 %v4680
        %v5437 = vunpack.c.l.b16 %v4681
        %v5438 = vunpack.c.h.b16 %v4681
        %v5439 = vunpack.c.l.b16 %v4682
        %v5440 = vunpack.c.h.b16 %v4682
        %v5441 = vunpack.c.l.b16 %v4683
        %v5442 = vunpack.c.h.b16 %v4683
        %v5443 = vunpack.c.l.b16 %v4684
        %v5444 = vunpack.c.h.b16 %v4684
        %v5445 = vunpack.c.l.b16 %v4685
        %v5446 = vunpack.c.h.b16 %v4685
        %v5447 = vunpack.c.l.b16 %v4686
        %v5448 = vunpack.c.h.b16 %v4686
        %v5449 = vunpack.c.l.b16 %v4687
        %v5450 = vunpack.c.h.b16 %v4687
        %v5451 = vunpack.c.l.b16 %v4688
        %v5452 = vunpack.c.h.b16 %v4688
        %v5453 = vunpack.c.l.b16 %v4689
        %v5454 = vunpack.c.h.b16 %v4689
        %v5455 = vunpack.c.l.b16 %v4690
        %v5456 = vunpack.c.h.b16 %v4690
        %v5457 = vunpack.c.l.b16 %v4691
        %v5458 = vunpack.c.h.b16 %v4691
        %v5459 = vunpack.c.l.b16 %v4692
        %v5460 = vunpack.c.h.b16 %v4692
        %v5461 = vunpack.c.l.b16 %v4693
        %v5462 = vunpack.c.h.b16 %v4693
        %v5463 = vunpack.c.l.b16 %v4694
        %v5464 = vunpack.c.h.b16 %v4694
        %v5465 = vunpack.c.l.b16 %v4695
        %v5466 = vunpack.c.h.b16 %v4695
        %v5467 = vunpack.c.l.b16 %v4696
        %v5468 = vunpack.c.h.b16 %v4696
        %v5469 = vunpack.c.l.b16 %v4697
        %v5470 = vunpack.c.h.b16 %v4697
        %v5471 = vunpack.c.l.b16 %v4698
        %v5472 = vunpack.c.h.b16 %v4698
        %v5473 = vunpack.c.l.b16 %v4699
        %v5474 = vunpack.c.h.b16 %v4699
        %v5475 = vunpack.c.l.b16 %v4700
        %v5476 = vunpack.c.h.b16 %v4700
        %v5477 = vunpack.c.l.b16 %v4701
        %v5478 = vunpack.c.h.b16 %v4701
        %v5479 = vunpack.c.l.b16 %v4702
        %v5480 = vunpack.c.h.b16 %v4702
        %v5481 = vunpack.c.l.b16 %v4703
        %v5482 = vunpack.c.h.b16 %v4703
        %v5483 = vunpack.c.l.b16 %v4704
        %v5484 = vunpack.c.h.b16 %v4704
        %v5485 = vunpack.c.l.b16 %v4705
        %v5486 = vunpack.c.h.b16 %v4705
        %v5487 = vunpack.c.l.b16 %v4706
        %v5488 = vunpack.c.h.b16 %v4706
        %v5489 = vunpack.c.l.b16 %v4707
        %v5490 = vunpack.c.h.b16 %v4707
        %v5491 = vunpack.c.l.b16 %v4708
        %v5492 = vunpack.c.h.b16 %v4708
        %v5493 = vunpack.c.l.b16 %v4709
        %v5494 = vunpack.c.h.b16 %v4709
        %v5495 = vunpack.c.l.b16 %v4710
        %v5496 = vunpack.c.h.b16 %v4710
        %v5497 = vunpack.c.l.b16 %v4711
        %v5498 = vunpack.c.h.b16 %v4711
        %v5499 = vunpack.c.l.b16 %v4712
        %v5500 = vunpack.c.h.b16 %v4712
        %v5501 = vunpack.c.l.b16 %v4713
        %v5502 = vunpack.c.h.b16 %v4713
        %v5503 = vunpack.c.l.b16 %v4714
        %v5504 = vunpack.c.h.b16 %v4714
        %v5505 = vunpack.c.l.b16 %v4715
        %v5506 = vunpack.c.h.b16 %v4715
        %v5507 = vunpack.c.l.b16 %v4716
        %v5508 = vunpack.c.h.b16 %v4716
        %v5509 = vunpack.c.l.b16 %v4717
        %v5510 = vunpack.c.h.b16 %v4717
        %v5511 = vunpack.c.l.b16 %v4718
        %v5512 = vunpack.c.h.b16 %v4718
        %v5513 = vunpack.c.l.b16 %v4719
        %v5514 = vunpack.c.h.b16 %v4719
        %v5515 = vunpack.c.l.b16 %v4720
        %v5516 = vunpack.c.h.b16 %v4720
        %v5517 = vunpack.c.l.b16 %v4721
        %v5518 = vunpack.c.h.b16 %v4721
        %v5519 = vunpack.c.l.b16 %v4722
        %v5520 = vunpack.c.h.b16 %v4722
        %v5521 = vunpack.c.l.b16 %v4723
        %v5522 = vunpack.c.h.b16 %v4723
        %v5523 = vunpack.c.l.b16 %v4724
        %v5524 = vunpack.c.h.b16 %v4724
        %v5525 = vunpack.c.l.b16 %v4725
        %v5526 = vunpack.c.h.b16 %v4725
        %v5527 = vunpack.c.l.b16 %v4726
        %v5528 = vunpack.c.h.b16 %v4726
        %v5529 = vunpack.c.l.b16 %v4727
        %v5530 = vunpack.c.h.b16 %v4727
        %v5531 = vunpack.c.l.b16 %v4728
        %v5532 = vunpack.c.h.b16 %v4728
        %v5533 = vunpack.c.l.b16 %v4729
        %v5534 = vunpack.c.h.b16 %v4729
        %v5535 = vunpack.c.l.b16 %v4730
        %v5536 = vunpack.c.h.b16 %v4730
        %v5537 = vunpack.c.l.b16 %v4731
        %v5538 = vunpack.c.h.b16 %v4731
        %v5539 = vunpack.c.l.b16 %v4732
        %v5540 = vunpack.c.h.b16 %v4732
        %v5541 = vunpack.c.l.b16 %v4733
        %v5542 = vunpack.c.h.b16 %v4733
        %v5543 = vunpack.c.l.b16 %v4734
        %v5544 = vunpack.c.h.b16 %v4734
        %v5545 = vunpack.c.l.b16 %v4735
        %v5546 = vunpack.c.h.b16 %v4735
        %v5547 = vunpack.c.l.b16 %v4736
        %v5548 = vunpack.c.h.b16 %v4736
        %v5549 = vunpack.c.l.b16 %v4737
        %v5550 = vunpack.c.h.b16 %v4737
        %v5551 = vunpack.c.l.b16 %v4738
        %v5552 = vunpack.c.h.b16 %v4738
        %v5553 = vunpack.c.l.b16 %v4739
        %v5554 = vunpack.c.h.b16 %v4739
        %v5555 = vunpack.c.l.b16 %v4740
        %v5556 = vunpack.c.h.b16 %v4740
        %v5557 = vunpack.c.l.b16 %v4741
        %v5558 = vunpack.c.h.b16 %v4741
        %v5559 = vunpack.c.l.b16 %v4742
        %v5560 = vunpack.c.h.b16 %v4742
        %v5561 = vunpack.c.l.b16 %v4743
        %v5562 = vunpack.c.h.b16 %v4743
        %v5563 = vunpack.c.l.b16 %v4744
        %v5564 = vunpack.c.h.b16 %v4744
        %v5565 = vunpack.c.l.b16 %v4745
        %v5566 = vunpack.c.h.b16 %v4745
        %v5567 = vunpack.c.l.b16 %v4746
        %v5568 = vunpack.c.h.b16 %v4746
        %v5569 = vunpack.c.l.b16 %v4747
        %v5570 = vunpack.c.h.b16 %v4747
        %v5571 = vunpack.c.l.b16 %v4748
        %v5572 = vunpack.c.h.b16 %v4748
        %v5573 = vunpack.c.l.b16 %v4749
        %v5574 = vunpack.c.h.b16 %v4749
        %v5575 = vunpack.c.l.b16 %v4750
        %v5576 = vunpack.c.h.b16 %v4750
        %v5577 = vunpack.c.l.b16 %v4751
        %v5578 = vunpack.c.h.b16 %v4751
        %v5579 = vunpack.c.l.b16 %v4752
        %v5580 = vunpack.c.h.b16 %v4752
        %v5581 = vunpack.c.l.b16 %v4753
        %v5582 = vunpack.c.h.b16 %v4753
        %v5583 = vunpack.c.l.b16 %v4754
        %v5584 = vunpack.c.h.b16 %v4754
        %v5585 = vunpack.c.l.b16 %v4755
        %v5586 = vunpack.c.h.b16 %v4755
        %v5587 = vunpack.c.l.b16 %v4756
        %v5588 = vunpack.c.h.b16 %v4756
        %v5589 = vunpack.c.l.b16 %v4757
        %v5590 = vunpack.c.h.b16 %v4757
        %v5591 = vunpack.c.l.b16 %v4758
        %v5592 = vunpack.c.h.b16 %v4758
        %v5593 = vunpack.c.l.b16 %v4759
        %v5594 = vunpack.c.h.b16 %v4759
        %v5595 = vunpack.c.l.b16 %v4760
        %v5596 = vunpack.c.h.b16 %v4760
        %v5597 = vunpack.c.l.b16 %v4761
        %v5598 = vunpack.c.h.b16 %v4761
        %v5599 = vunpack.c.l.b16 %v4762
        %v5600 = vunpack.c.h.b16 %v4762
        %v5601 = vunpack.c.l.b16 %v4763
        %v5602 = vunpack.c.h.b16 %v4763
        %v5603 = vunpack.c.l.b16 %v4764
        %v5604 = vunpack.c.h.b16 %v4764
        %v5605 = vunpack.c.l.b16 %v4765
        %v5606 = vunpack.c.h.b16 %v4765
        %v5607 = vunpack.c.l.b16 %v4766
        %v5608 = vunpack.c.h.b16 %v4766
        %v5609 = vunpack.c.l.b16 %v4767
        %v5610 = vunpack.c.h.b16 %v4767
        %v5611 = vunpack.c.l.b16 %v4768
        %v5612 = vunpack.c.h.b16 %v4768
        %v5613 = vunpack.c.l.b16 %v4769
        %v5614 = vunpack.c.h.b16 %v4769
        %v5615 = vunpack.c.l.b16 %v4770
        %v5616 = vunpack.c.h.b16 %v4770
        %v5617 = vunpack.c.l.b16 %v4771
        %v5618 = vunpack.c.h.b16 %v4771
        %v5619 = vunpack.c.l.b16 %v4772
        %v5620 = vunpack.c.h.b16 %v4772
        %v5621 = vunpack.c.l.b16 %v4773
        %v5622 = vunpack.c.h.b16 %v4773
        %v5623 = vunpack.c.l.b16 %v4774
        %v5624 = vunpack.c.h.b16 %v4774
        %v5625 = vunpack.c.l.b16 %v4775
        %v5626 = vunpack.c.h.b16 %v4775
        %v5627 = vunpack.c.l.b16 %v4776
        %v5628 = vunpack.c.h.b16 %v4776
        %v5629 = vunpack.c.l.b16 %v4777
        %v5630 = vunpack.c.h.b16 %v4777
        %v5631 = vunpack.c.l.b16 %v4778
        %v5632 = vunpack.c.h.b16 %v4778
        %v5633 = vunpack.c.l.b16 %v4779
        %v5634 = vunpack.c.h.b16 %v4779
        %v5635 = vunpack.c.l.b16 %v4780
        %v5636 = vunpack.c.h.b16 %v4780
        %v5637 = vunpack.c.l.b16 %v4781
        %v5638 = vunpack.c.h.b16 %v4781
        %v5639 = vunpack.c.l.b16 %v4782
        %v5640 = vunpack.c.h.b16 %v4782
        %v5641 = vunpack.c.l.b16 %v4783
        %v5642 = vunpack.c.h.b16 %v4783
        %v5643 = vunpack.c.l.b16 %v4784
        %v5644 = vunpack.c.h.b16 %v4784
        %v5645 = vunpack.c.l.b16 %v4785
        %v5646 = vunpack.c.h.b16 %v4785
        %v5647 = vunpack.c.l.b16 %v4786
        %v5648 = vunpack.c.h.b16 %v4786
        %v5649 = vunpack.c.l.b16 %v4787
        %v5650 = vunpack.c.h.b16 %v4787
        %v5651 = vunpack.c.l.b16 %v4788
        %v5652 = vunpack.c.h.b16 %v4788
        %v5653 = vunpack.c.l.b16 %v4789
        %v5654 = vunpack.c.h.b16 %v4789
        %v5655 = vunpack.c.l.b16 %v4790
        %v5656 = vunpack.c.h.b16 %v4790
        %v5657 = vunpack.c.l.b16 %v4791
        %v5658 = vunpack.c.h.b16 %v4791
        %v5659 = vunpack.c.l.b16 %v4792
        %v5660 = vunpack.c.h.b16 %v4792
        %v5661 = vunpack.c.l.b16 %v4793
        %v5662 = vunpack.c.h.b16 %v4793
        %v5663 = vunpack.c.l.b16 %v4794
        %v5664 = vunpack.c.h.b16 %v4794
        %v5665 = vunpack.c.l.b16 %v4795
        %v5666 = vunpack.c.h.b16 %v4795
        %v5667 = vunpack.c.l.b16 %v4796
        %v5668 = vunpack.c.h.b16 %v4796
        %v5669 = vunpack.c.l.b16 %v4797
        %v5670 = vunpack.c.h.b16 %v4797
        %v5671 = vunpack.c.l.b16 %v4798
        %v5672 = vunpack.c.h.b16 %v4798
        %v5673 = vunpack.c.l.b16 %v4799
        %v5674 = vunpack.c.h.b16 %v4799
        %v5675 = vunpack.c.l.b16 %v4800
        %v5676 = vunpack.c.h.b16 %v4800
        %v5677 = vunpack.c.l.b16 %v4801
        %v5678 = vunpack.c.h.b16 %v4801
        %v5679 = vunpack.c.l.b16 %v4802
        %v5680 = vunpack.c.h.b16 %v4802
        %v5681 = vunpack.c.l.b16 %v4803
        %v5682 = vunpack.c.h.b16 %v4803
        %v5683 = vunpack.c.l.b16 %v4804
        %v5684 = vunpack.c.h.b16 %v4804
        %v5685 = vunpack.c.l.b16 %v4805
        %v5686 = vunpack.c.h.b16 %v4805
        %v5687 = vunpack.c.l.b16 %v4806
        %v5688 = vunpack.c.h.b16 %v4806
        %v5689 = vunpack.c.l.b16 %v4807
        %v5690 = vunpack.c.h.b16 %v4807
        %v5691 = vunpack.c.l.b16 %v4808
        %v5692 = vunpack.c.h.b16 %v4808
        %v5693 = vunpack.c.l.b16 %v4809
        %v5694 = vunpack.c.h.b16 %v4809
        %v5695 = vunpack.c.l.b16 %v4810
        %v5696 = vunpack.c.h.b16 %v4810
        %v5697 = vunpack.c.l.b16 %v4811
        %v5698 = vunpack.c.h.b16 %v4811
        %v5699 = vunpack.c.l.b16 %v4812
        %v5700 = vunpack.c.h.b16 %v4812
        %v5701 = vunpack.c.l.b16 %v4813
        %v5702 = vunpack.c.h.b16 %v4813
        %v5703 = vunpack.c.l.b16 %v4814
        %v5704 = vunpack.c.h.b16 %v4814
        %v5705 = vunpack.c.l.b16 %v4815
        %v5706 = vunpack.c.h.b16 %v4815
        %v5707 = vunpack.c.l.b16 %v4816
        %v5708 = vunpack.c.h.b16 %v4816
        %v5709 = vunpack.c.l.b16 %v4817
        %v5710 = vunpack.c.h.b16 %v4817
        %v5711 = vunpack.c.l.b16 %v4818
        %v5712 = vunpack.c.h.b16 %v4818
        %v5713 = vunpack.c.l.b16 %v4819
        %v5714 = vunpack.c.h.b16 %v4819
        %v5715 = vunpack.c.l.b16 %v4820
        %v5716 = vunpack.c.h.b16 %v4820
        %v5717 = vpack.c.b16 %v5147, %v5141
        %v5718 = vpack.c.b16 %v5148, %v5142
        %v5719 = vpack.c.b16 %v5149, %v5143
        %v5720 = vpack.c.b16 %v5150, %v5144
        %v5721 = vpack.c.b16 %v5151, %v5145
        %v5722 = vpack.c.b16 %v5152, %v5146
        %v5723 = vpack.c.b16 %v5159, %v5153
        %v5724 = vpack.c.b16 %v5160, %v5154
        %v5725 = vpack.c.b16 %v5161, %v5155
        %v5726 = vpack.c.b16 %v5162, %v5156
        %v5727 = vpack.c.b16 %v5163, %v5157
        %v5728 = vpack.c.b16 %v5164, %v5158
        %v5729 = vpack.c.b16 %v5171, %v5165
        %v5730 = vpack.c.b16 %v5172, %v5166
        %v5731 = vpack.c.b16 %v5173, %v5167
        %v5732 = vpack.c.b16 %v5174, %v5168
        %v5733 = vpack.c.b16 %v5175, %v5169
        %v5734 = vpack.c.b16 %v5176, %v5170
        %v5735 = vpack.c.b16 %v5183, %v5177
        %v5736 = vpack.c.b16 %v5184, %v5178
        %v5737 = vpack.c.b16 %v5185, %v5179
        %v5738 = vpack.c.b16 %v5186, %v5180
        %v5739 = vpack.c.b16 %v5187, %v5181
        %v5740 = vpack.c.b16 %v5188, %v5182
        %v5741 = vpack.c.b16 %v5195, %v5189
        %v5742 = vpack.c.b16 %v5196, %v5190
        %v5743 = vpack.c.b16 %v5197, %v5191
        %v5744 = vpack.c.b16 %v5198, %v5192
        %v5745 = vpack.c.b16 %v5199, %v5193
        %v5746 = vpack.c.b16 %v5200, %v5194
        %v5747 = vpack.c.b16 %v5207, %v5201
        %v5748 = vpack.c.b16 %v5208, %v5202
        %v5749 = vpack.c.b16 %v5209, %v5203
        %v5750 = vpack.c.b16 %v5210, %v5204
        %v5751 = vpack.c.b16 %v5211, %v5205
        %v5752 = vpack.c.b16 %v5212, %v5206
        %v5753 = vpack.c.b16 %v5219, %v5213
        %v5754 = vpack.c.b16 %v5220, %v5214
        %v5755 = vpack.c.b16 %v5221, %v5215
        %v5756 = vpack.c.b16 %v5222, %v5216
        %v5757 = vpack.c.b16 %v5223, %v5217
        %v5758 = vpack.c.b16 %v5224, %v5218
        %v5759 = vpack.c.b16 %v5231, %v5225
        %v5760 = vpack.c.b16 %v5232, %v5226
        %v5761 = vpack.c.b16 %v5233, %v5227
        %v5762 = vpack.c.b16 %v5234, %v5228
        %v5763 = vpack.c.b16 %v5235, %v5229
        %v5764 = vpack.c.b16 %v5236, %v5230
        %v5765 = vpack.c.b16 %v5243, %v5237
        %v5766 = vpack.c.b16 %v5244, %v5238
        %v5767 = vpack.c.b16 %v5245, %v5239
        %v5768 = vpack.c.b16 %v5246, %v5240
        %v5769 = vpack.c.b16 %v5247, %v5241
        %v5770 = vpack.c.b16 %v5248, %v5242
        %v5771 = vpack.c.b16 %v5255, %v5249
        %v5772 = vpack.c.b16 %v5256, %v5250
        %v5773 = vpack.c.b16 %v5257, %v5251
        %v5774 = vpack.c.b16 %v5258, %v5252
        %v5775 = vpack.c.b16 %v5259, %v5253
        %v5776 = vpack.c.b16 %v5260, %v5254
        %v5777 = vpack.c.b16 %v5267, %v5261
        %v5778 = vpack.c.b16 %v5268, %v5262
        %v5779 = vpack.c.b16 %v5269, %v5263
        %v5780 = vpack.c.b16 %v5270, %v5264
        %v5781 = vpack.c.b16 %v5271, %v5265
        %v5782 = vpack.c.b16 %v5272, %v5266
        %v5783 = vpack.c.b16 %v5279, %v5273
        %v5784 = vpack.c.b16 %v5280, %v5274
        %v5785 = vpack.c.b16 %v5281, %v5275
        %v5786 = vpack.c.b16 %v5282, %v5276
        %v5787 = vpack.c.b16 %v5283, %v5277
        %v5788 = vpack.c.b16 %v5284, %v5278
        %v5789 = vpack.c.b16 %v5291, %v5285
        %v5790 = vpack.c.b16 %v5292, %v5286
        %v5791 = vpack.c.b16 %v5293, %v5287
        %v5792 = vpack.c.b16 %v5294, %v5288
        %v5793 = vpack.c.b16 %v5295, %v5289
        %v5794 = vpack.c.b16 %v5296, %v5290
        %v5795 = vpack.c.b16 %v5303, %v5297
        %v5796 = vpack.c.b16 %v5304, %v5298
        %v5797 = vpack.c.b16 %v5305, %v5299
        %v5798 = vpack.c.b16 %v5306, %v5300
        %v5799 = vpack.c.b16 %v5307, %v5301
        %v5800 = vpack.c.b16 %v5308, %v5302
        %v5801 = vpack.c.b16 %v5315, %v5309
        %v5802 = vpack.c.b16 %v5316, %v5310
        %v5803 = vpack.c.b16 %v5317, %v5311
        %v5804 = vpack.c.b16 %v5318, %v5312
        %v5805 = vpack.c.b16 %v5319, %v5313
        %v5806 = vpack.c.b16 %v5320, %v5314
        %v5807 = vpack.c.b16 %v5327, %v5321
        %v5808 = vpack.c.b16 %v5328, %v5322
        %v5809 = vpack.c.b16 %v5329, %v5323
        %v5810 = vpack.c.b16 %v5330, %v5324
        %v5811 = vpack.c.b16 %v5331, %v5325
        %v5812 = vpack.c.b16 %v5332, %v5326
        %v5813 = vpack.c.b16 %v5339, %v5333
        %v5814 = vpack.c.b16 %v5340, %v5334
        %v5815 = vpack.c.b16 %v5341, %v5335
        %v5816 = vpack.c.b16 %v5342, %v5336
        %v5817 = vpack.c.b16 %v5343, %v5337
        %v5818 = vpack.c.b16 %v5344, %v5338
        %v5819 = vpack.c.b16 %v5351, %v5345
        %v5820 = vpack.c.b16 %v5352, %v5346
        %v5821 = vpack.c.b16 %v5353, %v5347
        %v5822 = vpack.c.b16 %v5354, %v5348
        %v5823 = vpack.c.b16 %v5355, %v5349
        %v5824 = vpack.c.b16 %v5356, %v5350
        %v5825 = vpack.c.b16 %v5363, %v5357
        %v5826 = vpack.c.b16 %v5364, %v5358
        %v5827 = vpack.c.b16 %v5365, %v5359
        %v5828 = vpack.c.b16 %v5366, %v5360
        %v5829 = vpack.c.b16 %v5367, %v5361
        %v5830 = vpack.c.b16 %v5368, %v5362
        %v5831 = vpack.c.b16 %v5375, %v5369
        %v5832 = vpack.c.b16 %v5376, %v5370
        %v5833 = vpack.c.b16 %v5377, %v5371
        %v5834 = vpack.c.b16 %v5378, %v5372
        %v5835 = vpack.c.b16 %v5379, %v5373
        %v5836 = vpack.c.b16 %v5380, %v5374
        %v5837 = vpack.c.b16 %v5387, %v5381
        %v5838 = vpack.c.b16 %v5388, %v5382
        %v5839 = vpack.c.b16 %v5389, %v5383
        %v5840 = vpack.c.b16 %v5390, %v5384
        %v5841 = vpack.c.b16 %v5391, %v5385
        %v5842 = vpack.c.b16 %v5392, %v5386
        %v5843 = vpack.c.b16 %v5399, %v5393
        %v5844 = vpack.c.b16 %v5400, %v5394
        %v5845 = vpack.c.b16 %v5401, %v5395
        %v5846 = vpack.c.b16 %v5402, %v5396
        %v5847 = vpack.c.b16 %v5403, %v5397
        %v5848 = vpack.c.b16 %v5404, %v5398
        %v5849 = vpack.c.b16 %v5411, %v5405
        %v5850 = vpack.c.b16 %v5412, %v5406
        %v5851 = vpack.c.b16 %v5413, %v5407
        %v5852 = vpack.c.b16 %v5414, %v5408
        %v5853 = vpack.c.b16 %v5415, %v5409
        %v5854 = vpack.c.b16 %v5416, %v5410
        %v5855 = vpack.c.b16 %v5423, %v5417
        %v5856 = vpack.c.b16 %v5424, %v5418
        %v5857 = vpack.c.b16 %v5425, %v5419
        %v5858 = vpack.c.b16 %v5426, %v5420
        %v5859 = vpack.c.b16 %v5427, %v5421
        %v5860 = vpack.c.b16 %v5428, %v5422
        %v5861 = vpack.c.b16 %v5435, %v5429
        %v5862 = vpack.c.b16 %v5436, %v5430
        %v5863 = vpack.c.b16 %v5437, %v5431
        %v5864 = vpack.c.b16 %v5438, %v5432
        %v5865 = vpack.c.b16 %v5439, %v5433
        %v5866 = vpack.c.b16 %v5440, %v5434
        %v5867 = vpack.c.b16 %v5447, %v5441
        %v5868 = vpack.c.b16 %v5448, %v5442
        %v5869 = vpack.c.b16 %v5449, %v5443
        %v5870 = vpack.c.b16 %v5450, %v5444
        %v5871 = vpack.c.b16 %v5451, %v5445
        %v5872 = vpack.c.b16 %v5452, %v5446
        %v5873 = vpack.c.b16 %v5459, %v5453
        %v5874 = vpack.c.b16 %v5460, %v5454
        %v5875 = vpack.c.b16 %v5461, %v5455
        %v5876 = vpack.c.b16 %v5462, %v5456
        %v5877 = vpack.c.b16 %v5463, %v5457
        %v5878 = vpack.c.b16 %v5464, %v5458
        %v5879 = vpack.c.b16 %v5471, %v5465
        %v5880 = vpack.c.b16 %v5472, %v5466
        %v5881 = vpack.c.b16 %v5473, %v5467
        %v5882 = vpack.c.b16 %v5474, %v5468
        %v5883 = vpack.c.b16 %v5475, %v5469
        %v5884 = vpack.c.b16 %v5476, %v5470
        %v5885 = vpack.c.b16 %v5483, %v5477
        %v5886 = vpack.c.b16 %v5484, %v5478
        %v5887 = vpack.c.b16 %v5485, %v5479
        %v5888 = vpack.c.b16 %v5486, %v5480
        %v5889 = vpack.c.b16 %v5487, %v5481
        %v5890 = vpack.c.b16 %v5488, %v5482
        %v5891 = vpack.c.b16 %v5495, %v5489
        %v5892 = vpack.c.b16 %v5496, %v5490
        %v5893 = vpack.c.b16 %v5497, %v5491
        %v5894 = vpack.c.b16 %v5498, %v5492
        %v5895 = vpack.c.b16 %v5499, %v5493
        %v5896 = vpack.c.b16 %v5500, %v5494
        %v5897 = vpack.c.b16 %v5507, %v5501
        %v5898 = vpack.c.b16 %v5508, %v5502
        %v5899 = vpack.c.b16 %v5509, %v5503
        %v5900 = vpack.c.b16 %v5510, %v5504
        %v5901 = vpack.c.b16 %v5511, %v5505
        %v5902 = vpack.c.b16 %v5512, %v5506
        %v5903 = vpack.c.b16 %v5519, %v5513
        %v5904 = vpack.c.b16 %v5520, %v5514
        %v5905 = vpack.c.b16 %v5521, %v5515
        %v5906 = vpack.c.b16 %v5522, %v5516
        %v5907 = vpack.c.b16 %v5523, %v5517
        %v5908 = vpack.c.b16 %v5524, %v5518
        %v5909 = vpack.c.b16 %v5531, %v5525
        %v5910 = vpack.c.b16 %v5532, %v5526
        %v5911 = vpack.c.b16 %v5533, %v5527
        %v5912 = vpack.c.b16 %v5534, %v5528
        %v5913 = vpack.c.b16 %v5535, %v5529
        %v5914 = vpack.c.b16 %v5536, %v5530
        %v5915 = vpack.c.b16 %v5543, %v5537
        %v5916 = vpack.c.b16 %v5544, %v5538
        %v5917 = vpack.c.b16 %v5545, %v5539
        %v5918 = vpack.c.b16 %v5546, %v5540
        %v5919 = vpack.c.b16 %v5547, %v5541
        %v5920 = vpack.c.b16 %v5548, %v5542
        %v5921 = vpack.c.b16 %v5555, %v5549
        %v5922 = vpack.c.b16 %v5556, %v5550
        %v5923 = vpack.c.b16 %v5557, %v5551
        %v5924 = vpack.c.b16 %v5558, %v5552
        %v5925 = vpack.c.b16 %v5559, %v5553
        %v5926 = vpack.c.b16 %v5560, %v5554
        %v5927 = vpack.c.b16 %v5567, %v5561
        %v5928 = vpack.c.b16 %v5568, %v5562
        %v5929 = vpack.c.b16 %v5569, %v5563
        %v5930 = vpack.c.b16 %v5570, %v5564
        %v5931 = vpack.c.b16 %v5571, %v5565
        %v5932 = vpack.c.b16 %v5572, %v5566
        %v5933 = vpack.c.b16 %v5579, %v5573
        %v5934 = vpack.c.b16 %v5580, %v5574
        %v5935 = vpack.c.b16 %v5581, %v5575
        %v5936 = vpack.c.b16 %v5582, %v5576
        %v5937 = vpack.c.b16 %v5583, %v5577
        %v5938 = vpack.c.b16 %v5584, %v5578
        %v5939 = vpack.c.b16 %v5591, %v5585
        %v5940 = vpack.c.b16 %v5592, %v5586
        %v5941 = vpack.c.b16 %v5593, %v5587
        %v5942 = vpack.c.b16 %v5594, %v5588
        %v5943 = vpack.c.b16 %v5595, %v5589
        %v5944 = vpack.c.b16 %v5596, %v5590
        %v5945 = vpack.c.b16 %v5603, %v5597
        %v5946 = vpack.c.b16 %v5604, %v5598
        %v5947 = vpack.c.b16 %v5605, %v5599
        %v5948 = vpack.c.b16 %v5606, %v5600
        %v5949 = vpack.c.b16 %v5607, %v5601
        %v5950 = vpack.c.b16 %v5608, %v5602
        %v5951 = vpack.c.b16 %v5615, %v5609
        %v5952 = vpack.c.b16 %v5616, %v5610
        %v5953 = vpack.c.b16 %v5617, %v5611
        %v5954 = vpack.c.b16 %v5618, %v5612
        %v5955 = vpack.c.b16 %v5619, %v5613
        %v5956 = vpack.c.b16 %v5620, %v5614
        %v5957 = vpack.c.b16 %v5627, %v5621
        %v5958 = vpack.c.b16 %v5628, %v5622
        %v5959 = vpack.c.b16 %v5629, %v5623
        %v5960 = vpack.c.b16 %v5630, %v5624
        %v5961 = vpack.c.b16 %v5631, %v5625
        %v5962 = vpack.c.b16 %v5632, %v5626
        %v5963 = vpack.c.b16 %v5639, %v5633
        %v5964 = vpack.c.b16 %v5640, %v5634
        %v5965 = vpack.c.b16 %v5641, %v5635
        %v5966 = vpack.c.b16 %v5642, %v5636
        %v5967 = vpack.c.b16 %v5643, %v5637
        %v5968 = vpack.c.b16 %v5644, %v5638
        %v5969 = vpack.c.b16 %v5651, %v5645
        %v5970 = vpack.c.b16 %v5652, %v5646
        %v5971 = vpack.c.b16 %v5653, %v5647
        %v5972 = vpack.c.b16 %v5654, %v5648
        %v5973 = vpack.c.b16 %v5655, %v5649
        %v5974 = vpack.c.b16 %v5656, %v5650
        %v5975 = vpack.c.b16 %v5663, %v5657
        %v5976 = vpack.c.b16 %v5664, %v5658
        %v5977 = vpack.c.b16 %v5665, %v5659
        %v5978 = vpack.c.b16 %v5666, %v5660
        %v5979 = vpack.c.b16 %v5667, %v5661
        %v5980 = vpack.c.b16 %v5668, %v5662
        %v5981 = vpack.c.b16 %v5675, %v5669
        %v5982 = vpack.c.b16 %v5676, %v5670
        %v5983 = vpack.c.b16 %v5677, %v5671
        %v5984 = vpack.c.b16 %v5678, %v5672
        %v5985 = vpack.c.b16 %v5679, %v5673
        %v5986 = vpack.c.b16 %v5680, %v5674
        %v5987 = vpack.c.b16 %v5687, %v5681
        %v5988 = vpack.c.b16 %v5688, %v5682
        %v5989 = vpack.c.b16 %v5689, %v5683
        %v5990 = vpack.c.b16 %v5690, %v5684
        %v5991 = vpack.c.b16 %v5691, %v5685
        %v5992 = vpack.c.b16 %v5692, %v5686
        %v5993 = vpack.c.b16 %v5699, %v5693
        %v5994 = vpack.c.b16 %v5700, %v5694
        %v5995 = vpack.c.b16 %v5701, %v5695
        %v5996 = vpack.c.b16 %v5702, %v5696
        %v5997 = vpack.c.b16 %v5703, %v5697
        %v5998 = vpack.c.b16 %v5704, %v5698
        %v5999 = vpack.c.b16 %v5711, %v5705
        %v6000 = vpack.c.b16 %v5712, %v5706
        %v6001 = vpack.c.b16 %v5713, %v5707
        %v6002 = vpack.c.b16 %v5714, %v5708
        %v6003 = vpack.c.b16 %v5715, %v5709
        %v6004 = vpack.c.b16 %v5716, %v5710
        %6293 = vmatprep.subr.bf16.mxu0 %v5760
        %6294 = vmatpush1.bf16.msra.mxu0 %v5759
        %6295 = vmatprep.subr.bf16.mxu0 %v5754
        %6296 = vmatpush1.bf16.msra.mxu0 %v5753
        %6297 = vmatprep.subr.bf16.mxu0 %v5748
        %6298 = vmatpush1.bf16.msra.mxu0 %v5747
        %6299 = vmatprep.subr.bf16.mxu0 %v5742
        %6300 = vmatpush1.bf16.msra.mxu0 %v5741
        %6301 = vmatprep.subr.bf16.mxu0 %v5736
        %6302 = vmatpush1.bf16.msra.mxu0 %v5735
        %6303 = vmatprep.subr.bf16.mxu0 %v5730
        %6304 = vmatpush1.bf16.msra.mxu0 %v5729
        %6305 = vmatprep.subr.bf16.mxu0 %v5724
        %6306 = vmatpush1.bf16.msra.mxu0 %v5723
        %6307 = vmatprep.subr.bf16.mxu0 %v5718
        %6308 = vmatpush1.bf16.msra.mxu0 %v5717
        %6309 = vmatprep.subr.bf16.mxu0 %v5808
        %6310 = vmatpush2.bf16.msra.mxu0 %v5807
        %6311 = vmatprep.subr.bf16.mxu0 %v5802
        %6312 = vmatpush2.bf16.msra.mxu0 %v5801
        %6313 = vmatprep.subr.bf16.mxu0 %v5796
        %6314 = vmatpush2.bf16.msra.mxu0 %v5795
        %6315 = vmatprep.subr.bf16.mxu0 %v5790
        %6316 = vmatpush2.bf16.msra.mxu0 %v5789
        %6317 = vmatprep.subr.bf16.mxu0 %v5784
        %6318 = vmatpush2.bf16.msra.mxu0 %v5783
        %6319 = vmatprep.subr.bf16.mxu0 %v5778
        %6320 = vmatpush2.bf16.msra.mxu0 %v5777
        %6321 = vmatprep.subr.bf16.mxu0 %v5772
        %6322 = vmatpush2.bf16.msra.mxu0 %v5771
        %6323 = vmatprep.subr.bf16.mxu0 %v5766
        %6324 = vmatpush2.bf16.msra.mxu0 %v5765
        %6325 = vmatprep.mubr.bf16.mxu0 %v4528
        %6326 = vmatmul.mubr.bf16.gmra.mxu0 %v4527
        %v6327 = vpop.f32.mrf.mxu0
        %v6328 = vadd.f32 %v4826, %v6327
        %v6329 = vpop.f32.mrf.mxu0
        %v6330 = vadd.f32 %v4830, %v6329
        %v6331 = vpop.f32.mrf.mxu0
        %v6332 = vpop.f32.mrf.mxu0
        %6333 = vdwg.mxu0
        %6334 = vmatprep.subr.bf16.mxu0 %v5856
        %6335 = vmatpush1.bf16.msra.mxu0 %v5855
        %6336 = vmatprep.subr.bf16.mxu0 %v5850
        %6337 = vmatpush1.bf16.msra.mxu0 %v5849
        %6338 = vmatprep.subr.bf16.mxu0 %v5844
        %6339 = vmatpush1.bf16.msra.mxu0 %v5843
        %6340 = vmatprep.subr.bf16.mxu0 %v5838
        %6341 = vmatpush1.bf16.msra.mxu0 %v5837
        %6342 = vmatprep.subr.bf16.mxu0 %v5832
        %6343 = vmatpush1.bf16.msra.mxu0 %v5831
        %6344 = vmatprep.subr.bf16.mxu0 %v5826
        %6345 = vmatpush1.bf16.msra.mxu0 %v5825
        %6346 = vmatprep.subr.bf16.mxu0 %v5820
        %6347 = vmatpush1.bf16.msra.mxu0 %v5819
        %6348 = vmatprep.subr.bf16.mxu0 %v5814
        %6349 = vmatpush1.bf16.msra.mxu0 %v5813
        %6350 = vmatprep.subr.bf16.mxu0 %v5904
        %6351 = vmatpush2.bf16.msra.mxu0 %v5903
        %6352 = vmatprep.subr.bf16.mxu0 %v5898
        %6353 = vmatpush2.bf16.msra.mxu0 %v5897
        %6354 = vmatprep.subr.bf16.mxu0 %v5892
        %6355 = vmatpush2.bf16.msra.mxu0 %v5891
        %6356 = vmatprep.subr.bf16.mxu0 %v5886
        %6357 = vmatpush2.bf16.msra.mxu0 %v5885
        %6358 = vmatprep.subr.bf16.mxu0 %v5880
        %6359 = vmatpush2.bf16.msra.mxu0 %v5879
        %6360 = vmatprep.subr.bf16.mxu0 %v5874
        %6361 = vmatpush2.bf16.msra.mxu0 %v5873
        %6362 = vmatprep.subr.bf16.mxu0 %v5868
        %6363 = vmatpush2.bf16.msra.mxu0 %v5867
        %6364 = vmatprep.subr.bf16.mxu0 %v5862
        %6365 = vmatpush2.bf16.msra.mxu0 %v5861
        %6366 = vmatprep.mubr.bf16.mxu0 %v4530
        %6367 = vmatmul.mubr.bf16.gmra.mxu0 %v4529
        %v6368 = vpop.f32.mrf.mxu0
        %v6369 = vadd.f32 %v6328, %v6368
        %v6370 = vpop.f32.mrf.mxu0
        %v6371 = vadd.f32 %v6330, %v6370
        %v6372 = vpop.f32.mrf.mxu0
        %v6373 = vpop.f32.mrf.mxu0
        %6374 = vdwg.mxu0
        %6375 = vmatprep.subr.bf16.mxu0 %v5952
        %6376 = vmatpush1.bf16.msra.mxu0 %v5951
        %6377 = vmatprep.subr.bf16.mxu0 %v5946
        %6378 = vmatpush1.bf16.msra.mxu0 %v5945
        %6379 = vmatprep.subr.bf16.mxu0 %v5940
        %6380 = vmatpush1.bf16.msra.mxu0 %v5939
        %6381 = vmatprep.subr.bf16.mxu0 %v5934
        %6382 = vmatpush1.bf16.msra.mxu0 %v5933
        %6383 = vmatprep.subr.bf16.mxu0 %v5928
        %6384 = vmatpush1.bf16.msra.mxu0 %v5927
        %6385 = vmatprep.subr.bf16.mxu0 %v5922
        %6386 = vmatpush1.bf16.msra.mxu0 %v5921
        %6387 = vmatprep.subr.bf16.mxu0 %v5916
        %6388 = vmatpush1.bf16.msra.mxu0 %v5915
        %6389 = vmatprep.subr.bf16.mxu0 %v5910
        %6390 = vmatpush1.bf16.msra.mxu0 %v5909
        %6391 = vmatprep.subr.bf16.mxu0 %v6000
        %6392 = vmatpush2.bf16.msra.mxu0 %v5999
        %6393 = vmatprep.subr.bf16.mxu0 %v5994
        %6394 = vmatpush2.bf16.msra.mxu0 %v5993
        %6395 = vmatprep.subr.bf16.mxu0 %v5988
        %6396 = vmatpush2.bf16.msra.mxu0 %v5987
        %6397 = vmatprep.subr.bf16.mxu0 %v5982
        %6398 = vmatpush2.bf16.msra.mxu0 %v5981
        %6399 = vmatprep.subr.bf16.mxu0 %v5976
        %6400 = vmatpush2.bf16.msra.mxu0 %v5975
        %6401 = vmatprep.subr.bf16.mxu0 %v5970
        %6402 = vmatpush2.bf16.msra.mxu0 %v5969
        %6403 = vmatprep.subr.bf16.mxu0 %v5964
        %6404 = vmatpush2.bf16.msra.mxu0 %v5963
        %6405 = vmatprep.subr.bf16.mxu0 %v5958
        %6406 = vmatpush2.bf16.msra.mxu0 %v5957
        %6407 = vmatprep.mubr.bf16.mxu0 %v4532
        %6408 = vmatmul.mubr.bf16.gmra.mxu0 %v4531
        %v6409 = vpop.f32.mrf.mxu0
        %v6410 = vadd.f32 %v6369, %v6409
        %v6411 = vpop.f32.mrf.mxu0
        %v6412 = vadd.f32 %v6371, %v6411
        %v6413 = vpop.f32.mrf.mxu0
        %v6414 = vpop.f32.mrf.mxu0
        %6415 = vdwg.mxu0
        %6416 = vmatprep.subr.bf16.mxu0 %v5762
        %6417 = vmatpush1.bf16.msra.mxu0 %v5761
        %6418 = vmatprep.subr.bf16.mxu0 %v5756
        %6419 = vmatpush1.bf16.msra.mxu0 %v5755
        %6420 = vmatprep.subr.bf16.mxu0 %v5750
        %6421 = vmatpush1.bf16.msra.mxu0 %v5749
        %6422 = vmatprep.subr.bf16.mxu0 %v5744
        %6423 = vmatpush1.bf16.msra.mxu0 %v5743
        %6424 = vmatprep.subr.bf16.mxu0 %v5738
        %6425 = vmatpush1.bf16.msra.mxu0 %v5737
        %6426 = vmatprep.subr.bf16.mxu0 %v5732
        %6427 = vmatpush1.bf16.msra.mxu0 %v5731
        %6428 = vmatprep.subr.bf16.mxu0 %v5726
        %6429 = vmatpush1.bf16.msra.mxu0 %v5725
        %6430 = vmatprep.subr.bf16.mxu0 %v5720
        %6431 = vmatpush1.bf16.msra.mxu0 %v5719
        %6432 = vmatprep.subr.bf16.mxu0 %v5810
        %6433 = vmatpush2.bf16.msra.mxu0 %v5809
        %6434 = vmatprep.subr.bf16.mxu0 %v5804
        %6435 = vmatpush2.bf16.msra.mxu0 %v5803
        %6436 = vmatprep.subr.bf16.mxu0 %v5798
        %6437 = vmatpush2.bf16.msra.mxu0 %v5797
        %6438 = vmatprep.subr.bf16.mxu0 %v5792
        %6439 = vmatpush2.bf16.msra.mxu0 %v5791
        %6440 = vmatprep.subr.bf16.mxu0 %v5786
        %6441 = vmatpush2.bf16.msra.mxu0 %v5785
        %6442 = vmatprep.subr.bf16.mxu0 %v5780
        %6443 = vmatpush2.bf16.msra.mxu0 %v5779
        %6444 = vmatprep.subr.bf16.mxu0 %v5774
        %6445 = vmatpush2.bf16.msra.mxu0 %v5773
        %6446 = vmatprep.subr.bf16.mxu0 %v5768
        %6447 = vmatpush2.bf16.msra.mxu0 %v5767
        %6448 = vmatprep.mubr.bf16.mxu0 %v4528
        %6449 = vmatmul.mubr.bf16.gmra.mxu0 %v4527
        %v6450 = vpop.f32.mrf.mxu0
        %v6451 = vadd.f32 %v4834, %v6450
        %v6452 = vpop.f32.mrf.mxu0
        %v6453 = vadd.f32 %v4838, %v6452
        %v6454 = vpop.f32.mrf.mxu0
        %v6455 = vpop.f32.mrf.mxu0
        %6456 = vdwg.mxu0
        %6457 = vmatprep.subr.bf16.mxu0 %v5858
        %6458 = vmatpush1.bf16.msra.mxu0 %v5857
        %6459 = vmatprep.subr.bf16.mxu0 %v5852
        %6460 = vmatpush1.bf16.msra.mxu0 %v5851
        %6461 = vmatprep.subr.bf16.mxu0 %v5846
        %6462 = vmatpush1.bf16.msra.mxu0 %v5845
        %6463 = vmatprep.subr.bf16.mxu0 %v5840
        %6464 = vmatpush1.bf16.msra.mxu0 %v5839
        %6465 = vmatprep.subr.bf16.mxu0 %v5834
        %6466 = vmatpush1.bf16.msra.mxu0 %v5833
        %6467 = vmatprep.subr.bf16.mxu0 %v5828
        %6468 = vmatpush1.bf16.msra.mxu0 %v5827
        %6469 = vmatprep.subr.bf16.mxu0 %v5822
        %6470 = vmatpush1.bf16.msra.mxu0 %v5821
        %6471 = vmatprep.subr.bf16.mxu0 %v5816
        %6472 = vmatpush1.bf16.msra.mxu0 %v5815
        %6473 = vmatprep.subr.bf16.mxu0 %v5906
        %6474 = vmatpush2.bf16.msra.mxu0 %v5905
        %6475 = vmatprep.subr.bf16.mxu0 %v5900
        %6476 = vmatpush2.bf16.msra.mxu0 %v5899
        %6477 = vmatprep.subr.bf16.mxu0 %v5894
        %6478 = vmatpush2.bf16.msra.mxu0 %v5893
        %6479 = vmatprep.subr.bf16.mxu0 %v5888
        %6480 = vmatpush2.bf16.msra.mxu0 %v5887
        %6481 = vmatprep.subr.bf16.mxu0 %v5882
        %6482 = vmatpush2.bf16.msra.mxu0 %v5881
        %6483 = vmatprep.subr.bf16.mxu0 %v5876
        %6484 = vmatpush2.bf16.msra.mxu0 %v5875
        %6485 = vmatprep.subr.bf16.mxu0 %v5870
        %6486 = vmatpush2.bf16.msra.mxu0 %v5869
        %6487 = vmatprep.subr.bf16.mxu0 %v5864
        %6488 = vmatpush2.bf16.msra.mxu0 %v5863
        %6489 = vmatprep.mubr.bf16.mxu0 %v4530
        %6490 = vmatmul.mubr.bf16.gmra.mxu0 %v4529
        %v6491 = vpop.f32.mrf.mxu0
        %v6492 = vadd.f32 %v6451, %v6491
        %v6493 = vpop.f32.mrf.mxu0
        %v6494 = vadd.f32 %v6453, %v6493
        %v6495 = vpop.f32.mrf.mxu0
        %v6496 = vpop.f32.mrf.mxu0
        %6497 = vdwg.mxu0
        %6498 = vmatprep.subr.bf16.mxu0 %v5954
        %6499 = vmatpush1.bf16.msra.mxu0 %v5953
        %6500 = vmatprep.subr.bf16.mxu0 %v5948
        %6501 = vmatpush1.bf16.msra.mxu0 %v5947
        %6502 = vmatprep.subr.bf16.mxu0 %v5942
        %6503 = vmatpush1.bf16.msra.mxu0 %v5941
        %6504 = vmatprep.subr.bf16.mxu0 %v5936
        %6505 = vmatpush1.bf16.msra.mxu0 %v5935
        %6506 = vmatprep.subr.bf16.mxu0 %v5930
        %6507 = vmatpush1.bf16.msra.mxu0 %v5929
        %6508 = vmatprep.subr.bf16.mxu0 %v5924
        %6509 = vmatpush1.bf16.msra.mxu0 %v5923
        %6510 = vmatprep.subr.bf16.mxu0 %v5918
        %6511 = vmatpush1.bf16.msra.mxu0 %v5917
        %6512 = vmatprep.subr.bf16.mxu0 %v5912
        %6513 = vmatpush1.bf16.msra.mxu0 %v5911
        %6514 = vmatprep.subr.bf16.mxu0 %v6002
        %6515 = vmatpush2.bf16.msra.mxu0 %v6001
        %6516 = vmatprep.subr.bf16.mxu0 %v5996
        %6517 = vmatpush2.bf16.msra.mxu0 %v5995
        %6518 = vmatprep.subr.bf16.mxu0 %v5990
        %6519 = vmatpush2.bf16.msra.mxu0 %v5989
        %6520 = vmatprep.subr.bf16.mxu0 %v5984
        %6521 = vmatpush2.bf16.msra.mxu0 %v5983
        %6522 = vmatprep.subr.bf16.mxu0 %v5978
        %6523 = vmatpush2.bf16.msra.mxu0 %v5977
        %6524 = vmatprep.subr.bf16.mxu0 %v5972
        %6525 = vmatpush2.bf16.msra.mxu0 %v5971
        %6526 = vmatprep.subr.bf16.mxu0 %v5966
        %6527 = vmatpush2.bf16.msra.mxu0 %v5965
        %6528 = vmatprep.subr.bf16.mxu0 %v5960
        %6529 = vmatpush2.bf16.msra.mxu0 %v5959
        %6530 = vmatprep.mubr.bf16.mxu0 %v4532
        %6531 = vmatmul.mubr.bf16.gmra.mxu0 %v4531
        %v6532 = vpop.f32.mrf.mxu0
        %v6533 = vadd.f32 %v6492, %v6532
        %v6534 = vpop.f32.mrf.mxu0
        %v6535 = vadd.f32 %v6494, %v6534
        %v6536 = vpop.f32.mrf.mxu0
        %v6537 = vpop.f32.mrf.mxu0
        %6538 = vdwg.mxu0
        %6539 = vmatprep.subr.bf16.mxu0 %v5764
        %6540 = vmatpush1.bf16.msra.mxu0 %v5763
        %6541 = vmatprep.subr.bf16.mxu0 %v5758
        %6542 = vmatpush1.bf16.msra.mxu0 %v5757
        %6543 = vmatprep.subr.bf16.mxu0 %v5752
        %6544 = vmatpush1.bf16.msra.mxu0 %v5751
        %6545 = vmatprep.subr.bf16.mxu0 %v5746
        %6546 = vmatpush1.bf16.msra.mxu0 %v5745
        %6547 = vmatprep.subr.bf16.mxu0 %v5740
        %6548 = vmatpush1.bf16.msra.mxu0 %v5739
        %6549 = vmatprep.subr.bf16.mxu0 %v5734
        %6550 = vmatpush1.bf16.msra.mxu0 %v5733
        %6551 = vmatprep.subr.bf16.mxu0 %v5728
        %6552 = vmatpush1.bf16.msra.mxu0 %v5727
        %6553 = vmatprep.subr.bf16.mxu0 %v5722
        %6554 = vmatpush1.bf16.msra.mxu0 %v5721
        %6555 = vmatprep.subr.bf16.mxu0 %v5812
        %6556 = vmatpush2.bf16.msra.mxu0 %v5811
        %6557 = vmatprep.subr.bf16.mxu0 %v5806
        %6558 = vmatpush2.bf16.msra.mxu0 %v5805
        %6559 = vmatprep.subr.bf16.mxu0 %v5800
        %6560 = vmatpush2.bf16.msra.mxu0 %v5799
        %6561 = vmatprep.subr.bf16.mxu0 %v5794
        %6562 = vmatpush2.bf16.msra.mxu0 %v5793
        %6563 = vmatprep.subr.bf16.mxu0 %v5788
        %6564 = vmatpush2.bf16.msra.mxu0 %v5787
        %6565 = vmatprep.subr.bf16.mxu0 %v5782
        %6566 = vmatpush2.bf16.msra.mxu0 %v5781
        %6567 = vmatprep.subr.bf16.mxu0 %v5776
        %6568 = vmatpush2.bf16.msra.mxu0 %v5775
        %6569 = vmatprep.subr.bf16.mxu0 %v5770
        %6570 = vmatpush2.bf16.msra.mxu0 %v5769
        %6571 = vmatprep.mubr.bf16.mxu0 %v4528
        %6572 = vmatmul.mubr.bf16.gmra.mxu0 %v4527
        %v6573 = vpop.f32.mrf.mxu0
        %v6574 = vadd.f32 %v4842, %v6573
        %v6575 = vpop.f32.mrf.mxu0
        %v6576 = vadd.f32 %v4846, %v6575
        %v6577 = vpop.f32.mrf.mxu0
        %v6578 = vpop.f32.mrf.mxu0
        %6579 = vdwg.mxu0
        %6580 = vmatprep.subr.bf16.mxu0 %v5860
        %6581 = vmatpush1.bf16.msra.mxu0 %v5859
        %6582 = vmatprep.subr.bf16.mxu0 %v5854
        %6583 = vmatpush1.bf16.msra.mxu0 %v5853
        %6584 = vmatprep.subr.bf16.mxu0 %v5848
        %6585 = vmatpush1.bf16.msra.mxu0 %v5847
        %6586 = vmatprep.subr.bf16.mxu0 %v5842
        %6587 = vmatpush1.bf16.msra.mxu0 %v5841
        %6588 = vmatprep.subr.bf16.mxu0 %v5836
        %6589 = vmatpush1.bf16.msra.mxu0 %v5835
        %6590 = vmatprep.subr.bf16.mxu0 %v5830
        %6591 = vmatpush1.bf16.msra.mxu0 %v5829
        %6592 = vmatprep.subr.bf16.mxu0 %v5824
        %6593 = vmatpush1.bf16.msra.mxu0 %v5823
        %6594 = vmatprep.subr.bf16.mxu0 %v5818
        %6595 = vmatpush1.bf16.msra.mxu0 %v5817
        %6596 = vmatprep.subr.bf16.mxu0 %v5908
        %6597 = vmatpush2.bf16.msra.mxu0 %v5907
        %6598 = vmatprep.subr.bf16.mxu0 %v5902
        %6599 = vmatpush2.bf16.msra.mxu0 %v5901
        %6600 = vmatprep.subr.bf16.mxu0 %v5896
        %6601 = vmatpush2.bf16.msra.mxu0 %v5895
        %6602 = vmatprep.subr.bf16.mxu0 %v5890
        %6603 = vmatpush2.bf16.msra.mxu0 %v5889
        %6604 = vmatprep.subr.bf16.mxu0 %v5884
        %6605 = vmatpush2.bf16.msra.mxu0 %v5883
        %6606 = vmatprep.subr.bf16.mxu0 %v5878
        %6607 = vmatpush2.bf16.msra.mxu0 %v5877
        %6608 = vmatprep.subr.bf16.mxu0 %v5872
        %6609 = vmatpush2.bf16.msra.mxu0 %v5871
        %6610 = vmatprep.subr.bf16.mxu0 %v5866
        %6611 = vmatpush2.bf16.msra.mxu0 %v5865
        %6612 = vmatprep.mubr.bf16.mxu0 %v4530
        %6613 = vmatmul.mubr.bf16.gmra.mxu0 %v4529
        %v6614 = vpop.f32.mrf.mxu0
        %v6615 = vadd.f32 %v6574, %v6614
        %v6616 = vpop.f32.mrf.mxu0
        %v6617 = vadd.f32 %v6576, %v6616
        %v6618 = vpop.f32.mrf.mxu0
        %v6619 = vpop.f32.mrf.mxu0
        %6620 = vdwg.mxu0
        %6621 = vmatprep.subr.bf16.mxu0 %v5956
        %6622 = vmatpush1.bf16.msra.mxu0 %v5955
        %6623 = vmatprep.subr.bf16.mxu0 %v5950
        %6624 = vmatpush1.bf16.msra.mxu0 %v5949
        %6625 = vmatprep.subr.bf16.mxu0 %v5944
        %6626 = vmatpush1.bf16.msra.mxu0 %v5943
        %6627 = vmatprep.subr.bf16.mxu0 %v5938
        %6628 = vmatpush1.bf16.msra.mxu0 %v5937
        %6629 = vmatprep.subr.bf16.mxu0 %v5932
        %6630 = vmatpush1.bf16.msra.mxu0 %v5931
        %6631 = vmatprep.subr.bf16.mxu0 %v5926
        %6632 = vmatpush1.bf16.msra.mxu0 %v5925
        %6633 = vmatprep.subr.bf16.mxu0 %v5920
        %6634 = vmatpush1.bf16.msra.mxu0 %v5919
        %6635 = vmatprep.subr.bf16.mxu0 %v5914
        %6636 = vmatpush1.bf16.msra.mxu0 %v5913
        %6637 = vmatprep.subr.bf16.mxu0 %v6004
        %6638 = vmatpush2.bf16.msra.mxu0 %v6003
        %6639 = vmatprep.subr.bf16.mxu0 %v5998
        %6640 = vmatpush2.bf16.msra.mxu0 %v5997
        %6641 = vmatprep.subr.bf16.mxu0 %v5992
        %6642 = vmatpush2.bf16.msra.mxu0 %v5991
        %6643 = vmatprep.subr.bf16.mxu0 %v5986
        %6644 = vmatpush2.bf16.msra.mxu0 %v5985
        %6645 = vmatprep.subr.bf16.mxu0 %v5980
        %6646 = vmatpush2.bf16.msra.mxu0 %v5979
        %6647 = vmatprep.subr.bf16.mxu0 %v5974
        %6648 = vmatpush2.bf16.msra.mxu0 %v5973
        %6649 = vmatprep.subr.bf16.mxu0 %v5968
        %6650 = vmatpush2.bf16.msra.mxu0 %v5967
        %6651 = vmatprep.subr.bf16.mxu0 %v5962
        %6652 = vmatpush2.bf16.msra.mxu0 %v5961
        %6653 = vmatprep.mubr.bf16.mxu0 %v4532
        %6654 = vmatmul.mubr.bf16.gmra.mxu0 %v4531
        %v6655 = vpop.f32.mrf.mxu0
        %v6656 = vadd.f32 %v6615, %v6655
        %v6657 = vpop.f32.mrf.mxu0
        %v6658 = vadd.f32 %v6617, %v6657
        %v6659 = vpop.f32.mrf.mxu0
        %v6660 = vpop.f32.mrf.mxu0
        %6661 = vdwg.mxu0
        %v6662 = vmul.f32 %v6410, 0.5
        %v6663 = vmul.f32 %v6412, 0.5
        %v6664 = vmul.f32 %v6533, 0.5
        %v6665 = vmul.f32 %v6535, 0.5
        %v6666 = vmul.f32 %v6656, 0.5
        %v6667 = vmul.f32 %v6658, 0.5
        %v6668 = vmul.f32 %v6410, 0.70710677
        %v6669 = vmul.f32 %v6412, 0.70710677
        %v6670 = vmul.f32 %v6533, 0.70710677
        %v6671 = vmul.f32 %v6535, 0.70710677
        %v6672 = vmul.f32 %v6656, 0.70710677
        %v6673 = vmul.f32 %v6658, 0.70710677
        %v6674 = vmax.f32 %v6668, -3.832507
        %v6675 = vmax.f32 %v6669, -3.832507
        %v6676 = vmax.f32 %v6670, -3.832507
        %v6677 = vmax.f32 %v6671, -3.832507
        %v6678 = vmax.f32 %v6672, -3.832507
        %v6679 = vmax.f32 %v6673, -3.832507
        %v6680 = vmin.f32 %v6674, 3.832507
        %v6681 = vmin.f32 %v6675, 3.832507
        %v6682 = vmin.f32 %v6676, 3.832507
        %v6683 = vmin.f32 %v6677, 3.832507
        %v6684 = vmin.f32 %v6678, 3.832507
        %v6685 = vmin.f32 %v6679, 3.832507
        %v6686 = vmul.f32 %v6680, %v6680
        %v6687 = vmul.f32 %v6681, %v6681
        %v6688 = vmul.f32 %v6682, %v6682
        %v6689 = vmul.f32 %v6683, %v6683
        %v6690 = vmul.f32 %v6684, %v6684
        %v6691 = vmul.f32 %v6685, %v6685
        %v6692 = vmul.f32 %v6686, 0.00022905065
        %v6693 = vmul.f32 %v6687, 0.00022905065
        %v6694 = vmul.f32 %v6688, 0.00022905065
        %v6695 = vmul.f32 %v6689, 0.00022905065
        %v6696 = vmul.f32 %v6690, 0.00022905065
        %v6697 = vmul.f32 %v6691, 0.00022905065
        %v6698 = vadd.f32 %v6692, 0.003408291
        %v6699 = vadd.f32 %v6693, 0.003408291
        %v6700 = vadd.f32 %v6694, 0.003408291
        %v6701 = vadd.f32 %v6695, 0.003408291
        %v6702 = vadd.f32 %v6696, 0.003408291
        %v6703 = vadd.f32 %v6697, 0.003408291
        %v6704 = vmul.f32 %v6698, %v6686
        %v6705 = vmul.f32 %v6699, %v6687
        %v6706 = vmul.f32 %v6700, %v6688
        %v6707 = vmul.f32 %v6701, %v6689
        %v6708 = vmul.f32 %v6702, %v6690
        %v6709 = vmul.f32 %v6703, %v6691
        %v6710 = vadd.f32 %v6704, 0.050955694
        %v6711 = vadd.f32 %v6705, 0.050955694
        %v6712 = vadd.f32 %v6706, 0.050955694
        %v6713 = vadd.f32 %v6707, 0.050955694
        %v6714 = vadd.f32 %v6708, 0.050955694
        %v6715 = vadd.f32 %v6709, 0.050955694
        %v6716 = vmul.f32 %v6710, %v6686
        %v6717 = vmul.f32 %v6711, %v6687
        %v6718 = vmul.f32 %v6712, %v6688
        %v6719 = vmul.f32 %v6713, %v6689
        %v6720 = vmul.f32 %v6714, %v6690
        %v6721 = vmul.f32 %v6715, %v6691
        %v6722 = vadd.f32 %v6716, 0.18520832
        %v6723 = vadd.f32 %v6717, 0.18520832
        %v6724 = vadd.f32 %v6718, 0.18520832
        %v6725 = vadd.f32 %v6719, 0.18520832
        %v6726 = vadd.f32 %v6720, 0.18520832
        %v6727 = vadd.f32 %v6721, 0.18520832
        %v6728 = vmul.f32 %v6722, %v6686
        %v6729 = vmul.f32 %v6723, %v6687
        %v6730 = vmul.f32 %v6724, %v6688
        %v6731 = vmul.f32 %v6725, %v6689
        %v6732 = vmul.f32 %v6726, %v6690
        %v6733 = vmul.f32 %v6727, %v6691
        %v6734 = vadd.f32 %v6728, 1.1283791
        %v6735 = vadd.f32 %v6729, 1.1283791
        %v6736 = vadd.f32 %v6730, 1.1283791
        %v6737 = vadd.f32 %v6731, 1.1283791
        %v6738 = vadd.f32 %v6732, 1.1283791
        %v6739 = vadd.f32 %v6733, 1.1283791
        %v6740 = vmul.f32 %v6686, -1.1791603e-07
        %v6741 = vmul.f32 %v6687, -1.1791603e-07
        %v6742 = vmul.f32 %v6688, -1.1791603e-07
        %v6743 = vmul.f32 %v6689, -1.1791603e-07
        %v6744 = vmul.f32 %v6690, -1.1791603e-07
        %v6745 = vmul.f32 %v6691, -1.1791603e-07
        %v6746 = vadd.f32 %v6740, 2.3547966e-05
        %v6747 = vadd.f32 %v6741, 2.3547966e-05
        %v6748 = vadd.f32 %v6742, 2.3547966e-05
        %v6749 = vadd.f32 %v6743, 2.3547966e-05
        %v6750 = vadd.f32 %v6744, 2.3547966e-05
        %v6751 = vadd.f32 %v6745, 2.3547966e-05
        %v6752 = vmul.f32 %v6746, %v6686
        %v6753 = vmul.f32 %v6747, %v6687
        %v6754 = vmul.f32 %v6748, %v6688
        %v6755 = vmul.f32 %v6749, %v6689
        %v6756 = vmul.f32 %v6750, %v6690
        %v6757 = vmul.f32 %v6751, %v6691
        %v6758 = vadd.f32 %v6752, 0.0010179626
        %v6759 = vadd.f32 %v6753, 0.0010179626
        %v6760 = vadd.f32 %v6754, 0.0010179626
        %v6761 = vadd.f32 %v6755, 0.0010179626
        %v6762 = vadd.f32 %v6756, 0.0010179626
        %v6763 = vadd.f32 %v6757, 0.0010179626
        %v6764 = vmul.f32 %v6758, %v6686
        %v6765 = vmul.f32 %v6759, %v6687
        %v6766 = vmul.f32 %v6760, %v6688
        %v6767 = vmul.f32 %v6761, %v6689
        %v6768 = vmul.f32 %v6762, %v6690
        %v6769 = vmul.f32 %v6763, %v6691
        %v6770 = vadd.f32 %v6764, 0.01407047
        %v6771 = vadd.f32 %v6765, 0.01407047
        %v6772 = vadd.f32 %v6766, 0.01407047
        %v6773 = vadd.f32 %v6767, 0.01407047
        %v6774 = vadd.f32 %v6768, 0.01407047
        %v6775 = vadd.f32 %v6769, 0.01407047
        %v6776 = vmul.f32 %v6770, %v6686
        %v6777 = vmul.f32 %v6771, %v6687
        %v6778 = vmul.f32 %v6772, %v6688
        %v6779 = vmul.f32 %v6773, %v6689
        %v6780 = vmul.f32 %v6774, %v6690
        %v6781 = vmul.f32 %v6775, %v6691
        %v6782 = vadd.f32 %v6776, 0.11098505
        %v6783 = vadd.f32 %v6777, 0.11098505
        %v6784 = vadd.f32 %v6778, 0.11098505
        %v6785 = vadd.f32 %v6779, 0.11098505
        %v6786 = vadd.f32 %v6780, 0.11098505
        %v6787 = vadd.f32 %v6781, 0.11098505
        %v6788 = vmul.f32 %v6782, %v6686
        %v6789 = vmul.f32 %v6783, %v6687
        %v6790 = vmul.f32 %v6784, %v6688
        %v6791 = vmul.f32 %v6785, %v6689
        %v6792 = vmul.f32 %v6786, %v6690
        %v6793 = vmul.f32 %v6787, %v6691
        %v6794 = vadd.f32 %v6788, 0.49746925
        %v6795 = vadd.f32 %v6789, 0.49746925
        %v6796 = vadd.f32 %v6790, 0.49746925
        %v6797 = vadd.f32 %v6791, 0.49746925
        %v6798 = vadd.f32 %v6792, 0.49746925
        %v6799 = vadd.f32 %v6793, 0.49746925
        %v6800 = vmul.f32 %v6794, %v6686
        %v6801 = vmul.f32 %v6795, %v6687
        %v6802 = vmul.f32 %v6796, %v6688
        %v6803 = vmul.f32 %v6797, %v6689
        %v6804 = vmul.f32 %v6798, %v6690
        %v6805 = vmul.f32 %v6799, %v6691
        %v6806 = vadd.f32 %v6800, 1.0
        %v6807 = vadd.f32 %v6801, 1.0
        %v6808 = vadd.f32 %v6802, 1.0
        %v6809 = vadd.f32 %v6803, 1.0
        %v6810 = vadd.f32 %v6804, 1.0
        %v6811 = vadd.f32 %v6805, 1.0
        %v6812 = vmul.f32 %v6680, %v6734
        %v6813 = vmul.f32 %v6681, %v6735
        %v6814 = vmul.f32 %v6682, %v6736
        %v6815 = vmul.f32 %v6683, %v6737
        %v6816 = vmul.f32 %v6684, %v6738
        %v6817 = vmul.f32 %v6685, %v6739
        %v6818 = vrcp.pop %v6806
        %v6819 = vmul.f32 %v6812, %v6818
        %v6820 = vrcp.pop %v6807
        %v6821 = vmul.f32 %v6813, %v6820
        %v6822 = vrcp.pop %v6808
        %v6823 = vmul.f32 %v6814, %v6822
        %v6824 = vrcp.pop %v6809
        %v6825 = vmul.f32 %v6815, %v6824
        %v6826 = vrcp.pop %v6810
        %v6827 = vmul.f32 %v6816, %v6826
        %v6828 = vrcp.pop %v6811
        %v6829 = vmul.f32 %v6817, %v6828
        %v6830 = vadd.f32 %v6819, 1.0
        %v6831 = vadd.f32 %v6821, 1.0
        %v6832 = vadd.f32 %v6823, 1.0
        %v6833 = vadd.f32 %v6825, 1.0
        %v6834 = vadd.f32 %v6827, 1.0
        %v6835 = vadd.f32 %v6829, 1.0
        %v6836 = vmul.f32 %v6662, %v6830
        %v6837 = vmul.f32 %v6663, %v6831
        %v6838 = vmul.f32 %v6664, %v6832
        %v6839 = vmul.f32 %v6665, %v6833
        %v6840 = vmul.f32 %v6666, %v6834
        %v6841 = vmul.f32 %v6667, %v6835
        %v6842 = vld [vmem:[#allocation3] sm:$0xff]
        %v6843 = vld [vmem:[#allocation3 + $0x8] sm:$0xf]
        %v6844 = vpack.c.bf16 %v6836, %v6836
        %v6845 = vpack.c.bf16 %v6837, %v6837
        %v6846 = vpack.c.bf16 %v6838, %v6838
        %v6847 = vpack.c.bf16 %v6839, %v6839
        %v6848 = vpack.c.bf16 %v6840, %v6840
        %v6849 = vpack.c.bf16 %v6841, %v6841
        %v6850 = vld [vmem:[%s721] sm:$0xff]
        %v6851 = vld [vmem:[%s721 + $0x8] sm:$0xff]
        %v6852 = vld [vmem:[%s721 + $0x10] sm:$0xff]
        %v6853 = vld [vmem:[%s721 + $0x18] sm:$0xff]
        %v6854 = vld [vmem:[%s721 + $0x20] sm:$0xff]
        %v6855 = vld [vmem:[%s721 + $0x28] sm:$0xff]
        %v6856 = vld [vmem:[%s721 + $0x30] sm:$0xff]
        %v6857 = vld [vmem:[%s721 + $0x38] sm:$0xff]
        %v6858 = vld [vmem:[%s721 + $0x40] sm:$0xff]
        %v6859 = vld [vmem:[%s721 + $0x48] sm:$0xff]
        %v6860 = vld [vmem:[%s721 + $0x50] sm:$0xff]
        %v6861 = vld [vmem:[%s721 + $0x58] sm:$0xff]
        %v6862 = vld [vmem:[%s721 + $0x60] sm:$0xff]
        %v6863 = vld [vmem:[%s721 + $0x68] sm:$0xff]
        %v6864 = vld [vmem:[%s721 + $0x70] sm:$0xff]
        %v6865 = vld [vmem:[%s721 + $0x78] sm:$0xff]
        %v6866 = vld [vmem:[%s721 + $0x80] sm:$0xff]
        %v6867 = vld [vmem:[%s721 + $0x88] sm:$0xff]
        %v6868 = vld [vmem:[%s721 + $0x90] sm:$0xff]
        %v6869 = vld [vmem:[%s721 + $0x98] sm:$0xff]
        %v6870 = vld [vmem:[%s721 + $0xa0] sm:$0xff]
        %v6871 = vld [vmem:[%s721 + $0xa8] sm:$0xff]
        %v6872 = vld [vmem:[%s721 + $0xb0] sm:$0xff]
        %v6873 = vld [vmem:[%s721 + $0xb8] sm:$0xff]
        %v6874 = vld [vmem:[%s721 + $0xc0] sm:$0xff]
        %v6875 = vld [vmem:[%s721 + $0xc8] sm:$0xff]
        %v6876 = vld [vmem:[%s721 + $0xd0] sm:$0xff]
        %v6877 = vld [vmem:[%s721 + $0xd8] sm:$0xff]
        %v6878 = vld [vmem:[%s721 + $0xe0] sm:$0xff]
        %v6879 = vld [vmem:[%s721 + $0xe8] sm:$0xff]
        %v6880 = vld [vmem:[%s721 + $0xf0] sm:$0xff]
        %v6881 = vld [vmem:[%s721 + $0xf8] sm:$0xff]
        %v6882 = vld [vmem:[%s721 + $0x100] sm:$0xff]
        %v6883 = vld [vmem:[%s721 + $0x108] sm:$0xff]
        %v6884 = vld [vmem:[%s721 + $0x110] sm:$0xff]
        %v6885 = vld [vmem:[%s721 + $0x118] sm:$0xff]
        %v6886 = vld [vmem:[%s721 + $0x120] sm:$0xff]
        %v6887 = vld [vmem:[%s721 + $0x128] sm:$0xff]
        %v6888 = vld [vmem:[%s721 + $0x130] sm:$0xff]
        %v6889 = vld [vmem:[%s721 + $0x138] sm:$0xff]
        %v6890 = vld [vmem:[%s721 + $0x140] sm:$0xff]
        %v6891 = vld [vmem:[%s721 + $0x148] sm:$0xff]
        %v6892 = vld [vmem:[%s721 + $0x150] sm:$0xff]
        %v6893 = vld [vmem:[%s721 + $0x158] sm:$0xff]
        %v6894 = vld [vmem:[%s721 + $0x160] sm:$0xff]
        %v6895 = vld [vmem:[%s721 + $0x168] sm:$0xff]
        %v6896 = vld [vmem:[%s721 + $0x170] sm:$0xff]
        %v6897 = vld [vmem:[%s721 + $0x178] sm:$0xff]
        %v6898 = vld [vmem:[%s721 + $0x180] sm:$0xff]
        %v6899 = vld [vmem:[%s721 + $0x188] sm:$0xff]
        %v6900 = vld [vmem:[%s721 + $0x190] sm:$0xff]
        %v6901 = vld [vmem:[%s721 + $0x198] sm:$0xff]
        %v6902 = vld [vmem:[%s721 + $0x1a0] sm:$0xff]
        %v6903 = vld [vmem:[%s721 + $0x1a8] sm:$0xff]
        %v6904 = vld [vmem:[%s721 + $0x1b0] sm:$0xff]
        %v6905 = vld [vmem:[%s721 + $0x1b8] sm:$0xff]
        %v6906 = vld [vmem:[%s721 + $0x1c0] sm:$0xff]
        %v6907 = vld [vmem:[%s721 + $0x1c8] sm:$0xff]
        %v6908 = vld [vmem:[%s721 + $0x1d0] sm:$0xff]
        %v6909 = vld [vmem:[%s721 + $0x1d8] sm:$0xff]
        %v6910 = vld [vmem:[%s721 + $0x1e0] sm:$0xff]
        %v6911 = vld [vmem:[%s721 + $0x1e8] sm:$0xff]
        %v6912 = vld [vmem:[%s721 + $0x1f0] sm:$0xff]
        %v6913 = vld [vmem:[%s721 + $0x1f8] sm:$0xff]
        %v6914 = vld [vmem:[%s721 + $0x200] sm:$0xff]
        %v6915 = vld [vmem:[%s721 + $0x208] sm:$0xff]
        %v6916 = vld [vmem:[%s721 + $0x210] sm:$0xff]
        %v6917 = vld [vmem:[%s721 + $0x218] sm:$0xff]
        %v6918 = vld [vmem:[%s721 + $0x220] sm:$0xff]
        %v6919 = vld [vmem:[%s721 + $0x228] sm:$0xff]
        %v6920 = vld [vmem:[%s721 + $0x230] sm:$0xff]
        %v6921 = vld [vmem:[%s721 + $0x238] sm:$0xff]
        %v6922 = vld [vmem:[%s721 + $0x240] sm:$0xff]
        %v6923 = vld [vmem:[%s721 + $0x248] sm:$0xff]
        %v6924 = vld [vmem:[%s721 + $0x250] sm:$0xff]
        %v6925 = vld [vmem:[%s721 + $0x258] sm:$0xff]
        %v6926 = vld [vmem:[%s721 + $0x260] sm:$0xff]
        %v6927 = vld [vmem:[%s721 + $0x268] sm:$0xff]
        %v6928 = vld [vmem:[%s721 + $0x270] sm:$0xff]
        %v6929 = vld [vmem:[%s721 + $0x278] sm:$0xff]
        %v6930 = vld [vmem:[%s721 + $0x280] sm:$0xff]
        %v6931 = vld [vmem:[%s721 + $0x288] sm:$0xff]
        %v6932 = vld [vmem:[%s721 + $0x290] sm:$0xff]
        %v6933 = vld [vmem:[%s721 + $0x298] sm:$0xff]
        %v6934 = vld [vmem:[%s721 + $0x2a0] sm:$0xff]
        %v6935 = vld [vmem:[%s721 + $0x2a8] sm:$0xff]
        %v6936 = vld [vmem:[%s721 + $0x2b0] sm:$0xff]
        %v6937 = vld [vmem:[%s721 + $0x2b8] sm:$0xff]
        %v6938 = vld [vmem:[%s721 + $0x2c0] sm:$0xff]
        %v6939 = vld [vmem:[%s721 + $0x2c8] sm:$0xff]
        %v6940 = vld [vmem:[%s721 + $0x2d0] sm:$0xff]
        %v6941 = vld [vmem:[%s721 + $0x2d8] sm:$0xff]
        %v6942 = vld [vmem:[%s721 + $0x2e0] sm:$0xff]
        %v6943 = vld [vmem:[%s721 + $0x2e8] sm:$0xff]
        %v6944 = vld [vmem:[%s721 + $0x2f0] sm:$0xff]
        %v6945 = vld [vmem:[%s721 + $0x2f8] sm:$0xff]
        %v6946 = vld [vmem:[%s721 + $0x300] sm:$0xff]
        %v6947 = vld [vmem:[%s721 + $0x308] sm:$0xff]
        %v6948 = vld [vmem:[%s721 + $0x310] sm:$0xff]
        %v6949 = vld [vmem:[%s721 + $0x318] sm:$0xff]
        %v6950 = vld [vmem:[%s721 + $0x320] sm:$0xff]
        %v6951 = vld [vmem:[%s721 + $0x328] sm:$0xff]
        %v6952 = vld [vmem:[%s721 + $0x330] sm:$0xff]
        %v6953 = vld [vmem:[%s721 + $0x338] sm:$0xff]
        %v6954 = vld [vmem:[%s721 + $0x340] sm:$0xff]
        %v6955 = vld [vmem:[%s721 + $0x348] sm:$0xff]
        %v6956 = vld [vmem:[%s721 + $0x350] sm:$0xff]
        %v6957 = vld [vmem:[%s721 + $0x358] sm:$0xff]
        %v6958 = vld [vmem:[%s721 + $0x360] sm:$0xff]
        %v6959 = vld [vmem:[%s721 + $0x368] sm:$0xff]
        %v6960 = vld [vmem:[%s721 + $0x370] sm:$0xff]
        %v6961 = vld [vmem:[%s721 + $0x378] sm:$0xff]
        %v6962 = vld [vmem:[%s721 + $0x380] sm:$0xff]
        %v6963 = vld [vmem:[%s721 + $0x388] sm:$0xff]
        %v6964 = vld [vmem:[%s721 + $0x390] sm:$0xff]
        %v6965 = vld [vmem:[%s721 + $0x398] sm:$0xff]
        %v6966 = vld [vmem:[%s721 + $0x3a0] sm:$0xff]
        %v6967 = vld [vmem:[%s721 + $0x3a8] sm:$0xff]
        %v6968 = vld [vmem:[%s721 + $0x3b0] sm:$0xff]
        %v6969 = vld [vmem:[%s721 + $0x3b8] sm:$0xff]
        %v6970 = vld [vmem:[%s721 + $0x3c0] sm:$0xff]
        %v6971 = vld [vmem:[%s721 + $0x3c8] sm:$0xff]
        %v6972 = vld [vmem:[%s721 + $0x3d0] sm:$0xff]
        %v6973 = vld [vmem:[%s721 + $0x3d8] sm:$0xff]
        %v6974 = vld [vmem:[%s721 + $0x3e0] sm:$0xff]
        %v6975 = vld [vmem:[%s721 + $0x3e8] sm:$0xff]
        %v6976 = vld [vmem:[%s721 + $0x3f0] sm:$0xff]
        %v6977 = vld [vmem:[%s721 + $0x3f8] sm:$0xff]
        %v6978 = vld [vmem:[%s721 + $0x400] sm:$0xff]
        %v6979 = vld [vmem:[%s721 + $0x408] sm:$0xff]
        %v6980 = vld [vmem:[%s721 + $0x410] sm:$0xff]
        %v6981 = vld [vmem:[%s721 + $0x418] sm:$0xff]
        %v6982 = vld [vmem:[%s721 + $0x420] sm:$0xff]
        %v6983 = vld [vmem:[%s721 + $0x428] sm:$0xff]
        %v6984 = vld [vmem:[%s721 + $0x430] sm:$0xff]
        %v6985 = vld [vmem:[%s721 + $0x438] sm:$0xff]
        %v6986 = vld [vmem:[%s721 + $0x440] sm:$0xff]
        %v6987 = vld [vmem:[%s721 + $0x448] sm:$0xff]
        %v6988 = vld [vmem:[%s721 + $0x450] sm:$0xff]
        %v6989 = vld [vmem:[%s721 + $0x458] sm:$0xff]
        %v6990 = vld [vmem:[%s721 + $0x460] sm:$0xff]
        %v6991 = vld [vmem:[%s721 + $0x468] sm:$0xff]
        %v6992 = vld [vmem:[%s721 + $0x470] sm:$0xff]
        %v6993 = vld [vmem:[%s721 + $0x478] sm:$0xff]
        %v6994 = vld [vmem:[%s721 + $0x480] sm:$0xff]
        %v6995 = vld [vmem:[%s721 + $0x488] sm:$0xff]
        %v6996 = vld [vmem:[%s721 + $0x490] sm:$0xff]
        %v6997 = vld [vmem:[%s721 + $0x498] sm:$0xff]
        %v6998 = vld [vmem:[%s721 + $0x4a0] sm:$0xff]
        %v6999 = vld [vmem:[%s721 + $0x4a8] sm:$0xff]
        %v7000 = vld [vmem:[%s721 + $0x4b0] sm:$0xff]
        %v7001 = vld [vmem:[%s721 + $0x4b8] sm:$0xff]
        %v7002 = vld [vmem:[%s721 + $0x4c0] sm:$0xff]
        %v7003 = vld [vmem:[%s721 + $0x4c8] sm:$0xff]
        %v7004 = vld [vmem:[%s721 + $0x4d0] sm:$0xff]
        %v7005 = vld [vmem:[%s721 + $0x4d8] sm:$0xff]
        %v7006 = vld [vmem:[%s721 + $0x4e0] sm:$0xff]
        %v7007 = vld [vmem:[%s721 + $0x4e8] sm:$0xff]
        %v7008 = vld [vmem:[%s721 + $0x4f0] sm:$0xff]
        %v7009 = vld [vmem:[%s721 + $0x4f8] sm:$0xff]
        %v7010 = vld [vmem:[%s721 + $0x500] sm:$0xff]
        %v7011 = vld [vmem:[%s721 + $0x508] sm:$0xff]
        %v7012 = vld [vmem:[%s721 + $0x510] sm:$0xff]
        %v7013 = vld [vmem:[%s721 + $0x518] sm:$0xff]
        %v7014 = vld [vmem:[%s721 + $0x520] sm:$0xff]
        %v7015 = vld [vmem:[%s721 + $0x528] sm:$0xff]
        %v7016 = vld [vmem:[%s721 + $0x530] sm:$0xff]
        %v7017 = vld [vmem:[%s721 + $0x538] sm:$0xff]
        %v7018 = vld [vmem:[%s721 + $0x540] sm:$0xff]
        %v7019 = vld [vmem:[%s721 + $0x548] sm:$0xff]
        %v7020 = vld [vmem:[%s721 + $0x550] sm:$0xff]
        %v7021 = vld [vmem:[%s721 + $0x558] sm:$0xff]
        %v7022 = vld [vmem:[%s721 + $0x560] sm:$0xff]
        %v7023 = vld [vmem:[%s721 + $0x568] sm:$0xff]
        %v7024 = vld [vmem:[%s721 + $0x570] sm:$0xff]
        %v7025 = vld [vmem:[%s721 + $0x578] sm:$0xff]
        %v7026 = vld [vmem:[%s721 + $0x580] sm:$0xff]
        %v7027 = vld [vmem:[%s721 + $0x588] sm:$0xff]
        %v7028 = vld [vmem:[%s721 + $0x590] sm:$0xff]
        %v7029 = vld [vmem:[%s721 + $0x598] sm:$0xff]
        %v7030 = vld [vmem:[%s721 + $0x5a0] sm:$0xff]
        %v7031 = vld [vmem:[%s721 + $0x5a8] sm:$0xff]
        %v7032 = vld [vmem:[%s721 + $0x5b0] sm:$0xff]
        %v7033 = vld [vmem:[%s721 + $0x5b8] sm:$0xff]
        %v7034 = vld [vmem:[%s721 + $0x5c0] sm:$0xff]
        %v7035 = vld [vmem:[%s721 + $0x5c8] sm:$0xff]
        %v7036 = vld [vmem:[%s721 + $0x5d0] sm:$0xff]
        %v7037 = vld [vmem:[%s721 + $0x5d8] sm:$0xff]
        %v7038 = vld [vmem:[%s721 + $0x5e0] sm:$0xff]
        %v7039 = vld [vmem:[%s721 + $0x5e8] sm:$0xff]
        %v7040 = vld [vmem:[%s721 + $0x5f0] sm:$0xff]
        %v7041 = vld [vmem:[%s721 + $0x5f8] sm:$0xff]
        %v7042 = vld [vmem:[%s721 + $0x600] sm:$0xff]
        %v7043 = vld [vmem:[%s721 + $0x608] sm:$0xff]
        %v7044 = vld [vmem:[%s721 + $0x610] sm:$0xff]
        %v7045 = vld [vmem:[%s721 + $0x618] sm:$0xff]
        %v7046 = vld [vmem:[%s721 + $0x620] sm:$0xff]
        %v7047 = vld [vmem:[%s721 + $0x628] sm:$0xff]
        %v7048 = vld [vmem:[%s721 + $0x630] sm:$0xff]
        %v7049 = vld [vmem:[%s721 + $0x638] sm:$0xff]
        %v7050 = vld [vmem:[%s721 + $0x640] sm:$0xff]
        %v7051 = vld [vmem:[%s721 + $0x648] sm:$0xff]
        %v7052 = vld [vmem:[%s721 + $0x650] sm:$0xff]
        %v7053 = vld [vmem:[%s721 + $0x658] sm:$0xff]
        %v7054 = vld [vmem:[%s721 + $0x660] sm:$0xff]
        %v7055 = vld [vmem:[%s721 + $0x668] sm:$0xff]
        %v7056 = vld [vmem:[%s721 + $0x670] sm:$0xff]
        %v7057 = vld [vmem:[%s721 + $0x678] sm:$0xff]
        %v7058 = vld [vmem:[%s721 + $0x680] sm:$0xff]
        %v7059 = vld [vmem:[%s721 + $0x688] sm:$0xff]
        %v7060 = vld [vmem:[%s721 + $0x690] sm:$0xff]
        %v7061 = vld [vmem:[%s721 + $0x698] sm:$0xff]
        %v7062 = vld [vmem:[%s721 + $0x6a0] sm:$0xff]
        %v7063 = vld [vmem:[%s721 + $0x6a8] sm:$0xff]
        %v7064 = vld [vmem:[%s721 + $0x6b0] sm:$0xff]
        %v7065 = vld [vmem:[%s721 + $0x6b8] sm:$0xff]
        %v7066 = vld [vmem:[%s721 + $0x6c0] sm:$0xff]
        %v7067 = vld [vmem:[%s721 + $0x6c8] sm:$0xff]
        %v7068 = vld [vmem:[%s721 + $0x6d0] sm:$0xff]
        %v7069 = vld [vmem:[%s721 + $0x6d8] sm:$0xff]
        %v7070 = vld [vmem:[%s721 + $0x6e0] sm:$0xff]
        %v7071 = vld [vmem:[%s721 + $0x6e8] sm:$0xff]
        %v7072 = vld [vmem:[%s721 + $0x6f0] sm:$0xff]
        %v7073 = vld [vmem:[%s721 + $0x6f8] sm:$0xff]
        %v7074 = vld [vmem:[%s721 + $0x700] sm:$0xff]
        %v7075 = vld [vmem:[%s721 + $0x708] sm:$0xff]
        %v7076 = vld [vmem:[%s721 + $0x710] sm:$0xff]
        %v7077 = vld [vmem:[%s721 + $0x718] sm:$0xff]
        %v7078 = vld [vmem:[%s721 + $0x720] sm:$0xff]
        %v7079 = vld [vmem:[%s721 + $0x728] sm:$0xff]
        %v7080 = vld [vmem:[%s721 + $0x730] sm:$0xff]
        %v7081 = vld [vmem:[%s721 + $0x738] sm:$0xff]
        %v7082 = vld [vmem:[%s721 + $0x740] sm:$0xff]
        %v7083 = vld [vmem:[%s721 + $0x748] sm:$0xff]
        %v7084 = vld [vmem:[%s721 + $0x750] sm:$0xff]
        %v7085 = vld [vmem:[%s721 + $0x758] sm:$0xff]
        %v7086 = vld [vmem:[%s721 + $0x760] sm:$0xff]
        %v7087 = vld [vmem:[%s721 + $0x768] sm:$0xff]
        %v7088 = vld [vmem:[%s721 + $0x770] sm:$0xff]
        %v7089 = vld [vmem:[%s721 + $0x778] sm:$0xff]
        %v7090 = vld [vmem:[%s721 + $0x780] sm:$0xff]
        %v7091 = vld [vmem:[%s721 + $0x788] sm:$0xff]
        %v7092 = vld [vmem:[%s721 + $0x790] sm:$0xff]
        %v7093 = vld [vmem:[%s721 + $0x798] sm:$0xff]
        %v7094 = vld [vmem:[%s721 + $0x7a0] sm:$0xff]
        %v7095 = vld [vmem:[%s721 + $0x7a8] sm:$0xff]
        %v7096 = vld [vmem:[%s721 + $0x7b0] sm:$0xff]
        %v7097 = vld [vmem:[%s721 + $0x7b8] sm:$0xff]
        %v7098 = vld [vmem:[%s721 + $0x7c0] sm:$0xff]
        %v7099 = vld [vmem:[%s721 + $0x7c8] sm:$0xff]
        %v7100 = vld [vmem:[%s721 + $0x7d0] sm:$0xff]
        %v7101 = vld [vmem:[%s721 + $0x7d8] sm:$0xff]
        %v7102 = vld [vmem:[%s721 + $0x7e0] sm:$0xff]
        %v7103 = vld [vmem:[%s721 + $0x7e8] sm:$0xff]
        %v7104 = vld [vmem:[%s721 + $0x7f0] sm:$0xff]
        %v7105 = vld [vmem:[%s721 + $0x7f8] sm:$0xff]
        %v7106 = vld [vmem:[%s721 + $0x800] sm:$0xff]
        %v7107 = vld [vmem:[%s721 + $0x808] sm:$0xff]
        %v7108 = vld [vmem:[%s721 + $0x810] sm:$0xff]
        %v7109 = vld [vmem:[%s721 + $0x818] sm:$0xff]
        %v7110 = vld [vmem:[%s721 + $0x820] sm:$0xff]
        %v7111 = vld [vmem:[%s721 + $0x828] sm:$0xff]
        %v7112 = vld [vmem:[%s721 + $0x830] sm:$0xff]
        %v7113 = vld [vmem:[%s721 + $0x838] sm:$0xff]
        %v7114 = vld [vmem:[%s721 + $0x840] sm:$0xff]
        %v7115 = vld [vmem:[%s721 + $0x848] sm:$0xff]
        %v7116 = vld [vmem:[%s721 + $0x850] sm:$0xff]
        %v7117 = vld [vmem:[%s721 + $0x858] sm:$0xff]
        %v7118 = vld [vmem:[%s721 + $0x860] sm:$0xff]
        %v7119 = vld [vmem:[%s721 + $0x868] sm:$0xff]
        %v7120 = vld [vmem:[%s721 + $0x870] sm:$0xff]
        %v7121 = vld [vmem:[%s721 + $0x878] sm:$0xff]
        %v7122 = vld [vmem:[%s721 + $0x880] sm:$0xff]
        %v7123 = vld [vmem:[%s721 + $0x888] sm:$0xff]
        %v7124 = vld [vmem:[%s721 + $0x890] sm:$0xff]
        %v7125 = vld [vmem:[%s721 + $0x898] sm:$0xff]
        %v7126 = vld [vmem:[%s721 + $0x8a0] sm:$0xff]
        %v7127 = vld [vmem:[%s721 + $0x8a8] sm:$0xff]
        %v7128 = vld [vmem:[%s721 + $0x8b0] sm:$0xff]
        %v7129 = vld [vmem:[%s721 + $0x8b8] sm:$0xff]
        %v7130 = vld [vmem:[%s721 + $0x8c0] sm:$0xff]
        %v7131 = vld [vmem:[%s721 + $0x8c8] sm:$0xff]
        %v7132 = vld [vmem:[%s721 + $0x8d0] sm:$0xff]
        %v7133 = vld [vmem:[%s721 + $0x8d8] sm:$0xff]
        %v7134 = vld [vmem:[%s721 + $0x8e0] sm:$0xff]
        %v7135 = vld [vmem:[%s721 + $0x8e8] sm:$0xff]
        %v7136 = vld [vmem:[%s721 + $0x8f0] sm:$0xff]
        %v7137 = vld [vmem:[%s721 + $0x8f8] sm:$0xff]
        %v7426 = vunpack.c.l.b16 %v6850
        %v7427 = vunpack.c.h.b16 %v6850
        %v7428 = vunpack.c.l.b16 %v6851
        %v7429 = vunpack.c.h.b16 %v6851
        %v7430 = vunpack.c.l.b16 %v6852
        %v7431 = vunpack.c.h.b16 %v6852
        %v7432 = vunpack.c.l.b16 %v6853
        %v7433 = vunpack.c.h.b16 %v6853
        %v7434 = vunpack.c.l.b16 %v6854
        %v7435 = vunpack.c.h.b16 %v6854
        %v7436 = vunpack.c.l.b16 %v6855
        %v7437 = vunpack.c.h.b16 %v6855
        %v7438 = vunpack.c.l.b16 %v6856
        %v7439 = vunpack.c.h.b16 %v6856
        %v7440 = vunpack.c.l.b16 %v6857
        %v7441 = vunpack.c.h.b16 %v6857
        %v7442 = vunpack.c.l.b16 %v6858
        %v7443 = vunpack.c.h.b16 %v6858
        %v7444 = vunpack.c.l.b16 %v6859
        %v7445 = vunpack.c.h.b16 %v6859
        %v7446 = vunpack.c.l.b16 %v6860
        %v7447 = vunpack.c.h.b16 %v6860
        %v7448 = vunpack.c.l.b16 %v6861
        %v7449 = vunpack.c.h.b16 %v6861
        %v7450 = vunpack.c.l.b16 %v6862
        %v7451 = vunpack.c.h.b16 %v6862
        %v7452 = vunpack.c.l.b16 %v6863
        %v7453 = vunpack.c.h.b16 %v6863
        %v7454 = vunpack.c.l.b16 %v6864
        %v7455 = vunpack.c.h.b16 %v6864
        %v7456 = vunpack.c.l.b16 %v6865
        %v7457 = vunpack.c.h.b16 %v6865
        %v7458 = vunpack.c.l.b16 %v6866
        %v7459 = vunpack.c.h.b16 %v6866
        %v7460 = vunpack.c.l.b16 %v6867
        %v7461 = vunpack.c.h.b16 %v6867
        %v7462 = vunpack.c.l.b16 %v6868
        %v7463 = vunpack.c.h.b16 %v6868
        %v7464 = vunpack.c.l.b16 %v6869
        %v7465 = vunpack.c.h.b16 %v6869
        %v7466 = vunpack.c.l.b16 %v6870
        %v7467 = vunpack.c.h.b16 %v6870
        %v7468 = vunpack.c.l.b16 %v6871
        %v7469 = vunpack.c.h.b16 %v6871
        %v7470 = vunpack.c.l.b16 %v6872
        %v7471 = vunpack.c.h.b16 %v6872
        %v7472 = vunpack.c.l.b16 %v6873
        %v7473 = vunpack.c.h.b16 %v6873
        %v7474 = vunpack.c.l.b16 %v6874
        %v7475 = vunpack.c.h.b16 %v6874
        %v7476 = vunpack.c.l.b16 %v6875
        %v7477 = vunpack.c.h.b16 %v6875
        %v7478 = vunpack.c.l.b16 %v6876
        %v7479 = vunpack.c.h.b16 %v6876
        %v7480 = vunpack.c.l.b16 %v6877
        %v7481 = vunpack.c.h.b16 %v6877
        %v7482 = vunpack.c.l.b16 %v6878
        %v7483 = vunpack.c.h.b16 %v6878
        %v7484 = vunpack.c.l.b16 %v6879
        %v7485 = vunpack.c.h.b16 %v6879
        %v7486 = vunpack.c.l.b16 %v6880
        %v7487 = vunpack.c.h.b16 %v6880
        %v7488 = vunpack.c.l.b16 %v6881
        %v7489 = vunpack.c.h.b16 %v6881
        %v7490 = vunpack.c.l.b16 %v6882
        %v7491 = vunpack.c.h.b16 %v6882
        %v7492 = vunpack.c.l.b16 %v6883
        %v7493 = vunpack.c.h.b16 %v6883
        %v7494 = vunpack.c.l.b16 %v6884
        %v7495 = vunpack.c.h.b16 %v6884
        %v7496 = vunpack.c.l.b16 %v6885
        %v7497 = vunpack.c.h.b16 %v6885
        %v7498 = vunpack.c.l.b16 %v6886
        %v7499 = vunpack.c.h.b16 %v6886
        %v7500 = vunpack.c.l.b16 %v6887
        %v7501 = vunpack.c.h.b16 %v6887
        %v7502 = vunpack.c.l.b16 %v6888
        %v7503 = vunpack.c.h.b16 %v6888
        %v7504 = vunpack.c.l.b16 %v6889
        %v7505 = vunpack.c.h.b16 %v6889
        %v7506 = vunpack.c.l.b16 %v6890
        %v7507 = vunpack.c.h.b16 %v6890
        %v7508 = vunpack.c.l.b16 %v6891
        %v7509 = vunpack.c.h.b16 %v6891
        %v7510 = vunpack.c.l.b16 %v6892
        %v7511 = vunpack.c.h.b16 %v6892
        %v7512 = vunpack.c.l.b16 %v6893
        %v7513 = vunpack.c.h.b16 %v6893
        %v7514 = vunpack.c.l.b16 %v6894
        %v7515 = vunpack.c.h.b16 %v6894
        %v7516 = vunpack.c.l.b16 %v6895
        %v7517 = vunpack.c.h.b16 %v6895
        %v7518 = vunpack.c.l.b16 %v6896
        %v7519 = vunpack.c.h.b16 %v6896
        %v7520 = vunpack.c.l.b16 %v6897
        %v7521 = vunpack.c.h.b16 %v6897
        %v7522 = vunpack.c.l.b16 %v6898
        %v7523 = vunpack.c.h.b16 %v6898
        %v7524 = vunpack.c.l.b16 %v6899
        %v7525 = vunpack.c.h.b16 %v6899
        %v7526 = vunpack.c.l.b16 %v6900
        %v7527 = vunpack.c.h.b16 %v6900
        %v7528 = vunpack.c.l.b16 %v6901
        %v7529 = vunpack.c.h.b16 %v6901
        %v7530 = vunpack.c.l.b16 %v6902
        %v7531 = vunpack.c.h.b16 %v6902
        %v7532 = vunpack.c.l.b16 %v6903
        %v7533 = vunpack.c.h.b16 %v6903
        %v7534 = vunpack.c.l.b16 %v6904
        %v7535 = vunpack.c.h.b16 %v6904
        %v7536 = vunpack.c.l.b16 %v6905
        %v7537 = vunpack.c.h.b16 %v6905
        %v7538 = vunpack.c.l.b16 %v6906
        %v7539 = vunpack.c.h.b16 %v6906
        %v7540 = vunpack.c.l.b16 %v6907
        %v7541 = vunpack.c.h.b16 %v6907
        %v7542 = vunpack.c.l.b16 %v6908
        %v7543 = vunpack.c.h.b16 %v6908
        %v7544 = vunpack.c.l.b16 %v6909
        %v7545 = vunpack.c.h.b16 %v6909
        %v7546 = vunpack.c.l.b16 %v6910
        %v7547 = vunpack.c.h.b16 %v6910
        %v7548 = vunpack.c.l.b16 %v6911
        %v7549 = vunpack.c.h.b16 %v6911
        %v7550 = vunpack.c.l.b16 %v6912
        %v7551 = vunpack.c.h.b16 %v6912
        %v7552 = vunpack.c.l.b16 %v6913
        %v7553 = vunpack.c.h.b16 %v6913
        %v7554 = vunpack.c.l.b16 %v6914
        %v7555 = vunpack.c.h.b16 %v6914
        %v7556 = vunpack.c.l.b16 %v6915
        %v7557 = vunpack.c.h.b16 %v6915
        %v7558 = vunpack.c.l.b16 %v6916
        %v7559 = vunpack.c.h.b16 %v6916
        %v7560 = vunpack.c.l.b16 %v6917
        %v7561 = vunpack.c.h.b16 %v6917
        %v7562 = vunpack.c.l.b16 %v6918
        %v7563 = vunpack.c.h.b16 %v6918
        %v7564 = vunpack.c.l.b16 %v6919
        %v7565 = vunpack.c.h.b16 %v6919
        %v7566 = vunpack.c.l.b16 %v6920
        %v7567 = vunpack.c.h.b16 %v6920
        %v7568 = vunpack.c.l.b16 %v6921
        %v7569 = vunpack.c.h.b16 %v6921
        %v7570 = vunpack.c.l.b16 %v6922
        %v7571 = vunpack.c.h.b16 %v6922
        %v7572 = vunpack.c.l.b16 %v6923
        %v7573 = vunpack.c.h.b16 %v6923
        %v7574 = vunpack.c.l.b16 %v6924
        %v7575 = vunpack.c.h.b16 %v6924
        %v7576 = vunpack.c.l.b16 %v6925
        %v7577 = vunpack.c.h.b16 %v6925
        %v7578 = vunpack.c.l.b16 %v6926
        %v7579 = vunpack.c.h.b16 %v6926
        %v7580 = vunpack.c.l.b16 %v6927
        %v7581 = vunpack.c.h.b16 %v6927
        %v7582 = vunpack.c.l.b16 %v6928
        %v7583 = vunpack.c.h.b16 %v6928
        %v7584 = vunpack.c.l.b16 %v6929
        %v7585 = vunpack.c.h.b16 %v6929
        %v7586 = vunpack.c.l.b16 %v6930
        %v7587 = vunpack.c.h.b16 %v6930
        %v7588 = vunpack.c.l.b16 %v6931
        %v7589 = vunpack.c.h.b16 %v6931
        %v7590 = vunpack.c.l.b16 %v6932
        %v7591 = vunpack.c.h.b16 %v6932
        %v7592 = vunpack.c.l.b16 %v6933
        %v7593 = vunpack.c.h.b16 %v6933
        %v7594 = vunpack.c.l.b16 %v6934
        %v7595 = vunpack.c.h.b16 %v6934
        %v7596 = vunpack.c.l.b16 %v6935
        %v7597 = vunpack.c.h.b16 %v6935
        %v7598 = vunpack.c.l.b16 %v6936
        %v7599 = vunpack.c.h.b16 %v6936
        %v7600 = vunpack.c.l.b16 %v6937
        %v7601 = vunpack.c.h.b16 %v6937
        %v7602 = vunpack.c.l.b16 %v6938
        %v7603 = vunpack.c.h.b16 %v6938
        %v7604 = vunpack.c.l.b16 %v6939
        %v7605 = vunpack.c.h.b16 %v6939
        %v7606 = vunpack.c.l.b16 %v6940
        %v7607 = vunpack.c.h.b16 %v6940
        %v7608 = vunpack.c.l.b16 %v6941
        %v7609 = vunpack.c.h.b16 %v6941
        %v7610 = vunpack.c.l.b16 %v6942
        %v7611 = vunpack.c.h.b16 %v6942
        %v7612 = vunpack.c.l.b16 %v6943
        %v7613 = vunpack.c.h.b16 %v6943
        %v7614 = vunpack.c.l.b16 %v6944
        %v7615 = vunpack.c.h.b16 %v6944
        %v7616 = vunpack.c.l.b16 %v6945
        %v7617 = vunpack.c.h.b16 %v6945
        %v7618 = vunpack.c.l.b16 %v6946
        %v7619 = vunpack.c.h.b16 %v6946
        %v7620 = vunpack.c.l.b16 %v6947
        %v7621 = vunpack.c.h.b16 %v6947
        %v7622 = vunpack.c.l.b16 %v6948
        %v7623 = vunpack.c.h.b16 %v6948
        %v7624 = vunpack.c.l.b16 %v6949
        %v7625 = vunpack.c.h.b16 %v6949
        %v7626 = vunpack.c.l.b16 %v6950
        %v7627 = vunpack.c.h.b16 %v6950
        %v7628 = vunpack.c.l.b16 %v6951
        %v7629 = vunpack.c.h.b16 %v6951
        %v7630 = vunpack.c.l.b16 %v6952
        %v7631 = vunpack.c.h.b16 %v6952
        %v7632 = vunpack.c.l.b16 %v6953
        %v7633 = vunpack.c.h.b16 %v6953
        %v7634 = vunpack.c.l.b16 %v6954
        %v7635 = vunpack.c.h.b16 %v6954
        %v7636 = vunpack.c.l.b16 %v6955
        %v7637 = vunpack.c.h.b16 %v6955
        %v7638 = vunpack.c.l.b16 %v6956
        %v7639 = vunpack.c.h.b16 %v6956
        %v7640 = vunpack.c.l.b16 %v6957
        %v7641 = vunpack.c.h.b16 %v6957
        %v7642 = vunpack.c.l.b16 %v6958
        %v7643 = vunpack.c.h.b16 %v6958
        %v7644 = vunpack.c.l.b16 %v6959
        %v7645 = vunpack.c.h.b16 %v6959
        %v7646 = vunpack.c.l.b16 %v6960
        %v7647 = vunpack.c.h.b16 %v6960
        %v7648 = vunpack.c.l.b16 %v6961
        %v7649 = vunpack.c.h.b16 %v6961
        %v7650 = vunpack.c.l.b16 %v6962
        %v7651 = vunpack.c.h.b16 %v6962
        %v7652 = vunpack.c.l.b16 %v6963
        %v7653 = vunpack.c.h.b16 %v6963
        %v7654 = vunpack.c.l.b16 %v6964
        %v7655 = vunpack.c.h.b16 %v6964
        %v7656 = vunpack.c.l.b16 %v6965
        %v7657 = vunpack.c.h.b16 %v6965
        %v7658 = vunpack.c.l.b16 %v6966
        %v7659 = vunpack.c.h.b16 %v6966
        %v7660 = vunpack.c.l.b16 %v6967
        %v7661 = vunpack.c.h.b16 %v6967
        %v7662 = vunpack.c.l.b16 %v6968
        %v7663 = vunpack.c.h.b16 %v6968
        %v7664 = vunpack.c.l.b16 %v6969
        %v7665 = vunpack.c.h.b16 %v6969
        %v7666 = vunpack.c.l.b16 %v6970
        %v7667 = vunpack.c.h.b16 %v6970
        %v7668 = vunpack.c.l.b16 %v6971
        %v7669 = vunpack.c.h.b16 %v6971
        %v7670 = vunpack.c.l.b16 %v6972
        %v7671 = vunpack.c.h.b16 %v6972
        %v7672 = vunpack.c.l.b16 %v6973
        %v7673 = vunpack.c.h.b16 %v6973
        %v7674 = vunpack.c.l.b16 %v6974
        %v7675 = vunpack.c.h.b16 %v6974
        %v7676 = vunpack.c.l.b16 %v6975
        %v7677 = vunpack.c.h.b16 %v6975
        %v7678 = vunpack.c.l.b16 %v6976
        %v7679 = vunpack.c.h.b16 %v6976
        %v7680 = vunpack.c.l.b16 %v6977
        %v7681 = vunpack.c.h.b16 %v6977
        %v7682 = vunpack.c.l.b16 %v6978
        %v7683 = vunpack.c.h.b16 %v6978
        %v7684 = vunpack.c.l.b16 %v6979
        %v7685 = vunpack.c.h.b16 %v6979
        %v7686 = vunpack.c.l.b16 %v6980
        %v7687 = vunpack.c.h.b16 %v6980
        %v7688 = vunpack.c.l.b16 %v6981
        %v7689 = vunpack.c.h.b16 %v6981
        %v7690 = vunpack.c.l.b16 %v6982
        %v7691 = vunpack.c.h.b16 %v6982
        %v7692 = vunpack.c.l.b16 %v6983
        %v7693 = vunpack.c.h.b16 %v6983
        %v7694 = vunpack.c.l.b16 %v6984
        %v7695 = vunpack.c.h.b16 %v6984
        %v7696 = vunpack.c.l.b16 %v6985
        %v7697 = vunpack.c.h.b16 %v6985
        %v7698 = vunpack.c.l.b16 %v6986
        %v7699 = vunpack.c.h.b16 %v6986
        %v7700 = vunpack.c.l.b16 %v6987
        %v7701 = vunpack.c.h.b16 %v6987
        %v7702 = vunpack.c.l.b16 %v6988
        %v7703 = vunpack.c.h.b16 %v6988
        %v7704 = vunpack.c.l.b16 %v6989
        %v7705 = vunpack.c.h.b16 %v6989
        %v7706 = vunpack.c.l.b16 %v6990
        %v7707 = vunpack.c.h.b16 %v6990
        %v7708 = vunpack.c.l.b16 %v6991
        %v7709 = vunpack.c.h.b16 %v6991
        %v7710 = vunpack.c.l.b16 %v6992
        %v7711 = vunpack.c.h.b16 %v6992
        %v7712 = vunpack.c.l.b16 %v6993
        %v7713 = vunpack.c.h.b16 %v6993
        %v7714 = vunpack.c.l.b16 %v6994
        %v7715 = vunpack.c.h.b16 %v6994
        %v7716 = vunpack.c.l.b16 %v6995
        %v7717 = vunpack.c.h.b16 %v6995
        %v7718 = vunpack.c.l.b16 %v6996
        %v7719 = vunpack.c.h.b16 %v6996
        %v7720 = vunpack.c.l.b16 %v6997
        %v7721 = vunpack.c.h.b16 %v6997
        %v7722 = vunpack.c.l.b16 %v6998
        %v7723 = vunpack.c.h.b16 %v6998
        %v7724 = vunpack.c.l.b16 %v6999
        %v7725 = vunpack.c.h.b16 %v6999
        %v7726 = vunpack.c.l.b16 %v7000
        %v7727 = vunpack.c.h.b16 %v7000
        %v7728 = vunpack.c.l.b16 %v7001
        %v7729 = vunpack.c.h.b16 %v7001
        %v7730 = vunpack.c.l.b16 %v7002
        %v7731 = vunpack.c.h.b16 %v7002
        %v7732 = vunpack.c.l.b16 %v7003
        %v7733 = vunpack.c.h.b16 %v7003
        %v7734 = vunpack.c.l.b16 %v7004
        %v7735 = vunpack.c.h.b16 %v7004
        %v7736 = vunpack.c.l.b16 %v7005
        %v7737 = vunpack.c.h.b16 %v7005
        %v7738 = vunpack.c.l.b16 %v7006
        %v7739 = vunpack.c.h.b16 %v7006
        %v7740 = vunpack.c.l.b16 %v7007
        %v7741 = vunpack.c.h.b16 %v7007
        %v7742 = vunpack.c.l.b16 %v7008
        %v7743 = vunpack.c.h.b16 %v7008
        %v7744 = vunpack.c.l.b16 %v7009
        %v7745 = vunpack.c.h.b16 %v7009
        %v7746 = vunpack.c.l.b16 %v7010
        %v7747 = vunpack.c.h.b16 %v7010
        %v7748 = vunpack.c.l.b16 %v7011
        %v7749 = vunpack.c.h.b16 %v7011
        %v7750 = vunpack.c.l.b16 %v7012
        %v7751 = vunpack.c.h.b16 %v7012
        %v7752 = vunpack.c.l.b16 %v7013
        %v7753 = vunpack.c.h.b16 %v7013
        %v7754 = vunpack.c.l.b16 %v7014
        %v7755 = vunpack.c.h.b16 %v7014
        %v7756 = vunpack.c.l.b16 %v7015
        %v7757 = vunpack.c.h.b16 %v7015
        %v7758 = vunpack.c.l.b16 %v7016
        %v7759 = vunpack.c.h.b16 %v7016
        %v7760 = vunpack.c.l.b16 %v7017
        %v7761 = vunpack.c.h.b16 %v7017
        %v7762 = vunpack.c.l.b16 %v7018
        %v7763 = vunpack.c.h.b16 %v7018
        %v7764 = vunpack.c.l.b16 %v7019
        %v7765 = vunpack.c.h.b16 %v7019
        %v7766 = vunpack.c.l.b16 %v7020
        %v7767 = vunpack.c.h.b16 %v7020
        %v7768 = vunpack.c.l.b16 %v7021
        %v7769 = vunpack.c.h.b16 %v7021
        %v7770 = vunpack.c.l.b16 %v7022
        %v7771 = vunpack.c.h.b16 %v7022
        %v7772 = vunpack.c.l.b16 %v7023
        %v7773 = vunpack.c.h.b16 %v7023
        %v7774 = vunpack.c.l.b16 %v7024
        %v7775 = vunpack.c.h.b16 %v7024
        %v7776 = vunpack.c.l.b16 %v7025
        %v7777 = vunpack.c.h.b16 %v7025
        %v7778 = vunpack.c.l.b16 %v7026
        %v7779 = vunpack.c.h.b16 %v7026
        %v7780 = vunpack.c.l.b16 %v7027
        %v7781 = vunpack.c.h.b16 %v7027
        %v7782 = vunpack.c.l.b16 %v7028
        %v7783 = vunpack.c.h.b16 %v7028
        %v7784 = vunpack.c.l.b16 %v7029
        %v7785 = vunpack.c.h.b16 %v7029
        %v7786 = vunpack.c.l.b16 %v7030
        %v7787 = vunpack.c.h.b16 %v7030
        %v7788 = vunpack.c.l.b16 %v7031
        %v7789 = vunpack.c.h.b16 %v7031
        %v7790 = vunpack.c.l.b16 %v7032
        %v7791 = vunpack.c.h.b16 %v7032
        %v7792 = vunpack.c.l.b16 %v7033
        %v7793 = vunpack.c.h.b16 %v7033
        %v7794 = vunpack.c.l.b16 %v7034
        %v7795 = vunpack.c.h.b16 %v7034
        %v7796 = vunpack.c.l.b16 %v7035
        %v7797 = vunpack.c.h.b16 %v7035
        %v7798 = vunpack.c.l.b16 %v7036
        %v7799 = vunpack.c.h.b16 %v7036
        %v7800 = vunpack.c.l.b16 %v7037
        %v7801 = vunpack.c.h.b16 %v7037
        %v7802 = vunpack.c.l.b16 %v7038
        %v7803 = vunpack.c.h.b16 %v7038
        %v7804 = vunpack.c.l.b16 %v7039
        %v7805 = vunpack.c.h.b16 %v7039
        %v7806 = vunpack.c.l.b16 %v7040
        %v7807 = vunpack.c.h.b16 %v7040
        %v7808 = vunpack.c.l.b16 %v7041
        %v7809 = vunpack.c.h.b16 %v7041
        %v7810 = vunpack.c.l.b16 %v7042
        %v7811 = vunpack.c.h.b16 %v7042
        %v7812 = vunpack.c.l.b16 %v7043
        %v7813 = vunpack.c.h.b16 %v7043
        %v7814 = vunpack.c.l.b16 %v7044
        %v7815 = vunpack.c.h.b16 %v7044
        %v7816 = vunpack.c.l.b16 %v7045
        %v7817 = vunpack.c.h.b16 %v7045
        %v7818 = vunpack.c.l.b16 %v7046
        %v7819 = vunpack.c.h.b16 %v7046
        %v7820 = vunpack.c.l.b16 %v7047
        %v7821 = vunpack.c.h.b16 %v7047
        %v7822 = vunpack.c.l.b16 %v7048
        %v7823 = vunpack.c.h.b16 %v7048
        %v7824 = vunpack.c.l.b16 %v7049
        %v7825 = vunpack.c.h.b16 %v7049
        %v7826 = vunpack.c.l.b16 %v7050
        %v7827 = vunpack.c.h.b16 %v7050
        %v7828 = vunpack.c.l.b16 %v7051
        %v7829 = vunpack.c.h.b16 %v7051
        %v7830 = vunpack.c.l.b16 %v7052
        %v7831 = vunpack.c.h.b16 %v7052
        %v7832 = vunpack.c.l.b16 %v7053
        %v7833 = vunpack.c.h.b16 %v7053
        %v7834 = vunpack.c.l.b16 %v7054
        %v7835 = vunpack.c.h.b16 %v7054
        %v7836 = vunpack.c.l.b16 %v7055
        %v7837 = vunpack.c.h.b16 %v7055
        %v7838 = vunpack.c.l.b16 %v7056
        %v7839 = vunpack.c.h.b16 %v7056
        %v7840 = vunpack.c.l.b16 %v7057
        %v7841 = vunpack.c.h.b16 %v7057
        %v7842 = vunpack.c.l.b16 %v7058
        %v7843 = vunpack.c.h.b16 %v7058
        %v7844 = vunpack.c.l.b16 %v7059
        %v7845 = vunpack.c.h.b16 %v7059
        %v7846 = vunpack.c.l.b16 %v7060
        %v7847 = vunpack.c.h.b16 %v7060
        %v7848 = vunpack.c.l.b16 %v7061
        %v7849 = vunpack.c.h.b16 %v7061
        %v7850 = vunpack.c.l.b16 %v7062
        %v7851 = vunpack.c.h.b16 %v7062
        %v7852 = vunpack.c.l.b16 %v7063
        %v7853 = vunpack.c.h.b16 %v7063
        %v7854 = vunpack.c.l.b16 %v7064
        %v7855 = vunpack.c.h.b16 %v7064
        %v7856 = vunpack.c.l.b16 %v7065
        %v7857 = vunpack.c.h.b16 %v7065
        %v7858 = vunpack.c.l.b16 %v7066
        %v7859 = vunpack.c.h.b16 %v7066
        %v7860 = vunpack.c.l.b16 %v7067
        %v7861 = vunpack.c.h.b16 %v7067
        %v7862 = vunpack.c.l.b16 %v7068
        %v7863 = vunpack.c.h.b16 %v7068
        %v7864 = vunpack.c.l.b16 %v7069
        %v7865 = vunpack.c.h.b16 %v7069
        %v7866 = vunpack.c.l.b16 %v7070
        %v7867 = vunpack.c.h.b16 %v7070
        %v7868 = vunpack.c.l.b16 %v7071
        %v7869 = vunpack.c.h.b16 %v7071
        %v7870 = vunpack.c.l.b16 %v7072
        %v7871 = vunpack.c.h.b16 %v7072
        %v7872 = vunpack.c.l.b16 %v7073
        %v7873 = vunpack.c.h.b16 %v7073
        %v7874 = vunpack.c.l.b16 %v7074
        %v7875 = vunpack.c.h.b16 %v7074
        %v7876 = vunpack.c.l.b16 %v7075
        %v7877 = vunpack.c.h.b16 %v7075
        %v7878 = vunpack.c.l.b16 %v7076
        %v7879 = vunpack.c.h.b16 %v7076
        %v7880 = vunpack.c.l.b16 %v7077
        %v7881 = vunpack.c.h.b16 %v7077
        %v7882 = vunpack.c.l.b16 %v7078
        %v7883 = vunpack.c.h.b16 %v7078
        %v7884 = vunpack.c.l.b16 %v7079
        %v7885 = vunpack.c.h.b16 %v7079
        %v7886 = vunpack.c.l.b16 %v7080
        %v7887 = vunpack.c.h.b16 %v7080
        %v7888 = vunpack.c.l.b16 %v7081
        %v7889 = vunpack.c.h.b16 %v7081
        %v7890 = vunpack.c.l.b16 %v7082
        %v7891 = vunpack.c.h.b16 %v7082
        %v7892 = vunpack.c.l.b16 %v7083
        %v7893 = vunpack.c.h.b16 %v7083
        %v7894 = vunpack.c.l.b16 %v7084
        %v7895 = vunpack.c.h.b16 %v7084
        %v7896 = vunpack.c.l.b16 %v7085
        %v7897 = vunpack.c.h.b16 %v7085
        %v7898 = vunpack.c.l.b16 %v7086
        %v7899 = vunpack.c.h.b16 %v7086
        %v7900 = vunpack.c.l.b16 %v7087
        %v7901 = vunpack.c.h.b16 %v7087
        %v7902 = vunpack.c.l.b16 %v7088
        %v7903 = vunpack.c.h.b16 %v7088
        %v7904 = vunpack.c.l.b16 %v7089
        %v7905 = vunpack.c.h.b16 %v7089
        %v7906 = vunpack.c.l.b16 %v7090
        %v7907 = vunpack.c.h.b16 %v7090
        %v7908 = vunpack.c.l.b16 %v7091
        %v7909 = vunpack.c.h.b16 %v7091
        %v7910 = vunpack.c.l.b16 %v7092
        %v7911 = vunpack.c.h.b16 %v7092
        %v7912 = vunpack.c.l.b16 %v7093
        %v7913 = vunpack.c.h.b16 %v7093
        %v7914 = vunpack.c.l.b16 %v7094
        %v7915 = vunpack.c.h.b16 %v7094
        %v7916 = vunpack.c.l.b16 %v7095
        %v7917 = vunpack.c.h.b16 %v7095
        %v7918 = vunpack.c.l.b16 %v7096
        %v7919 = vunpack.c.h.b16 %v7096
        %v7920 = vunpack.c.l.b16 %v7097
        %v7921 = vunpack.c.h.b16 %v7097
        %v7922 = vunpack.c.l.b16 %v7098
        %v7923 = vunpack.c.h.b16 %v7098
        %v7924 = vunpack.c.l.b16 %v7099
        %v7925 = vunpack.c.h.b16 %v7099
        %v7926 = vunpack.c.l.b16 %v7100
        %v7927 = vunpack.c.h.b16 %v7100
        %v7928 = vunpack.c.l.b16 %v7101
        %v7929 = vunpack.c.h.b16 %v7101
        %v7930 = vunpack.c.l.b16 %v7102
        %v7931 = vunpack.c.h.b16 %v7102
        %v7932 = vunpack.c.l.b16 %v7103
        %v7933 = vunpack.c.h.b16 %v7103
        %v7934 = vunpack.c.l.b16 %v7104
        %v7935 = vunpack.c.h.b16 %v7104
        %v7936 = vunpack.c.l.b16 %v7105
        %v7937 = vunpack.c.h.b16 %v7105
        %v7938 = vunpack.c.l.b16 %v7106
        %v7939 = vunpack.c.h.b16 %v7106
        %v7940 = vunpack.c.l.b16 %v7107
        %v7941 = vunpack.c.h.b16 %v7107
        %v7942 = vunpack.c.l.b16 %v7108
        %v7943 = vunpack.c.h.b16 %v7108
        %v7944 = vunpack.c.l.b16 %v7109
        %v7945 = vunpack.c.h.b16 %v7109
        %v7946 = vunpack.c.l.b16 %v7110
        %v7947 = vunpack.c.h.b16 %v7110
        %v7948 = vunpack.c.l.b16 %v7111
        %v7949 = vunpack.c.h.b16 %v7111
        %v7950 = vunpack.c.l.b16 %v7112
        %v7951 = vunpack.c.h.b16 %v7112
        %v7952 = vunpack.c.l.b16 %v7113
        %v7953 = vunpack.c.h.b16 %v7113
        %v7954 = vunpack.c.l.b16 %v7114
        %v7955 = vunpack.c.h.b16 %v7114
        %v7956 = vunpack.c.l.b16 %v7115
        %v7957 = vunpack.c.h.b16 %v7115
        %v7958 = vunpack.c.l.b16 %v7116
        %v7959 = vunpack.c.h.b16 %v7116
        %v7960 = vunpack.c.l.b16 %v7117
        %v7961 = vunpack.c.h.b16 %v7117
        %v7962 = vunpack.c.l.b16 %v7118
        %v7963 = vunpack.c.h.b16 %v7118
        %v7964 = vunpack.c.l.b16 %v7119
        %v7965 = vunpack.c.h.b16 %v7119
        %v7966 = vunpack.c.l.b16 %v7120
        %v7967 = vunpack.c.h.b16 %v7120
        %v7968 = vunpack.c.l.b16 %v7121
        %v7969 = vunpack.c.h.b16 %v7121
        %v7970 = vunpack.c.l.b16 %v7122
        %v7971 = vunpack.c.h.b16 %v7122
        %v7972 = vunpack.c.l.b16 %v7123
        %v7973 = vunpack.c.h.b16 %v7123
        %v7974 = vunpack.c.l.b16 %v7124
        %v7975 = vunpack.c.h.b16 %v7124
        %v7976 = vunpack.c.l.b16 %v7125
        %v7977 = vunpack.c.h.b16 %v7125
        %v7978 = vunpack.c.l.b16 %v7126
        %v7979 = vunpack.c.h.b16 %v7126
        %v7980 = vunpack.c.l.b16 %v7127
        %v7981 = vunpack.c.h.b16 %v7127
        %v7982 = vunpack.c.l.b16 %v7128
        %v7983 = vunpack.c.h.b16 %v7128
        %v7984 = vunpack.c.l.b16 %v7129
        %v7985 = vunpack.c.h.b16 %v7129
        %v7986 = vunpack.c.l.b16 %v7130
        %v7987 = vunpack.c.h.b16 %v7130
        %v7988 = vunpack.c.l.b16 %v7131
        %v7989 = vunpack.c.h.b16 %v7131
        %v7990 = vunpack.c.l.b16 %v7132
        %v7991 = vunpack.c.h.b16 %v7132
        %v7992 = vunpack.c.l.b16 %v7133
        %v7993 = vunpack.c.h.b16 %v7133
        %v7994 = vunpack.c.l.b16 %v7134
        %v7995 = vunpack.c.h.b16 %v7134
        %v7996 = vunpack.c.l.b16 %v7135
        %v7997 = vunpack.c.h.b16 %v7135
        %v7998 = vunpack.c.l.b16 %v7136
        %v7999 = vunpack.c.h.b16 %v7136
        %v8000 = vunpack.c.l.b16 %v7137
        %v8001 = vunpack.c.h.b16 %v7137
        %v8002 = vpack.c.b16 %v7432, %v7426
        %v8003 = vpack.c.b16 %v7433, %v7427
        %v8004 = vpack.c.b16 %v7434, %v7428
        %v8005 = vpack.c.b16 %v7435, %v7429
        %v8006 = vpack.c.b16 %v7436, %v7430
        %v8007 = vpack.c.b16 %v7437, %v7431
        %v8008 = vpack.c.b16 %v7444, %v7438
        %v8009 = vpack.c.b16 %v7445, %v7439
        %v8010 = vpack.c.b16 %v7446, %v7440
        %v8011 = vpack.c.b16 %v7447, %v7441
        %v8012 = vpack.c.b16 %v7448, %v7442
        %v8013 = vpack.c.b16 %v7449, %v7443
        %v8014 = vpack.c.b16 %v7456, %v7450
        %v8015 = vpack.c.b16 %v7457, %v7451
        %v8016 = vpack.c.b16 %v7458, %v7452
        %v8017 = vpack.c.b16 %v7459, %v7453
        %v8018 = vpack.c.b16 %v7460, %v7454
        %v8019 = vpack.c.b16 %v7461, %v7455
        %v8020 = vpack.c.b16 %v7468, %v7462
        %v8021 = vpack.c.b16 %v7469, %v7463
        %v8022 = vpack.c.b16 %v7470, %v7464
        %v8023 = vpack.c.b16 %v7471, %v7465
        %v8024 = vpack.c.b16 %v7472, %v7466
        %v8025 = vpack.c.b16 %v7473, %v7467
        %v8026 = vpack.c.b16 %v7480, %v7474
        %v8027 = vpack.c.b16 %v7481, %v7475
        %v8028 = vpack.c.b16 %v7482, %v7476
        %v8029 = vpack.c.b16 %v7483, %v7477
        %v8030 = vpack.c.b16 %v7484, %v7478
        %v8031 = vpack.c.b16 %v7485, %v7479
        %v8032 = vpack.c.b16 %v7492, %v7486
        %v8033 = vpack.c.b16 %v7493, %v7487
        %v8034 = vpack.c.b16 %v7494, %v7488
        %v8035 = vpack.c.b16 %v7495, %v7489
        %v8036 = vpack.c.b16 %v7496, %v7490
        %v8037 = vpack.c.b16 %v7497, %v7491
        %v8038 = vpack.c.b16 %v7504, %v7498
        %v8039 = vpack.c.b16 %v7505, %v7499
        %v8040 = vpack.c.b16 %v7506, %v7500
        %v8041 = vpack.c.b16 %v7507, %v7501
        %v8042 = vpack.c.b16 %v7508, %v7502
        %v8043 = vpack.c.b16 %v7509, %v7503
        %v8044 = vpack.c.b16 %v7516, %v7510
        %v8045 = vpack.c.b16 %v7517, %v7511
        %v8046 = vpack.c.b16 %v7518, %v7512
        %v8047 = vpack.c.b16 %v7519, %v7513
        %v8048 = vpack.c.b16 %v7520, %v7514
        %v8049 = vpack.c.b16 %v7521, %v7515
        %v8050 = vpack.c.b16 %v7528, %v7522
        %v8051 = vpack.c.b16 %v7529, %v7523
        %v8052 = vpack.c.b16 %v7530, %v7524
        %v8053 = vpack.c.b16 %v7531, %v7525
        %v8054 = vpack.c.b16 %v7532, %v7526
        %v8055 = vpack.c.b16 %v7533, %v7527
        %v8056 = vpack.c.b16 %v7540, %v7534
        %v8057 = vpack.c.b16 %v7541, %v7535
        %v8058 = vpack.c.b16 %v7542, %v7536
        %v8059 = vpack.c.b16 %v7543, %v7537
        %v8060 = vpack.c.b16 %v7544, %v7538
        %v8061 = vpack.c.b16 %v7545, %v7539
        %v8062 = vpack.c.b16 %v7552, %v7546
        %v8063 = vpack.c.b16 %v7553, %v7547
        %v8064 = vpack.c.b16 %v7554, %v7548
        %v8065 = vpack.c.b16 %v7555, %v7549
        %v8066 = vpack.c.b16 %v7556, %v7550
        %v8067 = vpack.c.b16 %v7557, %v7551
        %v8068 = vpack.c.b16 %v7564, %v7558
        %v8069 = vpack.c.b16 %v7565, %v7559
        %v8070 = vpack.c.b16 %v7566, %v7560
        %v8071 = vpack.c.b16 %v7567, %v7561
        %v8072 = vpack.c.b16 %v7568, %v7562
        %v8073 = vpack.c.b16 %v7569, %v7563
        %v8074 = vpack.c.b16 %v7576, %v7570
        %v8075 = vpack.c.b16 %v7577, %v7571
        %v8076 = vpack.c.b16 %v7578, %v7572
        %v8077 = vpack.c.b16 %v7579, %v7573
        %v8078 = vpack.c.b16 %v7580, %v7574
        %v8079 = vpack.c.b16 %v7581, %v7575
        %v8080 = vpack.c.b16 %v7588, %v7582
        %v8081 = vpack.c.b16 %v7589, %v7583
        %v8082 = vpack.c.b16 %v7590, %v7584
        %v8083 = vpack.c.b16 %v7591, %v7585
        %v8084 = vpack.c.b16 %v7592, %v7586
        %v8085 = vpack.c.b16 %v7593, %v7587
        %v8086 = vpack.c.b16 %v7600, %v7594
        %v8087 = vpack.c.b16 %v7601, %v7595
        %v8088 = vpack.c.b16 %v7602, %v7596
        %v8089 = vpack.c.b16 %v7603, %v7597
        %v8090 = vpack.c.b16 %v7604, %v7598
        %v8091 = vpack.c.b16 %v7605, %v7599
        %v8092 = vpack.c.b16 %v7612, %v7606
        %v8093 = vpack.c.b16 %v7613, %v7607
        %v8094 = vpack.c.b16 %v7614, %v7608
        %v8095 = vpack.c.b16 %v7615, %v7609
        %v8096 = vpack.c.b16 %v7616, %v7610
        %v8097 = vpack.c.b16 %v7617, %v7611
        %v8098 = vpack.c.b16 %v7624, %v7618
        %v8099 = vpack.c.b16 %v7625, %v7619
        %v8100 = vpack.c.b16 %v7626, %v7620
        %v8101 = vpack.c.b16 %v7627, %v7621
        %v8102 = vpack.c.b16 %v7628, %v7622
        %v8103 = vpack.c.b16 %v7629, %v7623
        %v8104 = vpack.c.b16 %v7636, %v7630
        %v8105 = vpack.c.b16 %v7637, %v7631
        %v8106 = vpack.c.b16 %v7638, %v7632
        %v8107 = vpack.c.b16 %v7639, %v7633
        %v8108 = vpack.c.b16 %v7640, %v7634
        %v8109 = vpack.c.b16 %v7641, %v7635
        %v8110 = vpack.c.b16 %v7648, %v7642
        %v8111 = vpack.c.b16 %v7649, %v7643
        %v8112 = vpack.c.b16 %v7650, %v7644
        %v8113 = vpack.c.b16 %v7651, %v7645
        %v8114 = vpack.c.b16 %v7652, %v7646
        %v8115 = vpack.c.b16 %v7653, %v7647
        %v8116 = vpack.c.b16 %v7660, %v7654
        %v8117 = vpack.c.b16 %v7661, %v7655
        %v8118 = vpack.c.b16 %v7662, %v7656
        %v8119 = vpack.c.b16 %v7663, %v7657
        %v8120 = vpack.c.b16 %v7664, %v7658
        %v8121 = vpack.c.b16 %v7665, %v7659
        %v8122 = vpack.c.b16 %v7672, %v7666
        %v8123 = vpack.c.b16 %v7673, %v7667
        %v8124 = vpack.c.b16 %v7674, %v7668
        %v8125 = vpack.c.b16 %v7675, %v7669
        %v8126 = vpack.c.b16 %v7676, %v7670
        %v8127 = vpack.c.b16 %v7677, %v7671
        %v8128 = vpack.c.b16 %v7684, %v7678
        %v8129 = vpack.c.b16 %v7685, %v7679
        %v8130 = vpack.c.b16 %v7686, %v7680
        %v8131 = vpack.c.b16 %v7687, %v7681
        %v8132 = vpack.c.b16 %v7688, %v7682
        %v8133 = vpack.c.b16 %v7689, %v7683
        %v8134 = vpack.c.b16 %v7696, %v7690
        %v8135 = vpack.c.b16 %v7697, %v7691
        %v8136 = vpack.c.b16 %v7698, %v7692
        %v8137 = vpack.c.b16 %v7699, %v7693
        %v8138 = vpack.c.b16 %v7700, %v7694
        %v8139 = vpack.c.b16 %v7701, %v7695
        %v8140 = vpack.c.b16 %v7708, %v7702
        %v8141 = vpack.c.b16 %v7709, %v7703
        %v8142 = vpack.c.b16 %v7710, %v7704
        %v8143 = vpack.c.b16 %v7711, %v7705
        %v8144 = vpack.c.b16 %v7712, %v7706
        %v8145 = vpack.c.b16 %v7713, %v7707
        %v8146 = vpack.c.b16 %v7720, %v7714
        %v8147 = vpack.c.b16 %v7721, %v7715
        %v8148 = vpack.c.b16 %v7722, %v7716
        %v8149 = vpack.c.b16 %v7723, %v7717
        %v8150 = vpack.c.b16 %v7724, %v7718
        %v8151 = vpack.c.b16 %v7725, %v7719
        %v8152 = vpack.c.b16 %v7732, %v7726
        %v8153 = vpack.c.b16 %v7733, %v7727
        %v8154 = vpack.c.b16 %v7734, %v7728
        %v8155 = vpack.c.b16 %v7735, %v7729
        %v8156 = vpack.c.b16 %v7736, %v7730
        %v8157 = vpack.c.b16 %v7737, %v7731
        %v8158 = vpack.c.b16 %v7744, %v7738
        %v8159 = vpack.c.b16 %v7745, %v7739
        %v8160 = vpack.c.b16 %v7746, %v7740
        %v8161 = vpack.c.b16 %v7747, %v7741
        %v8162 = vpack.c.b16 %v7748, %v7742
        %v8163 = vpack.c.b16 %v7749, %v7743
        %v8164 = vpack.c.b16 %v7756, %v7750
        %v8165 = vpack.c.b16 %v7757, %v7751
        %v8166 = vpack.c.b16 %v7758, %v7752
        %v8167 = vpack.c.b16 %v7759, %v7753
        %v8168 = vpack.c.b16 %v7760, %v7754
        %v8169 = vpack.c.b16 %v7761, %v7755
        %v8170 = vpack.c.b16 %v7768, %v7762
        %v8171 = vpack.c.b16 %v7769, %v7763
        %v8172 = vpack.c.b16 %v7770, %v7764
        %v8173 = vpack.c.b16 %v7771, %v7765
        %v8174 = vpack.c.b16 %v7772, %v7766
        %v8175 = vpack.c.b16 %v7773, %v7767
        %v8176 = vpack.c.b16 %v7780, %v7774
        %v8177 = vpack.c.b16 %v7781, %v7775
        %v8178 = vpack.c.b16 %v7782, %v7776
        %v8179 = vpack.c.b16 %v7783, %v7777
        %v8180 = vpack.c.b16 %v7784, %v7778
        %v8181 = vpack.c.b16 %v7785, %v7779
        %v8182 = vpack.c.b16 %v7792, %v7786
        %v8183 = vpack.c.b16 %v7793, %v7787
        %v8184 = vpack.c.b16 %v7794, %v7788
        %v8185 = vpack.c.b16 %v7795, %v7789
        %v8186 = vpack.c.b16 %v7796, %v7790
        %v8187 = vpack.c.b16 %v7797, %v7791
        %v8188 = vpack.c.b16 %v7804, %v7798
        %v8189 = vpack.c.b16 %v7805, %v7799
        %v8190 = vpack.c.b16 %v7806, %v7800
        %v8191 = vpack.c.b16 %v7807, %v7801
        %v8192 = vpack.c.b16 %v7808, %v7802
        %v8193 = vpack.c.b16 %v7809, %v7803
        %v8194 = vpack.c.b16 %v7816, %v7810
        %v8195 = vpack.c.b16 %v7817, %v7811
        %v8196 = vpack.c.b16 %v7818, %v7812
        %v8197 = vpack.c.b16 %v7819, %v7813
        %v8198 = vpack.c.b16 %v7820, %v7814
        %v8199 = vpack.c.b16 %v7821, %v7815
        %v8200 = vpack.c.b16 %v7828, %v7822
        %v8201 = vpack.c.b16 %v7829, %v7823
        %v8202 = vpack.c.b16 %v7830, %v7824
        %v8203 = vpack.c.b16 %v7831, %v7825
        %v8204 = vpack.c.b16 %v7832, %v7826
        %v8205 = vpack.c.b16 %v7833, %v7827
        %v8206 = vpack.c.b16 %v7840, %v7834
        %v8207 = vpack.c.b16 %v7841, %v7835
        %v8208 = vpack.c.b16 %v7842, %v7836
        %v8209 = vpack.c.b16 %v7843, %v7837
        %v8210 = vpack.c.b16 %v7844, %v7838
        %v8211 = vpack.c.b16 %v7845, %v7839
        %v8212 = vpack.c.b16 %v7852, %v7846
        %v8213 = vpack.c.b16 %v7853, %v7847
        %v8214 = vpack.c.b16 %v7854, %v7848
        %v8215 = vpack.c.b16 %v7855, %v7849
        %v8216 = vpack.c.b16 %v7856, %v7850
        %v8217 = vpack.c.b16 %v7857, %v7851
        %v8218 = vpack.c.b16 %v7864, %v7858
        %v8219 = vpack.c.b16 %v7865, %v7859
        %v8220 = vpack.c.b16 %v7866, %v7860
        %v8221 = vpack.c.b16 %v7867, %v7861
        %v8222 = vpack.c.b16 %v7868, %v7862
        %v8223 = vpack.c.b16 %v7869, %v7863
        %v8224 = vpack.c.b16 %v7876, %v7870
        %v8225 = vpack.c.b16 %v7877, %v7871
        %v8226 = vpack.c.b16 %v7878, %v7872
        %v8227 = vpack.c.b16 %v7879, %v7873
        %v8228 = vpack.c.b16 %v7880, %v7874
        %v8229 = vpack.c.b16 %v7881, %v7875
        %v8230 = vpack.c.b16 %v7888, %v7882
        %v8231 = vpack.c.b16 %v7889, %v7883
        %v8232 = vpack.c.b16 %v7890, %v7884
        %v8233 = vpack.c.b16 %v7891, %v7885
        %v8234 = vpack.c.b16 %v7892, %v7886
        %v8235 = vpack.c.b16 %v7893, %v7887
        %v8236 = vpack.c.b16 %v7900, %v7894
        %v8237 = vpack.c.b16 %v7901, %v7895
        %v8238 = vpack.c.b16 %v7902, %v7896
        %v8239 = vpack.c.b16 %v7903, %v7897
        %v8240 = vpack.c.b16 %v7904, %v7898
        %v8241 = vpack.c.b16 %v7905, %v7899
        %v8242 = vpack.c.b16 %v7912, %v7906
        %v8243 = vpack.c.b16 %v7913, %v7907
        %v8244 = vpack.c.b16 %v7914, %v7908
        %v8245 = vpack.c.b16 %v7915, %v7909
        %v8246 = vpack.c.b16 %v7916, %v7910
        %v8247 = vpack.c.b16 %v7917, %v7911
        %v8248 = vpack.c.b16 %v7924, %v7918
        %v8249 = vpack.c.b16 %v7925, %v7919
        %v8250 = vpack.c.b16 %v7926, %v7920
        %v8251 = vpack.c.b16 %v7927, %v7921
        %v8252 = vpack.c.b16 %v7928, %v7922
        %v8253 = vpack.c.b16 %v7929, %v7923
        %v8254 = vpack.c.b16 %v7936, %v7930
        %v8255 = vpack.c.b16 %v7937, %v7931
        %v8256 = vpack.c.b16 %v7938, %v7932
        %v8257 = vpack.c.b16 %v7939, %v7933
        %v8258 = vpack.c.b16 %v7940, %v7934
        %v8259 = vpack.c.b16 %v7941, %v7935
        %v8260 = vpack.c.b16 %v7948, %v7942
        %v8261 = vpack.c.b16 %v7949, %v7943
        %v8262 = vpack.c.b16 %v7950, %v7944
        %v8263 = vpack.c.b16 %v7951, %v7945
        %v8264 = vpack.c.b16 %v7952, %v7946
        %v8265 = vpack.c.b16 %v7953, %v7947
        %v8266 = vpack.c.b16 %v7960, %v7954
        %v8267 = vpack.c.b16 %v7961, %v7955
        %v8268 = vpack.c.b16 %v7962, %v7956
        %v8269 = vpack.c.b16 %v7963, %v7957
        %v8270 = vpack.c.b16 %v7964, %v7958
        %v8271 = vpack.c.b16 %v7965, %v7959
        %v8272 = vpack.c.b16 %v7972, %v7966
        %v8273 = vpack.c.b16 %v7973, %v7967
        %v8274 = vpack.c.b16 %v7974, %v7968
        %v8275 = vpack.c.b16 %v7975, %v7969
        %v8276 = vpack.c.b16 %v7976, %v7970
        %v8277 = vpack.c.b16 %v7977, %v7971
        %v8278 = vpack.c.b16 %v7984, %v7978
        %v8279 = vpack.c.b16 %v7985, %v7979
        %v8280 = vpack.c.b16 %v7986, %v7980
        %v8281 = vpack.c.b16 %v7987, %v7981
        %v8282 = vpack.c.b16 %v7988, %v7982
        %v8283 = vpack.c.b16 %v7989, %v7983
        %v8284 = vpack.c.b16 %v7996, %v7990
        %v8285 = vpack.c.b16 %v7997, %v7991
        %v8286 = vpack.c.b16 %v7998, %v7992
        %v8287 = vpack.c.b16 %v7999, %v7993
        %v8288 = vpack.c.b16 %v8000, %v7994
        %v8289 = vpack.c.b16 %v8001, %v7995
        %8578 = vmatprep.subr.bf16.mxu0 %v8045
        %8579 = vmatpush1.bf16.msra.mxu0 %v8044
        %8580 = vmatprep.subr.bf16.mxu0 %v8039
        %8581 = vmatpush1.bf16.msra.mxu0 %v8038
        %8582 = vmatprep.subr.bf16.mxu0 %v8033
        %8583 = vmatpush1.bf16.msra.mxu0 %v8032
        %8584 = vmatprep.subr.bf16.mxu0 %v8027
        %8585 = vmatpush1.bf16.msra.mxu0 %v8026
        %8586 = vmatprep.subr.bf16.mxu0 %v8021
        %8587 = vmatpush1.bf16.msra.mxu0 %v8020
        %8588 = vmatprep.subr.bf16.mxu0 %v8015
        %8589 = vmatpush1.bf16.msra.mxu0 %v8014
        %8590 = vmatprep.subr.bf16.mxu0 %v8009
        %8591 = vmatpush1.bf16.msra.mxu0 %v8008
        %8592 = vmatprep.subr.bf16.mxu0 %v8003
        %8593 = vmatpush1.bf16.msra.mxu0 %v8002
        %8594 = vmatprep.subr.bf16.mxu0 %v8093
        %8595 = vmatpush2.bf16.msra.mxu0 %v8092
        %8596 = vmatprep.subr.bf16.mxu0 %v8087
        %8597 = vmatpush2.bf16.msra.mxu0 %v8086
        %8598 = vmatprep.subr.bf16.mxu0 %v8081
        %8599 = vmatpush2.bf16.msra.mxu0 %v8080
        %8600 = vmatprep.subr.bf16.mxu0 %v8075
        %8601 = vmatpush2.bf16.msra.mxu0 %v8074
        %8602 = vmatprep.subr.bf16.mxu0 %v8069
        %8603 = vmatpush2.bf16.msra.mxu0 %v8068
        %8604 = vmatprep.subr.bf16.mxu0 %v8063
        %8605 = vmatpush2.bf16.msra.mxu0 %v8062
        %8606 = vmatprep.subr.bf16.mxu0 %v8057
        %8607 = vmatpush2.bf16.msra.mxu0 %v8056
        %8608 = vmatprep.subr.bf16.mxu0 %v8051
        %8609 = vmatpush2.bf16.msra.mxu0 %v8050
        %8610 = vmatprep.mubr.bf16.mxu0 %v6845
        %8611 = vmatmul.mubr.bf16.gmra.mxu0 %v6844
        %v8612 = vpop.f32.mrf.mxu0
        %v8613 = vadd.f32 0.0, %v8612
        %v8614 = vpop.f32.mrf.mxu0
        %v8615 = vadd.f32 0.0, %v8614
        %v8616 = vpop.f32.mrf.mxu0
        %v8617 = vpop.f32.mrf.mxu0
        %8618 = vdwg.mxu0
        %8619 = vmatprep.subr.bf16.mxu0 %v8141
        %8620 = vmatpush1.bf16.msra.mxu0 %v8140
        %8621 = vmatprep.subr.bf16.mxu0 %v8135
        %8622 = vmatpush1.bf16.msra.mxu0 %v8134
        %8623 = vmatprep.subr.bf16.mxu0 %v8129
        %8624 = vmatpush1.bf16.msra.mxu0 %v8128
        %8625 = vmatprep.subr.bf16.mxu0 %v8123
        %8626 = vmatpush1.bf16.msra.mxu0 %v8122
        %8627 = vmatprep.subr.bf16.mxu0 %v8117
        %8628 = vmatpush1.bf16.msra.mxu0 %v8116
        %8629 = vmatprep.subr.bf16.mxu0 %v8111
        %8630 = vmatpush1.bf16.msra.mxu0 %v8110
        %8631 = vmatprep.subr.bf16.mxu0 %v8105
        %8632 = vmatpush1.bf16.msra.mxu0 %v8104
        %8633 = vmatprep.subr.bf16.mxu0 %v8099
        %8634 = vmatpush1.bf16.msra.mxu0 %v8098
        %8635 = vmatprep.subr.bf16.mxu0 %v8189
        %8636 = vmatpush2.bf16.msra.mxu0 %v8188
        %8637 = vmatprep.subr.bf16.mxu0 %v8183
        %8638 = vmatpush2.bf16.msra.mxu0 %v8182
        %8639 = vmatprep.subr.bf16.mxu0 %v8177
        %8640 = vmatpush2.bf16.msra.mxu0 %v8176
        %8641 = vmatprep.subr.bf16.mxu0 %v8171
        %8642 = vmatpush2.bf16.msra.mxu0 %v8170
        %8643 = vmatprep.subr.bf16.mxu0 %v8165
        %8644 = vmatpush2.bf16.msra.mxu0 %v8164
        %8645 = vmatprep.subr.bf16.mxu0 %v8159
        %8646 = vmatpush2.bf16.msra.mxu0 %v8158
        %8647 = vmatprep.subr.bf16.mxu0 %v8153
        %8648 = vmatpush2.bf16.msra.mxu0 %v8152
        %8649 = vmatprep.subr.bf16.mxu0 %v8147
        %8650 = vmatpush2.bf16.msra.mxu0 %v8146
        %8651 = vmatprep.mubr.bf16.mxu0 %v6847
        %8652 = vmatmul.mubr.bf16.gmra.mxu0 %v6846
        %v8653 = vpop.f32.mrf.mxu0
        %v8654 = vadd.f32 %v8613, %v8653
        %v8655 = vpop.f32.mrf.mxu0
        %v8656 = vadd.f32 %v8615, %v8655
        %v8657 = vpop.f32.mrf.mxu0
        %v8658 = vpop.f32.mrf.mxu0
        %8659 = vdwg.mxu0
        %8660 = vmatprep.subr.bf16.mxu0 %v8237
        %8661 = vmatpush1.bf16.msra.mxu0 %v8236
        %8662 = vmatprep.subr.bf16.mxu0 %v8231
        %8663 = vmatpush1.bf16.msra.mxu0 %v8230
        %8664 = vmatprep.subr.bf16.mxu0 %v8225
        %8665 = vmatpush1.bf16.msra.mxu0 %v8224
        %8666 = vmatprep.subr.bf16.mxu0 %v8219
        %8667 = vmatpush1.bf16.msra.mxu0 %v8218
        %8668 = vmatprep.subr.bf16.mxu0 %v8213
        %8669 = vmatpush1.bf16.msra.mxu0 %v8212
        %8670 = vmatprep.subr.bf16.mxu0 %v8207
        %8671 = vmatpush1.bf16.msra.mxu0 %v8206
        %8672 = vmatprep.subr.bf16.mxu0 %v8201
        %8673 = vmatpush1.bf16.msra.mxu0 %v8200
        %8674 = vmatprep.subr.bf16.mxu0 %v8195
        %8675 = vmatpush1.bf16.msra.mxu0 %v8194
        %8676 = vmatprep.subr.bf16.mxu0 %v8285
        %8677 = vmatpush2.bf16.msra.mxu0 %v8284
        %8678 = vmatprep.subr.bf16.mxu0 %v8279
        %8679 = vmatpush2.bf16.msra.mxu0 %v8278
        %8680 = vmatprep.subr.bf16.mxu0 %v8273
        %8681 = vmatpush2.bf16.msra.mxu0 %v8272
        %8682 = vmatprep.subr.bf16.mxu0 %v8267
        %8683 = vmatpush2.bf16.msra.mxu0 %v8266
        %8684 = vmatprep.subr.bf16.mxu0 %v8261
        %8685 = vmatpush2.bf16.msra.mxu0 %v8260
        %8686 = vmatprep.subr.bf16.mxu0 %v8255
        %8687 = vmatpush2.bf16.msra.mxu0 %v8254
        %8688 = vmatprep.subr.bf16.mxu0 %v8249
        %8689 = vmatpush2.bf16.msra.mxu0 %v8248
        %8690 = vmatprep.subr.bf16.mxu0 %v8243
        %8691 = vmatpush2.bf16.msra.mxu0 %v8242
        %8692 = vmatprep.mubr.bf16.mxu0 %v6849
        %8693 = vmatmul.mubr.bf16.gmra.mxu0 %v6848
        %v8694 = vpop.f32.mrf.mxu0
        %v8695 = vadd.f32 %v8654, %v8694
        %v8696 = vpop.f32.mrf.mxu0
        %v8697 = vadd.f32 %v8656, %v8696
        %v8698 = vpop.f32.mrf.mxu0
        %v8699 = vpop.f32.mrf.mxu0
        %8700 = vdwg.mxu0
        %8701 = vmatprep.subr.bf16.mxu0 %v8047
        %8702 = vmatpush1.bf16.msra.mxu0 %v8046
        %8703 = vmatprep.subr.bf16.mxu0 %v8041
        %8704 = vmatpush1.bf16.msra.mxu0 %v8040
        %8705 = vmatprep.subr.bf16.mxu0 %v8035
        %8706 = vmatpush1.bf16.msra.mxu0 %v8034
        %8707 = vmatprep.subr.bf16.mxu0 %v8029
        %8708 = vmatpush1.bf16.msra.mxu0 %v8028
        %8709 = vmatprep.subr.bf16.mxu0 %v8023
        %8710 = vmatpush1.bf16.msra.mxu0 %v8022
        %8711 = vmatprep.subr.bf16.mxu0 %v8017
        %8712 = vmatpush1.bf16.msra.mxu0 %v8016
        %8713 = vmatprep.subr.bf16.mxu0 %v8011
        %8714 = vmatpush1.bf16.msra.mxu0 %v8010
        %8715 = vmatprep.subr.bf16.mxu0 %v8005
        %8716 = vmatpush1.bf16.msra.mxu0 %v8004
        %8717 = vmatprep.subr.bf16.mxu0 %v8095
        %8718 = vmatpush2.bf16.msra.mxu0 %v8094
        %8719 = vmatprep.subr.bf16.mxu0 %v8089
        %8720 = vmatpush2.bf16.msra.mxu0 %v8088
        %8721 = vmatprep.subr.bf16.mxu0 %v8083
        %8722 = vmatpush2.bf16.msra.mxu0 %v8082
        %8723 = vmatprep.subr.bf16.mxu0 %v8077
        %8724 = vmatpush2.bf16.msra.mxu0 %v8076
        %8725 = vmatprep.subr.bf16.mxu0 %v8071
        %8726 = vmatpush2.bf16.msra.mxu0 %v8070
        %8727 = vmatprep.subr.bf16.mxu0 %v8065
        %8728 = vmatpush2.bf16.msra.mxu0 %v8064
        %8729 = vmatprep.subr.bf16.mxu0 %v8059
        %8730 = vmatpush2.bf16.msra.mxu0 %v8058
        %8731 = vmatprep.subr.bf16.mxu0 %v8053
        %8732 = vmatpush2.bf16.msra.mxu0 %v8052
        %8733 = vmatprep.mubr.bf16.mxu0 %v6845
        %8734 = vmatmul.mubr.bf16.gmra.mxu0 %v6844
        %v8735 = vpop.f32.mrf.mxu0
        %v8736 = vadd.f32 0.0, %v8735
        %v8737 = vpop.f32.mrf.mxu0
        %v8738 = vadd.f32 0.0, %v8737
        %v8739 = vpop.f32.mrf.mxu0
        %v8740 = vpop.f32.mrf.mxu0
        %8741 = vdwg.mxu0
        %8742 = vmatprep.subr.bf16.mxu0 %v8143
        %8743 = vmatpush1.bf16.msra.mxu0 %v8142
        %8744 = vmatprep.subr.bf16.mxu0 %v8137
        %8745 = vmatpush1.bf16.msra.mxu0 %v8136
        %8746 = vmatprep.subr.bf16.mxu0 %v8131
        %8747 = vmatpush1.bf16.msra.mxu0 %v8130
        %8748 = vmatprep.subr.bf16.mxu0 %v8125
        %8749 = vmatpush1.bf16.msra.mxu0 %v8124
        %8750 = vmatprep.subr.bf16.mxu0 %v8119
        %8751 = vmatpush1.bf16.msra.mxu0 %v8118
        %8752 = vmatprep.subr.bf16.mxu0 %v8113
        %8753 = vmatpush1.bf16.msra.mxu0 %v8112
        %8754 = vmatprep.subr.bf16.mxu0 %v8107
        %8755 = vmatpush1.bf16.msra.mxu0 %v8106
        %8756 = vmatprep.subr.bf16.mxu0 %v8101
        %8757 = vmatpush1.bf16.msra.mxu0 %v8100
        %8758 = vmatprep.subr.bf16.mxu0 %v8191
        %8759 = vmatpush2.bf16.msra.mxu0 %v8190
        %8760 = vmatprep.subr.bf16.mxu0 %v8185
        %8761 = vmatpush2.bf16.msra.mxu0 %v8184
        %8762 = vmatprep.subr.bf16.mxu0 %v8179
        %8763 = vmatpush2.bf16.msra.mxu0 %v8178
        %8764 = vmatprep.subr.bf16.mxu0 %v8173
        %8765 = vmatpush2.bf16.msra.mxu0 %v8172
        %8766 = vmatprep.subr.bf16.mxu0 %v8167
        %8767 = vmatpush2.bf16.msra.mxu0 %v8166
        %8768 = vmatprep.subr.bf16.mxu0 %v8161
        %8769 = vmatpush2.bf16.msra.mxu0 %v8160
        %8770 = vmatprep.subr.bf16.mxu0 %v8155
        %8771 = vmatpush2.bf16.msra.mxu0 %v8154
        %8772 = vmatprep.subr.bf16.mxu0 %v8149
        %8773 = vmatpush2.bf16.msra.mxu0 %v8148
        %8774 = vmatprep.mubr.bf16.mxu0 %v6847
        %8775 = vmatmul.mubr.bf16.gmra.mxu0 %v6846
        %v8776 = vpop.f32.mrf.mxu0
        %v8777 = vadd.f32 %v8736, %v8776
        %v8778 = vpop.f32.mrf.mxu0
        %v8779 = vadd.f32 %v8738, %v8778
        %v8780 = vpop.f32.mrf.mxu0
        %v8781 = vpop.f32.mrf.mxu0
        %8782 = vdwg.mxu0
        %8783 = vmatprep.subr.bf16.mxu0 %v8239
        %8784 = vmatpush1.bf16.msra.mxu0 %v8238
        %8785 = vmatprep.subr.bf16.mxu0 %v8233
        %8786 = vmatpush1.bf16.msra.mxu0 %v8232
        %8787 = vmatprep.subr.bf16.mxu0 %v8227
        %8788 = vmatpush1.bf16.msra.mxu0 %v8226
        %8789 = vmatprep.subr.bf16.mxu0 %v8221
        %8790 = vmatpush1.bf16.msra.mxu0 %v8220
        %8791 = vmatprep.subr.bf16.mxu0 %v8215
        %8792 = vmatpush1.bf16.msra.mxu0 %v8214
        %8793 = vmatprep.subr.bf16.mxu0 %v8209
        %8794 = vmatpush1.bf16.msra.mxu0 %v8208
        %8795 = vmatprep.subr.bf16.mxu0 %v8203
        %8796 = vmatpush1.bf16.msra.mxu0 %v8202
        %8797 = vmatprep.subr.bf16.mxu0 %v8197
        %8798 = vmatpush1.bf16.msra.mxu0 %v8196
        %8799 = vmatprep.subr.bf16.mxu0 %v8287
        %8800 = vmatpush2.bf16.msra.mxu0 %v8286
        %8801 = vmatprep.subr.bf16.mxu0 %v8281
        %8802 = vmatpush2.bf16.msra.mxu0 %v8280
        %8803 = vmatprep.subr.bf16.mxu0 %v8275
        %8804 = vmatpush2.bf16.msra.mxu0 %v8274
        %8805 = vmatprep.subr.bf16.mxu0 %v8269
        %8806 = vmatpush2.bf16.msra.mxu0 %v8268
        %8807 = vmatprep.subr.bf16.mxu0 %v8263
        %8808 = vmatpush2.bf16.msra.mxu0 %v8262
        %8809 = vmatprep.subr.bf16.mxu0 %v8257
        %8810 = vmatpush2.bf16.msra.mxu0 %v8256
        %8811 = vmatprep.subr.bf16.mxu0 %v8251
        %8812 = vmatpush2.bf16.msra.mxu0 %v8250
        %8813 = vmatprep.subr.bf16.mxu0 %v8245
        %8814 = vmatpush2.bf16.msra.mxu0 %v8244
        %8815 = vmatprep.mubr.bf16.mxu0 %v6849
        %8816 = vmatmul.mubr.bf16.gmra.mxu0 %v6848
        %v8817 = vpop.f32.mrf.mxu0
        %v8818 = vadd.f32 %v8777, %v8817
        %v8819 = vpop.f32.mrf.mxu0
        %v8820 = vadd.f32 %v8779, %v8819
        %v8821 = vpop.f32.mrf.mxu0
        %v8822 = vpop.f32.mrf.mxu0
        %8823 = vdwg.mxu0
        %8824 = vmatprep.subr.bf16.mxu0 %v8049
        %8825 = vmatpush1.bf16.msra.mxu0 %v8048
        %8826 = vmatprep.subr.bf16.mxu0 %v8043
        %8827 = vmatpush1.bf16.msra.mxu0 %v8042
        %8828 = vmatprep.subr.bf16.mxu0 %v8037
        %8829 = vmatpush1.bf16.msra.mxu0 %v8036
        %8830 = vmatprep.subr.bf16.mxu0 %v8031
        %8831 = vmatpush1.bf16.msra.mxu0 %v8030
        %8832 = vmatprep.subr.bf16.mxu0 %v8025
        %8833 = vmatpush1.bf16.msra.mxu0 %v8024
        %8834 = vmatprep.subr.bf16.mxu0 %v8019
        %8835 = vmatpush1.bf16.msra.mxu0 %v8018
        %8836 = vmatprep.subr.bf16.mxu0 %v8013
        %8837 = vmatpush1.bf16.msra.mxu0 %v8012
        %8838 = vmatprep.subr.bf16.mxu0 %v8007
        %8839 = vmatpush1.bf16.msra.mxu0 %v8006
        %8840 = vmatprep.subr.bf16.mxu0 %v8097
        %8841 = vmatpush2.bf16.msra.mxu0 %v8096
        %8842 = vmatprep.subr.bf16.mxu0 %v8091
        %8843 = vmatpush2.bf16.msra.mxu0 %v8090
        %8844 = vmatprep.subr.bf16.mxu0 %v8085
        %8845 = vmatpush2.bf16.msra.mxu0 %v8084
        %8846 = vmatprep.subr.bf16.mxu0 %v8079
        %8847 = vmatpush2.bf16.msra.mxu0 %v8078
        %8848 = vmatprep.subr.bf16.mxu0 %v8073
        %8849 = vmatpush2.bf16.msra.mxu0 %v8072
        %8850 = vmatprep.subr.bf16.mxu0 %v8067
        %8851 = vmatpush2.bf16.msra.mxu0 %v8066
        %8852 = vmatprep.subr.bf16.mxu0 %v8061
        %8853 = vmatpush2.bf16.msra.mxu0 %v8060
        %8854 = vmatprep.subr.bf16.mxu0 %v8055
        %8855 = vmatpush2.bf16.msra.mxu0 %v8054
        %8856 = vmatprep.mubr.bf16.mxu0 %v6845
        %8857 = vmatmul.mubr.bf16.gmra.mxu0 %v6844
        %v8858 = vpop.f32.mrf.mxu0
        %v8859 = vadd.f32 0.0, %v8858
        %v8860 = vpop.f32.mrf.mxu0
        %v8861 = vadd.f32 0.0, %v8860
        %v8862 = vpop.f32.mrf.mxu0
        %v8863 = vpop.f32.mrf.mxu0
        %8864 = vdwg.mxu0
        %8865 = vmatprep.subr.bf16.mxu0 %v8145
        %8866 = vmatpush1.bf16.msra.mxu0 %v8144
        %8867 = vmatprep.subr.bf16.mxu0 %v8139
        %8868 = vmatpush1.bf16.msra.mxu0 %v8138
        %8869 = vmatprep.subr.bf16.mxu0 %v8133
        %8870 = vmatpush1.bf16.msra.mxu0 %v8132
        %8871 = vmatprep.subr.bf16.mxu0 %v8127
        %8872 = vmatpush1.bf16.msra.mxu0 %v8126
        %8873 = vmatprep.subr.bf16.mxu0 %v8121
        %8874 = vmatpush1.bf16.msra.mxu0 %v8120
        %8875 = vmatprep.subr.bf16.mxu0 %v8115
        %8876 = vmatpush1.bf16.msra.mxu0 %v8114
        %8877 = vmatprep.subr.bf16.mxu0 %v8109
        %8878 = vmatpush1.bf16.msra.mxu0 %v8108
        %8879 = vmatprep.subr.bf16.mxu0 %v8103
        %8880 = vmatpush1.bf16.msra.mxu0 %v8102
        %8881 = vmatprep.subr.bf16.mxu0 %v8193
        %8882 = vmatpush2.bf16.msra.mxu0 %v8192
        %8883 = vmatprep.subr.bf16.mxu0 %v8187
        %8884 = vmatpush2.bf16.msra.mxu0 %v8186
        %8885 = vmatprep.subr.bf16.mxu0 %v8181
        %8886 = vmatpush2.bf16.msra.mxu0 %v8180
        %8887 = vmatprep.subr.bf16.mxu0 %v8175
        %8888 = vmatpush2.bf16.msra.mxu0 %v8174
        %8889 = vmatprep.subr.bf16.mxu0 %v8169
        %8890 = vmatpush2.bf16.msra.mxu0 %v8168
        %8891 = vmatprep.subr.bf16.mxu0 %v8163
        %8892 = vmatpush2.bf16.msra.mxu0 %v8162
        %8893 = vmatprep.subr.bf16.mxu0 %v8157
        %8894 = vmatpush2.bf16.msra.mxu0 %v8156
        %8895 = vmatprep.subr.bf16.mxu0 %v8151
        %8896 = vmatpush2.bf16.msra.mxu0 %v8150
        %8897 = vmatprep.mubr.bf16.mxu0 %v6847
        %8898 = vmatmul.mubr.bf16.gmra.mxu0 %v6846
        %v8899 = vpop.f32.mrf.mxu0
        %v8900 = vadd.f32 %v8859, %v8899
        %v8901 = vpop.f32.mrf.mxu0
        %v8902 = vadd.f32 %v8861, %v8901
        %v8903 = vpop.f32.mrf.mxu0
        %v8904 = vpop.f32.mrf.mxu0
        %8905 = vdwg.mxu0
        %8906 = vmatprep.subr.bf16.mxu0 %v8241
        %8907 = vmatpush1.bf16.msra.mxu0 %v8240
        %8908 = vmatprep.subr.bf16.mxu0 %v8235
        %8909 = vmatpush1.bf16.msra.mxu0 %v8234
        %8910 = vmatprep.subr.bf16.mxu0 %v8229
        %8911 = vmatpush1.bf16.msra.mxu0 %v8228
        %8912 = vmatprep.subr.bf16.mxu0 %v8223
        %8913 = vmatpush1.bf16.msra.mxu0 %v8222
        %8914 = vmatprep.subr.bf16.mxu0 %v8217
        %8915 = vmatpush1.bf16.msra.mxu0 %v8216
        %8916 = vmatprep.subr.bf16.mxu0 %v8211
        %8917 = vmatpush1.bf16.msra.mxu0 %v8210
        %8918 = vmatprep.subr.bf16.mxu0 %v8205
        %8919 = vmatpush1.bf16.msra.mxu0 %v8204
        %8920 = vmatprep.subr.bf16.mxu0 %v8199
        %8921 = vmatpush1.bf16.msra.mxu0 %v8198
        %8922 = vmatprep.subr.bf16.mxu0 %v8289
        %8923 = vmatpush2.bf16.msra.mxu0 %v8288
        %8924 = vmatprep.subr.bf16.mxu0 %v8283
        %8925 = vmatpush2.bf16.msra.mxu0 %v8282
        %8926 = vmatprep.subr.bf16.mxu0 %v8277
        %8927 = vmatpush2.bf16.msra.mxu0 %v8276
        %8928 = vmatprep.subr.bf16.mxu0 %v8271
        %8929 = vmatpush2.bf16.msra.mxu0 %v8270
        %8930 = vmatprep.subr.bf16.mxu0 %v8265
        %8931 = vmatpush2.bf16.msra.mxu0 %v8264
        %8932 = vmatprep.subr.bf16.mxu0 %v8259
        %8933 = vmatpush2.bf16.msra.mxu0 %v8258
        %8934 = vmatprep.subr.bf16.mxu0 %v8253
        %8935 = vmatpush2.bf16.msra.mxu0 %v8252
        %8936 = vmatprep.subr.bf16.mxu0 %v8247
        %8937 = vmatpush2.bf16.msra.mxu0 %v8246
        %8938 = vmatprep.mubr.bf16.mxu0 %v6849
        %8939 = vmatmul.mubr.bf16.gmra.mxu0 %v6848
        %v8940 = vpop.f32.mrf.mxu0
        %v8941 = vadd.f32 %v8900, %v8940
        %v8942 = vpop.f32.mrf.mxu0
        %v8943 = vadd.f32 %v8902, %v8942
        %v8944 = vpop.f32.mrf.mxu0
        %v8945 = vpop.f32.mrf.mxu0
        %8946 = vdwg.mxu0
        %v8953 = vcombine.low %v8695, %v8697
        %v8954 = vcombine.low %v8818, %v8820
        %v8956 = vunpack.c.l.s4 1983009808
        %v8957 = vunpack.c.0.s8 %v8956
        %v8958 = vlaneseq
        %v8959 = vshrl.u32 %v8958, 7
        %v8960 = vsub.s32 %v8957, %v8959
        %v8961 = vrot.slane %v8953, %v8960
        %v8963 = vunpack.c.l.s4 1983009808
        %v8964 = vunpack.c.0.s8 %v8963
        %v8965 = vlaneseq
        %v8966 = vshrl.u32 %v8965, 7
        %v8967 = vsub.s32 %v8964, %v8966
        %v8968 = vrot.slane %v8954, %v8967
        %v8969 = vcombine.low %v8961, %v8968
        %v8970 = vcombine.low %v8941, %v8943
        %v8972 = vunpack.c.l.s4 1983009808
        %v8973 = vunpack.c.0.s8 %v8972
        %v8974 = vlaneseq
        %v8975 = vshrl.u32 %v8974, 7
        %v8976 = vsub.s32 %v8973, %v8975
        %v8977 = vrot.slane %v8970, %v8976
        %v8980 = vadd.f32 %v6842, %v8969
        %v8981 = vadd.f32 %v6843, %v8977
        %8982 = vst [vmem:[#allocation3] sm:$0xff] %v8980
        %8983 = vst [vmem:[#allocation3 + $0x8] sm:$0xf] %v8981
        %p8984 = scmp.eq.s32.totalorder %s37, 3
        // Predicated region
        $region157: #{tpu_custom_call.1} parent=87 // pred_check
          %p8985 = pneg %p8984
        $region158: #{tpu_custom_call.1} parent=87 // pred_check_branch
          %8987 = sbr.rel (%p8985) target = $region160
        $region159: #{tpu_custom_call.1} parent=87 // pred_region
          %v8988 = vld [vmem:[#allocation3] sm:$0xff]
          %v8989 = vld [vmem:[#allocation3 + $0x8] sm:$0xf]
          %v8990 = vld [vmem:[#allocation22] sm:$0x3f]
          %v8992 = vlaneseq
          %v8993 = vshrl.u32 %v8992, 7
          %v8994 = vsub.s32 0, %v8993
          %v8995 = vrot.slane %v8990, %v8994
          %v8996 = vlaneseq
          %v8997 = vshrl.u32 %v8996, 7
          %v8998 = vsub.s32 1, %v8997
          %v8999 = vrot.slane %v8990, %v8998
          %v9000 = vlaneseq
          %v9001 = vshrl.u32 %v9000, 7
          %v9002 = vsub.s32 2, %v9001
          %v9003 = vrot.slane %v8990, %v9002
          %v9004 = vlaneseq
          %v9005 = vshrl.u32 %v9004, 7
          %v9006 = vsub.s32 3, %v9005
          %v9007 = vrot.slane %v8990, %v9006
          %v9008 = vlaneseq
          %v9009 = vshrl.u32 %v9008, 7
          %v9010 = vsub.s32 4, %v9009
          %v9011 = vrot.slane %v8990, %v9010
          %v9012 = vlaneseq
          %v9013 = vshrl.u32 %v9012, 7
          %v9014 = vsub.s32 5, %v9013
          %v9015 = vrot.slane %v8990, %v9014
          %v9016 = vcombine.low %v8995, %v8999
          %v9017 = vcombine.low %v9003, %v9007
          %v9019 = vunpack.c.l.s4 1983009808
          %v9020 = vunpack.c.0.s8 %v9019
          %v9021 = vlaneseq
          %v9022 = vshrl.u32 %v9021, 7
          %v9023 = vsub.s32 %v9020, %v9022
          %v9024 = vrot.slane %v9016, %v9023
          %v9026 = vunpack.c.l.s4 1983009808
          %v9027 = vunpack.c.0.s8 %v9026
          %v9028 = vlaneseq
          %v9029 = vshrl.u32 %v9028, 7
          %v9030 = vsub.s32 %v9027, %v9029
          %v9031 = vrot.slane %v9017, %v9030
          %v9032 = vcombine.low %v9024, %v9031
          %v9033 = vcombine.low %v9011, %v9015
          %v9035 = vunpack.c.l.s4 1983009808
          %v9036 = vunpack.c.0.s8 %v9035
          %v9037 = vlaneseq
          %v9038 = vshrl.u32 %v9037, 7
          %v9039 = vsub.s32 %v9036, %v9038
          %v9040 = vrot.slane %v9033, %v9039
          %v9043 = vadd.f32 %v8988, %v9032
          %v9044 = vadd.f32 %v8989, %v9040
          %v9045 = vld [vmem:[#allocation2] sm:$0xff]
          %v9046 = vld [vmem:[#allocation2 + $0x8] sm:$0xf]
          %v9047 = vadd.f32 %v9043, %v9045
          %v9048 = vadd.f32 %v9044, %v9046
          %v9049 = vld [vmem:[#allocation23] sm:$0x3f]
          %v9050 = vld [vmem:[#allocation24] sm:$0x3f]
          %v9053 = vcombine.high %v9047, %v9047
          %v9055 = vunpack.c.l.s4 1983009808
          %v9056 = vunpack.c.0.s8 %v9055
          %v9057 = vlaneseq
          %v9058 = vshrl.u32 %v9057, 7
          %v9059 = vsub.s32 %v9056, %v9058
          %v9060 = vrot.slane %v9047, %v9059
          %v9062 = vunpack.c.l.s4 1983009808
          %v9063 = vunpack.c.0.s8 %v9062
          %v9064 = vlaneseq
          %v9065 = vshrl.u32 %v9064, 7
          %v9066 = vsub.s32 %v9063, %v9065
          %v9067 = vrot.slane %v9053, %v9066
          %v9068 = vcombine.high %v9060, %v9060
          %v9069 = vcombine.high %v9067, %v9067
          %v9071 = vunpack.c.l.s4 1983009808
          %v9072 = vunpack.c.0.s8 %v9071
          %v9073 = vlaneseq
          %v9074 = vshrl.u32 %v9073, 7
          %v9075 = vsub.s32 %v9072, %v9074
          %v9076 = vrot.slane %v9048, %v9075
          %v9077 = vcombine.high %v9076, %v9076
          %vm9084 = vcmask 1041408
          %v9085 = vsel %vm9084, %v9060, 0.0
          %v9086 = vsel %vm9084, %v9068, 0.0
          %v9087 = vadd.f32 %v9085, %v9086
          %v9088 = vsel %vm9084, %v9067, 0.0
          %v9089 = vadd.f32 %v9087, %v9088
          %v9090 = vsel %vm9084, %v9069, 0.0
          %v9091 = vadd.f32 %v9089, %v9090
          %v9092 = vsel %vm9084, %v9076, 0.0
          %v9093 = vadd.f32 %v9091, %v9092
          %v9094 = vsel %vm9084, %v9077, 0.0
          %v9095 = vadd.f32 %v9093, %v9094
          %9096 = vadd.xlane.f32.xlu0 %v9095
          %v9097 = vpop.xlane.xlu0 %9096
          %v9098 = vrcp.pop 768.0
          %v9099 = vmul.f32 %v9097, %v9098
          %v9102 = vunpack.c.l.s4 269488144
          %v9103 = vunpack.c.0.s8 %v9102
          %v9104 = vlaneseq
          %v9105 = vshrl.u32 %v9104, 7
          %v9106 = vsub.s32 %v9103, %v9105
          %v9107 = vrot.slane %v9099, %v9106
          %v9109 = vsub.f32 %v9047, %v9107
          %v9110 = vsub.f32 %v9048, %v9107
          %v9111 = vmul.f32 %v9109, %v9109
          %v9112 = vmul.f32 %v9110, %v9110
          %v9115 = vcombine.high %v9111, %v9111
          %v9117 = vunpack.c.l.s4 1983009808
          %v9118 = vunpack.c.0.s8 %v9117
          %v9119 = vlaneseq
          %v9120 = vshrl.u32 %v9119, 7
          %v9121 = vsub.s32 %v9118, %v9120
          %v9122 = vrot.slane %v9111, %v9121
          %v9124 = vunpack.c.l.s4 1983009808
          %v9125 = vunpack.c.0.s8 %v9124
          %v9126 = vlaneseq
          %v9127 = vshrl.u32 %v9126, 7
          %v9128 = vsub.s32 %v9125, %v9127
          %v9129 = vrot.slane %v9115, %v9128
          %v9130 = vcombine.high %v9122, %v9122
          %v9131 = vcombine.high %v9129, %v9129
          %v9133 = vunpack.c.l.s4 1983009808
          %v9134 = vunpack.c.0.s8 %v9133
          %v9135 = vlaneseq
          %v9136 = vshrl.u32 %v9135, 7
          %v9137 = vsub.s32 %v9134, %v9136
          %v9138 = vrot.slane %v9112, %v9137
          %v9139 = vcombine.high %v9138, %v9138
          %v9146 = vsel %vm9084, %v9122, 0.0
          %v9147 = vsel %vm9084, %v9130, 0.0
          %v9148 = vadd.f32 %v9146, %v9147
          %v9149 = vsel %vm9084, %v9129, 0.0
          %v9150 = vadd.f32 %v9148, %v9149
          %v9151 = vsel %vm9084, %v9131, 0.0
          %v9152 = vadd.f32 %v9150, %v9151
          %v9153 = vsel %vm9084, %v9138, 0.0
          %v9154 = vadd.f32 %v9152, %v9153
          %v9155 = vsel %vm9084, %v9139, 0.0
          %v9156 = vadd.f32 %v9154, %v9155
          %9157 = vadd.xlane.f32.xlu0 %v9156
          %v9158 = vpop.xlane.xlu0 %9157
          %v9159 = vmul.f32 %v9158, %v9098
          %v9160 = vadd.f32 %v9159, 1e-12
          %v9161 = vrsqrt.pop %v9160
          %v9164 = vunpack.c.l.s4 269488144
          %v9165 = vunpack.c.0.s8 %v9164
          %v9166 = vlaneseq
          %v9167 = vshrl.u32 %v9166, 7
          %v9168 = vsub.s32 %v9165, %v9167
          %v9169 = vrot.slane %v9161, %v9168
          %v9171 = vmul.f32 %v9109, %v9169
          %v9172 = vmul.f32 %v9110, %v9169
          %v9174 = vlaneseq
          %v9175 = vshrl.u32 %v9174, 7
          %v9176 = vsub.s32 0, %v9175
          %v9177 = vrot.slane %v9049, %v9176
          %v9178 = vlaneseq
          %v9179 = vshrl.u32 %v9178, 7
          %v9180 = vsub.s32 1, %v9179
          %v9181 = vrot.slane %v9049, %v9180
          %v9182 = vlaneseq
          %v9183 = vshrl.u32 %v9182, 7
          %v9184 = vsub.s32 2, %v9183
          %v9185 = vrot.slane %v9049, %v9184
          %v9186 = vlaneseq
          %v9187 = vshrl.u32 %v9186, 7
          %v9188 = vsub.s32 3, %v9187
          %v9189 = vrot.slane %v9049, %v9188
          %v9190 = vlaneseq
          %v9191 = vshrl.u32 %v9190, 7
          %v9192 = vsub.s32 4, %v9191
          %v9193 = vrot.slane %v9049, %v9192
          %v9194 = vlaneseq
          %v9195 = vshrl.u32 %v9194, 7
          %v9196 = vsub.s32 5, %v9195
          %v9197 = vrot.slane %v9049, %v9196
          %v9206 = vcombine.high %v9171, %v9171
          %v9208 = vunpack.c.l.s4 1983009808
          %v9209 = vunpack.c.0.s8 %v9208
          %v9210 = vlaneseq
          %v9211 = vshrl.u32 %v9210, 7
          %v9212 = vsub.s32 %v9209, %v9211
          %v9213 = vrot.slane %v9171, %v9212
          %v9215 = vunpack.c.l.s4 1983009808
          %v9216 = vunpack.c.0.s8 %v9215
          %v9217 = vlaneseq
          %v9218 = vshrl.u32 %v9217, 7
          %v9219 = vsub.s32 %v9216, %v9218
          %v9220 = vrot.slane %v9206, %v9219
          %v9221 = vcombine.high %v9213, %v9213
          %v9222 = vcombine.high %v9220, %v9220
          %v9224 = vunpack.c.l.s4 1983009808
          %v9225 = vunpack.c.0.s8 %v9224
          %v9226 = vlaneseq
          %v9227 = vshrl.u32 %v9226, 7
          %v9228 = vsub.s32 %v9225, %v9227
          %v9229 = vrot.slane %v9172, %v9228
          %v9230 = vcombine.high %v9229, %v9229
          %v9237 = vmul.f32 %v9177, %v9213
          %v9238 = vmul.f32 %v9181, %v9221
          %v9239 = vmul.f32 %v9185, %v9220
          %v9240 = vmul.f32 %v9189, %v9222
          %v9241 = vmul.f32 %v9193, %v9229
          %v9242 = vmul.f32 %v9197, %v9230
          %v9244 = vlaneseq
          %v9245 = vshrl.u32 %v9244, 7
          %v9246 = vsub.s32 0, %v9245
          %v9247 = vrot.slane %v9050, %v9246
          %v9248 = vlaneseq
          %v9249 = vshrl.u32 %v9248, 7
          %v9250 = vsub.s32 1, %v9249
          %v9251 = vrot.slane %v9050, %v9250
          %v9252 = vlaneseq
          %v9253 = vshrl.u32 %v9252, 7
          %v9254 = vsub.s32 2, %v9253
          %v9255 = vrot.slane %v9050, %v9254
          %v9256 = vlaneseq
          %v9257 = vshrl.u32 %v9256, 7
          %v9258 = vsub.s32 3, %v9257
          %v9259 = vrot.slane %v9050, %v9258
          %v9260 = vlaneseq
          %v9261 = vshrl.u32 %v9260, 7
          %v9262 = vsub.s32 4, %v9261
          %v9263 = vrot.slane %v9050, %v9262
          %v9264 = vlaneseq
          %v9265 = vshrl.u32 %v9264, 7
          %v9266 = vsub.s32 5, %v9265
          %v9267 = vrot.slane %v9050, %v9266
          %v9274 = vadd.f32 %v9237, %v9247
          %v9275 = vadd.f32 %v9238, %v9251
          %v9276 = vadd.f32 %v9239, %v9255
          %v9277 = vadd.f32 %v9240, %v9259
          %v9278 = vadd.f32 %v9241, %v9263
          %v9279 = vadd.f32 %v9242, %v9267
          %v9280 = vld [vmem:[#allocation25] sm:$0xff]
          %v9281 = vld [vmem:[#allocation25 + $0x8] sm:$0xff]
          %v9282 = vld [vmem:[#allocation25 + $0x10] sm:$0xff]
          %v9283 = vld [vmem:[#allocation25 + $0x18] sm:$0xff]
          %v9284 = vld [vmem:[#allocation25 + $0x20] sm:$0xff]
          %v9285 = vld [vmem:[#allocation25 + $0x28] sm:$0xff]
          %v9286 = vld [vmem:[#allocation25 + $0x30] sm:$0xff]
          %v9287 = vld [vmem:[#allocation25 + $0x38] sm:$0xff]
          %v9288 = vld [vmem:[#allocation25 + $0x40] sm:$0xff]
          %v9289 = vld [vmem:[#allocation25 + $0x48] sm:$0xff]
          %v9290 = vld [vmem:[#allocation25 + $0x50] sm:$0xff]
          %v9291 = vld [vmem:[#allocation25 + $0x58] sm:$0xff]
          %v9292 = vld [vmem:[#allocation25 + $0x60] sm:$0xff]
          %v9293 = vld [vmem:[#allocation25 + $0x68] sm:$0xff]
          %v9294 = vld [vmem:[#allocation25 + $0x70] sm:$0xff]
          %v9295 = vld [vmem:[#allocation25 + $0x78] sm:$0xff]
          %v9296 = vld [vmem:[#allocation25 + $0x80] sm:$0xff]
          %v9297 = vld [vmem:[#allocation25 + $0x88] sm:$0xff]
          %v9298 = vld [vmem:[#allocation25 + $0x90] sm:$0xff]
          %v9299 = vld [vmem:[#allocation25 + $0x98] sm:$0xff]
          %v9300 = vld [vmem:[#allocation25 + $0xa0] sm:$0xff]
          %v9301 = vld [vmem:[#allocation25 + $0xa8] sm:$0xff]
          %v9302 = vld [vmem:[#allocation25 + $0xb0] sm:$0xff]
          %v9303 = vld [vmem:[#allocation25 + $0xb8] sm:$0xff]
          %v9304 = vld [vmem:[#allocation25 + $0xc0] sm:$0xff]
          %v9305 = vld [vmem:[#allocation25 + $0xc8] sm:$0xff]
          %v9306 = vld [vmem:[#allocation25 + $0xd0] sm:$0xff]
          %v9307 = vld [vmem:[#allocation25 + $0xd8] sm:$0xff]
          %v9308 = vld [vmem:[#allocation25 + $0xe0] sm:$0xff]
          %v9309 = vld [vmem:[#allocation25 + $0xe8] sm:$0xff]
          %v9310 = vld [vmem:[#allocation25 + $0xf0] sm:$0xff]
          %v9311 = vld [vmem:[#allocation25 + $0xf8] sm:$0xff]
          %v9312 = vld [vmem:[#allocation25 + $0x100] sm:$0xff]
          %v9313 = vld [vmem:[#allocation25 + $0x108] sm:$0xff]
          %v9314 = vld [vmem:[#allocation25 + $0x110] sm:$0xff]
          %v9315 = vld [vmem:[#allocation25 + $0x118] sm:$0xff]
          %v9316 = vld [vmem:[#allocation25 + $0x120] sm:$0xff]
          %v9317 = vld [vmem:[#allocation25 + $0x128] sm:$0xff]
          %v9318 = vld [vmem:[#allocation25 + $0x130] sm:$0xff]
          %v9319 = vld [vmem:[#allocation25 + $0x138] sm:$0xff]
          %v9320 = vld [vmem:[#allocation25 + $0x140] sm:$0xff]
          %v9321 = vld [vmem:[#allocation25 + $0x148] sm:$0xff]
          %v9322 = vld [vmem:[#allocation25 + $0x150] sm:$0xff]
          %v9323 = vld [vmem:[#allocation25 + $0x158] sm:$0xff]
          %v9324 = vld [vmem:[#allocation25 + $0x160] sm:$0xff]
          %v9325 = vld [vmem:[#allocation25 + $0x168] sm:$0xff]
          %v9326 = vld [vmem:[#allocation25 + $0x170] sm:$0xff]
          %v9327 = vld [vmem:[#allocation25 + $0x178] sm:$0xff]
          %v9328 = vld [vmem:[#allocation25 + $0x180] sm:$0xff]
          %v9329 = vld [vmem:[#allocation25 + $0x188] sm:$0xff]
          %v9330 = vld [vmem:[#allocation25 + $0x190] sm:$0xff]
          %v9331 = vld [vmem:[#allocation25 + $0x198] sm:$0xff]
          %v9332 = vld [vmem:[#allocation25 + $0x1a0] sm:$0xff]
          %v9333 = vld [vmem:[#allocation25 + $0x1a8] sm:$0xff]
          %v9334 = vld [vmem:[#allocation25 + $0x1b0] sm:$0xff]
          %v9335 = vld [vmem:[#allocation25 + $0x1b8] sm:$0xff]
          %v9336 = vld [vmem:[#allocation25 + $0x1c0] sm:$0xff]
          %v9337 = vld [vmem:[#allocation25 + $0x1c8] sm:$0xff]
          %v9338 = vld [vmem:[#allocation25 + $0x1d0] sm:$0xff]
          %v9339 = vld [vmem:[#allocation25 + $0x1d8] sm:$0xff]
          %v9340 = vld [vmem:[#allocation25 + $0x1e0] sm:$0xff]
          %v9341 = vld [vmem:[#allocation25 + $0x1e8] sm:$0xff]
          %v9342 = vld [vmem:[#allocation25 + $0x1f0] sm:$0xff]
          %v9343 = vld [vmem:[#allocation25 + $0x1f8] sm:$0xff]
          %v9344 = vld [vmem:[#allocation25 + $0x200] sm:$0xff]
          %v9345 = vld [vmem:[#allocation25 + $0x208] sm:$0xff]
          %v9346 = vld [vmem:[#allocation25 + $0x210] sm:$0xff]
          %v9347 = vld [vmem:[#allocation25 + $0x218] sm:$0xff]
          %v9348 = vld [vmem:[#allocation25 + $0x220] sm:$0xff]
          %v9349 = vld [vmem:[#allocation25 + $0x228] sm:$0xff]
          %v9350 = vld [vmem:[#allocation25 + $0x230] sm:$0xff]
          %v9351 = vld [vmem:[#allocation25 + $0x238] sm:$0xff]
          %v9352 = vld [vmem:[#allocation25 + $0x240] sm:$0xff]
          %v9353 = vld [vmem:[#allocation25 + $0x248] sm:$0xff]
          %v9354 = vld [vmem:[#allocation25 + $0x250] sm:$0xff]
          %v9355 = vld [vmem:[#allocation25 + $0x258] sm:$0xff]
          %v9356 = vld [vmem:[#allocation25 + $0x260] sm:$0xff]
          %v9357 = vld [vmem:[#allocation25 + $0x268] sm:$0xff]
          %v9358 = vld [vmem:[#allocation25 + $0x270] sm:$0xff]
          %v9359 = vld [vmem:[#allocation25 + $0x278] sm:$0xff]
          %v9360 = vld [vmem:[#allocation25 + $0x280] sm:$0xff]
          %v9361 = vld [vmem:[#allocation25 + $0x288] sm:$0xff]
          %v9362 = vld [vmem:[#allocation25 + $0x290] sm:$0xff]
          %v9363 = vld [vmem:[#allocation25 + $0x298] sm:$0xff]
          %v9364 = vld [vmem:[#allocation25 + $0x2a0] sm:$0xff]
          %v9365 = vld [vmem:[#allocation25 + $0x2a8] sm:$0xff]
          %v9366 = vld [vmem:[#allocation25 + $0x2b0] sm:$0xff]
          %v9367 = vld [vmem:[#allocation25 + $0x2b8] sm:$0xff]
          %v9368 = vld [vmem:[#allocation25 + $0x2c0] sm:$0xff]
          %v9369 = vld [vmem:[#allocation25 + $0x2c8] sm:$0xff]
          %v9370 = vld [vmem:[#allocation25 + $0x2d0] sm:$0xff]
          %v9371 = vld [vmem:[#allocation25 + $0x2d8] sm:$0xff]
          %v9372 = vld [vmem:[#allocation25 + $0x2e0] sm:$0xff]
          %v9373 = vld [vmem:[#allocation25 + $0x2e8] sm:$0xff]
          %v9374 = vld [vmem:[#allocation25 + $0x2f0] sm:$0xff]
          %v9375 = vld [vmem:[#allocation25 + $0x2f8] sm:$0xff]
          %v9376 = vld [vmem:[#allocation26] sm:$0x1]
          %v9378 = vlaneseq
          %v9379 = vshrl.u32 %v9378, 7
          %v9380 = vsub.s32 0, %v9379
          %v9381 = vrot.slane %v9376, %v9380
          %9383 = vmatprep.subr.mxu0 0.0
          %9384 = vmatpush1.msra.mxu0 %v9295
          %9385 = vmatprep.subr.mxu0 0.0
          %9386 = vmatpush1.msra.mxu0 %v9294
          %9387 = vmatprep.subr.mxu0 0.0
          %9388 = vmatpush1.msra.mxu0 %v9293
          %9389 = vmatprep.subr.mxu0 0.0
          %9390 = vmatpush1.msra.mxu0 %v9292
          %9391 = vmatprep.subr.mxu0 0.0
          %9392 = vmatpush1.msra.mxu0 %v9291
          %9393 = vmatprep.subr.mxu0 0.0
          %9394 = vmatpush1.msra.mxu0 %v9290
          %9395 = vmatprep.subr.mxu0 0.0
          %9396 = vmatpush1.msra.mxu0 %v9289
          %9397 = vmatprep.subr.mxu0 0.0
          %9398 = vmatpush1.msra.mxu0 %v9288
          %9399 = vmatprep.subr.mxu0 0.0
          %9400 = vmatpush1.msra.mxu0 %v9287
          %9401 = vmatprep.subr.mxu0 0.0
          %9402 = vmatpush1.msra.mxu0 %v9286
          %9403 = vmatprep.subr.mxu0 0.0
          %9404 = vmatpush1.msra.mxu0 %v9285
          %9405 = vmatprep.subr.mxu0 0.0
          %9406 = vmatpush1.msra.mxu0 %v9284
          %9407 = vmatprep.subr.mxu0 0.0
          %9408 = vmatpush1.msra.mxu0 %v9283
          %9409 = vmatprep.subr.mxu0 0.0
          %9410 = vmatpush1.msra.mxu0 %v9282
          %9411 = vmatprep.subr.mxu0 0.0
          %9412 = vmatpush1.msra.mxu0 %v9281
          %9413 = vmatprep.subr.mxu0 0.0
          %9414 = vmatpush1.msra.mxu0 %v9280
          %9415 = vmatprep.subr.mxu0 0.0
          %9416 = vmatpush2.msra.mxu0 %v9311
          %9417 = vmatprep.subr.mxu0 0.0
          %9418 = vmatpush2.msra.mxu0 %v9310
          %9419 = vmatprep.subr.mxu0 0.0
          %9420 = vmatpush2.msra.mxu0 %v9309
          %9421 = vmatprep.subr.mxu0 0.0
          %9422 = vmatpush2.msra.mxu0 %v9308
          %9423 = vmatprep.subr.mxu0 0.0
          %9424 = vmatpush2.msra.mxu0 %v9307
          %9425 = vmatprep.subr.mxu0 0.0
          %9426 = vmatpush2.msra.mxu0 %v9306
          %9427 = vmatprep.subr.mxu0 0.0
          %9428 = vmatpush2.msra.mxu0 %v9305
          %9429 = vmatprep.subr.mxu0 0.0
          %9430 = vmatpush2.msra.mxu0 %v9304
          %9431 = vmatprep.subr.mxu0 0.0
          %9432 = vmatpush2.msra.mxu0 %v9303
          %9433 = vmatprep.subr.mxu0 0.0
          %9434 = vmatpush2.msra.mxu0 %v9302
          %9435 = vmatprep.subr.mxu0 0.0
          %9436 = vmatpush2.msra.mxu0 %v9301
          %9437 = vmatprep.subr.mxu0 0.0
          %9438 = vmatpush2.msra.mxu0 %v9300
          %9439 = vmatprep.subr.mxu0 0.0
          %9440 = vmatpush2.msra.mxu0 %v9299
          %9441 = vmatprep.subr.mxu0 0.0
          %9442 = vmatpush2.msra.mxu0 %v9298
          %9443 = vmatprep.subr.mxu0 0.0
          %9444 = vmatpush2.msra.mxu0 %v9297
          %9445 = vmatprep.subr.mxu0 0.0
          %9446 = vmatpush2.msra.mxu0 %v9296
          %9447 = vmatprep.mubr.f32.mxu0 %v9275
          %9448 = vmatmul.mubr.f32.gmra.mxu0 %v9274
          %v9449 = vpop.f32.mrf.mxu0
          %v9450 = vadd.f32 %v9381, %v9449
          %v9451 = vpop.f32.mrf.mxu0
          %9452 = vdwg.mxu0
          %9453 = vmatprep.subr.mxu0 0.0
          %9454 = vmatpush1.msra.mxu0 %v9327
          %9455 = vmatprep.subr.mxu0 0.0
          %9456 = vmatpush1.msra.mxu0 %v9326
          %9457 = vmatprep.subr.mxu0 0.0
          %9458 = vmatpush1.msra.mxu0 %v9325
          %9459 = vmatprep.subr.mxu0 0.0
          %9460 = vmatpush1.msra.mxu0 %v9324
          %9461 = vmatprep.subr.mxu0 0.0
          %9462 = vmatpush1.msra.mxu0 %v9323
          %9463 = vmatprep.subr.mxu0 0.0
          %9464 = vmatpush1.msra.mxu0 %v9322
          %9465 = vmatprep.subr.mxu0 0.0
          %9466 = vmatpush1.msra.mxu0 %v9321
          %9467 = vmatprep.subr.mxu0 0.0
          %9468 = vmatpush1.msra.mxu0 %v9320
          %9469 = vmatprep.subr.mxu0 0.0
          %9470 = vmatpush1.msra.mxu0 %v9319
          %9471 = vmatprep.subr.mxu0 0.0
          %9472 = vmatpush1.msra.mxu0 %v9318
          %9473 = vmatprep.subr.mxu0 0.0
          %9474 = vmatpush1.msra.mxu0 %v9317
          %9475 = vmatprep.subr.mxu0 0.0
          %9476 = vmatpush1.msra.mxu0 %v9316
          %9477 = vmatprep.subr.mxu0 0.0
          %9478 = vmatpush1.msra.mxu0 %v9315
          %9479 = vmatprep.subr.mxu0 0.0
          %9480 = vmatpush1.msra.mxu0 %v9314
          %9481 = vmatprep.subr.mxu0 0.0
          %9482 = vmatpush1.msra.mxu0 %v9313
          %9483 = vmatprep.subr.mxu0 0.0
          %9484 = vmatpush1.msra.mxu0 %v9312
          %9485 = vmatprep.subr.mxu0 0.0
          %9486 = vmatpush2.msra.mxu0 %v9343
          %9487 = vmatprep.subr.mxu0 0.0
          %9488 = vmatpush2.msra.mxu0 %v9342
          %9489 = vmatprep.subr.mxu0 0.0
          %9490 = vmatpush2.msra.mxu0 %v9341
          %9491 = vmatprep.subr.mxu0 0.0
          %9492 = vmatpush2.msra.mxu0 %v9340
          %9493 = vmatprep.subr.mxu0 0.0
          %9494 = vmatpush2.msra.mxu0 %v9339
          %9495 = vmatprep.subr.mxu0 0.0
          %9496 = vmatpush2.msra.mxu0 %v9338
          %9497 = vmatprep.subr.mxu0 0.0
          %9498 = vmatpush2.msra.mxu0 %v9337
          %9499 = vmatprep.subr.mxu0 0.0
          %9500 = vmatpush2.msra.mxu0 %v9336
          %9501 = vmatprep.subr.mxu0 0.0
          %9502 = vmatpush2.msra.mxu0 %v9335
          %9503 = vmatprep.subr.mxu0 0.0
          %9504 = vmatpush2.msra.mxu0 %v9334
          %9505 = vmatprep.subr.mxu0 0.0
          %9506 = vmatpush2.msra.mxu0 %v9333
          %9507 = vmatprep.subr.mxu0 0.0
          %9508 = vmatpush2.msra.mxu0 %v9332
          %9509 = vmatprep.subr.mxu0 0.0
          %9510 = vmatpush2.msra.mxu0 %v9331
          %9511 = vmatprep.subr.mxu0 0.0
          %9512 = vmatpush2.msra.mxu0 %v9330
          %9513 = vmatprep.subr.mxu0 0.0
          %9514 = vmatpush2.msra.mxu0 %v9329
          %9515 = vmatprep.subr.mxu0 0.0
          %9516 = vmatpush2.msra.mxu0 %v9328
          %9517 = vmatprep.mubr.f32.mxu0 %v9277
          %9518 = vmatmul.mubr.f32.gmra.mxu0 %v9276
          %v9519 = vpop.f32.mrf.mxu0
          %v9520 = vadd.f32 %v9450, %v9519
          %v9521 = vpop.f32.mrf.mxu0
          %9522 = vdwg.mxu0
          %9523 = vmatprep.subr.mxu0 0.0
          %9524 = vmatpush1.msra.mxu0 %v9359
          %9525 = vmatprep.subr.mxu0 0.0
          %9526 = vmatpush1.msra.mxu0 %v9358
          %9527 = vmatprep.subr.mxu0 0.0
          %9528 = vmatpush1.msra.mxu0 %v9357
          %9529 = vmatprep.subr.mxu0 0.0
          %9530 = vmatpush1.msra.mxu0 %v9356
          %9531 = vmatprep.subr.mxu0 0.0
          %9532 = vmatpush1.msra.mxu0 %v9355
          %9533 = vmatprep.subr.mxu0 0.0
          %9534 = vmatpush1.msra.mxu0 %v9354
          %9535 = vmatprep.subr.mxu0 0.0
          %9536 = vmatpush1.msra.mxu0 %v9353
          %9537 = vmatprep.subr.mxu0 0.0
          %9538 = vmatpush1.msra.mxu0 %v9352
          %9539 = vmatprep.subr.mxu0 0.0
          %9540 = vmatpush1.msra.mxu0 %v9351
          %9541 = vmatprep.subr.mxu0 0.0
          %9542 = vmatpush1.msra.mxu0 %v9350
          %9543 = vmatprep.subr.mxu0 0.0
          %9544 = vmatpush1.msra.mxu0 %v9349
          %9545 = vmatprep.subr.mxu0 0.0
          %9546 = vmatpush1.msra.mxu0 %v9348
          %9547 = vmatprep.subr.mxu0 0.0
          %9548 = vmatpush1.msra.mxu0 %v9347
          %9549 = vmatprep.subr.mxu0 0.0
          %9550 = vmatpush1.msra.mxu0 %v9346
          %9551 = vmatprep.subr.mxu0 0.0
          %9552 = vmatpush1.msra.mxu0 %v9345
          %9553 = vmatprep.subr.mxu0 0.0
          %9554 = vmatpush1.msra.mxu0 %v9344
          %9555 = vmatprep.subr.mxu0 0.0
          %9556 = vmatpush2.msra.mxu0 %v9375
          %9557 = vmatprep.subr.mxu0 0.0
          %9558 = vmatpush2.msra.mxu0 %v9374
          %9559 = vmatprep.subr.mxu0 0.0
          %9560 = vmatpush2.msra.mxu0 %v9373
          %9561 = vmatprep.subr.mxu0 0.0
          %9562 = vmatpush2.msra.mxu0 %v9372
          %9563 = vmatprep.subr.mxu0 0.0
          %9564 = vmatpush2.msra.mxu0 %v9371
          %9565 = vmatprep.subr.mxu0 0.0
          %9566 = vmatpush2.msra.mxu0 %v9370
          %9567 = vmatprep.subr.mxu0 0.0
          %9568 = vmatpush2.msra.mxu0 %v9369
          %9569 = vmatprep.subr.mxu0 0.0
          %9570 = vmatpush2.msra.mxu0 %v9368
          %9571 = vmatprep.subr.mxu0 0.0
          %9572 = vmatpush2.msra.mxu0 %v9367
          %9573 = vmatprep.subr.mxu0 0.0
          %9574 = vmatpush2.msra.mxu0 %v9366
          %9575 = vmatprep.subr.mxu0 0.0
          %9576 = vmatpush2.msra.mxu0 %v9365
          %9577 = vmatprep.subr.mxu0 0.0
          %9578 = vmatpush2.msra.mxu0 %v9364
          %9579 = vmatprep.subr.mxu0 0.0
          %9580 = vmatpush2.msra.mxu0 %v9363
          %9581 = vmatprep.subr.mxu0 0.0
          %9582 = vmatpush2.msra.mxu0 %v9362
          %9583 = vmatprep.subr.mxu0 0.0
          %9584 = vmatpush2.msra.mxu0 %v9361
          %9585 = vmatprep.subr.mxu0 0.0
          %9586 = vmatpush2.msra.mxu0 %v9360
          %9587 = vmatprep.mubr.f32.mxu0 %v9279
          %9588 = vmatmul.mubr.f32.gmra.mxu0 %v9278
          %v9589 = vpop.f32.mrf.mxu0
          %v9590 = vadd.f32 %v9520, %v9589
          %v9591 = vpop.f32.mrf.mxu0
          %9592 = vdwg.mxu0
          %9593 = vst [vmem:[#allocation28] sm:$0x3] %v9590
        $region160: #{tpu_custom_call.1} parent=87 // pred_fallthru
          _
        // Predicated region
        $region161: #{tpu_custom_call.1} parent=87 // pred_check
          %p9594 = pneg %p422
        $region162: #{tpu_custom_call.1} parent=87 // pred_check_branch
          %9596 = sbr.rel (%p9594) target = $region164
        $region163: #{tpu_custom_call.1} parent=87 // pred_region
          %s9598 = ssub.s32 32, 32
          %9599 = vsyncadd [#allocation7], %s9598
          %s9601 = sshll.u32 [#allocation28], 4
          %s9602 = int_to_ptr.vmem [resolvable:$true] %s9601
          %9604 = dma.vmem_to_hbm [thread:$0]  %s9602, 32, %s17, [#allocation7]
        $region164: #{tpu_custom_call.1} parent=87 // pred_fallthru
          _
        // Predicated region
        $region165: #{tpu_custom_call.1} parent=87 // pred_check
          %p9605 = pneg %p422
        $region166: #{tpu_custom_call.1} parent=87 // pred_check_branch
          %9607 = sbr.rel (%p9605) target = $region168
        $region167: #{tpu_custom_call.1} parent=87 // pred_region
          %9608 = dma.done [#allocation7], 32
        $region168: #{tpu_custom_call.1} parent=87 // pred_fallthru
          _
      $region88: #{tpu_custom_call.1} parent=5 // pred_fallthru
        _
      %p9609 = scmp.le.s32.totalorder 2, %s32
      // Predicated region
      $region169: #{tpu_custom_call.1} parent=5 // pred_check
        %p9610 = pneg %p9609
      $region170: #{tpu_custom_call.1} parent=5 // pred_check_branch
        %9612 = sbr.rel (%p9610) target = $region172
      $region171: #{tpu_custom_call.1} parent=5 // pred_region
        %s9613 = ssub.s32 %s32, 2
      $region172: #{tpu_custom_call.1} parent=5 // pred_fallthru
        _
    $region6: #{tpu_custom_call.1} parent=1 // loop_footer
      %s36 = sadd.s32 1, %s32
    $region7: #{tpu_custom_call.1} parent=1 // loop_footer_branch
      %31 = sbr.rel target = $region3
    $region8: #{tpu_custom_call.1} parent=1 // loop_exit
      _
    %9614 = vsyncpa [#allocation6], 1
    %s9615 = scalar_lea.sflag [#allocation6], 1
    %9616 = vsyncpa %s9615, 1
    %9617 = vsyncpa [#allocation9], 1
    %9618 = vsyncpa [#allocation12], 1
    %9619 = vsyncpa [#allocation15], 1
    %9620 = vsyncpa [#allocation18], 1
    %9621 = vsyncpa [#allocation27], 1
    %9622 = vsyncpa [#allocation7], 1
    %s9623 = scalar_lea.sflag [#allocation7], 1
    %9624 = vsyncpa %s9623, 1

</llo_original>
